<compile_context>
chip_gen: v7x
topology: tpu7x:2x2x1
jax: 0.10.0
libtpu: 0.0.40
codegen_flags: <defaults>
</compile_context>

<pallas_src>
import jax
import jax.numpy as jnp
from jax.experimental import pallas as pl
from jax.experimental.pallas import tpu as pltpu

# ---- hyperparameters mirroring training.py module-level constants ----
N_EMBED = 384
N_HEAD = 4
N_LAYER = 4
BLOCK_SIZE = 128
HEAD_SIZE = N_EMBED // N_HEAD          # 96 (real head size; softmax scale)
HP = 128                               # padded head size (lane-aligned)
LN_EPS = 1e-5                          # PyTorch nn.LayerNorm default eps
INIT_STD = 0.02
NEG_INF = -1e30                        # finite mask value (NaN-safe)


# --------------------------------------------------------------------------
# in-kernel helpers
# --------------------------------------------------------------------------
def _layernorm(y, g, b):
    """LayerNorm over the last axis (biased variance, like torch)."""
    mean = jnp.mean(y, axis=-1, keepdims=True)
    var = jnp.mean((y - mean) ** 2, axis=-1, keepdims=True)
    return (y - mean) * jax.lax.rsqrt(var + LN_EPS) * g + b


# --------------------------------------------------------------------------
# Pallas kernels
# --------------------------------------------------------------------------
def gpt_blocks_kernel(x_ref,
                      wqkv_ref, wproj_ref, bp_ref,
                      w1_ref, b1_ref, w2_ref, b2_ref,
                      ln1g_ref, ln1b_ref, ln2g_ref, ln2b_ref,
                      o_ref, x_scr):
    """All transformer layers for one batch block.

    grid = (batch_blocks, n_layer). x_scr (VMEM, f32) holds the running
    activation across the layer axis; weights are the current layer's blocks.
    """
    layer = pl.program_id(1)

    @pl.when(layer == 0)
    def _():
        x_scr[...] = x_ref[...]

    BB, T, C = x_scr.shape
    M = BB * T

    x2 = x_scr[...].reshape(M, C)                       # f32 (M, C)
    x_bf = x2.astype(jnp.bfloat16)

    # --- fused QKV projection: one lane-aligned MXU matmul ---------------
    # layout: [q_h0..q_h3, k_h0..k_h3, v_h0..v_h3], each head 128-wide
    qkv = jnp.dot(x_bf, wqkv_ref[...],
                  preferred_element_type=jnp.float32)   # (M, 3*N_HEAD*HP)

    # causal mask (tril), shared by all heads / batch rows
    row = jax.lax.broadcasted_iota(jnp.int32, (T, T), 0)
    col = jax.lax.broadcasted_iota(jnp.int32, (T, T), 1)
    causal = (row >= col)[None]                         # (1, T, T)

    scale = HEAD_SIZE ** -0.5                           # k.shape[-1] ** -0.5

    # --- multi-head attention; concat folded into output projection ------
    sa = jnp.zeros((M, C), jnp.float32)
    for h in range(N_HEAD):
        q = qkv[:, h * HP:(h + 1) * HP]
        k = qkv[:, (N_HEAD + h) * HP:(N_HEAD + h + 1) * HP]
        v = qkv[:, (2 * N_HEAD + h) * HP:(2 * N_HEAD + h + 1) * HP]
        q = q.reshape(BB, T, HP).astype(jnp.bfloat16)
        k = k.reshape(BB, T, HP).astype(jnp.bfloat16)
        v = v.reshape(BB, T, HP).astype(jnp.bfloat16)

        wei = jnp.einsum("bqd,bkd->bqk", q, k,
                         preferred_element_type=jnp.float32) * scale
        wei = jnp.where(causal, wei, NEG_INF)
        m = jnp.max(wei, axis=-1, keepdims=True)
        e = jnp.exp(wei - m)
        denom = jnp.sum(e, axis=-1, keepdims=True)
        p = e * pl.reciprocal(denom, approx=True)       # softmax (f32)
        # dropout on attention weights omitted (eval semantics)

        out_h = jnp.einsum("bqk,bkd->bqd", p.astype(jnp.bfloat16), v,
                           preferred_element_type=jnp.float32)  # (BB,T,HP)
        sa = sa + jnp.dot(out_h.reshape(M, HP).astype(jnp.bfloat16),
                          wproj_ref[h * HP:(h + 1) * HP, :],
                          preferred_element_type=jnp.float32)
    sa = sa + bp_ref[...]
    # dropout on projection output omitted (eval semantics)

    # --- residual + ln1, feed-forward, residual + ln2 (post-LN Block) ----
    xn1 = _layernorm(x2 + sa, ln1g_ref[...], ln1b_ref[...])
    h1 = jnp.maximum(
        jnp.dot(xn1.astype(jnp.bfloat16), w1_ref[...],
                preferred_element_type=jnp.float32) + b1_ref[...], 0.0)
    ff = jnp.dot(h1.astype(jnp.bfloat16), w2_ref[...],
                 preferred_element_type=jnp.float32) + b2_ref[...]
    # dropout inside FFN omitted (eval semantics)
    y = _layernorm(xn1 + ff, ln2g_ref[...], ln2b_ref[...])

    x_scr[...] = y.reshape(x_scr.shape)

    @pl.when(layer == pl.num_programs(1) - 1)
    def _():
        o_ref[...] = x_scr[...]


def lm_head_kernel(x_ref, g_ref, b_ref, w_ref, bias_ref, o_ref):
    """Final LayerNorm + (vocab-tiled) vocabulary projection."""
    BB, T, C = x_ref.shape
    x2 = x_ref[...].reshape(BB * T, C)
    xn = _layernorm(x2, g_ref[...], b_ref[...])
    y = jnp.dot(xn.astype(jnp.bfloat16), w_ref[...],
                preferred_element_type=jnp.float32) + bias_ref[...]
    o_ref[...] = y.reshape(o_ref.shape)


# --------------------------------------------------------------------------
# wrappers calling pallas_call
# --------------------------------------------------------------------------
def _choose_batch_block(B, T, target_rows=256):
    bb = max(1, min(B, max(1, target_rows // T)))
    while B % bb != 0:
        bb -= 1
    return bb


def run_blocks(x, p):
    B, T, C = x.shape
    bb = _choose_batch_block(B, T)
    nb = B // bb
    L = p["wqkv"].shape[0]

    def wspec(arr):
        shp = arr.shape[1:]
        nd = len(shp)
        return pl.BlockSpec((None,) + shp,
                            lambda b, l, _nd=nd: (l,) + (0,) * _nd)

    weights = [p["wqkv"], p["wproj"], p["bp"],
               p["w1"], p["b1"], p["w2"], p["b2"],
               p["ln1g"], p["ln1b"], p["ln2g"], p["ln2b"]]
    in_specs = ([pl.BlockSpec((bb, T, C), lambda b, l: (b, 0, 0))]
                + [wspec(w) for w in weights])

    return pl.pallas_call(
        gpt_blocks_kernel,
        out_shape=jax.ShapeDtypeStruct((B, T, C), jnp.float32),
        grid=(nb, L),
        in_specs=in_specs,
        out_specs=pl.BlockSpec((bb, T, C), lambda b, l: (b, 0, 0)),
        scratch_shapes=[pltpu.VMEM((bb, T, C), jnp.float32)],
        compiler_params=pltpu.CompilerParams(
            dimension_semantics=("parallel", "arbitrary")),
    )(x, *weights)


def run_lm_head(x, p):
    B, T, C = x.shape
    Vp = p["lm_w"].shape[1]                 # padded vocab (multiple of 128)
    bb = _choose_batch_block(B, T)
    nb = B // bb
    tv = min(Vp, 2048)
    while Vp % tv != 0:
        tv -= 128
    nv = Vp // tv

    in_specs = [
        pl.BlockSpec((bb, T, C), lambda b, v: (b, 0, 0)),
        pl.BlockSpec((1, C), lambda b, v: (0, 0)),
        pl.BlockSpec((1, C), lambda b, v: (0, 0)),
        pl.BlockSpec((C, tv), lambda b, v: (0, v)),
        pl.BlockSpec((1, tv), lambda b, v: (0, v)),
    ]
    return pl.pallas_call(
        lm_head_kernel,
        out_shape=jax.ShapeDtypeStruct((B, T, Vp), jnp.float32),
        grid=(nb, nv),
        in_specs=in_specs,
        out_specs=pl.BlockSpec((bb, T, tv), lambda b, v: (b, 0, v)),
        compiler_params=pltpu.CompilerParams(
            dimension_semantics=("parallel", "parallel")),
    )(x, p["lnf_g"], p["lnf_b"], p["lm_w"], p["lm_b"])


def gpt_forward(index, prep, vocab_size):
    """GPTLanguageModel.forward(index, targets=None) -> logits."""
    B, T = index.shape
    tok_emb = jnp.take(prep["tok_emb"], index, axis=0)          # (B, T, C)
    pos_emb = prep["pos_emb"][:T]                                # (T, C)
    x = (tok_emb + pos_emb[None, :, :]).astype(jnp.float32)
    x = run_blocks(x, prep)
    logits_pad = run_lm_head(x, prep)                            # (B, T, Vp)
    return logits_pad[:, :, :vocab_size]
    # TODO(synk): cross-entropy loss branch (targets is not None) and
    # autoregressive generate() are not ported; this covers targets=None.


# --------------------------------------------------------------------------
# parameter preparation: repack torch-layout params for the kernels
# --------------------------------------------------------------------------
def prepare_params(params):
    pad = HP - HEAD_SIZE

    def pad_qkv_cols(w):            # (C, C) -> (C, N_HEAD*HP), head-padded
        w = w.reshape(N_EMBED, N_HEAD, HEAD_SIZE)
        w = jnp.pad(w, ((0, 0), (0, 0), (0, pad)))
        return w.reshape(N_EMBED, N_HEAD * HP)

    def pad_proj_rows(w):           # (C, C) -> (N_HEAD*HP, C), head-padded
        w = w.reshape(N_HEAD, HEAD_SIZE, N_EMBED)
        w = jnp.pad(w, ((0, 0), (0, pad), (0, 0)))
        return w.reshape(N_HEAD * HP, N_EMBED)

    wqkv, wproj = [], []
    bp, w1, b1, w2, b2 = [], [], [], [], []
    ln1g, ln1b, ln2g, ln2b = [], [], [], []
    for blk in params["blocks"]:
        wqkv.append(jnp.concatenate(
            [pad_qkv_cols(blk["wq"]), pad_qkv_cols(blk["wk"]),
             pad_qkv_cols(blk["wv"])], axis=1))
        wproj.append(pad_proj_rows(blk["wp"]))
        bp.append(blk["bp"]); w1.append(blk["w1"]); b1.append(blk["b1"])
        w2.append(blk["w2"]); b2.append(blk["b2"])
        ln1g.append(blk["ln1g"]); ln1b.append(blk["ln1b"])
        ln2g.append(blk["ln2g"]); ln2b.append(blk["ln2b"])

    V = params["lm_w"].shape[1]
    Vp = ((V + 127) // 128) * 128                  # lane-dense vocab padding
    lm_w = jnp.pad(params["lm_w"], ((0, 0), (0, Vp - V)))
    lm_b = jnp.pad(params["lm_b"], ((0, 0), (0, Vp - V)))

    return {
        "tok_emb": params["tok_emb"],
        "pos_emb": params["pos_emb"],
        # stacked (n_layer, ...) weights; big matmul weights in bf16
        "wqkv": jnp.stack(wqkv).astype(jnp.bfloat16),   # (L, C, 3*H*HP)
        "wproj": jnp.stack(wproj).astype(jnp.bfloat16),  # (L, H*HP, C)
        "bp": jnp.stack(bp),                             # (L, 1, C) f32
        "w1": jnp.stack(w1).astype(jnp.bfloat16),        # (L, C, 4C)
        "b1": jnp.stack(b1),                             # (L, 1, 4C)
        "w2": jnp.stack(w2).astype(jnp.bfloat16),        # (L, 4C, C)
        "b2": jnp.stack(b2),                             # (L, 1, C)
        "ln1g": jnp.stack(ln1g), "ln1b": jnp.stack(ln1b),
        "ln2g": jnp.stack(ln2g), "ln2b": jnp.stack(ln2b),
        "lnf_g": params["lnf_g"], "lnf_b": params["lnf_b"],
        "lm_w": lm_w.astype(jnp.bfloat16),               # (C, Vp)
        "lm_b": lm_b,                                    # (1, Vp) f32
    }


# --------------------------------------------------------------------------
# pure-JAX f32 reference (for correctness check only)
# --------------------------------------------------------------------------
def ref_forward(index, params):
    B, T = index.shape
    x = jnp.take(params["tok_emb"], index, axis=0) + params["pos_emb"][:T][None]
    hs = N_EMBED // N_HEAD
    causal = jnp.tril(jnp.ones((T, T), dtype=bool))
    for blk in params["blocks"]:
        outs = []
        for h in range(N_HEAD):
            sl = slice(h * hs, (h + 1) * hs)
            q = x @ blk["wq"][:, sl]
            k = x @ blk["wk"][:, sl]
            v = x @ blk["wv"][:, sl]
            wei = jnp.einsum("btd,bsd->bts", q, k) * (hs ** -0.5)
            wei = jnp.where(causal[None], wei, -jnp.inf)
            wei = jax.nn.softmax(wei, axis=-1)
            outs.append(jnp.einsum("bts,bsd->btd", wei, v))
        sa = jnp.concatenate(outs, axis=-1) @ blk["wp"] + blk["bp"]
        X = _layernorm(x + sa, blk["ln1g"], blk["ln1b"])
        ff = jnp.maximum(X @ blk["w1"] + blk["b1"], 0.0) @ blk["w2"] + blk["b2"]
        x = _layernorm(X + ff, blk["ln2g"], blk["ln2b"])
    x = _layernorm(x, params["lnf_g"], params["lnf_b"])
    return x @ params["lm_w"] + params["lm_b"]


# --------------------------------------------------------------------------
# deterministic parameter init (shapes match the torch module's __init__)
# --------------------------------------------------------------------------
def init_params(key, vocab_size):
    n_keys = 2 + N_LAYER * 6 + 1
    keys = iter(jax.random.split(key, n_keys))

    def normal(k, shape):
        return (INIT_STD * jax.random.normal(k, shape)).astype(jnp.float32)

    params = {
        "tok_emb": normal(next(keys), (vocab_size, N_EMBED)),
        "pos_emb": normal(next(keys), (BLOCK_SIZE, N_EMBED)),
        "blocks": [],
        "lnf_g": jnp.ones((1, N_EMBED), jnp.float32),
        "lnf_b": jnp.zeros((1, N_EMBED), jnp.float32),
    }
    for _ in range(N_LAYER):
        blk = {
            # weights stored (in, out); qkv output cols head-major
            "wq": normal(next(keys), (N_EMBED, N_EMBED)),
            "wk": normal(next(keys), (N_EMBED, N_EMBED)),
            "wv": normal(next(keys), (N_EMBED, N_EMBED)),
            "wp": normal(next(keys), (N_EMBED, N_EMBED)),
            "bp": jnp.zeros((1, N_EMBED), jnp.float32),
            "w1": normal(next(keys), (N_EMBED, 4 * N_EMBED)),
            "b1": jnp.zeros((1, 4 * N_EMBED), jnp.float32),
            "w2": normal(next(keys), (4 * N_EMBED, N_EMBED)),
            "b2": jnp.zeros((1, N_EMBED), jnp.float32),
            "ln1g": jnp.ones((1, N_EMBED), jnp.float32),
            "ln1b": jnp.zeros((1, N_EMBED), jnp.float32),
            "ln2g": jnp.ones((1, N_EMBED), jnp.float32),
            "ln2b": jnp.zeros((1, N_EMBED), jnp.float32),
        }
        params["blocks"].append(blk)
    params["lm_w"] = normal(next(keys), (N_EMBED, vocab_size))
    params["lm_b"] = jnp.zeros((1, vocab_size), jnp.float32)
    return params


# --------------------------------------------------------------------------
if __name__ == "__main__":
    vocab_size = 65
    B, T = 2, 8          # small; T <= block_size (128)

    key = jax.random.PRNGKey(0)
    k_params, k_idx = jax.random.split(key)
    params = init_params(k_params, vocab_size)
    prep = prepare_params(params)
    index = jax.random.randint(k_idx, (B, T), 0, vocab_size, dtype=jnp.int32)

    logits = jax.block_until_ready(gpt_forward(index, prep, vocab_size))
    assert logits.shape == (B, T, vocab_size), logits.shape
    assert logits.dtype == jnp.float32

    ref = jax.block_until_ready(ref_forward(index, params))
    # kernel uses bf16 weights / bf16 matmul inputs / approx reciprocal,
    # reference is pure f32 -> allow a bf16-level tolerance.
    max_err = float(jnp.max(jnp.abs(logits - ref)))
    assert jnp.allclose(logits, ref, atol=2e-2, rtol=2e-2), max_err

    print("KERNEL_OK")
</pallas_src>

<mosaic_0001>
module attributes {stable_mosaic.version = 11 : i64} {
  func.func @gpt_blocks_kernel(%arg0: i32, %arg1: i32, %arg2: memref<2x8x384xf32, #tpu.memory_space<vmem>>, %arg3: memref<1x384x1536xbf16, #tpu.memory_space<vmem>>, %arg4: memref<1x512x384xbf16, #tpu.memory_space<vmem>>, %arg5: memref<1x1x384xf32, #tpu.memory_space<vmem>>, %arg6: memref<1x384x1536xbf16, #tpu.memory_space<vmem>>, %arg7: memref<1x1x1536xf32, #tpu.memory_space<vmem>>, %arg8: memref<1x1536x384xbf16, #tpu.memory_space<vmem>>, %arg9: memref<1x1x384xf32, #tpu.memory_space<vmem>>, %arg10: memref<1x1x384xf32, #tpu.memory_space<vmem>>, %arg11: memref<1x1x384xf32, #tpu.memory_space<vmem>>, %arg12: memref<1x1x384xf32, #tpu.memory_space<vmem>>, %arg13: memref<1x1x384xf32, #tpu.memory_space<vmem>>, %arg14: memref<2x8x384xf32, #tpu.memory_space<vmem>>, %arg15: memref<2x8x384xf32, #tpu.memory_space<vmem>>) attributes {dimension_semantics = [#tpu.dimension_semantics<parallel>, #tpu.dimension_semantics<arbitrary>], iteration_bounds = array<i64: 1, 4>, scalar_prefetch = 0 : i64, scratch_operands = 1 : i64, tpu.core_type = #tpu.core_type<tc>, window_params = [{transform_indices = @transform_0, window_bounds = array<i64: 2, 8, 384>}, {transform_indices = @transform_1, window_bounds = array<i64: 1, 384, 1536>}, {transform_indices = @transform_2, window_bounds = array<i64: 1, 512, 384>}, {transform_indices = @transform_3, window_bounds = array<i64: 1, 1, 384>}, {transform_indices = @transform_4, window_bounds = array<i64: 1, 384, 1536>}, {transform_indices = @transform_5, window_bounds = array<i64: 1, 1, 1536>}, {transform_indices = @transform_6, window_bounds = array<i64: 1, 1536, 384>}, {transform_indices = @transform_7, window_bounds = array<i64: 1, 1, 384>}, {transform_indices = @transform_8, window_bounds = array<i64: 1, 1, 384>}, {transform_indices = @transform_9, window_bounds = array<i64: 1, 1, 384>}, {transform_indices = @transform_10, window_bounds = array<i64: 1, 1, 384>}, {transform_indices = @transform_11, window_bounds = array<i64: 1, 1, 384>}, {transform_indices = @transform_12, window_bounds = array<i64: 2, 8, 384>}]} {
    %c0_i32 = arith.constant 0 : i32
    %0 = arith.cmpi eq, %arg1, %c0_i32 : i32
    %1 = arith.extui %0 : i1 to i32
    %c0_i32_0 = arith.constant 0 : i32
    %2 = arith.cmpi ne, %1, %c0_i32_0 : i32
    scf.if %2 {
      %c0_88 = arith.constant 0 : index
      %c0_89 = arith.constant 0 : index
      %c0_90 = arith.constant 0 : index
      %231 = vector.load %arg2[%c0_88, %c0_89, %c0_90] : memref<2x8x384xf32, #tpu.memory_space<vmem>>, vector<2x8x384xf32>
      %c0_91 = arith.constant 0 : index
      %c0_92 = arith.constant 0 : index
      %c0_93 = arith.constant 0 : index
      %232 = vector.load %arg15[%c0_91, %c0_92, %c0_93] : memref<2x8x384xf32, #tpu.memory_space<vmem>>, vector<2x8x384xf32>
      tpu.vector_store %arg15[%c0_91, %c0_92, %c0_93], %231 {strides = array<i32>} : memref<2x8x384xf32, #tpu.memory_space<vmem>>, vector<2x8x384xf32>,
    } else {
    }
    %c0 = arith.constant 0 : index
    %c0_1 = arith.constant 0 : index
    %c0_2 = arith.constant 0 : index
    %3 = vector.load %arg15[%c0, %c0_1, %c0_2] : memref<2x8x384xf32, #tpu.memory_space<vmem>>, vector<2x8x384xf32>
    %4 = vector.shape_cast %3 : vector<2x8x384xf32> to vector<16x384xf32>
    %5 = arith.truncf %4 : vector<16x384xf32> to vector<16x384xbf16>
    %c0_3 = arith.constant 0 : index
    %c0_4 = arith.constant 0 : index
    %c0_5 = arith.constant 0 : index
    %6 = vector.load %arg3[%c0_3, %c0_4, %c0_5] : memref<1x384x1536xbf16, #tpu.memory_space<vmem>>, vector<1x384x1536xbf16>
    %7 = vector.shape_cast %6 : vector<1x384x1536xbf16> to vector<384x1536xbf16>
    %cst = arith.constant dense<0.000000e+00> : vector<16x1536xf32>
    %8 = tpu.matmul %5, %7, %cst {dimension_numbers = #tpu.dot_dimension_numbers<[1], [0], [0], [1], [0, 0, 1, 1], [], []>} : vector<16x384xbf16>, vector<384x1536xbf16>, vector<16x1536xf32> -> vector<16x1536xf32>
    %9 = tpu.iota {dimensions = array<i32: 0>} : vector<8x8xi32>
    %10 = tpu.iota {dimensions = array<i32: 1>} : vector<8x8xi32>
    %11 = arith.cmpi sge, %9, %10 : vector<8x8xi32>
    %12 = vector.shape_cast %11 : vector<8x8xi1> to vector<1x8x8xi1>
    %cst_6 = arith.constant 0.000000e+00 : f32
    %13 = vector.broadcast %cst_6 : f32 to vector<16x384xf32>
    %14 = vector.extract_strided_slice %8 {offsets = [0, 0], sizes = [16, 128], strides = [1, 1]} : vector<16x1536xf32> to vector<16x128xf32>
    %15 = vector.extract_strided_slice %8 {offsets = [0, 512], sizes = [16, 128], strides = [1, 1]} : vector<16x1536xf32> to vector<16x128xf32>
    %16 = vector.extract_strided_slice %8 {offsets = [0, 1024], sizes = [16, 128], strides = [1, 1]} : vector<16x1536xf32> to vector<16x128xf32>
    %17 = vector.shape_cast %14 : vector<16x128xf32> to vector<2x8x128xf32>
    %18 = arith.truncf %17 : vector<2x8x128xf32> to vector<2x8x128xbf16>
    %19 = vector.shape_cast %15 : vector<16x128xf32> to vector<2x8x128xf32>
    %20 = arith.truncf %19 : vector<2x8x128xf32> to vector<2x8x128xbf16>
    %21 = vector.shape_cast %16 : vector<16x128xf32> to vector<2x8x128xf32>
    %22 = arith.truncf %21 : vector<2x8x128xf32> to vector<2x8x128xbf16>
    "tpu.trace_start"() <{level = 10 : i32, message = "bqd,bkd->bqk"}> : () -> ()
    %cst_7 = arith.constant dense<0.000000e+00> : vector<2x8x8xf32>
    %23 = tpu.matmul %18, %20, %cst_7 {dimension_numbers = #tpu.dot_dimension_numbers<[2], [2], [1], [1], [0, 0, 0, 1, 1, 1], [0], [0]>} : vector<2x8x128xbf16>, vector<2x8x128xbf16>, vector<2x8x8xf32> -> vector<2x8x8xf32>
    "tpu.trace_stop"() : () -> ()
    %cst_8 = arith.constant 0.102062076 : f32
    %24 = vector.broadcast %cst_8 : f32 to vector<2x8x8xf32>
    %25 = arith.mulf %23, %24 : vector<2x8x8xf32>
    %cst_9 = arith.constant -1.000000e+30 : f32
    %26 = vector.shape_cast %12 : vector<1x8x8xi1> to vector<1x8x8xi1>
    %27 = vector.broadcast %26 : vector<1x8x8xi1> to vector<2x8x8xi1>
    %28 = vector.broadcast %cst_9 : f32 to vector<2x8x8xf32>
    %29 = arith.select %27, %25, %28 : vector<2x8x8xi1>, vector<2x8x8xf32>
    %cst_10 = arith.constant dense<0xFF800000> : vector<2x8xf32>
    %30 = vector.multi_reduction <maximumf>, %29, %cst_10 [2] : vector<2x8x8xf32> to vector<2x8xf32>
    %31 = vector.shape_cast %30 : vector<2x8xf32> to vector<2x8x1xf32>
    %32 = vector.broadcast %31 : vector<2x8x1xf32> to vector<2x8x8xf32>
    %33 = arith.subf %29, %32 : vector<2x8x8xf32>
    %34 = math.exp %33 : vector<2x8x8xf32>
    %cst_11 = arith.constant dense<0.000000e+00> : vector<2x8xf32>
    %35 = vector.multi_reduction <add>, %34, %cst_11 [2] : vector<2x8x8xf32> to vector<2x8xf32>
    %36 = vector.shape_cast %35 : vector<2x8xf32> to vector<2x8x1xf32>
    %37 = tpu.reciprocal %36 {approx = true} : vector<2x8x1xf32> -> vector<2x8x1xf32>
    %38 = vector.broadcast %37 : vector<2x8x1xf32> to vector<2x8x8xf32>
    %39 = arith.mulf %34, %38 : vector<2x8x8xf32>
    %40 = arith.truncf %39 : vector<2x8x8xf32> to vector<2x8x8xbf16>
    "tpu.trace_start"() <{level = 10 : i32, message = "bqk,bkd->bqd"}> : () -> ()
    %cst_12 = arith.constant dense<0.000000e+00> : vector<2x8x128xf32>
    %41 = tpu.matmul %40, %22, %cst_12 {dimension_numbers = #tpu.dot_dimension_numbers<[2], [1], [1], [2], [0, 0, 0, 1, 1, 2], [0], [0]>} : vector<2x8x8xbf16>, vector<2x8x128xbf16>, vector<2x8x128xf32> -> vector<2x8x128xf32>
    "tpu.trace_stop"() : () -> ()
    %42 = vector.shape_cast %41 : vector<2x8x128xf32> to vector<16x128xf32>
    %43 = arith.truncf %42 : vector<16x128xf32> to vector<16x128xbf16>
    %c0_13 = arith.constant 0 : index
    %c0_14 = arith.constant 0 : index
    %c0_15 = arith.constant 0 : index
    %44 = vector.load %arg4[%c0_13, %c0_14, %c0_15] : memref<1x512x384xbf16, #tpu.memory_space<vmem>>, vector<1x128x384xbf16>
    %45 = vector.shape_cast %44 : vector<1x128x384xbf16> to vector<128x384xbf16>
    %cst_16 = arith.constant dense<0.000000e+00> : vector<16x384xf32>
    %46 = tpu.matmul %43, %45, %cst_16 {dimension_numbers = #tpu.dot_dimension_numbers<[1], [0], [0], [1], [0, 0, 1, 1], [], []>} : vector<16x128xbf16>, vector<128x384xbf16>, vector<16x384xf32> -> vector<16x384xf32>
    %47 = arith.addf %13, %46 : vector<16x384xf32>
    %48 = vector.extract_strided_slice %8 {offsets = [0, 128], sizes = [16, 128], strides = [1, 1]} : vector<16x1536xf32> to vector<16x128xf32>
    %49 = vector.extract_strided_slice %8 {offsets = [0, 640], sizes = [16, 128], strides = [1, 1]} : vector<16x1536xf32> to vector<16x128xf32>
    %50 = vector.extract_strided_slice %8 {offsets = [0, 1152], sizes = [16, 128], strides = [1, 1]} : vector<16x1536xf32> to vector<16x128xf32>
    %51 = vector.shape_cast %48 : vector<16x128xf32> to vector<2x8x128xf32>
    %52 = arith.truncf %51 : vector<2x8x128xf32> to vector<2x8x128xbf16>
    %53 = vector.shape_cast %49 : vector<16x128xf32> to vector<2x8x128xf32>
    %54 = arith.truncf %53 : vector<2x8x128xf32> to vector<2x8x128xbf16>
    %55 = vector.shape_cast %50 : vector<16x128xf32> to vector<2x8x128xf32>
    %56 = arith.truncf %55 : vector<2x8x128xf32> to vector<2x8x128xbf16>
    "tpu.trace_start"() <{level = 10 : i32, message = "bqd,bkd->bqk"}> : () -> ()
    %cst_17 = arith.constant dense<0.000000e+00> : vector<2x8x8xf32>
    %57 = tpu.matmul %52, %54, %cst_17 {dimension_numbers = #tpu.dot_dimension_numbers<[2], [2], [1], [1], [0, 0, 0, 1, 1, 1], [0], [0]>} : vector<2x8x128xbf16>, vector<2x8x128xbf16>, vector<2x8x8xf32> -> vector<2x8x8xf32>
    "tpu.trace_stop"() : () -> ()
    %cst_18 = arith.constant 0.102062076 : f32
    %58 = vector.broadcast %cst_18 : f32 to vector<2x8x8xf32>
    %59 = arith.mulf %57, %58 : vector<2x8x8xf32>
    %cst_19 = arith.constant -1.000000e+30 : f32
    %60 = vector.shape_cast %12 : vector<1x8x8xi1> to vector<1x8x8xi1>
    %61 = vector.broadcast %60 : vector<1x8x8xi1> to vector<2x8x8xi1>
    %62 = vector.broadcast %cst_19 : f32 to vector<2x8x8xf32>
    %63 = arith.select %61, %59, %62 : vector<2x8x8xi1>, vector<2x8x8xf32>
    %cst_20 = arith.constant dense<0xFF800000> : vector<2x8xf32>
    %64 = vector.multi_reduction <maximumf>, %63, %cst_20 [2] : vector<2x8x8xf32> to vector<2x8xf32>
    %65 = vector.shape_cast %64 : vector<2x8xf32> to vector<2x8x1xf32>
    %66 = vector.broadcast %65 : vector<2x8x1xf32> to vector<2x8x8xf32>
    %67 = arith.subf %63, %66 : vector<2x8x8xf32>
    %68 = math.exp %67 : vector<2x8x8xf32>
    %cst_21 = arith.constant dense<0.000000e+00> : vector<2x8xf32>
    %69 = vector.multi_reduction <add>, %68, %cst_21 [2] : vector<2x8x8xf32> to vector<2x8xf32>
    %70 = vector.shape_cast %69 : vector<2x8xf32> to vector<2x8x1xf32>
    %71 = tpu.reciprocal %70 {approx = true} : vector<2x8x1xf32> -> vector<2x8x1xf32>
    %72 = vector.broadcast %71 : vector<2x8x1xf32> to vector<2x8x8xf32>
    %73 = arith.mulf %68, %72 : vector<2x8x8xf32>
    %74 = arith.truncf %73 : vector<2x8x8xf32> to vector<2x8x8xbf16>
    "tpu.trace_start"() <{level = 10 : i32, message = "bqk,bkd->bqd"}> : () -> ()
    %cst_22 = arith.constant dense<0.000000e+00> : vector<2x8x128xf32>
    %75 = tpu.matmul %74, %56, %cst_22 {dimension_numbers = #tpu.dot_dimension_numbers<[2], [1], [1], [2], [0, 0, 0, 1, 1, 2], [0], [0]>} : vector<2x8x8xbf16>, vector<2x8x128xbf16>, vector<2x8x128xf32> -> vector<2x8x128xf32>
    "tpu.trace_stop"() : () -> ()
    %76 = vector.shape_cast %75 : vector<2x8x128xf32> to vector<16x128xf32>
    %77 = arith.truncf %76 : vector<16x128xf32> to vector<16x128xbf16>
    %c0_23 = arith.constant 0 : index
    %c128 = arith.constant 128 : index
    %c0_24 = arith.constant 0 : index
    %78 = vector.load %arg4[%c0_23, %c128, %c0_24] : memref<1x512x384xbf16, #tpu.memory_space<vmem>>, vector<1x128x384xbf16>
    %79 = vector.shape_cast %78 : vector<1x128x384xbf16> to vector<128x384xbf16>
    %cst_25 = arith.constant dense<0.000000e+00> : vector<16x384xf32>
    %80 = tpu.matmul %77, %79, %cst_25 {dimension_numbers = #tpu.dot_dimension_numbers<[1], [0], [0], [1], [0, 0, 1, 1], [], []>} : vector<16x128xbf16>, vector<128x384xbf16>, vector<16x384xf32> -> vector<16x384xf32>
    %81 = arith.addf %47, %80 : vector<16x384xf32>
    %82 = vector.extract_strided_slice %8 {offsets = [0, 256], sizes = [16, 128], strides = [1, 1]} : vector<16x1536xf32> to vector<16x128xf32>
    %83 = vector.extract_strided_slice %8 {offsets = [0, 768], sizes = [16, 128], strides = [1, 1]} : vector<16x1536xf32> to vector<16x128xf32>
    %84 = vector.extract_strided_slice %8 {offsets = [0, 1280], sizes = [16, 128], strides = [1, 1]} : vector<16x1536xf32> to vector<16x128xf32>
    %85 = vector.shape_cast %82 : vector<16x128xf32> to vector<2x8x128xf32>
    %86 = arith.truncf %85 : vector<2x8x128xf32> to vector<2x8x128xbf16>
    %87 = vector.shape_cast %83 : vector<16x128xf32> to vector<2x8x128xf32>
    %88 = arith.truncf %87 : vector<2x8x128xf32> to vector<2x8x128xbf16>
    %89 = vector.shape_cast %84 : vector<16x128xf32> to vector<2x8x128xf32>
    %90 = arith.truncf %89 : vector<2x8x128xf32> to vector<2x8x128xbf16>
    "tpu.trace_start"() <{level = 10 : i32, message = "bqd,bkd->bqk"}> : () -> ()
    %cst_26 = arith.constant dense<0.000000e+00> : vector<2x8x8xf32>
    %91 = tpu.matmul %86, %88, %cst_26 {dimension_numbers = #tpu.dot_dimension_numbers<[2], [2], [1], [1], [0, 0, 0, 1, 1, 1], [0], [0]>} : vector<2x8x128xbf16>, vector<2x8x128xbf16>, vector<2x8x8xf32> -> vector<2x8x8xf32>
    "tpu.trace_stop"() : () -> ()
    %cst_27 = arith.constant 0.102062076 : f32
    %92 = vector.broadcast %cst_27 : f32 to vector<2x8x8xf32>
    %93 = arith.mulf %91, %92 : vector<2x8x8xf32>
    %cst_28 = arith.constant -1.000000e+30 : f32
    %94 = vector.shape_cast %12 : vector<1x8x8xi1> to vector<1x8x8xi1>
    %95 = vector.broadcast %94 : vector<1x8x8xi1> to vector<2x8x8xi1>
    %96 = vector.broadcast %cst_28 : f32 to vector<2x8x8xf32>
    %97 = arith.select %95, %93, %96 : vector<2x8x8xi1>, vector<2x8x8xf32>
    %cst_29 = arith.constant dense<0xFF800000> : vector<2x8xf32>
    %98 = vector.multi_reduction <maximumf>, %97, %cst_29 [2] : vector<2x8x8xf32> to vector<2x8xf32>
    %99 = vector.shape_cast %98 : vector<2x8xf32> to vector<2x8x1xf32>
    %100 = vector.broadcast %99 : vector<2x8x1xf32> to vector<2x8x8xf32>
    %101 = arith.subf %97, %100 : vector<2x8x8xf32>
    %102 = math.exp %101 : vector<2x8x8xf32>
    %cst_30 = arith.constant dense<0.000000e+00> : vector<2x8xf32>
    %103 = vector.multi_reduction <add>, %102, %cst_30 [2] : vector<2x8x8xf32> to vector<2x8xf32>
    %104 = vector.shape_cast %103 : vector<2x8xf32> to vector<2x8x1xf32>
    %105 = tpu.reciprocal %104 {approx = true} : vector<2x8x1xf32> -> vector<2x8x1xf32>
    %106 = vector.broadcast %105 : vector<2x8x1xf32> to vector<2x8x8xf32>
    %107 = arith.mulf %102, %106 : vector<2x8x8xf32>
    %108 = arith.truncf %107 : vector<2x8x8xf32> to vector<2x8x8xbf16>
    "tpu.trace_start"() <{level = 10 : i32, message = "bqk,bkd->bqd"}> : () -> ()
    %cst_31 = arith.constant dense<0.000000e+00> : vector<2x8x128xf32>
    %109 = tpu.matmul %108, %90, %cst_31 {dimension_numbers = #tpu.dot_dimension_numbers<[2], [1], [1], [2], [0, 0, 0, 1, 1, 2], [0], [0]>} : vector<2x8x8xbf16>, vector<2x8x128xbf16>, vector<2x8x128xf32> -> vector<2x8x128xf32>
    "tpu.trace_stop"() : () -> ()
    %110 = vector.shape_cast %109 : vector<2x8x128xf32> to vector<16x128xf32>
    %111 = arith.truncf %110 : vector<16x128xf32> to vector<16x128xbf16>
    %c0_32 = arith.constant 0 : index
    %c256 = arith.constant 256 : index
    %c0_33 = arith.constant 0 : index
    %112 = vector.load %arg4[%c0_32, %c256, %c0_33] : memref<1x512x384xbf16, #tpu.memory_space<vmem>>, vector<1x128x384xbf16>
    %113 = vector.shape_cast %112 : vector<1x128x384xbf16> to vector<128x384xbf16>
    %cst_34 = arith.constant dense<0.000000e+00> : vector<16x384xf32>
    %114 = tpu.matmul %111, %113, %cst_34 {dimension_numbers = #tpu.dot_dimension_numbers<[1], [0], [0], [1], [0, 0, 1, 1], [], []>} : vector<16x128xbf16>, vector<128x384xbf16>, vector<16x384xf32> -> vector<16x384xf32>
    %115 = arith.addf %81, %114 : vector<16x384xf32>
    %116 = vector.extract_strided_slice %8 {offsets = [0, 384], sizes = [16, 128], strides = [1, 1]} : vector<16x1536xf32> to vector<16x128xf32>
    %117 = vector.extract_strided_slice %8 {offsets = [0, 896], sizes = [16, 128], strides = [1, 1]} : vector<16x1536xf32> to vector<16x128xf32>
    %118 = vector.extract_strided_slice %8 {offsets = [0, 1408], sizes = [16, 128], strides = [1, 1]} : vector<16x1536xf32> to vector<16x128xf32>
    %119 = vector.shape_cast %116 : vector<16x128xf32> to vector<2x8x128xf32>
    %120 = arith.truncf %119 : vector<2x8x128xf32> to vector<2x8x128xbf16>
    %121 = vector.shape_cast %117 : vector<16x128xf32> to vector<2x8x128xf32>
    %122 = arith.truncf %121 : vector<2x8x128xf32> to vector<2x8x128xbf16>
    %123 = vector.shape_cast %118 : vector<16x128xf32> to vector<2x8x128xf32>
    %124 = arith.truncf %123 : vector<2x8x128xf32> to vector<2x8x128xbf16>
    "tpu.trace_start"() <{level = 10 : i32, message = "bqd,bkd->bqk"}> : () -> ()
    %cst_35 = arith.constant dense<0.000000e+00> : vector<2x8x8xf32>
    %125 = tpu.matmul %120, %122, %cst_35 {dimension_numbers = #tpu.dot_dimension_numbers<[2], [2], [1], [1], [0, 0, 0, 1, 1, 1], [0], [0]>} : vector<2x8x128xbf16>, vector<2x8x128xbf16>, vector<2x8x8xf32> -> vector<2x8x8xf32>
    "tpu.trace_stop"() : () -> ()
    %cst_36 = arith.constant 0.102062076 : f32
    %126 = vector.broadcast %cst_36 : f32 to vector<2x8x8xf32>
    %127 = arith.mulf %125, %126 : vector<2x8x8xf32>
    %cst_37 = arith.constant -1.000000e+30 : f32
    %128 = vector.shape_cast %12 : vector<1x8x8xi1> to vector<1x8x8xi1>
    %129 = vector.broadcast %128 : vector<1x8x8xi1> to vector<2x8x8xi1>
    %130 = vector.broadcast %cst_37 : f32 to vector<2x8x8xf32>
    %131 = arith.select %129, %127, %130 : vector<2x8x8xi1>, vector<2x8x8xf32>
    %cst_38 = arith.constant dense<0xFF800000> : vector<2x8xf32>
    %132 = vector.multi_reduction <maximumf>, %131, %cst_38 [2] : vector<2x8x8xf32> to vector<2x8xf32>
    %133 = vector.shape_cast %132 : vector<2x8xf32> to vector<2x8x1xf32>
    %134 = vector.broadcast %133 : vector<2x8x1xf32> to vector<2x8x8xf32>
    %135 = arith.subf %131, %134 : vector<2x8x8xf32>
    %136 = math.exp %135 : vector<2x8x8xf32>
    %cst_39 = arith.constant dense<0.000000e+00> : vector<2x8xf32>
    %137 = vector.multi_reduction <add>, %136, %cst_39 [2] : vector<2x8x8xf32> to vector<2x8xf32>
    %138 = vector.shape_cast %137 : vector<2x8xf32> to vector<2x8x1xf32>
    %139 = tpu.reciprocal %138 {approx = true} : vector<2x8x1xf32> -> vector<2x8x1xf32>
    %140 = vector.broadcast %139 : vector<2x8x1xf32> to vector<2x8x8xf32>
    %141 = arith.mulf %136, %140 : vector<2x8x8xf32>
    %142 = arith.truncf %141 : vector<2x8x8xf32> to vector<2x8x8xbf16>
    "tpu.trace_start"() <{level = 10 : i32, message = "bqk,bkd->bqd"}> : () -> ()
    %cst_40 = arith.constant dense<0.000000e+00> : vector<2x8x128xf32>
    %143 = tpu.matmul %142, %124, %cst_40 {dimension_numbers = #tpu.dot_dimension_numbers<[2], [1], [1], [2], [0, 0, 0, 1, 1, 2], [0], [0]>} : vector<2x8x8xbf16>, vector<2x8x128xbf16>, vector<2x8x128xf32> -> vector<2x8x128xf32>
    "tpu.trace_stop"() : () -> ()
    %144 = vector.shape_cast %143 : vector<2x8x128xf32> to vector<16x128xf32>
    %145 = arith.truncf %144 : vector<16x128xf32> to vector<16x128xbf16>
    %c0_41 = arith.constant 0 : index
    %c384 = arith.constant 384 : index
    %c0_42 = arith.constant 0 : index
    %146 = vector.load %arg4[%c0_41, %c384, %c0_42] : memref<1x512x384xbf16, #tpu.memory_space<vmem>>, vector<1x128x384xbf16>
    %147 = vector.shape_cast %146 : vector<1x128x384xbf16> to vector<128x384xbf16>
    %cst_43 = arith.constant dense<0.000000e+00> : vector<16x384xf32>
    %148 = tpu.matmul %145, %147, %cst_43 {dimension_numbers = #tpu.dot_dimension_numbers<[1], [0], [0], [1], [0, 0, 1, 1], [], []>} : vector<16x128xbf16>, vector<128x384xbf16>, vector<16x384xf32> -> vector<16x384xf32>
    %149 = arith.addf %115, %148 : vector<16x384xf32>
    %c0_44 = arith.constant 0 : index
    %c0_45 = arith.constant 0 : index
    %c0_46 = arith.constant 0 : index
    %150 = vector.load %arg5[%c0_44, %c0_45, %c0_46] : memref<1x1x384xf32, #tpu.memory_space<vmem>>, vector<1x1x384xf32>
    %151 = vector.shape_cast %150 : vector<1x1x384xf32> to vector<1x384xf32>
    %152 = vector.broadcast %151 : vector<1x384xf32> to vector<16x384xf32>
    %153 = arith.addf %149, %152 : vector<16x384xf32>
    %154 = arith.addf %4, %153 : vector<16x384xf32>
    %c0_47 = arith.constant 0 : index
    %c0_48 = arith.constant 0 : index
    %c0_49 = arith.constant 0 : index
    %155 = vector.load %arg10[%c0_47, %c0_48, %c0_49] : memref<1x1x384xf32, #tpu.memory_space<vmem>>, vector<1x1x384xf32>
    %156 = vector.shape_cast %155 : vector<1x1x384xf32> to vector<1x384xf32>
    %c0_50 = arith.constant 0 : index
    %c0_51 = arith.constant 0 : index
    %c0_52 = arith.constant 0 : index
    %157 = vector.load %arg11[%c0_50, %c0_51, %c0_52] : memref<1x1x384xf32, #tpu.memory_space<vmem>>, vector<1x1x384xf32>
    %158 = vector.shape_cast %157 : vector<1x1x384xf32> to vector<1x384xf32>
    %cst_53 = arith.constant dense<0.000000e+00> : vector<16xf32>
    %159 = vector.multi_reduction <add>, %154, %cst_53 [1] : vector<16x384xf32> to vector<16xf32>
    %160 = vector.shape_cast %159 : vector<16xf32> to vector<16x1xf32>
    %cst_54 = arith.constant 3.840000e+02 : f32
    %161 = vector.broadcast %cst_54 : f32 to vector<16x1xf32>
    %162 = arith.divf %160, %161 : vector<16x1xf32>
    %163 = vector.broadcast %162 : vector<16x1xf32> to vector<16x384xf32>
    %164 = arith.subf %154, %163 : vector<16x384xf32>
    %165 = arith.mulf %164, %164 : vector<16x384xf32>
    %cst_55 = arith.constant dense<0.000000e+00> : vector<16xf32>
    %166 = vector.multi_reduction <add>, %165, %cst_55 [1] : vector<16x384xf32> to vector<16xf32>
    %167 = vector.shape_cast %166 : vector<16xf32> to vector<16x1xf32>
    %cst_56 = arith.constant 3.840000e+02 : f32
    %168 = vector.broadcast %cst_56 : f32 to vector<16x1xf32>
    %169 = arith.divf %167, %168 : vector<16x1xf32>
    %170 = vector.broadcast %162 : vector<16x1xf32> to vector<16x384xf32>
    %171 = arith.subf %154, %170 : vector<16x384xf32>
    %cst_57 = arith.constant 9.99999974E-6 : f32
    %172 = vector.broadcast %cst_57 : f32 to vector<16x1xf32>
    %173 = arith.addf %169, %172 : vector<16x1xf32>
    %174 = math.rsqrt %173 : vector<16x1xf32>
    %175 = vector.broadcast %174 : vector<16x1xf32> to vector<16x384xf32>
    %176 = arith.mulf %171, %175 : vector<16x384xf32>
    %177 = vector.broadcast %156 : vector<1x384xf32> to vector<16x384xf32>
    %178 = arith.mulf %176, %177 : vector<16x384xf32>
    %179 = vector.broadcast %158 : vector<1x384xf32> to vector<16x384xf32>
    %180 = arith.addf %178, %179 : vector<16x384xf32>
    %181 = arith.truncf %180 : vector<16x384xf32> to vector<16x384xbf16>
    %c0_58 = arith.constant 0 : index
    %c0_59 = arith.constant 0 : index
    %c0_60 = arith.constant 0 : index
    %182 = vector.load %arg6[%c0_58, %c0_59, %c0_60] : memref<1x384x1536xbf16, #tpu.memory_space<vmem>>, vector<1x384x1536xbf16>
    %183 = vector.shape_cast %182 : vector<1x384x1536xbf16> to vector<384x1536xbf16>
    %cst_61 = arith.constant dense<0.000000e+00> : vector<16x1536xf32>
    %184 = tpu.matmul %181, %183, %cst_61 {dimension_numbers = #tpu.dot_dimension_numbers<[1], [0], [0], [1], [0, 0, 1, 1], [], []>} : vector<16x384xbf16>, vector<384x1536xbf16>, vector<16x1536xf32> -> vector<16x1536xf32>
    %c0_62 = arith.constant 0 : index
    %c0_63 = arith.constant 0 : index
    %c0_64 = arith.constant 0 : index
    %185 = vector.load %arg7[%c0_62, %c0_63, %c0_64] : memref<1x1x1536xf32, #tpu.memory_space<vmem>>, vector<1x1x1536xf32>
    %186 = vector.shape_cast %185 : vector<1x1x1536xf32> to vector<1x1536xf32>
    %187 = vector.broadcast %186 : vector<1x1536xf32> to vector<16x1536xf32>
    %188 = arith.addf %184, %187 : vector<16x1536xf32>
    %cst_65 = arith.constant 0.000000e+00 : f32
    %189 = vector.broadcast %cst_65 : f32 to vector<16x1536xf32>
    %190 = arith.maximumf %188, %189 : vector<16x1536xf32>
    %191 = arith.truncf %190 : vector<16x1536xf32> to vector<16x1536xbf16>
    %c0_66 = arith.constant 0 : index
    %c0_67 = arith.constant 0 : index
    %c0_68 = arith.constant 0 : index
    %192 = vector.load %arg8[%c0_66, %c0_67, %c0_68] : memref<1x1536x384xbf16, #tpu.memory_space<vmem>>, vector<1x1536x384xbf16>
    %193 = vector.shape_cast %192 : vector<1x1536x384xbf16> to vector<1536x384xbf16>
    %cst_69 = arith.constant dense<0.000000e+00> : vector<16x384xf32>
    %194 = tpu.matmul %191, %193, %cst_69 {dimension_numbers = #tpu.dot_dimension_numbers<[1], [0], [0], [1], [0, 0, 1, 1], [], []>} : vector<16x1536xbf16>, vector<1536x384xbf16>, vector<16x384xf32> -> vector<16x384xf32>
    %c0_70 = arith.constant 0 : index
    %c0_71 = arith.constant 0 : index
    %c0_72 = arith.constant 0 : index
    %195 = vector.load %arg9[%c0_70, %c0_71, %c0_72] : memref<1x1x384xf32, #tpu.memory_space<vmem>>, vector<1x1x384xf32>
    %196 = vector.shape_cast %195 : vector<1x1x384xf32> to vector<1x384xf32>
    %197 = vector.broadcast %196 : vector<1x384xf32> to vector<16x384xf32>
    %198 = arith.addf %194, %197 : vector<16x384xf32>
    %199 = arith.addf %180, %198 : vector<16x384xf32>
    %c0_73 = arith.constant 0 : index
    %c0_74 = arith.constant 0 : index
    %c0_75 = arith.constant 0 : index
    %200 = vector.load %arg12[%c0_73, %c0_74, %c0_75] : memref<1x1x384xf32, #tpu.memory_space<vmem>>, vector<1x1x384xf32>
    %201 = vector.shape_cast %200 : vector<1x1x384xf32> to vector<1x384xf32>
    %c0_76 = arith.constant 0 : index
    %c0_77 = arith.constant 0 : index
    %c0_78 = arith.constant 0 : index
    %202 = vector.load %arg13[%c0_76, %c0_77, %c0_78] : memref<1x1x384xf32, #tpu.memory_space<vmem>>, vector<1x1x384xf32>
    %203 = vector.shape_cast %202 : vector<1x1x384xf32> to vector<1x384xf32>
    %cst_79 = arith.constant dense<0.000000e+00> : vector<16xf32>
    %204 = vector.multi_reduction <add>, %199, %cst_79 [1] : vector<16x384xf32> to vector<16xf32>
    %205 = vector.shape_cast %204 : vector<16xf32> to vector<16x1xf32>
    %cst_80 = arith.constant 3.840000e+02 : f32
    %206 = vector.broadcast %cst_80 : f32 to vector<16x1xf32>
    %207 = arith.divf %205, %206 : vector<16x1xf32>
    %208 = vector.broadcast %207 : vector<16x1xf32> to vector<16x384xf32>
    %209 = arith.subf %199, %208 : vector<16x384xf32>
    %210 = arith.mulf %209, %209 : vector<16x384xf32>
    %cst_81 = arith.constant dense<0.000000e+00> : vector<16xf32>
    %211 = vector.multi_reduction <add>, %210, %cst_81 [1] : vector<16x384xf32> to vector<16xf32>
    %212 = vector.shape_cast %211 : vector<16xf32> to vector<16x1xf32>
    %cst_82 = arith.constant 3.840000e+02 : f32
    %213 = vector.broadcast %cst_82 : f32 to vector<16x1xf32>
    %214 = arith.divf %212, %213 : vector<16x1xf32>
    %215 = vector.broadcast %207 : vector<16x1xf32> to vector<16x384xf32>
    %216 = arith.subf %199, %215 : vector<16x384xf32>
    %cst_83 = arith.constant 9.99999974E-6 : f32
    %217 = vector.broadcast %cst_83 : f32 to vector<16x1xf32>
    %218 = arith.addf %214, %217 : vector<16x1xf32>
    %219 = math.rsqrt %218 : vector<16x1xf32>
    %220 = vector.broadcast %219 : vector<16x1xf32> to vector<16x384xf32>
    %221 = arith.mulf %216, %220 : vector<16x384xf32>
    %222 = vector.broadcast %201 : vector<1x384xf32> to vector<16x384xf32>
    %223 = arith.mulf %221, %222 : vector<16x384xf32>
    %224 = vector.broadcast %203 : vector<1x384xf32> to vector<16x384xf32>
    %225 = arith.addf %223, %224 : vector<16x384xf32>
    %226 = vector.shape_cast %225 : vector<16x384xf32> to vector<2x8x384xf32>
    %c0_84 = arith.constant 0 : index
    %c0_85 = arith.constant 0 : index
    %c0_86 = arith.constant 0 : index
    %227 = vector.load %arg15[%c0_84, %c0_85, %c0_86] : memref<2x8x384xf32, #tpu.memory_space<vmem>>, vector<2x8x384xf32>
    tpu.vector_store %arg15[%c0_84, %c0_85, %c0_86], %226 {strides = array<i32>} : memref<2x8x384xf32, #tpu.memory_space<vmem>>, vector<2x8x384xf32>,
    %c3_i32 = arith.constant 3 : i32
    %228 = arith.cmpi eq, %arg1, %c3_i32 : i32
    %229 = arith.extui %228 : i1 to i32
    %c0_i32_87 = arith.constant 0 : i32
    %230 = arith.cmpi ne, %229, %c0_i32_87 : i32
    scf.if %230 {
      %c0_88 = arith.constant 0 : index
      %c0_89 = arith.constant 0 : index
      %c0_90 = arith.constant 0 : index
      %231 = vector.load %arg15[%c0_88, %c0_89, %c0_90] : memref<2x8x384xf32, #tpu.memory_space<vmem>>, vector<2x8x384xf32>
      %c0_91 = arith.constant 0 : index
      %c0_92 = arith.constant 0 : index
      %c0_93 = arith.constant 0 : index
      %232 = vector.load %arg14[%c0_91, %c0_92, %c0_93] : memref<2x8x384xf32, #tpu.memory_space<vmem>>, vector<2x8x384xf32>
      tpu.vector_store %arg14[%c0_91, %c0_92, %c0_93], %231 {strides = array<i32>} : memref<2x8x384xf32, #tpu.memory_space<vmem>>, vector<2x8x384xf32>,
    } else {
    }
    return
  }
  func.func @transform_0(%arg0: i32, %arg1: i32) -> (i32, i32, i32) {
    %c0_i32 = arith.constant 0 : i32
    %c0_i32_0 = arith.constant 0 : i32
    %c0_i32_1 = arith.constant 0 : i32
    return %arg0, %c0_i32, %c0_i32_0 : i32, i32, i32
  }
  func.func @transform_1(%arg0: i32, %arg1: i32) -> (i32, i32, i32) {
    %c0_i32 = arith.constant 0 : i32
    %c0_i32_0 = arith.constant 0 : i32
    %c0_i32_1 = arith.constant 0 : i32
    return %arg1, %c0_i32, %c0_i32_0 : i32, i32, i32
  }
  func.func @transform_2(%arg0: i32, %arg1: i32) -> (i32, i32, i32) {
    %c0_i32 = arith.constant 0 : i32
    %c0_i32_0 = arith.constant 0 : i32
    %c0_i32_1 = arith.constant 0 : i32
    return %arg1, %c0_i32, %c0_i32_0 : i32, i32, i32
  }
  func.func @transform_3(%arg0: i32, %arg1: i32) -> (i32, i32, i32) {
    %c0_i32 = arith.constant 0 : i32
    %c0_i32_0 = arith.constant 0 : i32
    %c0_i32_1 = arith.constant 0 : i32
    return %arg1, %c0_i32, %c0_i32_0 : i32, i32, i32
  }
  func.func @transform_4(%arg0: i32, %arg1: i32) -> (i32, i32, i32) {
    %c0_i32 = arith.constant 0 : i32
    %c0_i32_0 = arith.constant 0 : i32
    %c0_i32_1 = arith.constant 0 : i32
    return %arg1, %c0_i32, %c0_i32_0 : i32, i32, i32
  }
  func.func @transform_5(%arg0: i32, %arg1: i32) -> (i32, i32, i32) {
    %c0_i32 = arith.constant 0 : i32
    %c0_i32_0 = arith.constant 0 : i32
    %c0_i32_1 = arith.constant 0 : i32
    return %arg1, %c0_i32, %c0_i32_0 : i32, i32, i32
  }
  func.func @transform_6(%arg0: i32, %arg1: i32) -> (i32, i32, i32) {
    %c0_i32 = arith.constant 0 : i32
    %c0_i32_0 = arith.constant 0 : i32
    %c0_i32_1 = arith.constant 0 : i32
    return %arg1, %c0_i32, %c0_i32_0 : i32, i32, i32
  }
  func.func @transform_7(%arg0: i32, %arg1: i32) -> (i32, i32, i32) {
    %c0_i32 = arith.constant 0 : i32
    %c0_i32_0 = arith.constant 0 : i32
    %c0_i32_1 = arith.constant 0 : i32
    return %arg1, %c0_i32, %c0_i32_0 : i32, i32, i32
  }
  func.func @transform_8(%arg0: i32, %arg1: i32) -> (i32, i32, i32) {
    %c0_i32 = arith.constant 0 : i32
    %c0_i32_0 = arith.constant 0 : i32
    %c0_i32_1 = arith.constant 0 : i32
    return %arg1, %c0_i32, %c0_i32_0 : i32, i32, i32
  }
  func.func @transform_9(%arg0: i32, %arg1: i32) -> (i32, i32, i32) {
    %c0_i32 = arith.constant 0 : i32
    %c0_i32_0 = arith.constant 0 : i32
    %c0_i32_1 = arith.constant 0 : i32
    return %arg1, %c0_i32, %c0_i32_0 : i32, i32, i32
  }
  func.func @transform_10(%arg0: i32, %arg1: i32) -> (i32, i32, i32) {
    %c0_i32 = arith.constant 0 : i32
    %c0_i32_0 = arith.constant 0 : i32
    %c0_i32_1 = arith.constant 0 : i32
    return %arg1, %c0_i32, %c0_i32_0 : i32, i32, i32
  }
  func.func @transform_11(%arg0: i32, %arg1: i32) -> (i32, i32, i32) {
    %c0_i32 = arith.constant 0 : i32
    %c0_i32_0 = arith.constant 0 : i32
    %c0_i32_1 = arith.constant 0 : i32
    return %arg1, %c0_i32, %c0_i32_0 : i32, i32, i32
  }
  func.func @transform_12(%arg0: i32, %arg1: i32) -> (i32, i32, i32) {
    %c0_i32 = arith.constant 0 : i32
    %c0_i32_0 = arith.constant 0 : i32
    %c0_i32_1 = arith.constant 0 : i32
    return %arg0, %c0_i32, %c0_i32_0 : i32, i32, i32
  }
}

</mosaic_0001>

<llo_original>
// kernel: tpu_custom_call.1
$region0: #{tpu_custom_call.1}
  #allocation0 [shape = 'u32[]', space=smem, size = 0x4, offset = 0x4, fixed_abs, tag = 'smem constant byte address 0x4 - core index']
  #allocation1 [shape = 'u32[144,128]{1,0:T(1,128)}', space=vmem, size = 0x12000, scoped, tag = 'internal scratch']
  #allocation2 [shape = 'f32[2,8,384]{2,1,0:T(8,128)}', space=vmem, size = 0x6000, scoped, tag = 'scratch operand']
  %s0 = inlined_call_operand.hbm [shape: f32[2,8,384], index: 0, kind: input, shape index: {}]
  %s1 = inlined_call_operand.hbm [shape: bf16[4,384,1536], index: 1, kind: input, shape index: {}]
  %s2 = inlined_call_operand.hbm [shape: bf16[4,512,384], index: 2, kind: input, shape index: {}]
  %s3 = inlined_call_operand.hbm [shape: f32[4,1,384], index: 3, kind: input, shape index: {}]
  %s4 = inlined_call_operand.hbm [shape: bf16[4,384,1536], index: 4, kind: input, shape index: {}]
  %s5 = inlined_call_operand.hbm [shape: f32[4,1,1536], index: 5, kind: input, shape index: {}]
  %s6 = inlined_call_operand.hbm [shape: bf16[4,1536,384], index: 6, kind: input, shape index: {}]
  %s7 = inlined_call_operand.hbm [shape: f32[4,1,384], index: 7, kind: input, shape index: {}]
  %s8 = inlined_call_operand.hbm [shape: f32[4,1,384], index: 8, kind: input, shape index: {}]
  %s9 = inlined_call_operand.hbm [shape: f32[4,1,384], index: 9, kind: input, shape index: {}]
  %s10 = inlined_call_operand.hbm [shape: f32[4,1,384], index: 10, kind: input, shape index: {}]
  %s11 = inlined_call_operand.hbm [shape: f32[4,1,384], index: 11, kind: input, shape index: {}]
  %s12 = inlined_call_operand.hbm [shape: f32[2,8,384], index: 12, kind: output, shape index: {}]
  %s13 = sld [smem:[#allocation0]]
  $region137: #{tpu_custom_call.1} parent=0
    _
  %s15 = ssub.s32 1, %s13
  %s16 = scalar_select 0, %s15, %s13
  $region1: #{tpu_custom_call.1} parent=0
    #allocation3 [shape = 'u8[24576]{0}', space=vmem, size = 0x6000, scoped, tag = 'input window, operand 0, single buffered']
    #allocation4 [shape = 's32[2]{0}', space=sflag, size = 0x8, scoped, tag = 'scoped memory for tpu_custom_call.1']
    #allocation5 [shape = 's32[2]{0}', space=sflag, size = 0x8, scoped, tag = 'scoped memory for tpu_custom_call.1']
    #allocation6 [shape = 'u8[2359296]{0}', space=vmem, size = 0x240000, scoped, tag = 'input window, operand 1']
    #allocation7 [shape = 's32[2]{0}', space=sflag, size = 0x8, scoped, tag = 'scoped memory for tpu_custom_call.1']
    #allocation8 [shape = 'u8[786432]{0}', space=vmem, size = 0xc0000, scoped, tag = 'input window, operand 2']
    #allocation9 [shape = 'u8[3072]{0}', space=vmem, size = 0xc00, scoped, tag = 'input window, operand 3']
    #allocation10 [shape = 's32[2]{0}', space=sflag, size = 0x8, scoped, tag = 'scoped memory for tpu_custom_call.1']
    #allocation11 [shape = 'u8[2359296]{0}', space=vmem, size = 0x240000, scoped, tag = 'input window, operand 4']
    #allocation12 [shape = 'u8[12288]{0}', space=vmem, size = 0x3000, scoped, tag = 'input window, operand 5']
    #allocation13 [shape = 's32[2]{0}', space=sflag, size = 0x8, scoped, tag = 'scoped memory for tpu_custom_call.1']
    #allocation14 [shape = 'u8[2359296]{0}', space=vmem, size = 0x240000, scoped, tag = 'input window, operand 6']
    #allocation15 [shape = 'u8[3072]{0}', space=vmem, size = 0xc00, scoped, tag = 'input window, operand 7']
    #allocation16 [shape = 's32[2]{0}', space=sflag, size = 0x8, scoped, tag = 'scoped memory for tpu_custom_call.1']
    #allocation17 [shape = 'u8[3072]{0}', space=vmem, size = 0xc00, scoped, tag = 'input window, operand 8']
    #allocation18 [shape = 'u8[3072]{0}', space=vmem, size = 0xc00, scoped, tag = 'input window, operand 9']
    #allocation19 [shape = 's32[2]{0}', space=sflag, size = 0x8, scoped, tag = 'scoped memory for tpu_custom_call.1']
    #allocation20 [shape = 'u8[3072]{0}', space=vmem, size = 0xc00, scoped, tag = 'input window, operand 10']
    #allocation21 [shape = 'u8[3072]{0}', space=vmem, size = 0xc00, scoped, tag = 'input window, operand 11']
    #allocation22 [shape = 's32[2]{0}', space=sflag, size = 0x8, scoped, tag = 'scoped memory for tpu_custom_call.1']
    #allocation23 [shape = 'u8[24576]{0}', space=vmem, size = 0x6000, scoped, tag = 'output window, operand 0, single buffered']
    %17 = vsyncpa [#allocation4], 0
    %18 = vsyncpa [#allocation7], 0
    %s19 = scalar_lea.sflag [#allocation7], 1
    %20 = vsyncpa %s19, 0
    %21 = vsyncpa [#allocation10], 0
    %s22 = scalar_lea.sflag [#allocation10], 1
    %23 = vsyncpa %s22, 0
    %24 = vsyncpa [#allocation13], 0
    %s25 = scalar_lea.sflag [#allocation13], 1
    %26 = vsyncpa %s25, 0
    %27 = vsyncpa [#allocation16], 0
    %s28 = scalar_lea.sflag [#allocation16], 1
    %29 = vsyncpa %s28, 0
    %30 = vsyncpa [#allocation19], 0
    %s31 = scalar_lea.sflag [#allocation19], 1
    %32 = vsyncpa %s31, 0
    %33 = vsyncpa [#allocation22], 0
    %s34 = scalar_lea.sflag [#allocation22], 1
    %35 = vsyncpa %s34, 0
    %36 = vsyncpa [#allocation5], 0
    loop: start=0, step=1, limit=6
    $region2: #{tpu_custom_call.1} parent=1 // loop_pre_header
      _
    $region3: #{tpu_custom_call.1} parent=1 // loop_header
      %s38 = sphi 0, %s42
      %p39 = scmp.ge.s32.totalorder %s38, 6
      %s45 = sphi 0, %s57
      %s46 = sphi 0, %s53
      %s47 = sphi 0, %s45
      %s48 = sphi 0, %s46
      %s49 = sphi 0, %s47
      %s50 = sphi 0, %s48
      %s60 = sphi 0, %s62
      %s63 = sphi 0, %s60
      %s64 = sphi 0, %s63
      %s80 = sphi 0, %s64
      %s86 = sphi 0, %s88
      %s89 = sphi 0, %s86
      %s90 = sphi 0, %s89
      %s106 = sphi 0, %s90
      %s112 = sphi 0, %s114
      %s115 = sphi 0, %s112
      %s116 = sphi 0, %s115
      %s132 = sphi 0, %s116
      %s138 = sphi 0, %s140
      %s141 = sphi 0, %s138
      %s142 = sphi 0, %s141
      %s158 = sphi 0, %s142
      %s164 = sphi 0, %s166
      %s167 = sphi 0, %s164
      %s168 = sphi 0, %s167
      %s184 = sphi 0, %s168
      %s190 = sphi 0, %s192
      %s193 = sphi 0, %s190
      %s194 = sphi 0, %s193
      %s210 = sphi 0, %s194
      %s216 = sphi 0, %s218
      %s219 = sphi 0, %s216
      %s220 = sphi 0, %s219
      %s236 = sphi 0, %s220
      %s242 = sphi 0, %s244
      %s245 = sphi 0, %s242
      %s246 = sphi 0, %s245
      %s262 = sphi 0, %s246
      %s268 = sphi 0, %s270
      %s271 = sphi 0, %s268
      %s272 = sphi 0, %s271
      %s288 = sphi 0, %s272
      %s294 = sphi 0, %s296
      %s297 = sphi 0, %s294
      %s298 = sphi 0, %s297
      %s314 = sphi 0, %s298
      %s320 = sphi 0, %s322
      %s323 = sphi 0, %s320
      %s324 = sphi 0, %s323
      %s340 = sphi 0, %s324
      %s346 = sphi 0, %s348
      %s349 = sphi 0, %s346
      %s350 = sphi 0, %s349
      %s366 = sphi 0, %s350
      %s372 = sphi 0, %s374
      %s375 = sphi 0, %s372
      %s376 = sphi 0, %s375
      %s392 = sphi 0, %s376
    $region4: #{tpu_custom_call.1} parent=1 // loop_header_branch
      %41 = sbr.rel (%p39) target = $region8
    $region5: #{tpu_custom_call.1} parent=1 // loop_body
      %s43 = ssub.s32 %s38, 1
      %s44 = ssub.s32 %s38, 2
      %s51 = sadd.s32 1, %s46
      %p52 = scmp.ge.s32.totalorder %s51, 4
      %s53 = scalar_select %p52, 0, %s51
      %s54 = sadd.s32 1, %s45
      %s55 = scalar_select %p52, %s54, %s45
      %p56 = scmp.ge.s32.totalorder %s55, 1
      %s57 = scalar_select %p56, 0, %s55
      %s58 = ssub.s32 %s45, %s57
      %p59 = scmp.eq.s32.totalorder %s58, 0
      %s61 = sadd.s32 %s60, 1
      %s62 = scalar_select %p59, %s60, %s61
      %p65 = pneg %p59
      %p66 = scmp.eq.s32.totalorder %s38, 3
      %p67 = por %p65, %p66
      %p68 = scmp.ne.s32.totalorder %s60, %s63
      %p69 = scmp.eq.s32.totalorder %s38, 0
      %p70 = por %p68, %p69
      %p71 = scmp.ne.s32.totalorder %s60, %s63
      %p72 = scmp.eq.s32.totalorder %s43, 3
      %p73 = por %p71, %p72
      %p74 = scmp.ne.s32.totalorder %s63, %s64
      %p75 = scmp.eq.s32.totalorder %s43, 0
      %p76 = por %p74, %p75
      %p77 = scmp.ne.s32.totalorder %s63, %s64
      %p78 = scmp.eq.s32.totalorder %s44, 3
      %p79 = por %p77, %p78
      %p81 = scmp.ne.s32.totalorder %s64, %s80
      %p82 = scmp.eq.s32.totalorder %s44, 0
      %p83 = por %p81, %p82
      %s84 = ssub.s32 %s46, %s53
      %p85 = scmp.eq.s32.totalorder %s84, 0
      %s87 = sadd.s32 %s86, 1
      %s88 = scalar_select %p85, %s86, %s87
      %p91 = pneg %p85
      %p92 = scmp.eq.s32.totalorder %s38, 3
      %p93 = por %p91, %p92
      %p94 = scmp.ne.s32.totalorder %s86, %s89
      %p95 = scmp.eq.s32.totalorder %s38, 0
      %p96 = por %p94, %p95
      %p97 = scmp.ne.s32.totalorder %s86, %s89
      %p98 = scmp.eq.s32.totalorder %s43, 3
      %p99 = por %p97, %p98
      %p100 = scmp.ne.s32.totalorder %s89, %s90
      %p101 = scmp.eq.s32.totalorder %s43, 0
      %p102 = por %p100, %p101
      %p103 = scmp.ne.s32.totalorder %s89, %s90
      %p104 = scmp.eq.s32.totalorder %s44, 3
      %p105 = por %p103, %p104
      %p107 = scmp.ne.s32.totalorder %s90, %s106
      %p108 = scmp.eq.s32.totalorder %s44, 0
      %p109 = por %p107, %p108
      %s110 = ssub.s32 %s46, %s53
      %p111 = scmp.eq.s32.totalorder %s110, 0
      %s113 = sadd.s32 %s112, 1
      %s114 = scalar_select %p111, %s112, %s113
      %p117 = pneg %p111
      %p118 = scmp.eq.s32.totalorder %s38, 3
      %p119 = por %p117, %p118
      %p120 = scmp.ne.s32.totalorder %s112, %s115
      %p121 = scmp.eq.s32.totalorder %s38, 0
      %p122 = por %p120, %p121
      %p123 = scmp.ne.s32.totalorder %s112, %s115
      %p124 = scmp.eq.s32.totalorder %s43, 3
      %p125 = por %p123, %p124
      %p126 = scmp.ne.s32.totalorder %s115, %s116
      %p127 = scmp.eq.s32.totalorder %s43, 0
      %p128 = por %p126, %p127
      %p129 = scmp.ne.s32.totalorder %s115, %s116
      %p130 = scmp.eq.s32.totalorder %s44, 3
      %p131 = por %p129, %p130
      %p133 = scmp.ne.s32.totalorder %s116, %s132
      %p134 = scmp.eq.s32.totalorder %s44, 0
      %p135 = por %p133, %p134
      %s136 = ssub.s32 %s46, %s53
      %p137 = scmp.eq.s32.totalorder %s136, 0
      %s139 = sadd.s32 %s138, 1
      %s140 = scalar_select %p137, %s138, %s139
      %p143 = pneg %p137
      %p144 = scmp.eq.s32.totalorder %s38, 3
      %p145 = por %p143, %p144
      %p146 = scmp.ne.s32.totalorder %s138, %s141
      %p147 = scmp.eq.s32.totalorder %s38, 0
      %p148 = por %p146, %p147
      %p149 = scmp.ne.s32.totalorder %s138, %s141
      %p150 = scmp.eq.s32.totalorder %s43, 3
      %p151 = por %p149, %p150
      %p152 = scmp.ne.s32.totalorder %s141, %s142
      %p153 = scmp.eq.s32.totalorder %s43, 0
      %p154 = por %p152, %p153
      %p155 = scmp.ne.s32.totalorder %s141, %s142
      %p156 = scmp.eq.s32.totalorder %s44, 3
      %p157 = por %p155, %p156
      %p159 = scmp.ne.s32.totalorder %s142, %s158
      %p160 = scmp.eq.s32.totalorder %s44, 0
      %p161 = por %p159, %p160
      %s162 = ssub.s32 %s46, %s53
      %p163 = scmp.eq.s32.totalorder %s162, 0
      %s165 = sadd.s32 %s164, 1
      %s166 = scalar_select %p163, %s164, %s165
      %p169 = pneg %p163
      %p170 = scmp.eq.s32.totalorder %s38, 3
      %p171 = por %p169, %p170
      %p172 = scmp.ne.s32.totalorder %s164, %s167
      %p173 = scmp.eq.s32.totalorder %s38, 0
      %p174 = por %p172, %p173
      %p175 = scmp.ne.s32.totalorder %s164, %s167
      %p176 = scmp.eq.s32.totalorder %s43, 3
      %p177 = por %p175, %p176
      %p178 = scmp.ne.s32.totalorder %s167, %s168
      %p179 = scmp.eq.s32.totalorder %s43, 0
      %p180 = por %p178, %p179
      %p181 = scmp.ne.s32.totalorder %s167, %s168
      %p182 = scmp.eq.s32.totalorder %s44, 3
      %p183 = por %p181, %p182
      %p185 = scmp.ne.s32.totalorder %s168, %s184
      %p186 = scmp.eq.s32.totalorder %s44, 0
      %p187 = por %p185, %p186
      %s188 = ssub.s32 %s46, %s53
      %p189 = scmp.eq.s32.totalorder %s188, 0
      %s191 = sadd.s32 %s190, 1
      %s192 = scalar_select %p189, %s190, %s191
      %p195 = pneg %p189
      %p196 = scmp.eq.s32.totalorder %s38, 3
      %p197 = por %p195, %p196
      %p198 = scmp.ne.s32.totalorder %s190, %s193
      %p199 = scmp.eq.s32.totalorder %s38, 0
      %p200 = por %p198, %p199
      %p201 = scmp.ne.s32.totalorder %s190, %s193
      %p202 = scmp.eq.s32.totalorder %s43, 3
      %p203 = por %p201, %p202
      %p204 = scmp.ne.s32.totalorder %s193, %s194
      %p205 = scmp.eq.s32.totalorder %s43, 0
      %p206 = por %p204, %p205
      %p207 = scmp.ne.s32.totalorder %s193, %s194
      %p208 = scmp.eq.s32.totalorder %s44, 3
      %p209 = por %p207, %p208
      %p211 = scmp.ne.s32.totalorder %s194, %s210
      %p212 = scmp.eq.s32.totalorder %s44, 0
      %p213 = por %p211, %p212
      %s214 = ssub.s32 %s46, %s53
      %p215 = scmp.eq.s32.totalorder %s214, 0
      %s217 = sadd.s32 %s216, 1
      %s218 = scalar_select %p215, %s216, %s217
      %p221 = pneg %p215
      %p222 = scmp.eq.s32.totalorder %s38, 3
      %p223 = por %p221, %p222
      %p224 = scmp.ne.s32.totalorder %s216, %s219
      %p225 = scmp.eq.s32.totalorder %s38, 0
      %p226 = por %p224, %p225
      %p227 = scmp.ne.s32.totalorder %s216, %s219
      %p228 = scmp.eq.s32.totalorder %s43, 3
      %p229 = por %p227, %p228
      %p230 = scmp.ne.s32.totalorder %s219, %s220
      %p231 = scmp.eq.s32.totalorder %s43, 0
      %p232 = por %p230, %p231
      %p233 = scmp.ne.s32.totalorder %s219, %s220
      %p234 = scmp.eq.s32.totalorder %s44, 3
      %p235 = por %p233, %p234
      %p237 = scmp.ne.s32.totalorder %s220, %s236
      %p238 = scmp.eq.s32.totalorder %s44, 0
      %p239 = por %p237, %p238
      %s240 = ssub.s32 %s46, %s53
      %p241 = scmp.eq.s32.totalorder %s240, 0
      %s243 = sadd.s32 %s242, 1
      %s244 = scalar_select %p241, %s242, %s243
      %p247 = pneg %p241
      %p248 = scmp.eq.s32.totalorder %s38, 3
      %p249 = por %p247, %p248
      %p250 = scmp.ne.s32.totalorder %s242, %s245
      %p251 = scmp.eq.s32.totalorder %s38, 0
      %p252 = por %p250, %p251
      %p253 = scmp.ne.s32.totalorder %s242, %s245
      %p254 = scmp.eq.s32.totalorder %s43, 3
      %p255 = por %p253, %p254
      %p256 = scmp.ne.s32.totalorder %s245, %s246
      %p257 = scmp.eq.s32.totalorder %s43, 0
      %p258 = por %p256, %p257
      %p259 = scmp.ne.s32.totalorder %s245, %s246
      %p260 = scmp.eq.s32.totalorder %s44, 3
      %p261 = por %p259, %p260
      %p263 = scmp.ne.s32.totalorder %s246, %s262
      %p264 = scmp.eq.s32.totalorder %s44, 0
      %p265 = por %p263, %p264
      %s266 = ssub.s32 %s46, %s53
      %p267 = scmp.eq.s32.totalorder %s266, 0
      %s269 = sadd.s32 %s268, 1
      %s270 = scalar_select %p267, %s268, %s269
      %p273 = pneg %p267
      %p274 = scmp.eq.s32.totalorder %s38, 3
      %p275 = por %p273, %p274
      %p276 = scmp.ne.s32.totalorder %s268, %s271
      %p277 = scmp.eq.s32.totalorder %s38, 0
      %p278 = por %p276, %p277
      %p279 = scmp.ne.s32.totalorder %s268, %s271
      %p280 = scmp.eq.s32.totalorder %s43, 3
      %p281 = por %p279, %p280
      %p282 = scmp.ne.s32.totalorder %s271, %s272
      %p283 = scmp.eq.s32.totalorder %s43, 0
      %p284 = por %p282, %p283
      %p285 = scmp.ne.s32.totalorder %s271, %s272
      %p286 = scmp.eq.s32.totalorder %s44, 3
      %p287 = por %p285, %p286
      %p289 = scmp.ne.s32.totalorder %s272, %s288
      %p290 = scmp.eq.s32.totalorder %s44, 0
      %p291 = por %p289, %p290
      %s292 = ssub.s32 %s46, %s53
      %p293 = scmp.eq.s32.totalorder %s292, 0
      %s295 = sadd.s32 %s294, 1
      %s296 = scalar_select %p293, %s294, %s295
      %p299 = pneg %p293
      %p300 = scmp.eq.s32.totalorder %s38, 3
      %p301 = por %p299, %p300
      %p302 = scmp.ne.s32.totalorder %s294, %s297
      %p303 = scmp.eq.s32.totalorder %s38, 0
      %p304 = por %p302, %p303
      %p305 = scmp.ne.s32.totalorder %s294, %s297
      %p306 = scmp.eq.s32.totalorder %s43, 3
      %p307 = por %p305, %p306
      %p308 = scmp.ne.s32.totalorder %s297, %s298
      %p309 = scmp.eq.s32.totalorder %s43, 0
      %p310 = por %p308, %p309
      %p311 = scmp.ne.s32.totalorder %s297, %s298
      %p312 = scmp.eq.s32.totalorder %s44, 3
      %p313 = por %p311, %p312
      %p315 = scmp.ne.s32.totalorder %s298, %s314
      %p316 = scmp.eq.s32.totalorder %s44, 0
      %p317 = por %p315, %p316
      %s318 = ssub.s32 %s46, %s53
      %p319 = scmp.eq.s32.totalorder %s318, 0
      %s321 = sadd.s32 %s320, 1
      %s322 = scalar_select %p319, %s320, %s321
      %p325 = pneg %p319
      %p326 = scmp.eq.s32.totalorder %s38, 3
      %p327 = por %p325, %p326
      %p328 = scmp.ne.s32.totalorder %s320, %s323
      %p329 = scmp.eq.s32.totalorder %s38, 0
      %p330 = por %p328, %p329
      %p331 = scmp.ne.s32.totalorder %s320, %s323
      %p332 = scmp.eq.s32.totalorder %s43, 3
      %p333 = por %p331, %p332
      %p334 = scmp.ne.s32.totalorder %s323, %s324
      %p335 = scmp.eq.s32.totalorder %s43, 0
      %p336 = por %p334, %p335
      %p337 = scmp.ne.s32.totalorder %s323, %s324
      %p338 = scmp.eq.s32.totalorder %s44, 3
      %p339 = por %p337, %p338
      %p341 = scmp.ne.s32.totalorder %s324, %s340
      %p342 = scmp.eq.s32.totalorder %s44, 0
      %p343 = por %p341, %p342
      %s344 = ssub.s32 %s46, %s53
      %p345 = scmp.eq.s32.totalorder %s344, 0
      %s347 = sadd.s32 %s346, 1
      %s348 = scalar_select %p345, %s346, %s347
      %p351 = pneg %p345
      %p352 = scmp.eq.s32.totalorder %s38, 3
      %p353 = por %p351, %p352
      %p354 = scmp.ne.s32.totalorder %s346, %s349
      %p355 = scmp.eq.s32.totalorder %s38, 0
      %p356 = por %p354, %p355
      %p357 = scmp.ne.s32.totalorder %s346, %s349
      %p358 = scmp.eq.s32.totalorder %s43, 3
      %p359 = por %p357, %p358
      %p360 = scmp.ne.s32.totalorder %s349, %s350
      %p361 = scmp.eq.s32.totalorder %s43, 0
      %p362 = por %p360, %p361
      %p363 = scmp.ne.s32.totalorder %s349, %s350
      %p364 = scmp.eq.s32.totalorder %s44, 3
      %p365 = por %p363, %p364
      %p367 = scmp.ne.s32.totalorder %s350, %s366
      %p368 = scmp.eq.s32.totalorder %s44, 0
      %p369 = por %p367, %p368
      %s370 = ssub.s32 %s45, %s57
      %p371 = scmp.eq.s32.totalorder %s370, 0
      %s373 = sadd.s32 %s372, 1
      %s374 = scalar_select %p371, %s372, %s373
      %p377 = pneg %p371
      %p378 = scmp.eq.s32.totalorder %s38, 3
      %p379 = por %p377, %p378
      %p380 = scmp.ne.s32.totalorder %s372, %s375
      %p381 = scmp.eq.s32.totalorder %s38, 0
      %p382 = por %p380, %p381
      %p383 = scmp.ne.s32.totalorder %s372, %s375
      %p384 = scmp.eq.s32.totalorder %s43, 3
      %p385 = por %p383, %p384
      %p386 = scmp.ne.s32.totalorder %s375, %s376
      %p387 = scmp.eq.s32.totalorder %s43, 0
      %p388 = por %p386, %p387
      %p389 = scmp.ne.s32.totalorder %s375, %s376
      %p390 = scmp.eq.s32.totalorder %s44, 3
      %p391 = por %p389, %p390
      %p393 = scmp.ne.s32.totalorder %s376, %s392
      %p394 = scmp.eq.s32.totalorder %s44, 0
      %p395 = por %p393, %p394
      %p396 = scmp.le.s32.totalorder 1, %s38
      %p397 = scmp.lt.s32.totalorder %s38, 5
      %p398 = pnand %p396, %p397
      %p399 = pneg %p398
      // Predicated region
      $region9: #{tpu_custom_call.1} parent=5 // pred_check
        _
      $region10: #{tpu_custom_call.1} parent=5 // pred_check_branch
        %401 = sbr.rel (%p398) target = $region12
      $region11: #{tpu_custom_call.1} parent=5 // pred_region
        %s402 = ssub.s32 %s38, 1
        // Predicated region
        $region13: #{tpu_custom_call.1} parent=11 // pred_check
          %p403 = pneg %p76
        $region14: #{tpu_custom_call.1} parent=11 // pred_check_branch
          %405 = sbr.rel (%p403) target = $region16
        $region15: #{tpu_custom_call.1} parent=11 // pred_region
          %s406 = smul.u32 2, %s47
          %s408 = ssub.s32 768, 768
          %409 = vsyncadd [#allocation4], %s408
          %s410 = smul.addr %s406, 3
          %s411 = smul.addr %s410, 128
          %s412 = scalar_lea.hbm %s0, %s411
          %s413 = sshll.u32 [#allocation3], 4
          %s414 = int_to_ptr.vmem [resolvable:$true] %s413
          %419 = dma.hbm_to_vmem [thread:$0]  %s412, 768, %s414, [#allocation4], 384, 384, 24
        $region16: #{tpu_custom_call.1} parent=11 // pred_fallthru
          _
      $region12: #{tpu_custom_call.1} parent=5 // pred_fallthru
        _
      %p420 = scmp.lt.s32.totalorder %s38, 4
      // Predicated region
      $region17: #{tpu_custom_call.1} parent=5 // pred_check
        %p421 = pneg %p420
      $region18: #{tpu_custom_call.1} parent=5 // pred_check_branch
        %423 = sbr.rel (%p421) target = $region20
      $region19: #{tpu_custom_call.1} parent=5 // pred_region
        // Predicated region
        $region21: #{tpu_custom_call.1} parent=19 // pred_check
          %p424 = pneg %p96
        $region22: #{tpu_custom_call.1} parent=19 // pred_check_branch
          %426 = sbr.rel (%p424) target = $region24
        $region23: #{tpu_custom_call.1} parent=19 // pred_region
          %s427 = sand.u32 %s38, 1
          %s428 = scalar_lea.sflag [#allocation7], %s427
          %s429 = sand.u32 %s86, 1
          %s430 = smul.addr %s429, 2304
          %s431 = scalar_lea.vmem [#allocation6], %s430
          %s433 = ssub.s32 36864, 36864
          %434 = vsyncadd %s428, %s433
          %s435 = smul.addr %s46, 576
          %s436 = smul.addr %s435, 64
          %s437 = scalar_lea.hbm %s1, %s436
          %s438 = sshll.u32 %s431, 4
          %s439 = int_to_ptr.vmem [resolvable:$true] %s438
          %444 = dma.hbm_to_vmem [thread:$0]  %s437, 36864, %s439, %s428, 768, 768, 48
        $region24: #{tpu_custom_call.1} parent=19 // pred_fallthru
          _
        // Predicated region
        $region25: #{tpu_custom_call.1} parent=19 // pred_check
          %p445 = pneg %p122
        $region26: #{tpu_custom_call.1} parent=19 // pred_check_branch
          %447 = sbr.rel (%p445) target = $region28
        $region27: #{tpu_custom_call.1} parent=19 // pred_region
          %s448 = sand.u32 %s38, 1
          %s449 = scalar_lea.sflag [#allocation7], %s448
          %s450 = sand.u32 %s112, 1
          %s451 = smul.addr %s450, 768
          %s452 = scalar_lea.vmem [#allocation8], %s451
          %s454 = ssub.s32 12288, 12288
          %455 = vsyncadd %s449, %s454
          %s456 = smul.addr %s46, 192
          %s457 = smul.addr %s456, 64
          %s458 = scalar_lea.hbm %s2, %s457
          %s459 = sshll.u32 %s452, 4
          %s460 = int_to_ptr.vmem [resolvable:$true] %s459
          %465 = dma.hbm_to_vmem [thread:$0]  %s458, 12288, %s460, %s449, 192, 192, 12
        $region28: #{tpu_custom_call.1} parent=19 // pred_fallthru
          _
        // Predicated region
        $region29: #{tpu_custom_call.1} parent=19 // pred_check
          %p466 = pneg %p148
        $region30: #{tpu_custom_call.1} parent=19 // pred_check_branch
          %468 = sbr.rel (%p466) target = $region32
        $region31: #{tpu_custom_call.1} parent=19 // pred_region
          %s469 = sand.u32 %s38, 1
          %s470 = scalar_lea.sflag [#allocation10], %s469
          %s471 = sand.u32 %s138, 1
          %s472 = smul.addr %s471, 3
          %s473 = scalar_lea.vmem [#allocation9], %s472
          %s475 = ssub.s32 48, 48
          %476 = vsyncadd %s470, %s475
          %s477 = smul.addr %s46, 3
          %s478 = smul.addr %s477, 16
          %s479 = scalar_lea.hbm %s3, %s478
          %s481 = sshll.u32 %s473, 4
          %s482 = int_to_ptr.vmem [resolvable:$true] %s481
          %484 = dma.hbm_to_vmem [thread:$0]  %s479, 48, %s482, %s470
        $region32: #{tpu_custom_call.1} parent=19 // pred_fallthru
          _
        // Predicated region
        $region33: #{tpu_custom_call.1} parent=19 // pred_check
          %p485 = pneg %p174
        $region34: #{tpu_custom_call.1} parent=19 // pred_check_branch
          %487 = sbr.rel (%p485) target = $region36
        $region35: #{tpu_custom_call.1} parent=19 // pred_region
          %s488 = sand.u32 %s38, 1
          %s489 = scalar_lea.sflag [#allocation10], %s488
          %s490 = sand.u32 %s164, 1
          %s491 = smul.addr %s490, 2304
          %s492 = scalar_lea.vmem [#allocation11], %s491
          %s494 = ssub.s32 36864, 36864
          %495 = vsyncadd %s489, %s494
          %s496 = smul.addr %s46, 576
          %s497 = smul.addr %s496, 64
          %s498 = scalar_lea.hbm %s4, %s497
          %s499 = sshll.u32 %s492, 4
          %s500 = int_to_ptr.vmem [resolvable:$true] %s499
          %505 = dma.hbm_to_vmem [thread:$0]  %s498, 36864, %s500, %s489, 768, 768, 48
        $region36: #{tpu_custom_call.1} parent=19 // pred_fallthru
          _
        // Predicated region
        $region37: #{tpu_custom_call.1} parent=19 // pred_check
          %p506 = pneg %p200
        $region38: #{tpu_custom_call.1} parent=19 // pred_check_branch
          %508 = sbr.rel (%p506) target = $region40
        $region39: #{tpu_custom_call.1} parent=19 // pred_region
          %s509 = sand.u32 %s38, 1
          %s510 = scalar_lea.sflag [#allocation13], %s509
          %s511 = sand.u32 %s190, 1
          %s512 = smul.addr %s511, 12
          %s513 = scalar_lea.vmem [#allocation12], %s512
          %s515 = ssub.s32 192, 192
          %516 = vsyncadd %s510, %s515
          %s517 = smul.addr %s46, 12
          %s518 = smul.addr %s517, 16
          %s519 = scalar_lea.hbm %s5, %s518
          %s521 = sshll.u32 %s513, 4
          %s522 = int_to_ptr.vmem [resolvable:$true] %s521
          %524 = dma.hbm_to_vmem [thread:$0]  %s519, 192, %s522, %s510
        $region40: #{tpu_custom_call.1} parent=19 // pred_fallthru
          _
        // Predicated region
        $region41: #{tpu_custom_call.1} parent=19 // pred_check
          %p525 = pneg %p226
        $region42: #{tpu_custom_call.1} parent=19 // pred_check_branch
          %527 = sbr.rel (%p525) target = $region44
        $region43: #{tpu_custom_call.1} parent=19 // pred_region
          %s528 = sand.u32 %s38, 1
          %s529 = scalar_lea.sflag [#allocation13], %s528
          %s530 = sand.u32 %s216, 1
          %s531 = smul.addr %s530, 2304
          %s532 = scalar_lea.vmem [#allocation14], %s531
          %s534 = ssub.s32 36864, 36864
          %535 = vsyncadd %s529, %s534
          %s536 = smul.addr %s46, 576
          %s537 = smul.addr %s536, 64
          %s538 = scalar_lea.hbm %s6, %s537
          %s539 = sshll.u32 %s532, 4
          %s540 = int_to_ptr.vmem [resolvable:$true] %s539
          %545 = dma.hbm_to_vmem [thread:$0]  %s538, 36864, %s540, %s529, 192, 192, 12
        $region44: #{tpu_custom_call.1} parent=19 // pred_fallthru
          _
        // Predicated region
        $region45: #{tpu_custom_call.1} parent=19 // pred_check
          %p546 = pneg %p252
        $region46: #{tpu_custom_call.1} parent=19 // pred_check_branch
          %548 = sbr.rel (%p546) target = $region48
        $region47: #{tpu_custom_call.1} parent=19 // pred_region
          %s549 = sand.u32 %s38, 1
          %s550 = scalar_lea.sflag [#allocation16], %s549
          %s551 = sand.u32 %s242, 1
          %s552 = smul.addr %s551, 3
          %s553 = scalar_lea.vmem [#allocation15], %s552
          %s555 = ssub.s32 48, 48
          %556 = vsyncadd %s550, %s555
          %s557 = smul.addr %s46, 3
          %s558 = smul.addr %s557, 16
          %s559 = scalar_lea.hbm %s7, %s558
          %s561 = sshll.u32 %s553, 4
          %s562 = int_to_ptr.vmem [resolvable:$true] %s561
          %564 = dma.hbm_to_vmem [thread:$0]  %s559, 48, %s562, %s550
        $region48: #{tpu_custom_call.1} parent=19 // pred_fallthru
          _
        // Predicated region
        $region49: #{tpu_custom_call.1} parent=19 // pred_check
          %p565 = pneg %p278
        $region50: #{tpu_custom_call.1} parent=19 // pred_check_branch
          %567 = sbr.rel (%p565) target = $region52
        $region51: #{tpu_custom_call.1} parent=19 // pred_region
          %s568 = sand.u32 %s38, 1
          %s569 = scalar_lea.sflag [#allocation16], %s568
          %s570 = sand.u32 %s268, 1
          %s571 = smul.addr %s570, 3
          %s572 = scalar_lea.vmem [#allocation17], %s571
          %s574 = ssub.s32 48, 48
          %575 = vsyncadd %s569, %s574
          %s576 = smul.addr %s46, 3
          %s577 = smul.addr %s576, 16
          %s578 = scalar_lea.hbm %s8, %s577
          %s580 = sshll.u32 %s572, 4
          %s581 = int_to_ptr.vmem [resolvable:$true] %s580
          %583 = dma.hbm_to_vmem [thread:$0]  %s578, 48, %s581, %s569
        $region52: #{tpu_custom_call.1} parent=19 // pred_fallthru
          _
        // Predicated region
        $region53: #{tpu_custom_call.1} parent=19 // pred_check
          %p584 = pneg %p304
        $region54: #{tpu_custom_call.1} parent=19 // pred_check_branch
          %586 = sbr.rel (%p584) target = $region56
        $region55: #{tpu_custom_call.1} parent=19 // pred_region
          %s587 = sand.u32 %s38, 1
          %s588 = scalar_lea.sflag [#allocation19], %s587
          %s589 = sand.u32 %s294, 1
          %s590 = smul.addr %s589, 3
          %s591 = scalar_lea.vmem [#allocation18], %s590
          %s593 = ssub.s32 48, 48
          %594 = vsyncadd %s588, %s593
          %s595 = smul.addr %s46, 3
          %s596 = smul.addr %s595, 16
          %s597 = scalar_lea.hbm %s9, %s596
          %s599 = sshll.u32 %s591, 4
          %s600 = int_to_ptr.vmem [resolvable:$true] %s599
          %602 = dma.hbm_to_vmem [thread:$0]  %s597, 48, %s600, %s588
        $region56: #{tpu_custom_call.1} parent=19 // pred_fallthru
          _
        // Predicated region
        $region57: #{tpu_custom_call.1} parent=19 // pred_check
          %p603 = pneg %p330
        $region58: #{tpu_custom_call.1} parent=19 // pred_check_branch
          %605 = sbr.rel (%p603) target = $region60
        $region59: #{tpu_custom_call.1} parent=19 // pred_region
          %s606 = sand.u32 %s38, 1
          %s607 = scalar_lea.sflag [#allocation19], %s606
          %s608 = sand.u32 %s320, 1
          %s609 = smul.addr %s608, 3
          %s610 = scalar_lea.vmem [#allocation20], %s609
          %s612 = ssub.s32 48, 48
          %613 = vsyncadd %s607, %s612
          %s614 = smul.addr %s46, 3
          %s615 = smul.addr %s614, 16
          %s616 = scalar_lea.hbm %s10, %s615
          %s618 = sshll.u32 %s610, 4
          %s619 = int_to_ptr.vmem [resolvable:$true] %s618
          %621 = dma.hbm_to_vmem [thread:$0]  %s616, 48, %s619, %s607
        $region60: #{tpu_custom_call.1} parent=19 // pred_fallthru
          _
        // Predicated region
        $region61: #{tpu_custom_call.1} parent=19 // pred_check
          %p622 = pneg %p356
        $region62: #{tpu_custom_call.1} parent=19 // pred_check_branch
          %624 = sbr.rel (%p622) target = $region64
        $region63: #{tpu_custom_call.1} parent=19 // pred_region
          %s625 = sand.u32 %s346, 1
          %s626 = scalar_lea.sflag [#allocation22], %s625
          %s627 = sand.u32 %s346, 1
          %s628 = smul.addr %s627, 3
          %s629 = scalar_lea.vmem [#allocation21], %s628
          %s631 = ssub.s32 48, 48
          %632 = vsyncadd %s626, %s631
          %s633 = smul.addr %s46, 3
          %s634 = smul.addr %s633, 16
          %s635 = scalar_lea.hbm %s11, %s634
          %s637 = sshll.u32 %s629, 4
          %s638 = int_to_ptr.vmem [resolvable:$true] %s637
          %640 = dma.hbm_to_vmem [thread:$0]  %s635, 48, %s638, %s626
        $region64: #{tpu_custom_call.1} parent=19 // pred_fallthru
          _
      $region20: #{tpu_custom_call.1} parent=5 // pred_fallthru
        _
      %p641 = scmp.le.s32.totalorder 1, %s38
      %p642 = scmp.lt.s32.totalorder %s38, 5
      %p643 = pnand %p641, %p642
      %p644 = pneg %p643
      // Predicated region
      $region65: #{tpu_custom_call.1} parent=5 // pred_check
        _
      $region66: #{tpu_custom_call.1} parent=5 // pred_check_branch
        %646 = sbr.rel (%p643) target = $region68
      $region67: #{tpu_custom_call.1} parent=5 // pred_region
        %s647 = ssub.s32 %s38, 1
        // Predicated region
        $region69: #{tpu_custom_call.1} parent=67 // pred_check
          %p648 = pneg %p76
        $region70: #{tpu_custom_call.1} parent=67 // pred_check_branch
          %650 = sbr.rel (%p648) target = $region72
        $region71: #{tpu_custom_call.1} parent=67 // pred_region
          %651 = dma.done [#allocation4], 768
        $region72: #{tpu_custom_call.1} parent=67 // pred_fallthru
          _
        %s652 = sand.u32 %s43, 1
        %s653 = scalar_lea.sflag [#allocation7], %s652
        %s654 = sand.u32 %s89, 1
        %s655 = smul.addr %s654, 2304
        %s656 = scalar_lea.vmem [#allocation6], %s655
        // Predicated region
        $region73: #{tpu_custom_call.1} parent=67 // pred_check
          %p657 = pneg %p102
        $region74: #{tpu_custom_call.1} parent=67 // pred_check_branch
          %659 = sbr.rel (%p657) target = $region76
        $region75: #{tpu_custom_call.1} parent=67 // pred_region
          %660 = dma.done %s653, 36864
        $region76: #{tpu_custom_call.1} parent=67 // pred_fallthru
          _
        %s661 = sand.u32 %s43, 1
        %s662 = scalar_lea.sflag [#allocation7], %s661
        %s663 = sand.u32 %s115, 1
        %s664 = smul.addr %s663, 768
        %s665 = scalar_lea.vmem [#allocation8], %s664
        // Predicated region
        $region77: #{tpu_custom_call.1} parent=67 // pred_check
          %p666 = pneg %p128
        $region78: #{tpu_custom_call.1} parent=67 // pred_check_branch
          %668 = sbr.rel (%p666) target = $region80
        $region79: #{tpu_custom_call.1} parent=67 // pred_region
          %669 = dma.done %s662, 12288
        $region80: #{tpu_custom_call.1} parent=67 // pred_fallthru
          _
        %s670 = sand.u32 %s43, 1
        %s671 = scalar_lea.sflag [#allocation10], %s670
        %s672 = sand.u32 %s141, 1
        %s673 = smul.addr %s672, 3
        %s674 = scalar_lea.vmem [#allocation9], %s673
        // Predicated region
        $region81: #{tpu_custom_call.1} parent=67 // pred_check
          %p675 = pneg %p154
        $region82: #{tpu_custom_call.1} parent=67 // pred_check_branch
          %677 = sbr.rel (%p675) target = $region84
        $region83: #{tpu_custom_call.1} parent=67 // pred_region
          %678 = dma.done %s671, 48
        $region84: #{tpu_custom_call.1} parent=67 // pred_fallthru
          _
        %s679 = sand.u32 %s43, 1
        %s680 = scalar_lea.sflag [#allocation10], %s679
        %s681 = sand.u32 %s167, 1
        %s682 = smul.addr %s681, 2304
        %s683 = scalar_lea.vmem [#allocation11], %s682
        // Predicated region
        $region85: #{tpu_custom_call.1} parent=67 // pred_check
          %p684 = pneg %p180
        $region86: #{tpu_custom_call.1} parent=67 // pred_check_branch
          %686 = sbr.rel (%p684) target = $region88
        $region87: #{tpu_custom_call.1} parent=67 // pred_region
          %687 = dma.done %s680, 36864
        $region88: #{tpu_custom_call.1} parent=67 // pred_fallthru
          _
        %s688 = sand.u32 %s43, 1
        %s689 = scalar_lea.sflag [#allocation13], %s688
        %s690 = sand.u32 %s193, 1
        %s691 = smul.addr %s690, 12
        %s692 = scalar_lea.vmem [#allocation12], %s691
        // Predicated region
        $region89: #{tpu_custom_call.1} parent=67 // pred_check
          %p693 = pneg %p206
        $region90: #{tpu_custom_call.1} parent=67 // pred_check_branch
          %695 = sbr.rel (%p693) target = $region92
        $region91: #{tpu_custom_call.1} parent=67 // pred_region
          %696 = dma.done %s689, 192
        $region92: #{tpu_custom_call.1} parent=67 // pred_fallthru
          _
        %s697 = sand.u32 %s43, 1
        %s698 = scalar_lea.sflag [#allocation13], %s697
        %s699 = sand.u32 %s219, 1
        %s700 = smul.addr %s699, 2304
        %s701 = scalar_lea.vmem [#allocation14], %s700
        // Predicated region
        $region93: #{tpu_custom_call.1} parent=67 // pred_check
          %p702 = pneg %p232
        $region94: #{tpu_custom_call.1} parent=67 // pred_check_branch
          %704 = sbr.rel (%p702) target = $region96
        $region95: #{tpu_custom_call.1} parent=67 // pred_region
          %705 = dma.done %s698, 36864
        $region96: #{tpu_custom_call.1} parent=67 // pred_fallthru
          _
        %s706 = sand.u32 %s43, 1
        %s707 = scalar_lea.sflag [#allocation16], %s706
        %s708 = sand.u32 %s245, 1
        %s709 = smul.addr %s708, 3
        %s710 = scalar_lea.vmem [#allocation15], %s709
        // Predicated region
        $region97: #{tpu_custom_call.1} parent=67 // pred_check
          %p711 = pneg %p258
        $region98: #{tpu_custom_call.1} parent=67 // pred_check_branch
          %713 = sbr.rel (%p711) target = $region100
        $region99: #{tpu_custom_call.1} parent=67 // pred_region
          %714 = dma.done %s707, 48
        $region100: #{tpu_custom_call.1} parent=67 // pred_fallthru
          _
        %s715 = sand.u32 %s43, 1
        %s716 = scalar_lea.sflag [#allocation16], %s715
        %s717 = sand.u32 %s271, 1
        %s718 = smul.addr %s717, 3
        %s719 = scalar_lea.vmem [#allocation17], %s718
        // Predicated region
        $region101: #{tpu_custom_call.1} parent=67 // pred_check
          %p720 = pneg %p284
        $region102: #{tpu_custom_call.1} parent=67 // pred_check_branch
          %722 = sbr.rel (%p720) target = $region104
        $region103: #{tpu_custom_call.1} parent=67 // pred_region
          %723 = dma.done %s716, 48
        $region104: #{tpu_custom_call.1} parent=67 // pred_fallthru
          _
        %s724 = sand.u32 %s43, 1
        %s725 = scalar_lea.sflag [#allocation19], %s724
        %s726 = sand.u32 %s297, 1
        %s727 = smul.addr %s726, 3
        %s728 = scalar_lea.vmem [#allocation18], %s727
        // Predicated region
        $region105: #{tpu_custom_call.1} parent=67 // pred_check
          %p729 = pneg %p310
        $region106: #{tpu_custom_call.1} parent=67 // pred_check_branch
          %731 = sbr.rel (%p729) target = $region108
        $region107: #{tpu_custom_call.1} parent=67 // pred_region
          %732 = dma.done %s725, 48
        $region108: #{tpu_custom_call.1} parent=67 // pred_fallthru
          _
        %s733 = sand.u32 %s43, 1
        %s734 = scalar_lea.sflag [#allocation19], %s733
        %s735 = sand.u32 %s323, 1
        %s736 = smul.addr %s735, 3
        %s737 = scalar_lea.vmem [#allocation20], %s736
        // Predicated region
        $region109: #{tpu_custom_call.1} parent=67 // pred_check
          %p738 = pneg %p336
        $region110: #{tpu_custom_call.1} parent=67 // pred_check_branch
          %740 = sbr.rel (%p738) target = $region112
        $region111: #{tpu_custom_call.1} parent=67 // pred_region
          %741 = dma.done %s734, 48
        $region112: #{tpu_custom_call.1} parent=67 // pred_fallthru
          _
        %s742 = sand.u32 %s349, 1
        %s743 = scalar_lea.sflag [#allocation22], %s742
        %s744 = sand.u32 %s349, 1
        %s745 = smul.addr %s744, 3
        %s746 = scalar_lea.vmem [#allocation21], %s745
        // Predicated region
        $region113: #{tpu_custom_call.1} parent=67 // pred_check
          %p747 = pneg %p362
        $region114: #{tpu_custom_call.1} parent=67 // pred_check_branch
          %749 = sbr.rel (%p747) target = $region116
        $region115: #{tpu_custom_call.1} parent=67 // pred_region
          %750 = dma.done %s743, 48
        $region116: #{tpu_custom_call.1} parent=67 // pred_fallthru
          _
        %p751 = pneg %p76
        %p752 = pneg %p73
        %s753 = sand.u32 %s43, 1
        %s754 = scalar_lea.sflag [#allocation7], %s753
        %s755 = sand.u32 %s89, 1
        %s756 = smul.addr %s755, 2304
        %s757 = scalar_lea.vmem [#allocation6], %s756
        %p758 = pneg %p102
        %p759 = pneg %p99
        %s760 = sand.u32 %s43, 1
        %s761 = scalar_lea.sflag [#allocation7], %s760
        %s762 = sand.u32 %s115, 1
        %s763 = smul.addr %s762, 768
        %s764 = scalar_lea.vmem [#allocation8], %s763
        %p765 = pneg %p128
        %p766 = pneg %p125
        %s767 = sand.u32 %s43, 1
        %s768 = scalar_lea.sflag [#allocation10], %s767
        %s769 = sand.u32 %s141, 1
        %s770 = smul.addr %s769, 3
        %s771 = scalar_lea.vmem [#allocation9], %s770
        %p772 = pneg %p154
        %p773 = pneg %p151
        %s774 = sand.u32 %s43, 1
        %s775 = scalar_lea.sflag [#allocation10], %s774
        %s776 = sand.u32 %s167, 1
        %s777 = smul.addr %s776, 2304
        %s778 = scalar_lea.vmem [#allocation11], %s777
        %p779 = pneg %p180
        %p780 = pneg %p177
        %s781 = sand.u32 %s43, 1
        %s782 = scalar_lea.sflag [#allocation13], %s781
        %s783 = sand.u32 %s193, 1
        %s784 = smul.addr %s783, 12
        %s785 = scalar_lea.vmem [#allocation12], %s784
        %p786 = pneg %p206
        %p787 = pneg %p203
        %s788 = sand.u32 %s43, 1
        %s789 = scalar_lea.sflag [#allocation13], %s788
        %s790 = sand.u32 %s219, 1
        %s791 = smul.addr %s790, 2304
        %s792 = scalar_lea.vmem [#allocation14], %s791
        %p793 = pneg %p232
        %p794 = pneg %p229
        %s795 = sand.u32 %s43, 1
        %s796 = scalar_lea.sflag [#allocation16], %s795
        %s797 = sand.u32 %s245, 1
        %s798 = smul.addr %s797, 3
        %s799 = scalar_lea.vmem [#allocation15], %s798
        %p800 = pneg %p258
        %p801 = pneg %p255
        %s802 = sand.u32 %s43, 1
        %s803 = scalar_lea.sflag [#allocation16], %s802
        %s804 = sand.u32 %s271, 1
        %s805 = smul.addr %s804, 3
        %s806 = scalar_lea.vmem [#allocation17], %s805
        %p807 = pneg %p284
        %p808 = pneg %p281
        %s809 = sand.u32 %s43, 1
        %s810 = scalar_lea.sflag [#allocation19], %s809
        %s811 = sand.u32 %s297, 1
        %s812 = smul.addr %s811, 3
        %s813 = scalar_lea.vmem [#allocation18], %s812
        %p814 = pneg %p310
        %p815 = pneg %p307
        %s816 = sand.u32 %s43, 1
        %s817 = scalar_lea.sflag [#allocation19], %s816
        %s818 = sand.u32 %s323, 1
        %s819 = smul.addr %s818, 3
        %s820 = scalar_lea.vmem [#allocation20], %s819
        %p821 = pneg %p336
        %p822 = pneg %p333
        %s823 = sand.u32 %s349, 1
        %s824 = scalar_lea.sflag [#allocation22], %s823
        %s825 = sand.u32 %s349, 1
        %s826 = smul.addr %s825, 3
        %s827 = scalar_lea.vmem [#allocation21], %s826
        %p828 = pneg %p362
        %p829 = pneg %p359
        %p830 = pneg %p388
        %p831 = pneg %p385
        %s832 = smul.u32 2, %s47
        %s833 = smul.u32 2, %s47
        %p835 = scmp.eq.s32.totalorder %s48, 0
        // Predicated region
        $region117: #{tpu_custom_call.1} parent=67 // pred_check
          %p836 = pneg %p835
        $region118: #{tpu_custom_call.1} parent=67 // pred_check_branch
          %838 = sbr.rel (%p836) target = $region120
        $region119: #{tpu_custom_call.1} parent=67 // pred_region
          %v839 = vld [vmem:[#allocation3] sm:$0xff]
          %v840 = vld [vmem:[#allocation3 + $0x8] sm:$0xff]
          %v841 = vld [vmem:[#allocation3 + $0x10] sm:$0xff]
          %v842 = vld [vmem:[#allocation3 + $0x18] sm:$0xff]
          %v843 = vld [vmem:[#allocation3 + $0x20] sm:$0xff]
          %v844 = vld [vmem:[#allocation3 + $0x28] sm:$0xff]
          %845 = vst [vmem:[#allocation2] sm:$0xff] %v839
          %846 = vst [vmem:[#allocation2 + $0x8] sm:$0xff] %v840
          %847 = vst [vmem:[#allocation2 + $0x10] sm:$0xff] %v841
          %848 = vst [vmem:[#allocation2 + $0x18] sm:$0xff] %v842
          %849 = vst [vmem:[#allocation2 + $0x20] sm:$0xff] %v843
          %850 = vst [vmem:[#allocation2 + $0x28] sm:$0xff] %v844
        $region120: #{tpu_custom_call.1} parent=67 // pred_fallthru
          _
        %v851 = vld [vmem:[#allocation2] sm:$0xff]
        %v852 = vld [vmem:[#allocation2 + $0x8] sm:$0xff]
        %v853 = vld [vmem:[#allocation2 + $0x10] sm:$0xff]
        %v854 = vld [vmem:[#allocation2 + $0x18] sm:$0xff]
        %v855 = vld [vmem:[#allocation2 + $0x20] sm:$0xff]
        %v856 = vld [vmem:[#allocation2 + $0x28] sm:$0xff]
        %v857 = vpack.c.bf16 %v854, %v851
        %v858 = vpack.c.bf16 %v855, %v852
        %v859 = vpack.c.bf16 %v856, %v853
        %v860 = vld [vmem:[%s656] sm:$0xff]
        %v861 = vld [vmem:[%s656 + $0x8] sm:$0xff]
        %v862 = vld [vmem:[%s656 + $0x10] sm:$0xff]
        %v863 = vld [vmem:[%s656 + $0x18] sm:$0xff]
        %v864 = vld [vmem:[%s656 + $0x20] sm:$0xff]
        %v865 = vld [vmem:[%s656 + $0x28] sm:$0xff]
        %v866 = vld [vmem:[%s656 + $0x30] sm:$0xff]
        %v867 = vld [vmem:[%s656 + $0x38] sm:$0xff]
        %v868 = vld [vmem:[%s656 + $0x40] sm:$0xff]
        %v869 = vld [vmem:[%s656 + $0x48] sm:$0xff]
        %v870 = vld [vmem:[%s656 + $0x50] sm:$0xff]
        %v871 = vld [vmem:[%s656 + $0x58] sm:$0xff]
        %v872 = vld [vmem:[%s656 + $0x60] sm:$0xff]
        %v873 = vld [vmem:[%s656 + $0x68] sm:$0xff]
        %v874 = vld [vmem:[%s656 + $0x70] sm:$0xff]
        %v875 = vld [vmem:[%s656 + $0x78] sm:$0xff]
        %v876 = vld [vmem:[%s656 + $0x80] sm:$0xff]
        %v877 = vld [vmem:[%s656 + $0x88] sm:$0xff]
        %v878 = vld [vmem:[%s656 + $0x90] sm:$0xff]
        %v879 = vld [vmem:[%s656 + $0x98] sm:$0xff]
        %v880 = vld [vmem:[%s656 + $0xa0] sm:$0xff]
        %v881 = vld [vmem:[%s656 + $0xa8] sm:$0xff]
        %v882 = vld [vmem:[%s656 + $0xb0] sm:$0xff]
        %v883 = vld [vmem:[%s656 + $0xb8] sm:$0xff]
        %v884 = vld [vmem:[%s656 + $0xc0] sm:$0xff]
        %v885 = vld [vmem:[%s656 + $0xc8] sm:$0xff]
        %v886 = vld [vmem:[%s656 + $0xd0] sm:$0xff]
        %v887 = vld [vmem:[%s656 + $0xd8] sm:$0xff]
        %v888 = vld [vmem:[%s656 + $0xe0] sm:$0xff]
        %v889 = vld [vmem:[%s656 + $0xe8] sm:$0xff]
        %v890 = vld [vmem:[%s656 + $0xf0] sm:$0xff]
        %v891 = vld [vmem:[%s656 + $0xf8] sm:$0xff]
        %v892 = vld [vmem:[%s656 + $0x100] sm:$0xff]
        %v893 = vld [vmem:[%s656 + $0x108] sm:$0xff]
        %v894 = vld [vmem:[%s656 + $0x110] sm:$0xff]
        %v895 = vld [vmem:[%s656 + $0x118] sm:$0xff]
        %v896 = vld [vmem:[%s656 + $0x120] sm:$0xff]
        %v897 = vld [vmem:[%s656 + $0x128] sm:$0xff]
        %v898 = vld [vmem:[%s656 + $0x130] sm:$0xff]
        %v899 = vld [vmem:[%s656 + $0x138] sm:$0xff]
        %v900 = vld [vmem:[%s656 + $0x140] sm:$0xff]
        %v901 = vld [vmem:[%s656 + $0x148] sm:$0xff]
        %v902 = vld [vmem:[%s656 + $0x150] sm:$0xff]
        %v903 = vld [vmem:[%s656 + $0x158] sm:$0xff]
        %v904 = vld [vmem:[%s656 + $0x160] sm:$0xff]
        %v905 = vld [vmem:[%s656 + $0x168] sm:$0xff]
        %v906 = vld [vmem:[%s656 + $0x170] sm:$0xff]
        %v907 = vld [vmem:[%s656 + $0x178] sm:$0xff]
        %v908 = vld [vmem:[%s656 + $0x180] sm:$0xff]
        %v909 = vld [vmem:[%s656 + $0x188] sm:$0xff]
        %v910 = vld [vmem:[%s656 + $0x190] sm:$0xff]
        %v911 = vld [vmem:[%s656 + $0x198] sm:$0xff]
        %v912 = vld [vmem:[%s656 + $0x1a0] sm:$0xff]
        %v913 = vld [vmem:[%s656 + $0x1a8] sm:$0xff]
        %v914 = vld [vmem:[%s656 + $0x1b0] sm:$0xff]
        %v915 = vld [vmem:[%s656 + $0x1b8] sm:$0xff]
        %v916 = vld [vmem:[%s656 + $0x1c0] sm:$0xff]
        %v917 = vld [vmem:[%s656 + $0x1c8] sm:$0xff]
        %v918 = vld [vmem:[%s656 + $0x1d0] sm:$0xff]
        %v919 = vld [vmem:[%s656 + $0x1d8] sm:$0xff]
        %v920 = vld [vmem:[%s656 + $0x1e0] sm:$0xff]
        %v921 = vld [vmem:[%s656 + $0x1e8] sm:$0xff]
        %v922 = vld [vmem:[%s656 + $0x1f0] sm:$0xff]
        %v923 = vld [vmem:[%s656 + $0x1f8] sm:$0xff]
        %v924 = vld [vmem:[%s656 + $0x200] sm:$0xff]
        %v925 = vld [vmem:[%s656 + $0x208] sm:$0xff]
        %v926 = vld [vmem:[%s656 + $0x210] sm:$0xff]
        %v927 = vld [vmem:[%s656 + $0x218] sm:$0xff]
        %v928 = vld [vmem:[%s656 + $0x220] sm:$0xff]
        %v929 = vld [vmem:[%s656 + $0x228] sm:$0xff]
        %v930 = vld [vmem:[%s656 + $0x230] sm:$0xff]
        %v931 = vld [vmem:[%s656 + $0x238] sm:$0xff]
        %v932 = vld [vmem:[%s656 + $0x240] sm:$0xff]
        %v933 = vld [vmem:[%s656 + $0x248] sm:$0xff]
        %v934 = vld [vmem:[%s656 + $0x250] sm:$0xff]
        %v935 = vld [vmem:[%s656 + $0x258] sm:$0xff]
        %v936 = vld [vmem:[%s656 + $0x260] sm:$0xff]
        %v937 = vld [vmem:[%s656 + $0x268] sm:$0xff]
        %v938 = vld [vmem:[%s656 + $0x270] sm:$0xff]
        %v939 = vld [vmem:[%s656 + $0x278] sm:$0xff]
        %v940 = vld [vmem:[%s656 + $0x280] sm:$0xff]
        %v941 = vld [vmem:[%s656 + $0x288] sm:$0xff]
        %v942 = vld [vmem:[%s656 + $0x290] sm:$0xff]
        %v943 = vld [vmem:[%s656 + $0x298] sm:$0xff]
        %v944 = vld [vmem:[%s656 + $0x2a0] sm:$0xff]
        %v945 = vld [vmem:[%s656 + $0x2a8] sm:$0xff]
        %v946 = vld [vmem:[%s656 + $0x2b0] sm:$0xff]
        %v947 = vld [vmem:[%s656 + $0x2b8] sm:$0xff]
        %v948 = vld [vmem:[%s656 + $0x2c0] sm:$0xff]
        %v949 = vld [vmem:[%s656 + $0x2c8] sm:$0xff]
        %v950 = vld [vmem:[%s656 + $0x2d0] sm:$0xff]
        %v951 = vld [vmem:[%s656 + $0x2d8] sm:$0xff]
        %v952 = vld [vmem:[%s656 + $0x2e0] sm:$0xff]
        %v953 = vld [vmem:[%s656 + $0x2e8] sm:$0xff]
        %v954 = vld [vmem:[%s656 + $0x2f0] sm:$0xff]
        %v955 = vld [vmem:[%s656 + $0x2f8] sm:$0xff]
        %v956 = vld [vmem:[%s656 + $0x300] sm:$0xff]
        %v957 = vld [vmem:[%s656 + $0x308] sm:$0xff]
        %v958 = vld [vmem:[%s656 + $0x310] sm:$0xff]
        %v959 = vld [vmem:[%s656 + $0x318] sm:$0xff]
        %v960 = vld [vmem:[%s656 + $0x320] sm:$0xff]
        %v961 = vld [vmem:[%s656 + $0x328] sm:$0xff]
        %v962 = vld [vmem:[%s656 + $0x330] sm:$0xff]
        %v963 = vld [vmem:[%s656 + $0x338] sm:$0xff]
        %v964 = vld [vmem:[%s656 + $0x340] sm:$0xff]
        %v965 = vld [vmem:[%s656 + $0x348] sm:$0xff]
        %v966 = vld [vmem:[%s656 + $0x350] sm:$0xff]
        %v967 = vld [vmem:[%s656 + $0x358] sm:$0xff]
        %v968 = vld [vmem:[%s656 + $0x360] sm:$0xff]
        %v969 = vld [vmem:[%s656 + $0x368] sm:$0xff]
        %v970 = vld [vmem:[%s656 + $0x370] sm:$0xff]
        %v971 = vld [vmem:[%s656 + $0x378] sm:$0xff]
        %v972 = vld [vmem:[%s656 + $0x380] sm:$0xff]
        %v973 = vld [vmem:[%s656 + $0x388] sm:$0xff]
        %v974 = vld [vmem:[%s656 + $0x390] sm:$0xff]
        %v975 = vld [vmem:[%s656 + $0x398] sm:$0xff]
        %v976 = vld [vmem:[%s656 + $0x3a0] sm:$0xff]
        %v977 = vld [vmem:[%s656 + $0x3a8] sm:$0xff]
        %v978 = vld [vmem:[%s656 + $0x3b0] sm:$0xff]
        %v979 = vld [vmem:[%s656 + $0x3b8] sm:$0xff]
        %v980 = vld [vmem:[%s656 + $0x3c0] sm:$0xff]
        %v981 = vld [vmem:[%s656 + $0x3c8] sm:$0xff]
        %v982 = vld [vmem:[%s656 + $0x3d0] sm:$0xff]
        %v983 = vld [vmem:[%s656 + $0x3d8] sm:$0xff]
        %v984 = vld [vmem:[%s656 + $0x3e0] sm:$0xff]
        %v985 = vld [vmem:[%s656 + $0x3e8] sm:$0xff]
        %v986 = vld [vmem:[%s656 + $0x3f0] sm:$0xff]
        %v987 = vld [vmem:[%s656 + $0x3f8] sm:$0xff]
        %v988 = vld [vmem:[%s656 + $0x400] sm:$0xff]
        %v989 = vld [vmem:[%s656 + $0x408] sm:$0xff]
        %v990 = vld [vmem:[%s656 + $0x410] sm:$0xff]
        %v991 = vld [vmem:[%s656 + $0x418] sm:$0xff]
        %v992 = vld [vmem:[%s656 + $0x420] sm:$0xff]
        %v993 = vld [vmem:[%s656 + $0x428] sm:$0xff]
        %v994 = vld [vmem:[%s656 + $0x430] sm:$0xff]
        %v995 = vld [vmem:[%s656 + $0x438] sm:$0xff]
        %v996 = vld [vmem:[%s656 + $0x440] sm:$0xff]
        %v997 = vld [vmem:[%s656 + $0x448] sm:$0xff]
        %v998 = vld [vmem:[%s656 + $0x450] sm:$0xff]
        %v999 = vld [vmem:[%s656 + $0x458] sm:$0xff]
        %v1000 = vld [vmem:[%s656 + $0x460] sm:$0xff]
        %v1001 = vld [vmem:[%s656 + $0x468] sm:$0xff]
        %v1002 = vld [vmem:[%s656 + $0x470] sm:$0xff]
        %v1003 = vld [vmem:[%s656 + $0x478] sm:$0xff]
        %v1004 = vld [vmem:[%s656 + $0x480] sm:$0xff]
        %v1005 = vld [vmem:[%s656 + $0x488] sm:$0xff]
        %v1006 = vld [vmem:[%s656 + $0x490] sm:$0xff]
        %v1007 = vld [vmem:[%s656 + $0x498] sm:$0xff]
        %v1008 = vld [vmem:[%s656 + $0x4a0] sm:$0xff]
        %v1009 = vld [vmem:[%s656 + $0x4a8] sm:$0xff]
        %v1010 = vld [vmem:[%s656 + $0x4b0] sm:$0xff]
        %v1011 = vld [vmem:[%s656 + $0x4b8] sm:$0xff]
        %v1012 = vld [vmem:[%s656 + $0x4c0] sm:$0xff]
        %v1013 = vld [vmem:[%s656 + $0x4c8] sm:$0xff]
        %v1014 = vld [vmem:[%s656 + $0x4d0] sm:$0xff]
        %v1015 = vld [vmem:[%s656 + $0x4d8] sm:$0xff]
        %v1016 = vld [vmem:[%s656 + $0x4e0] sm:$0xff]
        %v1017 = vld [vmem:[%s656 + $0x4e8] sm:$0xff]
        %v1018 = vld [vmem:[%s656 + $0x4f0] sm:$0xff]
        %v1019 = vld [vmem:[%s656 + $0x4f8] sm:$0xff]
        %v1020 = vld [vmem:[%s656 + $0x500] sm:$0xff]
        %v1021 = vld [vmem:[%s656 + $0x508] sm:$0xff]
        %v1022 = vld [vmem:[%s656 + $0x510] sm:$0xff]
        %v1023 = vld [vmem:[%s656 + $0x518] sm:$0xff]
        %v1024 = vld [vmem:[%s656 + $0x520] sm:$0xff]
        %v1025 = vld [vmem:[%s656 + $0x528] sm:$0xff]
        %v1026 = vld [vmem:[%s656 + $0x530] sm:$0xff]
        %v1027 = vld [vmem:[%s656 + $0x538] sm:$0xff]
        %v1028 = vld [vmem:[%s656 + $0x540] sm:$0xff]
        %v1029 = vld [vmem:[%s656 + $0x548] sm:$0xff]
        %v1030 = vld [vmem:[%s656 + $0x550] sm:$0xff]
        %v1031 = vld [vmem:[%s656 + $0x558] sm:$0xff]
        %v1032 = vld [vmem:[%s656 + $0x560] sm:$0xff]
        %v1033 = vld [vmem:[%s656 + $0x568] sm:$0xff]
        %v1034 = vld [vmem:[%s656 + $0x570] sm:$0xff]
        %v1035 = vld [vmem:[%s656 + $0x578] sm:$0xff]
        %v1036 = vld [vmem:[%s656 + $0x580] sm:$0xff]
        %v1037 = vld [vmem:[%s656 + $0x588] sm:$0xff]
        %v1038 = vld [vmem:[%s656 + $0x590] sm:$0xff]
        %v1039 = vld [vmem:[%s656 + $0x598] sm:$0xff]
        %v1040 = vld [vmem:[%s656 + $0x5a0] sm:$0xff]
        %v1041 = vld [vmem:[%s656 + $0x5a8] sm:$0xff]
        %v1042 = vld [vmem:[%s656 + $0x5b0] sm:$0xff]
        %v1043 = vld [vmem:[%s656 + $0x5b8] sm:$0xff]
        %v1044 = vld [vmem:[%s656 + $0x5c0] sm:$0xff]
        %v1045 = vld [vmem:[%s656 + $0x5c8] sm:$0xff]
        %v1046 = vld [vmem:[%s656 + $0x5d0] sm:$0xff]
        %v1047 = vld [vmem:[%s656 + $0x5d8] sm:$0xff]
        %v1048 = vld [vmem:[%s656 + $0x5e0] sm:$0xff]
        %v1049 = vld [vmem:[%s656 + $0x5e8] sm:$0xff]
        %v1050 = vld [vmem:[%s656 + $0x5f0] sm:$0xff]
        %v1051 = vld [vmem:[%s656 + $0x5f8] sm:$0xff]
        %v1052 = vld [vmem:[%s656 + $0x600] sm:$0xff]
        %v1053 = vld [vmem:[%s656 + $0x608] sm:$0xff]
        %v1054 = vld [vmem:[%s656 + $0x610] sm:$0xff]
        %v1055 = vld [vmem:[%s656 + $0x618] sm:$0xff]
        %v1056 = vld [vmem:[%s656 + $0x620] sm:$0xff]
        %v1057 = vld [vmem:[%s656 + $0x628] sm:$0xff]
        %v1058 = vld [vmem:[%s656 + $0x630] sm:$0xff]
        %v1059 = vld [vmem:[%s656 + $0x638] sm:$0xff]
        %v1060 = vld [vmem:[%s656 + $0x640] sm:$0xff]
        %v1061 = vld [vmem:[%s656 + $0x648] sm:$0xff]
        %v1062 = vld [vmem:[%s656 + $0x650] sm:$0xff]
        %v1063 = vld [vmem:[%s656 + $0x658] sm:$0xff]
        %v1064 = vld [vmem:[%s656 + $0x660] sm:$0xff]
        %v1065 = vld [vmem:[%s656 + $0x668] sm:$0xff]
        %v1066 = vld [vmem:[%s656 + $0x670] sm:$0xff]
        %v1067 = vld [vmem:[%s656 + $0x678] sm:$0xff]
        %v1068 = vld [vmem:[%s656 + $0x680] sm:$0xff]
        %v1069 = vld [vmem:[%s656 + $0x688] sm:$0xff]
        %v1070 = vld [vmem:[%s656 + $0x690] sm:$0xff]
        %v1071 = vld [vmem:[%s656 + $0x698] sm:$0xff]
        %v1072 = vld [vmem:[%s656 + $0x6a0] sm:$0xff]
        %v1073 = vld [vmem:[%s656 + $0x6a8] sm:$0xff]
        %v1074 = vld [vmem:[%s656 + $0x6b0] sm:$0xff]
        %v1075 = vld [vmem:[%s656 + $0x6b8] sm:$0xff]
        %v1076 = vld [vmem:[%s656 + $0x6c0] sm:$0xff]
        %v1077 = vld [vmem:[%s656 + $0x6c8] sm:$0xff]
        %v1078 = vld [vmem:[%s656 + $0x6d0] sm:$0xff]
        %v1079 = vld [vmem:[%s656 + $0x6d8] sm:$0xff]
        %v1080 = vld [vmem:[%s656 + $0x6e0] sm:$0xff]
        %v1081 = vld [vmem:[%s656 + $0x6e8] sm:$0xff]
        %v1082 = vld [vmem:[%s656 + $0x6f0] sm:$0xff]
        %v1083 = vld [vmem:[%s656 + $0x6f8] sm:$0xff]
        %v1084 = vld [vmem:[%s656 + $0x700] sm:$0xff]
        %v1085 = vld [vmem:[%s656 + $0x708] sm:$0xff]
        %v1086 = vld [vmem:[%s656 + $0x710] sm:$0xff]
        %v1087 = vld [vmem:[%s656 + $0x718] sm:$0xff]
        %v1088 = vld [vmem:[%s656 + $0x720] sm:$0xff]
        %v1089 = vld [vmem:[%s656 + $0x728] sm:$0xff]
        %v1090 = vld [vmem:[%s656 + $0x730] sm:$0xff]
        %v1091 = vld [vmem:[%s656 + $0x738] sm:$0xff]
        %v1092 = vld [vmem:[%s656 + $0x740] sm:$0xff]
        %v1093 = vld [vmem:[%s656 + $0x748] sm:$0xff]
        %v1094 = vld [vmem:[%s656 + $0x750] sm:$0xff]
        %v1095 = vld [vmem:[%s656 + $0x758] sm:$0xff]
        %v1096 = vld [vmem:[%s656 + $0x760] sm:$0xff]
        %v1097 = vld [vmem:[%s656 + $0x768] sm:$0xff]
        %v1098 = vld [vmem:[%s656 + $0x770] sm:$0xff]
        %v1099 = vld [vmem:[%s656 + $0x778] sm:$0xff]
        %v1100 = vld [vmem:[%s656 + $0x780] sm:$0xff]
        %v1101 = vld [vmem:[%s656 + $0x788] sm:$0xff]
        %v1102 = vld [vmem:[%s656 + $0x790] sm:$0xff]
        %v1103 = vld [vmem:[%s656 + $0x798] sm:$0xff]
        %v1104 = vld [vmem:[%s656 + $0x7a0] sm:$0xff]
        %v1105 = vld [vmem:[%s656 + $0x7a8] sm:$0xff]
        %v1106 = vld [vmem:[%s656 + $0x7b0] sm:$0xff]
        %v1107 = vld [vmem:[%s656 + $0x7b8] sm:$0xff]
        %v1108 = vld [vmem:[%s656 + $0x7c0] sm:$0xff]
        %v1109 = vld [vmem:[%s656 + $0x7c8] sm:$0xff]
        %v1110 = vld [vmem:[%s656 + $0x7d0] sm:$0xff]
        %v1111 = vld [vmem:[%s656 + $0x7d8] sm:$0xff]
        %v1112 = vld [vmem:[%s656 + $0x7e0] sm:$0xff]
        %v1113 = vld [vmem:[%s656 + $0x7e8] sm:$0xff]
        %v1114 = vld [vmem:[%s656 + $0x7f0] sm:$0xff]
        %v1115 = vld [vmem:[%s656 + $0x7f8] sm:$0xff]
        %v1116 = vld [vmem:[%s656 + $0x800] sm:$0xff]
        %v1117 = vld [vmem:[%s656 + $0x808] sm:$0xff]
        %v1118 = vld [vmem:[%s656 + $0x810] sm:$0xff]
        %v1119 = vld [vmem:[%s656 + $0x818] sm:$0xff]
        %v1120 = vld [vmem:[%s656 + $0x820] sm:$0xff]
        %v1121 = vld [vmem:[%s656 + $0x828] sm:$0xff]
        %v1122 = vld [vmem:[%s656 + $0x830] sm:$0xff]
        %v1123 = vld [vmem:[%s656 + $0x838] sm:$0xff]
        %v1124 = vld [vmem:[%s656 + $0x840] sm:$0xff]
        %v1125 = vld [vmem:[%s656 + $0x848] sm:$0xff]
        %v1126 = vld [vmem:[%s656 + $0x850] sm:$0xff]
        %v1127 = vld [vmem:[%s656 + $0x858] sm:$0xff]
        %v1128 = vld [vmem:[%s656 + $0x860] sm:$0xff]
        %v1129 = vld [vmem:[%s656 + $0x868] sm:$0xff]
        %v1130 = vld [vmem:[%s656 + $0x870] sm:$0xff]
        %v1131 = vld [vmem:[%s656 + $0x878] sm:$0xff]
        %v1132 = vld [vmem:[%s656 + $0x880] sm:$0xff]
        %v1133 = vld [vmem:[%s656 + $0x888] sm:$0xff]
        %v1134 = vld [vmem:[%s656 + $0x890] sm:$0xff]
        %v1135 = vld [vmem:[%s656 + $0x898] sm:$0xff]
        %v1136 = vld [vmem:[%s656 + $0x8a0] sm:$0xff]
        %v1137 = vld [vmem:[%s656 + $0x8a8] sm:$0xff]
        %v1138 = vld [vmem:[%s656 + $0x8b0] sm:$0xff]
        %v1139 = vld [vmem:[%s656 + $0x8b8] sm:$0xff]
        %v1140 = vld [vmem:[%s656 + $0x8c0] sm:$0xff]
        %v1141 = vld [vmem:[%s656 + $0x8c8] sm:$0xff]
        %v1142 = vld [vmem:[%s656 + $0x8d0] sm:$0xff]
        %v1143 = vld [vmem:[%s656 + $0x8d8] sm:$0xff]
        %v1144 = vld [vmem:[%s656 + $0x8e0] sm:$0xff]
        %v1145 = vld [vmem:[%s656 + $0x8e8] sm:$0xff]
        %v1146 = vld [vmem:[%s656 + $0x8f0] sm:$0xff]
        %v1147 = vld [vmem:[%s656 + $0x8f8] sm:$0xff]
        %v1436 = vunpack.c.l.b16 %v860
        %v1437 = vunpack.c.h.b16 %v860
        %v1438 = vunpack.c.l.b16 %v861
        %v1439 = vunpack.c.h.b16 %v861
        %v1440 = vunpack.c.l.b16 %v862
        %v1441 = vunpack.c.h.b16 %v862
        %v1442 = vunpack.c.l.b16 %v863
        %v1443 = vunpack.c.h.b16 %v863
        %v1444 = vunpack.c.l.b16 %v864
        %v1445 = vunpack.c.h.b16 %v864
        %v1446 = vunpack.c.l.b16 %v865
        %v1447 = vunpack.c.h.b16 %v865
        %v1448 = vunpack.c.l.b16 %v866
        %v1449 = vunpack.c.h.b16 %v866
        %v1450 = vunpack.c.l.b16 %v867
        %v1451 = vunpack.c.h.b16 %v867
        %v1452 = vunpack.c.l.b16 %v868
        %v1453 = vunpack.c.h.b16 %v868
        %v1454 = vunpack.c.l.b16 %v869
        %v1455 = vunpack.c.h.b16 %v869
        %v1456 = vunpack.c.l.b16 %v870
        %v1457 = vunpack.c.h.b16 %v870
        %v1458 = vunpack.c.l.b16 %v871
        %v1459 = vunpack.c.h.b16 %v871
        %v1460 = vunpack.c.l.b16 %v872
        %v1461 = vunpack.c.h.b16 %v872
        %v1462 = vunpack.c.l.b16 %v873
        %v1463 = vunpack.c.h.b16 %v873
        %v1464 = vunpack.c.l.b16 %v874
        %v1465 = vunpack.c.h.b16 %v874
        %v1466 = vunpack.c.l.b16 %v875
        %v1467 = vunpack.c.h.b16 %v875
        %v1468 = vunpack.c.l.b16 %v876
        %v1469 = vunpack.c.h.b16 %v876
        %v1470 = vunpack.c.l.b16 %v877
        %v1471 = vunpack.c.h.b16 %v877
        %v1472 = vunpack.c.l.b16 %v878
        %v1473 = vunpack.c.h.b16 %v878
        %v1474 = vunpack.c.l.b16 %v879
        %v1475 = vunpack.c.h.b16 %v879
        %v1476 = vunpack.c.l.b16 %v880
        %v1477 = vunpack.c.h.b16 %v880
        %v1478 = vunpack.c.l.b16 %v881
        %v1479 = vunpack.c.h.b16 %v881
        %v1480 = vunpack.c.l.b16 %v882
        %v1481 = vunpack.c.h.b16 %v882
        %v1482 = vunpack.c.l.b16 %v883
        %v1483 = vunpack.c.h.b16 %v883
        %v1484 = vunpack.c.l.b16 %v884
        %v1485 = vunpack.c.h.b16 %v884
        %v1486 = vunpack.c.l.b16 %v885
        %v1487 = vunpack.c.h.b16 %v885
        %v1488 = vunpack.c.l.b16 %v886
        %v1489 = vunpack.c.h.b16 %v886
        %v1490 = vunpack.c.l.b16 %v887
        %v1491 = vunpack.c.h.b16 %v887
        %v1492 = vunpack.c.l.b16 %v888
        %v1493 = vunpack.c.h.b16 %v888
        %v1494 = vunpack.c.l.b16 %v889
        %v1495 = vunpack.c.h.b16 %v889
        %v1496 = vunpack.c.l.b16 %v890
        %v1497 = vunpack.c.h.b16 %v890
        %v1498 = vunpack.c.l.b16 %v891
        %v1499 = vunpack.c.h.b16 %v891
        %v1500 = vunpack.c.l.b16 %v892
        %v1501 = vunpack.c.h.b16 %v892
        %v1502 = vunpack.c.l.b16 %v893
        %v1503 = vunpack.c.h.b16 %v893
        %v1504 = vunpack.c.l.b16 %v894
        %v1505 = vunpack.c.h.b16 %v894
        %v1506 = vunpack.c.l.b16 %v895
        %v1507 = vunpack.c.h.b16 %v895
        %v1508 = vunpack.c.l.b16 %v896
        %v1509 = vunpack.c.h.b16 %v896
        %v1510 = vunpack.c.l.b16 %v897
        %v1511 = vunpack.c.h.b16 %v897
        %v1512 = vunpack.c.l.b16 %v898
        %v1513 = vunpack.c.h.b16 %v898
        %v1514 = vunpack.c.l.b16 %v899
        %v1515 = vunpack.c.h.b16 %v899
        %v1516 = vunpack.c.l.b16 %v900
        %v1517 = vunpack.c.h.b16 %v900
        %v1518 = vunpack.c.l.b16 %v901
        %v1519 = vunpack.c.h.b16 %v901
        %v1520 = vunpack.c.l.b16 %v902
        %v1521 = vunpack.c.h.b16 %v902
        %v1522 = vunpack.c.l.b16 %v903
        %v1523 = vunpack.c.h.b16 %v903
        %v1524 = vunpack.c.l.b16 %v904
        %v1525 = vunpack.c.h.b16 %v904
        %v1526 = vunpack.c.l.b16 %v905
        %v1527 = vunpack.c.h.b16 %v905
        %v1528 = vunpack.c.l.b16 %v906
        %v1529 = vunpack.c.h.b16 %v906
        %v1530 = vunpack.c.l.b16 %v907
        %v1531 = vunpack.c.h.b16 %v907
        %v1532 = vunpack.c.l.b16 %v908
        %v1533 = vunpack.c.h.b16 %v908
        %v1534 = vunpack.c.l.b16 %v909
        %v1535 = vunpack.c.h.b16 %v909
        %v1536 = vunpack.c.l.b16 %v910
        %v1537 = vunpack.c.h.b16 %v910
        %v1538 = vunpack.c.l.b16 %v911
        %v1539 = vunpack.c.h.b16 %v911
        %v1540 = vunpack.c.l.b16 %v912
        %v1541 = vunpack.c.h.b16 %v912
        %v1542 = vunpack.c.l.b16 %v913
        %v1543 = vunpack.c.h.b16 %v913
        %v1544 = vunpack.c.l.b16 %v914
        %v1545 = vunpack.c.h.b16 %v914
        %v1546 = vunpack.c.l.b16 %v915
        %v1547 = vunpack.c.h.b16 %v915
        %v1548 = vunpack.c.l.b16 %v916
        %v1549 = vunpack.c.h.b16 %v916
        %v1550 = vunpack.c.l.b16 %v917
        %v1551 = vunpack.c.h.b16 %v917
        %v1552 = vunpack.c.l.b16 %v918
        %v1553 = vunpack.c.h.b16 %v918
        %v1554 = vunpack.c.l.b16 %v919
        %v1555 = vunpack.c.h.b16 %v919
        %v1556 = vunpack.c.l.b16 %v920
        %v1557 = vunpack.c.h.b16 %v920
        %v1558 = vunpack.c.l.b16 %v921
        %v1559 = vunpack.c.h.b16 %v921
        %v1560 = vunpack.c.l.b16 %v922
        %v1561 = vunpack.c.h.b16 %v922
        %v1562 = vunpack.c.l.b16 %v923
        %v1563 = vunpack.c.h.b16 %v923
        %v1564 = vunpack.c.l.b16 %v924
        %v1565 = vunpack.c.h.b16 %v924
        %v1566 = vunpack.c.l.b16 %v925
        %v1567 = vunpack.c.h.b16 %v925
        %v1568 = vunpack.c.l.b16 %v926
        %v1569 = vunpack.c.h.b16 %v926
        %v1570 = vunpack.c.l.b16 %v927
        %v1571 = vunpack.c.h.b16 %v927
        %v1572 = vunpack.c.l.b16 %v928
        %v1573 = vunpack.c.h.b16 %v928
        %v1574 = vunpack.c.l.b16 %v929
        %v1575 = vunpack.c.h.b16 %v929
        %v1576 = vunpack.c.l.b16 %v930
        %v1577 = vunpack.c.h.b16 %v930
        %v1578 = vunpack.c.l.b16 %v931
        %v1579 = vunpack.c.h.b16 %v931
        %v1580 = vunpack.c.l.b16 %v932
        %v1581 = vunpack.c.h.b16 %v932
        %v1582 = vunpack.c.l.b16 %v933
        %v1583 = vunpack.c.h.b16 %v933
        %v1584 = vunpack.c.l.b16 %v934
        %v1585 = vunpack.c.h.b16 %v934
        %v1586 = vunpack.c.l.b16 %v935
        %v1587 = vunpack.c.h.b16 %v935
        %v1588 = vunpack.c.l.b16 %v936
        %v1589 = vunpack.c.h.b16 %v936
        %v1590 = vunpack.c.l.b16 %v937
        %v1591 = vunpack.c.h.b16 %v937
        %v1592 = vunpack.c.l.b16 %v938
        %v1593 = vunpack.c.h.b16 %v938
        %v1594 = vunpack.c.l.b16 %v939
        %v1595 = vunpack.c.h.b16 %v939
        %v1596 = vunpack.c.l.b16 %v940
        %v1597 = vunpack.c.h.b16 %v940
        %v1598 = vunpack.c.l.b16 %v941
        %v1599 = vunpack.c.h.b16 %v941
        %v1600 = vunpack.c.l.b16 %v942
        %v1601 = vunpack.c.h.b16 %v942
        %v1602 = vunpack.c.l.b16 %v943
        %v1603 = vunpack.c.h.b16 %v943
        %v1604 = vunpack.c.l.b16 %v944
        %v1605 = vunpack.c.h.b16 %v944
        %v1606 = vunpack.c.l.b16 %v945
        %v1607 = vunpack.c.h.b16 %v945
        %v1608 = vunpack.c.l.b16 %v946
        %v1609 = vunpack.c.h.b16 %v946
        %v1610 = vunpack.c.l.b16 %v947
        %v1611 = vunpack.c.h.b16 %v947
        %v1612 = vunpack.c.l.b16 %v948
        %v1613 = vunpack.c.h.b16 %v948
        %v1614 = vunpack.c.l.b16 %v949
        %v1615 = vunpack.c.h.b16 %v949
        %v1616 = vunpack.c.l.b16 %v950
        %v1617 = vunpack.c.h.b16 %v950
        %v1618 = vunpack.c.l.b16 %v951
        %v1619 = vunpack.c.h.b16 %v951
        %v1620 = vunpack.c.l.b16 %v952
        %v1621 = vunpack.c.h.b16 %v952
        %v1622 = vunpack.c.l.b16 %v953
        %v1623 = vunpack.c.h.b16 %v953
        %v1624 = vunpack.c.l.b16 %v954
        %v1625 = vunpack.c.h.b16 %v954
        %v1626 = vunpack.c.l.b16 %v955
        %v1627 = vunpack.c.h.b16 %v955
        %v1628 = vunpack.c.l.b16 %v956
        %v1629 = vunpack.c.h.b16 %v956
        %v1630 = vunpack.c.l.b16 %v957
        %v1631 = vunpack.c.h.b16 %v957
        %v1632 = vunpack.c.l.b16 %v958
        %v1633 = vunpack.c.h.b16 %v958
        %v1634 = vunpack.c.l.b16 %v959
        %v1635 = vunpack.c.h.b16 %v959
        %v1636 = vunpack.c.l.b16 %v960
        %v1637 = vunpack.c.h.b16 %v960
        %v1638 = vunpack.c.l.b16 %v961
        %v1639 = vunpack.c.h.b16 %v961
        %v1640 = vunpack.c.l.b16 %v962
        %v1641 = vunpack.c.h.b16 %v962
        %v1642 = vunpack.c.l.b16 %v963
        %v1643 = vunpack.c.h.b16 %v963
        %v1644 = vunpack.c.l.b16 %v964
        %v1645 = vunpack.c.h.b16 %v964
        %v1646 = vunpack.c.l.b16 %v965
        %v1647 = vunpack.c.h.b16 %v965
        %v1648 = vunpack.c.l.b16 %v966
        %v1649 = vunpack.c.h.b16 %v966
        %v1650 = vunpack.c.l.b16 %v967
        %v1651 = vunpack.c.h.b16 %v967
        %v1652 = vunpack.c.l.b16 %v968
        %v1653 = vunpack.c.h.b16 %v968
        %v1654 = vunpack.c.l.b16 %v969
        %v1655 = vunpack.c.h.b16 %v969
        %v1656 = vunpack.c.l.b16 %v970
        %v1657 = vunpack.c.h.b16 %v970
        %v1658 = vunpack.c.l.b16 %v971
        %v1659 = vunpack.c.h.b16 %v971
        %v1660 = vunpack.c.l.b16 %v972
        %v1661 = vunpack.c.h.b16 %v972
        %v1662 = vunpack.c.l.b16 %v973
        %v1663 = vunpack.c.h.b16 %v973
        %v1664 = vunpack.c.l.b16 %v974
        %v1665 = vunpack.c.h.b16 %v974
        %v1666 = vunpack.c.l.b16 %v975
        %v1667 = vunpack.c.h.b16 %v975
        %v1668 = vunpack.c.l.b16 %v976
        %v1669 = vunpack.c.h.b16 %v976
        %v1670 = vunpack.c.l.b16 %v977
        %v1671 = vunpack.c.h.b16 %v977
        %v1672 = vunpack.c.l.b16 %v978
        %v1673 = vunpack.c.h.b16 %v978
        %v1674 = vunpack.c.l.b16 %v979
        %v1675 = vunpack.c.h.b16 %v979
        %v1676 = vunpack.c.l.b16 %v980
        %v1677 = vunpack.c.h.b16 %v980
        %v1678 = vunpack.c.l.b16 %v981
        %v1679 = vunpack.c.h.b16 %v981
        %v1680 = vunpack.c.l.b16 %v982
        %v1681 = vunpack.c.h.b16 %v982
        %v1682 = vunpack.c.l.b16 %v983
        %v1683 = vunpack.c.h.b16 %v983
        %v1684 = vunpack.c.l.b16 %v984
        %v1685 = vunpack.c.h.b16 %v984
        %v1686 = vunpack.c.l.b16 %v985
        %v1687 = vunpack.c.h.b16 %v985
        %v1688 = vunpack.c.l.b16 %v986
        %v1689 = vunpack.c.h.b16 %v986
        %v1690 = vunpack.c.l.b16 %v987
        %v1691 = vunpack.c.h.b16 %v987
        %v1692 = vunpack.c.l.b16 %v988
        %v1693 = vunpack.c.h.b16 %v988
        %v1694 = vunpack.c.l.b16 %v989
        %v1695 = vunpack.c.h.b16 %v989
        %v1696 = vunpack.c.l.b16 %v990
        %v1697 = vunpack.c.h.b16 %v990
        %v1698 = vunpack.c.l.b16 %v991
        %v1699 = vunpack.c.h.b16 %v991
        %v1700 = vunpack.c.l.b16 %v992
        %v1701 = vunpack.c.h.b16 %v992
        %v1702 = vunpack.c.l.b16 %v993
        %v1703 = vunpack.c.h.b16 %v993
        %v1704 = vunpack.c.l.b16 %v994
        %v1705 = vunpack.c.h.b16 %v994
        %v1706 = vunpack.c.l.b16 %v995
        %v1707 = vunpack.c.h.b16 %v995
        %v1708 = vunpack.c.l.b16 %v996
        %v1709 = vunpack.c.h.b16 %v996
        %v1710 = vunpack.c.l.b16 %v997
        %v1711 = vunpack.c.h.b16 %v997
        %v1712 = vunpack.c.l.b16 %v998
        %v1713 = vunpack.c.h.b16 %v998
        %v1714 = vunpack.c.l.b16 %v999
        %v1715 = vunpack.c.h.b16 %v999
        %v1716 = vunpack.c.l.b16 %v1000
        %v1717 = vunpack.c.h.b16 %v1000
        %v1718 = vunpack.c.l.b16 %v1001
        %v1719 = vunpack.c.h.b16 %v1001
        %v1720 = vunpack.c.l.b16 %v1002
        %v1721 = vunpack.c.h.b16 %v1002
        %v1722 = vunpack.c.l.b16 %v1003
        %v1723 = vunpack.c.h.b16 %v1003
        %v1724 = vunpack.c.l.b16 %v1004
        %v1725 = vunpack.c.h.b16 %v1004
        %v1726 = vunpack.c.l.b16 %v1005
        %v1727 = vunpack.c.h.b16 %v1005
        %v1728 = vunpack.c.l.b16 %v1006
        %v1729 = vunpack.c.h.b16 %v1006
        %v1730 = vunpack.c.l.b16 %v1007
        %v1731 = vunpack.c.h.b16 %v1007
        %v1732 = vunpack.c.l.b16 %v1008
        %v1733 = vunpack.c.h.b16 %v1008
        %v1734 = vunpack.c.l.b16 %v1009
        %v1735 = vunpack.c.h.b16 %v1009
        %v1736 = vunpack.c.l.b16 %v1010
        %v1737 = vunpack.c.h.b16 %v1010
        %v1738 = vunpack.c.l.b16 %v1011
        %v1739 = vunpack.c.h.b16 %v1011
        %v1740 = vunpack.c.l.b16 %v1012
        %v1741 = vunpack.c.h.b16 %v1012
        %v1742 = vunpack.c.l.b16 %v1013
        %v1743 = vunpack.c.h.b16 %v1013
        %v1744 = vunpack.c.l.b16 %v1014
        %v1745 = vunpack.c.h.b16 %v1014
        %v1746 = vunpack.c.l.b16 %v1015
        %v1747 = vunpack.c.h.b16 %v1015
        %v1748 = vunpack.c.l.b16 %v1016
        %v1749 = vunpack.c.h.b16 %v1016
        %v1750 = vunpack.c.l.b16 %v1017
        %v1751 = vunpack.c.h.b16 %v1017
        %v1752 = vunpack.c.l.b16 %v1018
        %v1753 = vunpack.c.h.b16 %v1018
        %v1754 = vunpack.c.l.b16 %v1019
        %v1755 = vunpack.c.h.b16 %v1019
        %v1756 = vunpack.c.l.b16 %v1020
        %v1757 = vunpack.c.h.b16 %v1020
        %v1758 = vunpack.c.l.b16 %v1021
        %v1759 = vunpack.c.h.b16 %v1021
        %v1760 = vunpack.c.l.b16 %v1022
        %v1761 = vunpack.c.h.b16 %v1022
        %v1762 = vunpack.c.l.b16 %v1023
        %v1763 = vunpack.c.h.b16 %v1023
        %v1764 = vunpack.c.l.b16 %v1024
        %v1765 = vunpack.c.h.b16 %v1024
        %v1766 = vunpack.c.l.b16 %v1025
        %v1767 = vunpack.c.h.b16 %v1025
        %v1768 = vunpack.c.l.b16 %v1026
        %v1769 = vunpack.c.h.b16 %v1026
        %v1770 = vunpack.c.l.b16 %v1027
        %v1771 = vunpack.c.h.b16 %v1027
        %v1772 = vunpack.c.l.b16 %v1028
        %v1773 = vunpack.c.h.b16 %v1028
        %v1774 = vunpack.c.l.b16 %v1029
        %v1775 = vunpack.c.h.b16 %v1029
        %v1776 = vunpack.c.l.b16 %v1030
        %v1777 = vunpack.c.h.b16 %v1030
        %v1778 = vunpack.c.l.b16 %v1031
        %v1779 = vunpack.c.h.b16 %v1031
        %v1780 = vunpack.c.l.b16 %v1032
        %v1781 = vunpack.c.h.b16 %v1032
        %v1782 = vunpack.c.l.b16 %v1033
        %v1783 = vunpack.c.h.b16 %v1033
        %v1784 = vunpack.c.l.b16 %v1034
        %v1785 = vunpack.c.h.b16 %v1034
        %v1786 = vunpack.c.l.b16 %v1035
        %v1787 = vunpack.c.h.b16 %v1035
        %v1788 = vunpack.c.l.b16 %v1036
        %v1789 = vunpack.c.h.b16 %v1036
        %v1790 = vunpack.c.l.b16 %v1037
        %v1791 = vunpack.c.h.b16 %v1037
        %v1792 = vunpack.c.l.b16 %v1038
        %v1793 = vunpack.c.h.b16 %v1038
        %v1794 = vunpack.c.l.b16 %v1039
        %v1795 = vunpack.c.h.b16 %v1039
        %v1796 = vunpack.c.l.b16 %v1040
        %v1797 = vunpack.c.h.b16 %v1040
        %v1798 = vunpack.c.l.b16 %v1041
        %v1799 = vunpack.c.h.b16 %v1041
        %v1800 = vunpack.c.l.b16 %v1042
        %v1801 = vunpack.c.h.b16 %v1042
        %v1802 = vunpack.c.l.b16 %v1043
        %v1803 = vunpack.c.h.b16 %v1043
        %v1804 = vunpack.c.l.b16 %v1044
        %v1805 = vunpack.c.h.b16 %v1044
        %v1806 = vunpack.c.l.b16 %v1045
        %v1807 = vunpack.c.h.b16 %v1045
        %v1808 = vunpack.c.l.b16 %v1046
        %v1809 = vunpack.c.h.b16 %v1046
        %v1810 = vunpack.c.l.b16 %v1047
        %v1811 = vunpack.c.h.b16 %v1047
        %v1812 = vunpack.c.l.b16 %v1048
        %v1813 = vunpack.c.h.b16 %v1048
        %v1814 = vunpack.c.l.b16 %v1049
        %v1815 = vunpack.c.h.b16 %v1049
        %v1816 = vunpack.c.l.b16 %v1050
        %v1817 = vunpack.c.h.b16 %v1050
        %v1818 = vunpack.c.l.b16 %v1051
        %v1819 = vunpack.c.h.b16 %v1051
        %v1820 = vunpack.c.l.b16 %v1052
        %v1821 = vunpack.c.h.b16 %v1052
        %v1822 = vunpack.c.l.b16 %v1053
        %v1823 = vunpack.c.h.b16 %v1053
        %v1824 = vunpack.c.l.b16 %v1054
        %v1825 = vunpack.c.h.b16 %v1054
        %v1826 = vunpack.c.l.b16 %v1055
        %v1827 = vunpack.c.h.b16 %v1055
        %v1828 = vunpack.c.l.b16 %v1056
        %v1829 = vunpack.c.h.b16 %v1056
        %v1830 = vunpack.c.l.b16 %v1057
        %v1831 = vunpack.c.h.b16 %v1057
        %v1832 = vunpack.c.l.b16 %v1058
        %v1833 = vunpack.c.h.b16 %v1058
        %v1834 = vunpack.c.l.b16 %v1059
        %v1835 = vunpack.c.h.b16 %v1059
        %v1836 = vunpack.c.l.b16 %v1060
        %v1837 = vunpack.c.h.b16 %v1060
        %v1838 = vunpack.c.l.b16 %v1061
        %v1839 = vunpack.c.h.b16 %v1061
        %v1840 = vunpack.c.l.b16 %v1062
        %v1841 = vunpack.c.h.b16 %v1062
        %v1842 = vunpack.c.l.b16 %v1063
        %v1843 = vunpack.c.h.b16 %v1063
        %v1844 = vunpack.c.l.b16 %v1064
        %v1845 = vunpack.c.h.b16 %v1064
        %v1846 = vunpack.c.l.b16 %v1065
        %v1847 = vunpack.c.h.b16 %v1065
        %v1848 = vunpack.c.l.b16 %v1066
        %v1849 = vunpack.c.h.b16 %v1066
        %v1850 = vunpack.c.l.b16 %v1067
        %v1851 = vunpack.c.h.b16 %v1067
        %v1852 = vunpack.c.l.b16 %v1068
        %v1853 = vunpack.c.h.b16 %v1068
        %v1854 = vunpack.c.l.b16 %v1069
        %v1855 = vunpack.c.h.b16 %v1069
        %v1856 = vunpack.c.l.b16 %v1070
        %v1857 = vunpack.c.h.b16 %v1070
        %v1858 = vunpack.c.l.b16 %v1071
        %v1859 = vunpack.c.h.b16 %v1071
        %v1860 = vunpack.c.l.b16 %v1072
        %v1861 = vunpack.c.h.b16 %v1072
        %v1862 = vunpack.c.l.b16 %v1073
        %v1863 = vunpack.c.h.b16 %v1073
        %v1864 = vunpack.c.l.b16 %v1074
        %v1865 = vunpack.c.h.b16 %v1074
        %v1866 = vunpack.c.l.b16 %v1075
        %v1867 = vunpack.c.h.b16 %v1075
        %v1868 = vunpack.c.l.b16 %v1076
        %v1869 = vunpack.c.h.b16 %v1076
        %v1870 = vunpack.c.l.b16 %v1077
        %v1871 = vunpack.c.h.b16 %v1077
        %v1872 = vunpack.c.l.b16 %v1078
        %v1873 = vunpack.c.h.b16 %v1078
        %v1874 = vunpack.c.l.b16 %v1079
        %v1875 = vunpack.c.h.b16 %v1079
        %v1876 = vunpack.c.l.b16 %v1080
        %v1877 = vunpack.c.h.b16 %v1080
        %v1878 = vunpack.c.l.b16 %v1081
        %v1879 = vunpack.c.h.b16 %v1081
        %v1880 = vunpack.c.l.b16 %v1082
        %v1881 = vunpack.c.h.b16 %v1082
        %v1882 = vunpack.c.l.b16 %v1083
        %v1883 = vunpack.c.h.b16 %v1083
        %v1884 = vunpack.c.l.b16 %v1084
        %v1885 = vunpack.c.h.b16 %v1084
        %v1886 = vunpack.c.l.b16 %v1085
        %v1887 = vunpack.c.h.b16 %v1085
        %v1888 = vunpack.c.l.b16 %v1086
        %v1889 = vunpack.c.h.b16 %v1086
        %v1890 = vunpack.c.l.b16 %v1087
        %v1891 = vunpack.c.h.b16 %v1087
        %v1892 = vunpack.c.l.b16 %v1088
        %v1893 = vunpack.c.h.b16 %v1088
        %v1894 = vunpack.c.l.b16 %v1089
        %v1895 = vunpack.c.h.b16 %v1089
        %v1896 = vunpack.c.l.b16 %v1090
        %v1897 = vunpack.c.h.b16 %v1090
        %v1898 = vunpack.c.l.b16 %v1091
        %v1899 = vunpack.c.h.b16 %v1091
        %v1900 = vunpack.c.l.b16 %v1092
        %v1901 = vunpack.c.h.b16 %v1092
        %v1902 = vunpack.c.l.b16 %v1093
        %v1903 = vunpack.c.h.b16 %v1093
        %v1904 = vunpack.c.l.b16 %v1094
        %v1905 = vunpack.c.h.b16 %v1094
        %v1906 = vunpack.c.l.b16 %v1095
        %v1907 = vunpack.c.h.b16 %v1095
        %v1908 = vunpack.c.l.b16 %v1096
        %v1909 = vunpack.c.h.b16 %v1096
        %v1910 = vunpack.c.l.b16 %v1097
        %v1911 = vunpack.c.h.b16 %v1097
        %v1912 = vunpack.c.l.b16 %v1098
        %v1913 = vunpack.c.h.b16 %v1098
        %v1914 = vunpack.c.l.b16 %v1099
        %v1915 = vunpack.c.h.b16 %v1099
        %v1916 = vunpack.c.l.b16 %v1100
        %v1917 = vunpack.c.h.b16 %v1100
        %v1918 = vunpack.c.l.b16 %v1101
        %v1919 = vunpack.c.h.b16 %v1101
        %v1920 = vunpack.c.l.b16 %v1102
        %v1921 = vunpack.c.h.b16 %v1102
        %v1922 = vunpack.c.l.b16 %v1103
        %v1923 = vunpack.c.h.b16 %v1103
        %v1924 = vunpack.c.l.b16 %v1104
        %v1925 = vunpack.c.h.b16 %v1104
        %v1926 = vunpack.c.l.b16 %v1105
        %v1927 = vunpack.c.h.b16 %v1105
        %v1928 = vunpack.c.l.b16 %v1106
        %v1929 = vunpack.c.h.b16 %v1106
        %v1930 = vunpack.c.l.b16 %v1107
        %v1931 = vunpack.c.h.b16 %v1107
        %v1932 = vunpack.c.l.b16 %v1108
        %v1933 = vunpack.c.h.b16 %v1108
        %v1934 = vunpack.c.l.b16 %v1109
        %v1935 = vunpack.c.h.b16 %v1109
        %v1936 = vunpack.c.l.b16 %v1110
        %v1937 = vunpack.c.h.b16 %v1110
        %v1938 = vunpack.c.l.b16 %v1111
        %v1939 = vunpack.c.h.b16 %v1111
        %v1940 = vunpack.c.l.b16 %v1112
        %v1941 = vunpack.c.h.b16 %v1112
        %v1942 = vunpack.c.l.b16 %v1113
        %v1943 = vunpack.c.h.b16 %v1113
        %v1944 = vunpack.c.l.b16 %v1114
        %v1945 = vunpack.c.h.b16 %v1114
        %v1946 = vunpack.c.l.b16 %v1115
        %v1947 = vunpack.c.h.b16 %v1115
        %v1948 = vunpack.c.l.b16 %v1116
        %v1949 = vunpack.c.h.b16 %v1116
        %v1950 = vunpack.c.l.b16 %v1117
        %v1951 = vunpack.c.h.b16 %v1117
        %v1952 = vunpack.c.l.b16 %v1118
        %v1953 = vunpack.c.h.b16 %v1118
        %v1954 = vunpack.c.l.b16 %v1119
        %v1955 = vunpack.c.h.b16 %v1119
        %v1956 = vunpack.c.l.b16 %v1120
        %v1957 = vunpack.c.h.b16 %v1120
        %v1958 = vunpack.c.l.b16 %v1121
        %v1959 = vunpack.c.h.b16 %v1121
        %v1960 = vunpack.c.l.b16 %v1122
        %v1961 = vunpack.c.h.b16 %v1122
        %v1962 = vunpack.c.l.b16 %v1123
        %v1963 = vunpack.c.h.b16 %v1123
        %v1964 = vunpack.c.l.b16 %v1124
        %v1965 = vunpack.c.h.b16 %v1124
        %v1966 = vunpack.c.l.b16 %v1125
        %v1967 = vunpack.c.h.b16 %v1125
        %v1968 = vunpack.c.l.b16 %v1126
        %v1969 = vunpack.c.h.b16 %v1126
        %v1970 = vunpack.c.l.b16 %v1127
        %v1971 = vunpack.c.h.b16 %v1127
        %v1972 = vunpack.c.l.b16 %v1128
        %v1973 = vunpack.c.h.b16 %v1128
        %v1974 = vunpack.c.l.b16 %v1129
        %v1975 = vunpack.c.h.b16 %v1129
        %v1976 = vunpack.c.l.b16 %v1130
        %v1977 = vunpack.c.h.b16 %v1130
        %v1978 = vunpack.c.l.b16 %v1131
        %v1979 = vunpack.c.h.b16 %v1131
        %v1980 = vunpack.c.l.b16 %v1132
        %v1981 = vunpack.c.h.b16 %v1132
        %v1982 = vunpack.c.l.b16 %v1133
        %v1983 = vunpack.c.h.b16 %v1133
        %v1984 = vunpack.c.l.b16 %v1134
        %v1985 = vunpack.c.h.b16 %v1134
        %v1986 = vunpack.c.l.b16 %v1135
        %v1987 = vunpack.c.h.b16 %v1135
        %v1988 = vunpack.c.l.b16 %v1136
        %v1989 = vunpack.c.h.b16 %v1136
        %v1990 = vunpack.c.l.b16 %v1137
        %v1991 = vunpack.c.h.b16 %v1137
        %v1992 = vunpack.c.l.b16 %v1138
        %v1993 = vunpack.c.h.b16 %v1138
        %v1994 = vunpack.c.l.b16 %v1139
        %v1995 = vunpack.c.h.b16 %v1139
        %v1996 = vunpack.c.l.b16 %v1140
        %v1997 = vunpack.c.h.b16 %v1140
        %v1998 = vunpack.c.l.b16 %v1141
        %v1999 = vunpack.c.h.b16 %v1141
        %v2000 = vunpack.c.l.b16 %v1142
        %v2001 = vunpack.c.h.b16 %v1142
        %v2002 = vunpack.c.l.b16 %v1143
        %v2003 = vunpack.c.h.b16 %v1143
        %v2004 = vunpack.c.l.b16 %v1144
        %v2005 = vunpack.c.h.b16 %v1144
        %v2006 = vunpack.c.l.b16 %v1145
        %v2007 = vunpack.c.h.b16 %v1145
        %v2008 = vunpack.c.l.b16 %v1146
        %v2009 = vunpack.c.h.b16 %v1146
        %v2010 = vunpack.c.l.b16 %v1147
        %v2011 = vunpack.c.h.b16 %v1147
        %v2012 = vpack.c.b16 %v1448, %v1436
        %v2013 = vpack.c.b16 %v1449, %v1437
        %v2014 = vpack.c.b16 %v1450, %v1438
        %v2015 = vpack.c.b16 %v1451, %v1439
        %v2016 = vpack.c.b16 %v1452, %v1440
        %v2017 = vpack.c.b16 %v1453, %v1441
        %v2018 = vpack.c.b16 %v1454, %v1442
        %v2019 = vpack.c.b16 %v1455, %v1443
        %v2020 = vpack.c.b16 %v1456, %v1444
        %v2021 = vpack.c.b16 %v1457, %v1445
        %v2022 = vpack.c.b16 %v1458, %v1446
        %v2023 = vpack.c.b16 %v1459, %v1447
        %v2024 = vpack.c.b16 %v1472, %v1460
        %v2025 = vpack.c.b16 %v1473, %v1461
        %v2026 = vpack.c.b16 %v1474, %v1462
        %v2027 = vpack.c.b16 %v1475, %v1463
        %v2028 = vpack.c.b16 %v1476, %v1464
        %v2029 = vpack.c.b16 %v1477, %v1465
        %v2030 = vpack.c.b16 %v1478, %v1466
        %v2031 = vpack.c.b16 %v1479, %v1467
        %v2032 = vpack.c.b16 %v1480, %v1468
        %v2033 = vpack.c.b16 %v1481, %v1469
        %v2034 = vpack.c.b16 %v1482, %v1470
        %v2035 = vpack.c.b16 %v1483, %v1471
        %v2036 = vpack.c.b16 %v1496, %v1484
        %v2037 = vpack.c.b16 %v1497, %v1485
        %v2038 = vpack.c.b16 %v1498, %v1486
        %v2039 = vpack.c.b16 %v1499, %v1487
        %v2040 = vpack.c.b16 %v1500, %v1488
        %v2041 = vpack.c.b16 %v1501, %v1489
        %v2042 = vpack.c.b16 %v1502, %v1490
        %v2043 = vpack.c.b16 %v1503, %v1491
        %v2044 = vpack.c.b16 %v1504, %v1492
        %v2045 = vpack.c.b16 %v1505, %v1493
        %v2046 = vpack.c.b16 %v1506, %v1494
        %v2047 = vpack.c.b16 %v1507, %v1495
        %v2048 = vpack.c.b16 %v1520, %v1508
        %v2049 = vpack.c.b16 %v1521, %v1509
        %v2050 = vpack.c.b16 %v1522, %v1510
        %v2051 = vpack.c.b16 %v1523, %v1511
        %v2052 = vpack.c.b16 %v1524, %v1512
        %v2053 = vpack.c.b16 %v1525, %v1513
        %v2054 = vpack.c.b16 %v1526, %v1514
        %v2055 = vpack.c.b16 %v1527, %v1515
        %v2056 = vpack.c.b16 %v1528, %v1516
        %v2057 = vpack.c.b16 %v1529, %v1517
        %v2058 = vpack.c.b16 %v1530, %v1518
        %v2059 = vpack.c.b16 %v1531, %v1519
        %v2060 = vpack.c.b16 %v1544, %v1532
        %v2061 = vpack.c.b16 %v1545, %v1533
        %v2062 = vpack.c.b16 %v1546, %v1534
        %v2063 = vpack.c.b16 %v1547, %v1535
        %v2064 = vpack.c.b16 %v1548, %v1536
        %v2065 = vpack.c.b16 %v1549, %v1537
        %v2066 = vpack.c.b16 %v1550, %v1538
        %v2067 = vpack.c.b16 %v1551, %v1539
        %v2068 = vpack.c.b16 %v1552, %v1540
        %v2069 = vpack.c.b16 %v1553, %v1541
        %v2070 = vpack.c.b16 %v1554, %v1542
        %v2071 = vpack.c.b16 %v1555, %v1543
        %v2072 = vpack.c.b16 %v1568, %v1556
        %v2073 = vpack.c.b16 %v1569, %v1557
        %v2074 = vpack.c.b16 %v1570, %v1558
        %v2075 = vpack.c.b16 %v1571, %v1559
        %v2076 = vpack.c.b16 %v1572, %v1560
        %v2077 = vpack.c.b16 %v1573, %v1561
        %v2078 = vpack.c.b16 %v1574, %v1562
        %v2079 = vpack.c.b16 %v1575, %v1563
        %v2080 = vpack.c.b16 %v1576, %v1564
        %v2081 = vpack.c.b16 %v1577, %v1565
        %v2082 = vpack.c.b16 %v1578, %v1566
        %v2083 = vpack.c.b16 %v1579, %v1567
        %v2084 = vpack.c.b16 %v1592, %v1580
        %v2085 = vpack.c.b16 %v1593, %v1581
        %v2086 = vpack.c.b16 %v1594, %v1582
        %v2087 = vpack.c.b16 %v1595, %v1583
        %v2088 = vpack.c.b16 %v1596, %v1584
        %v2089 = vpack.c.b16 %v1597, %v1585
        %v2090 = vpack.c.b16 %v1598, %v1586
        %v2091 = vpack.c.b16 %v1599, %v1587
        %v2092 = vpack.c.b16 %v1600, %v1588
        %v2093 = vpack.c.b16 %v1601, %v1589
        %v2094 = vpack.c.b16 %v1602, %v1590
        %v2095 = vpack.c.b16 %v1603, %v1591
        %v2096 = vpack.c.b16 %v1616, %v1604
        %v2097 = vpack.c.b16 %v1617, %v1605
        %v2098 = vpack.c.b16 %v1618, %v1606
        %v2099 = vpack.c.b16 %v1619, %v1607
        %v2100 = vpack.c.b16 %v1620, %v1608
        %v2101 = vpack.c.b16 %v1621, %v1609
        %v2102 = vpack.c.b16 %v1622, %v1610
        %v2103 = vpack.c.b16 %v1623, %v1611
        %v2104 = vpack.c.b16 %v1624, %v1612
        %v2105 = vpack.c.b16 %v1625, %v1613
        %v2106 = vpack.c.b16 %v1626, %v1614
        %v2107 = vpack.c.b16 %v1627, %v1615
        %v2108 = vpack.c.b16 %v1640, %v1628
        %v2109 = vpack.c.b16 %v1641, %v1629
        %v2110 = vpack.c.b16 %v1642, %v1630
        %v2111 = vpack.c.b16 %v1643, %v1631
        %v2112 = vpack.c.b16 %v1644, %v1632
        %v2113 = vpack.c.b16 %v1645, %v1633
        %v2114 = vpack.c.b16 %v1646, %v1634
        %v2115 = vpack.c.b16 %v1647, %v1635
        %v2116 = vpack.c.b16 %v1648, %v1636
        %v2117 = vpack.c.b16 %v1649, %v1637
        %v2118 = vpack.c.b16 %v1650, %v1638
        %v2119 = vpack.c.b16 %v1651, %v1639
        %v2120 = vpack.c.b16 %v1664, %v1652
        %v2121 = vpack.c.b16 %v1665, %v1653
        %v2122 = vpack.c.b16 %v1666, %v1654
        %v2123 = vpack.c.b16 %v1667, %v1655
        %v2124 = vpack.c.b16 %v1668, %v1656
        %v2125 = vpack.c.b16 %v1669, %v1657
        %v2126 = vpack.c.b16 %v1670, %v1658
        %v2127 = vpack.c.b16 %v1671, %v1659
        %v2128 = vpack.c.b16 %v1672, %v1660
        %v2129 = vpack.c.b16 %v1673, %v1661
        %v2130 = vpack.c.b16 %v1674, %v1662
        %v2131 = vpack.c.b16 %v1675, %v1663
        %v2132 = vpack.c.b16 %v1688, %v1676
        %v2133 = vpack.c.b16 %v1689, %v1677
        %v2134 = vpack.c.b16 %v1690, %v1678
        %v2135 = vpack.c.b16 %v1691, %v1679
        %v2136 = vpack.c.b16 %v1692, %v1680
        %v2137 = vpack.c.b16 %v1693, %v1681
        %v2138 = vpack.c.b16 %v1694, %v1682
        %v2139 = vpack.c.b16 %v1695, %v1683
        %v2140 = vpack.c.b16 %v1696, %v1684
        %v2141 = vpack.c.b16 %v1697, %v1685
        %v2142 = vpack.c.b16 %v1698, %v1686
        %v2143 = vpack.c.b16 %v1699, %v1687
        %v2144 = vpack.c.b16 %v1712, %v1700
        %v2145 = vpack.c.b16 %v1713, %v1701
        %v2146 = vpack.c.b16 %v1714, %v1702
        %v2147 = vpack.c.b16 %v1715, %v1703
        %v2148 = vpack.c.b16 %v1716, %v1704
        %v2149 = vpack.c.b16 %v1717, %v1705
        %v2150 = vpack.c.b16 %v1718, %v1706
        %v2151 = vpack.c.b16 %v1719, %v1707
        %v2152 = vpack.c.b16 %v1720, %v1708
        %v2153 = vpack.c.b16 %v1721, %v1709
        %v2154 = vpack.c.b16 %v1722, %v1710
        %v2155 = vpack.c.b16 %v1723, %v1711
        %v2156 = vpack.c.b16 %v1736, %v1724
        %v2157 = vpack.c.b16 %v1737, %v1725
        %v2158 = vpack.c.b16 %v1738, %v1726
        %v2159 = vpack.c.b16 %v1739, %v1727
        %v2160 = vpack.c.b16 %v1740, %v1728
        %v2161 = vpack.c.b16 %v1741, %v1729
        %v2162 = vpack.c.b16 %v1742, %v1730
        %v2163 = vpack.c.b16 %v1743, %v1731
        %v2164 = vpack.c.b16 %v1744, %v1732
        %v2165 = vpack.c.b16 %v1745, %v1733
        %v2166 = vpack.c.b16 %v1746, %v1734
        %v2167 = vpack.c.b16 %v1747, %v1735
        %v2168 = vpack.c.b16 %v1760, %v1748
        %v2169 = vpack.c.b16 %v1761, %v1749
        %v2170 = vpack.c.b16 %v1762, %v1750
        %v2171 = vpack.c.b16 %v1763, %v1751
        %v2172 = vpack.c.b16 %v1764, %v1752
        %v2173 = vpack.c.b16 %v1765, %v1753
        %v2174 = vpack.c.b16 %v1766, %v1754
        %v2175 = vpack.c.b16 %v1767, %v1755
        %v2176 = vpack.c.b16 %v1768, %v1756
        %v2177 = vpack.c.b16 %v1769, %v1757
        %v2178 = vpack.c.b16 %v1770, %v1758
        %v2179 = vpack.c.b16 %v1771, %v1759
        %v2180 = vpack.c.b16 %v1784, %v1772
        %v2181 = vpack.c.b16 %v1785, %v1773
        %v2182 = vpack.c.b16 %v1786, %v1774
        %v2183 = vpack.c.b16 %v1787, %v1775
        %v2184 = vpack.c.b16 %v1788, %v1776
        %v2185 = vpack.c.b16 %v1789, %v1777
        %v2186 = vpack.c.b16 %v1790, %v1778
        %v2187 = vpack.c.b16 %v1791, %v1779
        %v2188 = vpack.c.b16 %v1792, %v1780
        %v2189 = vpack.c.b16 %v1793, %v1781
        %v2190 = vpack.c.b16 %v1794, %v1782
        %v2191 = vpack.c.b16 %v1795, %v1783
        %v2192 = vpack.c.b16 %v1808, %v1796
        %v2193 = vpack.c.b16 %v1809, %v1797
        %v2194 = vpack.c.b16 %v1810, %v1798
        %v2195 = vpack.c.b16 %v1811, %v1799
        %v2196 = vpack.c.b16 %v1812, %v1800
        %v2197 = vpack.c.b16 %v1813, %v1801
        %v2198 = vpack.c.b16 %v1814, %v1802
        %v2199 = vpack.c.b16 %v1815, %v1803
        %v2200 = vpack.c.b16 %v1816, %v1804
        %v2201 = vpack.c.b16 %v1817, %v1805
        %v2202 = vpack.c.b16 %v1818, %v1806
        %v2203 = vpack.c.b16 %v1819, %v1807
        %v2204 = vpack.c.b16 %v1832, %v1820
        %v2205 = vpack.c.b16 %v1833, %v1821
        %v2206 = vpack.c.b16 %v1834, %v1822
        %v2207 = vpack.c.b16 %v1835, %v1823
        %v2208 = vpack.c.b16 %v1836, %v1824
        %v2209 = vpack.c.b16 %v1837, %v1825
        %v2210 = vpack.c.b16 %v1838, %v1826
        %v2211 = vpack.c.b16 %v1839, %v1827
        %v2212 = vpack.c.b16 %v1840, %v1828
        %v2213 = vpack.c.b16 %v1841, %v1829
        %v2214 = vpack.c.b16 %v1842, %v1830
        %v2215 = vpack.c.b16 %v1843, %v1831
        %v2216 = vpack.c.b16 %v1856, %v1844
        %v2217 = vpack.c.b16 %v1857, %v1845
        %v2218 = vpack.c.b16 %v1858, %v1846
        %v2219 = vpack.c.b16 %v1859, %v1847
        %v2220 = vpack.c.b16 %v1860, %v1848
        %v2221 = vpack.c.b16 %v1861, %v1849
        %v2222 = vpack.c.b16 %v1862, %v1850
        %v2223 = vpack.c.b16 %v1863, %v1851
        %v2224 = vpack.c.b16 %v1864, %v1852
        %v2225 = vpack.c.b16 %v1865, %v1853
        %v2226 = vpack.c.b16 %v1866, %v1854
        %v2227 = vpack.c.b16 %v1867, %v1855
        %v2228 = vpack.c.b16 %v1880, %v1868
        %v2229 = vpack.c.b16 %v1881, %v1869
        %v2230 = vpack.c.b16 %v1882, %v1870
        %v2231 = vpack.c.b16 %v1883, %v1871
        %v2232 = vpack.c.b16 %v1884, %v1872
        %v2233 = vpack.c.b16 %v1885, %v1873
        %v2234 = vpack.c.b16 %v1886, %v1874
        %v2235 = vpack.c.b16 %v1887, %v1875
        %v2236 = vpack.c.b16 %v1888, %v1876
        %v2237 = vpack.c.b16 %v1889, %v1877
        %v2238 = vpack.c.b16 %v1890, %v1878
        %v2239 = vpack.c.b16 %v1891, %v1879
        %v2240 = vpack.c.b16 %v1904, %v1892
        %v2241 = vpack.c.b16 %v1905, %v1893
        %v2242 = vpack.c.b16 %v1906, %v1894
        %v2243 = vpack.c.b16 %v1907, %v1895
        %v2244 = vpack.c.b16 %v1908, %v1896
        %v2245 = vpack.c.b16 %v1909, %v1897
        %v2246 = vpack.c.b16 %v1910, %v1898
        %v2247 = vpack.c.b16 %v1911, %v1899
        %v2248 = vpack.c.b16 %v1912, %v1900
        %v2249 = vpack.c.b16 %v1913, %v1901
        %v2250 = vpack.c.b16 %v1914, %v1902
        %v2251 = vpack.c.b16 %v1915, %v1903
        %v2252 = vpack.c.b16 %v1928, %v1916
        %v2253 = vpack.c.b16 %v1929, %v1917
        %v2254 = vpack.c.b16 %v1930, %v1918
        %v2255 = vpack.c.b16 %v1931, %v1919
        %v2256 = vpack.c.b16 %v1932, %v1920
        %v2257 = vpack.c.b16 %v1933, %v1921
        %v2258 = vpack.c.b16 %v1934, %v1922
        %v2259 = vpack.c.b16 %v1935, %v1923
        %v2260 = vpack.c.b16 %v1936, %v1924
        %v2261 = vpack.c.b16 %v1937, %v1925
        %v2262 = vpack.c.b16 %v1938, %v1926
        %v2263 = vpack.c.b16 %v1939, %v1927
        %v2264 = vpack.c.b16 %v1952, %v1940
        %v2265 = vpack.c.b16 %v1953, %v1941
        %v2266 = vpack.c.b16 %v1954, %v1942
        %v2267 = vpack.c.b16 %v1955, %v1943
        %v2268 = vpack.c.b16 %v1956, %v1944
        %v2269 = vpack.c.b16 %v1957, %v1945
        %v2270 = vpack.c.b16 %v1958, %v1946
        %v2271 = vpack.c.b16 %v1959, %v1947
        %v2272 = vpack.c.b16 %v1960, %v1948
        %v2273 = vpack.c.b16 %v1961, %v1949
        %v2274 = vpack.c.b16 %v1962, %v1950
        %v2275 = vpack.c.b16 %v1963, %v1951
        %v2276 = vpack.c.b16 %v1976, %v1964
        %v2277 = vpack.c.b16 %v1977, %v1965
        %v2278 = vpack.c.b16 %v1978, %v1966
        %v2279 = vpack.c.b16 %v1979, %v1967
        %v2280 = vpack.c.b16 %v1980, %v1968
        %v2281 = vpack.c.b16 %v1981, %v1969
        %v2282 = vpack.c.b16 %v1982, %v1970
        %v2283 = vpack.c.b16 %v1983, %v1971
        %v2284 = vpack.c.b16 %v1984, %v1972
        %v2285 = vpack.c.b16 %v1985, %v1973
        %v2286 = vpack.c.b16 %v1986, %v1974
        %v2287 = vpack.c.b16 %v1987, %v1975
        %v2288 = vpack.c.b16 %v2000, %v1988
        %v2289 = vpack.c.b16 %v2001, %v1989
        %v2290 = vpack.c.b16 %v2002, %v1990
        %v2291 = vpack.c.b16 %v2003, %v1991
        %v2292 = vpack.c.b16 %v2004, %v1992
        %v2293 = vpack.c.b16 %v2005, %v1993
        %v2294 = vpack.c.b16 %v2006, %v1994
        %v2295 = vpack.c.b16 %v2007, %v1995
        %v2296 = vpack.c.b16 %v2008, %v1996
        %v2297 = vpack.c.b16 %v2009, %v1997
        %v2298 = vpack.c.b16 %v2010, %v1998
        %v2299 = vpack.c.b16 %v2011, %v1999
        %2588 = vmatprep.subr.bf16.mxu0 %v2013
        %2589 = vmatpush1.bf16.msra.mxu0 %v2012
        %2590 = vmatprep.subr.bf16.mxu0 %v2025
        %2591 = vmatpush1.bf16.msra.mxu0 %v2024
        %2592 = vmatprep.subr.bf16.mxu0 %v2037
        %2593 = vmatpush1.bf16.msra.mxu0 %v2036
        %2594 = vmatprep.subr.bf16.mxu0 %v2049
        %2595 = vmatpush1.bf16.msra.mxu0 %v2048
        %2596 = vmatprep.subr.bf16.mxu0 %v2061
        %2597 = vmatpush1.bf16.msra.mxu0 %v2060
        %2598 = vmatprep.subr.bf16.mxu0 %v2073
        %2599 = vmatpush1.bf16.msra.mxu0 %v2072
        %2600 = vmatprep.subr.bf16.mxu0 %v2085
        %2601 = vmatpush1.bf16.msra.mxu0 %v2084
        %2602 = vmatprep.subr.bf16.mxu0 %v2097
        %2603 = vmatpush1.bf16.msra.mxu0 %v2096
        %2604 = vmatprep.subr.bf16.mxu0 %v2109
        %2605 = vmatpush1.bf16.msra.mxu0 %v2108
        %2606 = vmatprep.subr.bf16.mxu0 %v2121
        %2607 = vmatpush1.bf16.msra.mxu0 %v2120
        %2608 = vmatprep.subr.bf16.mxu0 %v2133
        %2609 = vmatpush1.bf16.msra.mxu0 %v2132
        %2610 = vmatprep.subr.bf16.mxu0 %v2145
        %2611 = vmatpush1.bf16.msra.mxu0 %v2144
        %2612 = vmatprep.subr.bf16.mxu0 %v2157
        %2613 = vmatpush1.bf16.msra.mxu0 %v2156
        %2614 = vmatprep.subr.bf16.mxu0 %v2169
        %2615 = vmatpush1.bf16.msra.mxu0 %v2168
        %2616 = vmatprep.subr.bf16.mxu0 %v2181
        %2617 = vmatpush1.bf16.msra.mxu0 %v2180
        %2618 = vmatprep.subr.bf16.mxu0 %v2193
        %2619 = vmatpush1.bf16.msra.mxu0 %v2192
        %2620 = vmatprep.mubr.bf16.mxu0 %v858
        %2621 = vmatmul.mubr.bf16.gmra.mrb[0].mxu0 %v857
        %v2622 = vpop.f32.mrb[0].mxu0
        %v2623 = vadd.f32 0.0, %v2622
        %v2624 = vpop.f32.mrb[0].mxu0
        %v2625 = vadd.f32 0.0, %v2624
        %v2626 = vpop.f32.mrb[0].mxu0
        %v2627 = vadd.f32 0.0, %v2626
        %v2628 = vpop.f32.mrb[0].mxu0
        %v2629 = vadd.f32 0.0, %v2628
        %2630 = vdwg.mxu0
        %2631 = vmatprep.subr.bf16.mxu0 %v2205
        %2632 = vmatpush1.bf16.msra.mxu0 %v2204
        %2633 = vmatprep.subr.bf16.mxu0 %v2217
        %2634 = vmatpush1.bf16.msra.mxu0 %v2216
        %2635 = vmatprep.subr.bf16.mxu0 %v2229
        %2636 = vmatpush1.bf16.msra.mxu0 %v2228
        %2637 = vmatprep.subr.bf16.mxu0 %v2241
        %2638 = vmatpush1.bf16.msra.mxu0 %v2240
        %2639 = vmatprep.subr.bf16.mxu0 %v2253
        %2640 = vmatpush1.bf16.msra.mxu0 %v2252
        %2641 = vmatprep.subr.bf16.mxu0 %v2265
        %2642 = vmatpush1.bf16.msra.mxu0 %v2264
        %2643 = vmatprep.subr.bf16.mxu0 %v2277
        %2644 = vmatpush1.bf16.msra.mxu0 %v2276
        %2645 = vmatprep.subr.bf16.mxu0 %v2289
        %2646 = vmatpush1.bf16.msra.mxu0 %v2288
        %2647 = vmatprep.subr.bf16.mxu0 0
        %2648 = vmatpush1.bf16.msra.mxu0 0
        %2649 = vmatprep.subr.bf16.mxu0 0
        %2650 = vmatpush1.bf16.msra.mxu0 0
        %2651 = vmatprep.subr.bf16.mxu0 0
        %2652 = vmatpush1.bf16.msra.mxu0 0
        %2653 = vmatprep.subr.bf16.mxu0 0
        %2654 = vmatpush1.bf16.msra.mxu0 0
        %2655 = vmatprep.subr.bf16.mxu0 0
        %2656 = vmatpush1.bf16.msra.mxu0 0
        %2657 = vmatprep.subr.bf16.mxu0 0
        %2658 = vmatpush1.bf16.msra.mxu0 0
        %2659 = vmatprep.subr.bf16.mxu0 0
        %2660 = vmatpush1.bf16.msra.mxu0 0
        %2661 = vmatprep.subr.bf16.mxu0 0
        %2662 = vmatpush1.bf16.msra.mxu0 0
        %2663 = vmatprep.mubr.bf16.mxu0 0
        %2664 = vmatmul.mubr.bf16.gmra.mrb[0].mxu0 %v859
        %v2665 = vpop.f32.mrb[0].mxu0
        %v2666 = vadd.f32 %v2623, %v2665
        %v2667 = vpop.f32.mrb[0].mxu0
        %v2668 = vadd.f32 %v2625, %v2667
        %v2669 = vpop.f32.mrb[0].mxu0
        %v2670 = vadd.f32 %v2627, %v2669
        %v2671 = vpop.f32.mrb[0].mxu0
        %v2672 = vadd.f32 %v2629, %v2671
        %2673 = vdwg.mxu0
        %2674 = vmatprep.subr.bf16.mxu0 %v2015
        %2675 = vmatpush1.bf16.msra.mxu0 %v2014
        %2676 = vmatprep.subr.bf16.mxu0 %v2027
        %2677 = vmatpush1.bf16.msra.mxu0 %v2026
        %2678 = vmatprep.subr.bf16.mxu0 %v2039
        %2679 = vmatpush1.bf16.msra.mxu0 %v2038
        %2680 = vmatprep.subr.bf16.mxu0 %v2051
        %2681 = vmatpush1.bf16.msra.mxu0 %v2050
        %2682 = vmatprep.subr.bf16.mxu0 %v2063
        %2683 = vmatpush1.bf16.msra.mxu0 %v2062
        %2684 = vmatprep.subr.bf16.mxu0 %v2075
        %2685 = vmatpush1.bf16.msra.mxu0 %v2074
        %2686 = vmatprep.subr.bf16.mxu0 %v2087
        %2687 = vmatpush1.bf16.msra.mxu0 %v2086
        %2688 = vmatprep.subr.bf16.mxu0 %v2099
        %2689 = vmatpush1.bf16.msra.mxu0 %v2098
        %2690 = vmatprep.subr.bf16.mxu0 %v2111
        %2691 = vmatpush1.bf16.msra.mxu0 %v2110
        %2692 = vmatprep.subr.bf16.mxu0 %v2123
        %2693 = vmatpush1.bf16.msra.mxu0 %v2122
        %2694 = vmatprep.subr.bf16.mxu0 %v2135
        %2695 = vmatpush1.bf16.msra.mxu0 %v2134
        %2696 = vmatprep.subr.bf16.mxu0 %v2147
        %2697 = vmatpush1.bf16.msra.mxu0 %v2146
        %2698 = vmatprep.subr.bf16.mxu0 %v2159
        %2699 = vmatpush1.bf16.msra.mxu0 %v2158
        %2700 = vmatprep.subr.bf16.mxu0 %v2171
        %2701 = vmatpush1.bf16.msra.mxu0 %v2170
        %2702 = vmatprep.subr.bf16.mxu0 %v2183
        %2703 = vmatpush1.bf16.msra.mxu0 %v2182
        %2704 = vmatprep.subr.bf16.mxu0 %v2195
        %2705 = vmatpush1.bf16.msra.mxu0 %v2194
        %2706 = vmatprep.mubr.bf16.mxu0 %v858
        %2707 = vmatmul.mubr.bf16.gmra.mrb[0].mxu0 %v857
        %v2708 = vpop.f32.mrb[0].mxu0
        %v2709 = vadd.f32 0.0, %v2708
        %v2710 = vpop.f32.mrb[0].mxu0
        %v2711 = vadd.f32 0.0, %v2710
        %v2712 = vpop.f32.mrb[0].mxu0
        %v2713 = vadd.f32 0.0, %v2712
        %v2714 = vpop.f32.mrb[0].mxu0
        %v2715 = vadd.f32 0.0, %v2714
        %2716 = vdwg.mxu0
        %2717 = vmatprep.subr.bf16.mxu0 %v2207
        %2718 = vmatpush1.bf16.msra.mxu0 %v2206
        %2719 = vmatprep.subr.bf16.mxu0 %v2219
        %2720 = vmatpush1.bf16.msra.mxu0 %v2218
        %2721 = vmatprep.subr.bf16.mxu0 %v2231
        %2722 = vmatpush1.bf16.msra.mxu0 %v2230
        %2723 = vmatprep.subr.bf16.mxu0 %v2243
        %2724 = vmatpush1.bf16.msra.mxu0 %v2242
        %2725 = vmatprep.subr.bf16.mxu0 %v2255
        %2726 = vmatpush1.bf16.msra.mxu0 %v2254
        %2727 = vmatprep.subr.bf16.mxu0 %v2267
        %2728 = vmatpush1.bf16.msra.mxu0 %v2266
        %2729 = vmatprep.subr.bf16.mxu0 %v2279
        %2730 = vmatpush1.bf16.msra.mxu0 %v2278
        %2731 = vmatprep.subr.bf16.mxu0 %v2291
        %2732 = vmatpush1.bf16.msra.mxu0 %v2290
        %2733 = vmatprep.subr.bf16.mxu0 0
        %2734 = vmatpush1.bf16.msra.mxu0 0
        %2735 = vmatprep.subr.bf16.mxu0 0
        %2736 = vmatpush1.bf16.msra.mxu0 0
        %2737 = vmatprep.subr.bf16.mxu0 0
        %2738 = vmatpush1.bf16.msra.mxu0 0
        %2739 = vmatprep.subr.bf16.mxu0 0
        %2740 = vmatpush1.bf16.msra.mxu0 0
        %2741 = vmatprep.subr.bf16.mxu0 0
        %2742 = vmatpush1.bf16.msra.mxu0 0
        %2743 = vmatprep.subr.bf16.mxu0 0
        %2744 = vmatpush1.bf16.msra.mxu0 0
        %2745 = vmatprep.subr.bf16.mxu0 0
        %2746 = vmatpush1.bf16.msra.mxu0 0
        %2747 = vmatprep.subr.bf16.mxu0 0
        %2748 = vmatpush1.bf16.msra.mxu0 0
        %2749 = vmatprep.mubr.bf16.mxu0 0
        %2750 = vmatmul.mubr.bf16.gmra.mrb[0].mxu0 %v859
        %v2751 = vpop.f32.mrb[0].mxu0
        %v2752 = vadd.f32 %v2709, %v2751
        %v2753 = vpop.f32.mrb[0].mxu0
        %v2754 = vadd.f32 %v2711, %v2753
        %v2755 = vpop.f32.mrb[0].mxu0
        %v2756 = vadd.f32 %v2713, %v2755
        %v2757 = vpop.f32.mrb[0].mxu0
        %v2758 = vadd.f32 %v2715, %v2757
        %2759 = vdwg.mxu0
        %2760 = vmatprep.subr.bf16.mxu0 %v2017
        %2761 = vmatpush1.bf16.msra.mxu0 %v2016
        %2762 = vmatprep.subr.bf16.mxu0 %v2029
        %2763 = vmatpush1.bf16.msra.mxu0 %v2028
        %2764 = vmatprep.subr.bf16.mxu0 %v2041
        %2765 = vmatpush1.bf16.msra.mxu0 %v2040
        %2766 = vmatprep.subr.bf16.mxu0 %v2053
        %2767 = vmatpush1.bf16.msra.mxu0 %v2052
        %2768 = vmatprep.subr.bf16.mxu0 %v2065
        %2769 = vmatpush1.bf16.msra.mxu0 %v2064
        %2770 = vmatprep.subr.bf16.mxu0 %v2077
        %2771 = vmatpush1.bf16.msra.mxu0 %v2076
        %2772 = vmatprep.subr.bf16.mxu0 %v2089
        %2773 = vmatpush1.bf16.msra.mxu0 %v2088
        %2774 = vmatprep.subr.bf16.mxu0 %v2101
        %2775 = vmatpush1.bf16.msra.mxu0 %v2100
        %2776 = vmatprep.subr.bf16.mxu0 %v2113
        %2777 = vmatpush1.bf16.msra.mxu0 %v2112
        %2778 = vmatprep.subr.bf16.mxu0 %v2125
        %2779 = vmatpush1.bf16.msra.mxu0 %v2124
        %2780 = vmatprep.subr.bf16.mxu0 %v2137
        %2781 = vmatpush1.bf16.msra.mxu0 %v2136
        %2782 = vmatprep.subr.bf16.mxu0 %v2149
        %2783 = vmatpush1.bf16.msra.mxu0 %v2148
        %2784 = vmatprep.subr.bf16.mxu0 %v2161
        %2785 = vmatpush1.bf16.msra.mxu0 %v2160
        %2786 = vmatprep.subr.bf16.mxu0 %v2173
        %2787 = vmatpush1.bf16.msra.mxu0 %v2172
        %2788 = vmatprep.subr.bf16.mxu0 %v2185
        %2789 = vmatpush1.bf16.msra.mxu0 %v2184
        %2790 = vmatprep.subr.bf16.mxu0 %v2197
        %2791 = vmatpush1.bf16.msra.mxu0 %v2196
        %2792 = vmatprep.mubr.bf16.mxu0 %v858
        %2793 = vmatmul.mubr.bf16.gmra.mrb[0].mxu0 %v857
        %v2794 = vpop.f32.mrb[0].mxu0
        %v2795 = vadd.f32 0.0, %v2794
        %v2796 = vpop.f32.mrb[0].mxu0
        %v2797 = vadd.f32 0.0, %v2796
        %v2798 = vpop.f32.mrb[0].mxu0
        %v2799 = vadd.f32 0.0, %v2798
        %v2800 = vpop.f32.mrb[0].mxu0
        %v2801 = vadd.f32 0.0, %v2800
        %2802 = vdwg.mxu0
        %2803 = vmatprep.subr.bf16.mxu0 %v2209
        %2804 = vmatpush1.bf16.msra.mxu0 %v2208
        %2805 = vmatprep.subr.bf16.mxu0 %v2221
        %2806 = vmatpush1.bf16.msra.mxu0 %v2220
        %2807 = vmatprep.subr.bf16.mxu0 %v2233
        %2808 = vmatpush1.bf16.msra.mxu0 %v2232
        %2809 = vmatprep.subr.bf16.mxu0 %v2245
        %2810 = vmatpush1.bf16.msra.mxu0 %v2244
        %2811 = vmatprep.subr.bf16.mxu0 %v2257
        %2812 = vmatpush1.bf16.msra.mxu0 %v2256
        %2813 = vmatprep.subr.bf16.mxu0 %v2269
        %2814 = vmatpush1.bf16.msra.mxu0 %v2268
        %2815 = vmatprep.subr.bf16.mxu0 %v2281
        %2816 = vmatpush1.bf16.msra.mxu0 %v2280
        %2817 = vmatprep.subr.bf16.mxu0 %v2293
        %2818 = vmatpush1.bf16.msra.mxu0 %v2292
        %2819 = vmatprep.subr.bf16.mxu0 0
        %2820 = vmatpush1.bf16.msra.mxu0 0
        %2821 = vmatprep.subr.bf16.mxu0 0
        %2822 = vmatpush1.bf16.msra.mxu0 0
        %2823 = vmatprep.subr.bf16.mxu0 0
        %2824 = vmatpush1.bf16.msra.mxu0 0
        %2825 = vmatprep.subr.bf16.mxu0 0
        %2826 = vmatpush1.bf16.msra.mxu0 0
        %2827 = vmatprep.subr.bf16.mxu0 0
        %2828 = vmatpush1.bf16.msra.mxu0 0
        %2829 = vmatprep.subr.bf16.mxu0 0
        %2830 = vmatpush1.bf16.msra.mxu0 0
        %2831 = vmatprep.subr.bf16.mxu0 0
        %2832 = vmatpush1.bf16.msra.mxu0 0
        %2833 = vmatprep.subr.bf16.mxu0 0
        %2834 = vmatpush1.bf16.msra.mxu0 0
        %2835 = vmatprep.mubr.bf16.mxu0 0
        %2836 = vmatmul.mubr.bf16.gmra.mrb[0].mxu0 %v859
        %v2837 = vpop.f32.mrb[0].mxu0
        %v2838 = vadd.f32 %v2795, %v2837
        %v2839 = vpop.f32.mrb[0].mxu0
        %v2840 = vadd.f32 %v2797, %v2839
        %v2841 = vpop.f32.mrb[0].mxu0
        %v2842 = vadd.f32 %v2799, %v2841
        %v2843 = vpop.f32.mrb[0].mxu0
        %v2844 = vadd.f32 %v2801, %v2843
        %2845 = vdwg.mxu0
        %2846 = vmatprep.subr.bf16.mxu0 %v2019
        %2847 = vmatpush1.bf16.msra.mxu0 %v2018
        %2848 = vmatprep.subr.bf16.mxu0 %v2031
        %2849 = vmatpush1.bf16.msra.mxu0 %v2030
        %2850 = vmatprep.subr.bf16.mxu0 %v2043
        %2851 = vmatpush1.bf16.msra.mxu0 %v2042
        %2852 = vmatprep.subr.bf16.mxu0 %v2055
        %2853 = vmatpush1.bf16.msra.mxu0 %v2054
        %2854 = vmatprep.subr.bf16.mxu0 %v2067
        %2855 = vmatpush1.bf16.msra.mxu0 %v2066
        %2856 = vmatprep.subr.bf16.mxu0 %v2079
        %2857 = vmatpush1.bf16.msra.mxu0 %v2078
        %2858 = vmatprep.subr.bf16.mxu0 %v2091
        %2859 = vmatpush1.bf16.msra.mxu0 %v2090
        %2860 = vmatprep.subr.bf16.mxu0 %v2103
        %2861 = vmatpush1.bf16.msra.mxu0 %v2102
        %2862 = vmatprep.subr.bf16.mxu0 %v2115
        %2863 = vmatpush1.bf16.msra.mxu0 %v2114
        %2864 = vmatprep.subr.bf16.mxu0 %v2127
        %2865 = vmatpush1.bf16.msra.mxu0 %v2126
        %2866 = vmatprep.subr.bf16.mxu0 %v2139
        %2867 = vmatpush1.bf16.msra.mxu0 %v2138
        %2868 = vmatprep.subr.bf16.mxu0 %v2151
        %2869 = vmatpush1.bf16.msra.mxu0 %v2150
        %2870 = vmatprep.subr.bf16.mxu0 %v2163
        %2871 = vmatpush1.bf16.msra.mxu0 %v2162
        %2872 = vmatprep.subr.bf16.mxu0 %v2175
        %2873 = vmatpush1.bf16.msra.mxu0 %v2174
        %2874 = vmatprep.subr.bf16.mxu0 %v2187
        %2875 = vmatpush1.bf16.msra.mxu0 %v2186
        %2876 = vmatprep.subr.bf16.mxu0 %v2199
        %2877 = vmatpush1.bf16.msra.mxu0 %v2198
        %2878 = vmatprep.mubr.bf16.mxu0 %v858
        %2879 = vmatmul.mubr.bf16.gmra.mrb[0].mxu0 %v857
        %v2880 = vpop.f32.mrb[0].mxu0
        %v2881 = vadd.f32 0.0, %v2880
        %v2882 = vpop.f32.mrb[0].mxu0
        %v2883 = vadd.f32 0.0, %v2882
        %v2884 = vpop.f32.mrb[0].mxu0
        %v2885 = vadd.f32 0.0, %v2884
        %v2886 = vpop.f32.mrb[0].mxu0
        %v2887 = vadd.f32 0.0, %v2886
        %2888 = vdwg.mxu0
        %2889 = vmatprep.subr.bf16.mxu0 %v2211
        %2890 = vmatpush1.bf16.msra.mxu0 %v2210
        %2891 = vmatprep.subr.bf16.mxu0 %v2223
        %2892 = vmatpush1.bf16.msra.mxu0 %v2222
        %2893 = vmatprep.subr.bf16.mxu0 %v2235
        %2894 = vmatpush1.bf16.msra.mxu0 %v2234
        %2895 = vmatprep.subr.bf16.mxu0 %v2247
        %2896 = vmatpush1.bf16.msra.mxu0 %v2246
        %2897 = vmatprep.subr.bf16.mxu0 %v2259
        %2898 = vmatpush1.bf16.msra.mxu0 %v2258
        %2899 = vmatprep.subr.bf16.mxu0 %v2271
        %2900 = vmatpush1.bf16.msra.mxu0 %v2270
        %2901 = vmatprep.subr.bf16.mxu0 %v2283
        %2902 = vmatpush1.bf16.msra.mxu0 %v2282
        %2903 = vmatprep.subr.bf16.mxu0 %v2295
        %2904 = vmatpush1.bf16.msra.mxu0 %v2294
        %2905 = vmatprep.subr.bf16.mxu0 0
        %2906 = vmatpush1.bf16.msra.mxu0 0
        %2907 = vmatprep.subr.bf16.mxu0 0
        %2908 = vmatpush1.bf16.msra.mxu0 0
        %2909 = vmatprep.subr.bf16.mxu0 0
        %2910 = vmatpush1.bf16.msra.mxu0 0
        %2911 = vmatprep.subr.bf16.mxu0 0
        %2912 = vmatpush1.bf16.msra.mxu0 0
        %2913 = vmatprep.subr.bf16.mxu0 0
        %2914 = vmatpush1.bf16.msra.mxu0 0
        %2915 = vmatprep.subr.bf16.mxu0 0
        %2916 = vmatpush1.bf16.msra.mxu0 0
        %2917 = vmatprep.subr.bf16.mxu0 0
        %2918 = vmatpush1.bf16.msra.mxu0 0
        %2919 = vmatprep.subr.bf16.mxu0 0
        %2920 = vmatpush1.bf16.msra.mxu0 0
        %2921 = vmatprep.mubr.bf16.mxu0 0
        %2922 = vmatmul.mubr.bf16.gmra.mrb[0].mxu0 %v859
        %v2923 = vpop.f32.mrb[0].mxu0
        %v2924 = vadd.f32 %v2881, %v2923
        %v2925 = vpop.f32.mrb[0].mxu0
        %v2926 = vadd.f32 %v2883, %v2925
        %v2927 = vpop.f32.mrb[0].mxu0
        %v2928 = vadd.f32 %v2885, %v2927
        %v2929 = vpop.f32.mrb[0].mxu0
        %v2930 = vadd.f32 %v2887, %v2929
        %2931 = vdwg.mxu0
        %2932 = vmatprep.subr.bf16.mxu0 %v2021
        %2933 = vmatpush1.bf16.msra.mxu0 %v2020
        %2934 = vmatprep.subr.bf16.mxu0 %v2033
        %2935 = vmatpush1.bf16.msra.mxu0 %v2032
        %2936 = vmatprep.subr.bf16.mxu0 %v2045
        %2937 = vmatpush1.bf16.msra.mxu0 %v2044
        %2938 = vmatprep.subr.bf16.mxu0 %v2057
        %2939 = vmatpush1.bf16.msra.mxu0 %v2056
        %2940 = vmatprep.subr.bf16.mxu0 %v2069
        %2941 = vmatpush1.bf16.msra.mxu0 %v2068
        %2942 = vmatprep.subr.bf16.mxu0 %v2081
        %2943 = vmatpush1.bf16.msra.mxu0 %v2080
        %2944 = vmatprep.subr.bf16.mxu0 %v2093
        %2945 = vmatpush1.bf16.msra.mxu0 %v2092
        %2946 = vmatprep.subr.bf16.mxu0 %v2105
        %2947 = vmatpush1.bf16.msra.mxu0 %v2104
        %2948 = vmatprep.subr.bf16.mxu0 %v2117
        %2949 = vmatpush1.bf16.msra.mxu0 %v2116
        %2950 = vmatprep.subr.bf16.mxu0 %v2129
        %2951 = vmatpush1.bf16.msra.mxu0 %v2128
        %2952 = vmatprep.subr.bf16.mxu0 %v2141
        %2953 = vmatpush1.bf16.msra.mxu0 %v2140
        %2954 = vmatprep.subr.bf16.mxu0 %v2153
        %2955 = vmatpush1.bf16.msra.mxu0 %v2152
        %2956 = vmatprep.subr.bf16.mxu0 %v2165
        %2957 = vmatpush1.bf16.msra.mxu0 %v2164
        %2958 = vmatprep.subr.bf16.mxu0 %v2177
        %2959 = vmatpush1.bf16.msra.mxu0 %v2176
        %2960 = vmatprep.subr.bf16.mxu0 %v2189
        %2961 = vmatpush1.bf16.msra.mxu0 %v2188
        %2962 = vmatprep.subr.bf16.mxu0 %v2201
        %2963 = vmatpush1.bf16.msra.mxu0 %v2200
        %2964 = vmatprep.mubr.bf16.mxu0 %v858
        %2965 = vmatmul.mubr.bf16.gmra.mrb[0].mxu0 %v857
        %v2966 = vpop.f32.mrb[0].mxu0
        %v2967 = vadd.f32 0.0, %v2966
        %v2968 = vpop.f32.mrb[0].mxu0
        %v2969 = vadd.f32 0.0, %v2968
        %v2970 = vpop.f32.mrb[0].mxu0
        %v2971 = vadd.f32 0.0, %v2970
        %v2972 = vpop.f32.mrb[0].mxu0
        %v2973 = vadd.f32 0.0, %v2972
        %2974 = vdwg.mxu0
        %2975 = vmatprep.subr.bf16.mxu0 %v2213
        %2976 = vmatpush1.bf16.msra.mxu0 %v2212
        %2977 = vmatprep.subr.bf16.mxu0 %v2225
        %2978 = vmatpush1.bf16.msra.mxu0 %v2224
        %2979 = vmatprep.subr.bf16.mxu0 %v2237
        %2980 = vmatpush1.bf16.msra.mxu0 %v2236
        %2981 = vmatprep.subr.bf16.mxu0 %v2249
        %2982 = vmatpush1.bf16.msra.mxu0 %v2248
        %2983 = vmatprep.subr.bf16.mxu0 %v2261
        %2984 = vmatpush1.bf16.msra.mxu0 %v2260
        %2985 = vmatprep.subr.bf16.mxu0 %v2273
        %2986 = vmatpush1.bf16.msra.mxu0 %v2272
        %2987 = vmatprep.subr.bf16.mxu0 %v2285
        %2988 = vmatpush1.bf16.msra.mxu0 %v2284
        %2989 = vmatprep.subr.bf16.mxu0 %v2297
        %2990 = vmatpush1.bf16.msra.mxu0 %v2296
        %2991 = vmatprep.subr.bf16.mxu0 0
        %2992 = vmatpush1.bf16.msra.mxu0 0
        %2993 = vmatprep.subr.bf16.mxu0 0
        %2994 = vmatpush1.bf16.msra.mxu0 0
        %2995 = vmatprep.subr.bf16.mxu0 0
        %2996 = vmatpush1.bf16.msra.mxu0 0
        %2997 = vmatprep.subr.bf16.mxu0 0
        %2998 = vmatpush1.bf16.msra.mxu0 0
        %2999 = vmatprep.subr.bf16.mxu0 0
        %3000 = vmatpush1.bf16.msra.mxu0 0
        %3001 = vmatprep.subr.bf16.mxu0 0
        %3002 = vmatpush1.bf16.msra.mxu0 0
        %3003 = vmatprep.subr.bf16.mxu0 0
        %3004 = vmatpush1.bf16.msra.mxu0 0
        %3005 = vmatprep.subr.bf16.mxu0 0
        %3006 = vmatpush1.bf16.msra.mxu0 0
        %3007 = vmatprep.mubr.bf16.mxu0 0
        %3008 = vmatmul.mubr.bf16.gmra.mrb[0].mxu0 %v859
        %v3009 = vpop.f32.mrb[0].mxu0
        %v3010 = vadd.f32 %v2967, %v3009
        %v3011 = vpop.f32.mrb[0].mxu0
        %v3012 = vadd.f32 %v2969, %v3011
        %v3013 = vpop.f32.mrb[0].mxu0
        %v3014 = vadd.f32 %v2971, %v3013
        %v3015 = vpop.f32.mrb[0].mxu0
        %v3016 = vadd.f32 %v2973, %v3015
        %3017 = vdwg.mxu0
        %3018 = vmatprep.subr.bf16.mxu0 %v2023
        %3019 = vmatpush1.bf16.msra.mxu0 %v2022
        %3020 = vmatprep.subr.bf16.mxu0 %v2035
        %3021 = vmatpush1.bf16.msra.mxu0 %v2034
        %3022 = vmatprep.subr.bf16.mxu0 %v2047
        %3023 = vmatpush1.bf16.msra.mxu0 %v2046
        %3024 = vmatprep.subr.bf16.mxu0 %v2059
        %3025 = vmatpush1.bf16.msra.mxu0 %v2058
        %3026 = vmatprep.subr.bf16.mxu0 %v2071
        %3027 = vmatpush1.bf16.msra.mxu0 %v2070
        %3028 = vmatprep.subr.bf16.mxu0 %v2083
        %3029 = vmatpush1.bf16.msra.mxu0 %v2082
        %3030 = vmatprep.subr.bf16.mxu0 %v2095
        %3031 = vmatpush1.bf16.msra.mxu0 %v2094
        %3032 = vmatprep.subr.bf16.mxu0 %v2107
        %3033 = vmatpush1.bf16.msra.mxu0 %v2106
        %3034 = vmatprep.subr.bf16.mxu0 %v2119
        %3035 = vmatpush1.bf16.msra.mxu0 %v2118
        %3036 = vmatprep.subr.bf16.mxu0 %v2131
        %3037 = vmatpush1.bf16.msra.mxu0 %v2130
        %3038 = vmatprep.subr.bf16.mxu0 %v2143
        %3039 = vmatpush1.bf16.msra.mxu0 %v2142
        %3040 = vmatprep.subr.bf16.mxu0 %v2155
        %3041 = vmatpush1.bf16.msra.mxu0 %v2154
        %3042 = vmatprep.subr.bf16.mxu0 %v2167
        %3043 = vmatpush1.bf16.msra.mxu0 %v2166
        %3044 = vmatprep.subr.bf16.mxu0 %v2179
        %3045 = vmatpush1.bf16.msra.mxu0 %v2178
        %3046 = vmatprep.subr.bf16.mxu0 %v2191
        %3047 = vmatpush1.bf16.msra.mxu0 %v2190
        %3048 = vmatprep.subr.bf16.mxu0 %v2203
        %3049 = vmatpush1.bf16.msra.mxu0 %v2202
        %3050 = vmatprep.mubr.bf16.mxu0 %v858
        %3051 = vmatmul.mubr.bf16.gmra.mrb[0].mxu0 %v857
        %v3052 = vpop.f32.mrb[0].mxu0
        %v3053 = vadd.f32 0.0, %v3052
        %v3054 = vpop.f32.mrb[0].mxu0
        %v3055 = vadd.f32 0.0, %v3054
        %v3056 = vpop.f32.mrb[0].mxu0
        %v3057 = vadd.f32 0.0, %v3056
        %v3058 = vpop.f32.mrb[0].mxu0
        %v3059 = vadd.f32 0.0, %v3058
        %3060 = vdwg.mxu0
        %3061 = vmatprep.subr.bf16.mxu0 %v2215
        %3062 = vmatpush1.bf16.msra.mxu0 %v2214
        %3063 = vmatprep.subr.bf16.mxu0 %v2227
        %3064 = vmatpush1.bf16.msra.mxu0 %v2226
        %3065 = vmatprep.subr.bf16.mxu0 %v2239
        %3066 = vmatpush1.bf16.msra.mxu0 %v2238
        %3067 = vmatprep.subr.bf16.mxu0 %v2251
        %3068 = vmatpush1.bf16.msra.mxu0 %v2250
        %3069 = vmatprep.subr.bf16.mxu0 %v2263
        %3070 = vmatpush1.bf16.msra.mxu0 %v2262
        %3071 = vmatprep.subr.bf16.mxu0 %v2275
        %3072 = vmatpush1.bf16.msra.mxu0 %v2274
        %3073 = vmatprep.subr.bf16.mxu0 %v2287
        %3074 = vmatpush1.bf16.msra.mxu0 %v2286
        %3075 = vmatprep.subr.bf16.mxu0 %v2299
        %3076 = vmatpush1.bf16.msra.mxu0 %v2298
        %3077 = vmatprep.subr.bf16.mxu0 0
        %3078 = vmatpush1.bf16.msra.mxu0 0
        %3079 = vmatprep.subr.bf16.mxu0 0
        %3080 = vmatpush1.bf16.msra.mxu0 0
        %3081 = vmatprep.subr.bf16.mxu0 0
        %3082 = vmatpush1.bf16.msra.mxu0 0
        %3083 = vmatprep.subr.bf16.mxu0 0
        %3084 = vmatpush1.bf16.msra.mxu0 0
        %3085 = vmatprep.subr.bf16.mxu0 0
        %3086 = vmatpush1.bf16.msra.mxu0 0
        %3087 = vmatprep.subr.bf16.mxu0 0
        %3088 = vmatpush1.bf16.msra.mxu0 0
        %3089 = vmatprep.subr.bf16.mxu0 0
        %3090 = vmatpush1.bf16.msra.mxu0 0
        %3091 = vmatprep.subr.bf16.mxu0 0
        %3092 = vmatpush1.bf16.msra.mxu0 0
        %3093 = vmatprep.mubr.bf16.mxu0 0
        %3094 = vmatmul.mubr.bf16.gmra.mrb[0].mxu0 %v859
        %v3095 = vpop.f32.mrb[0].mxu0
        %v3096 = vadd.f32 %v3053, %v3095
        %v3097 = vpop.f32.mrb[0].mxu0
        %v3098 = vadd.f32 %v3055, %v3097
        %v3099 = vpop.f32.mrb[0].mxu0
        %v3100 = vadd.f32 %v3057, %v3099
        %v3101 = vpop.f32.mrb[0].mxu0
        %v3102 = vadd.f32 %v3059, %v3101
        %3103 = vdwg.mxu0
        %v3104 = vlaneseq
        %v3105 = vshrl.u32 %v3104, 7
        %v3106 = vlaneseq
        %v3107 = vand.u32 %v3106, 127
        %vm3108 = vcmp.ge.s32.totalorder %v3105, %v3107
        %v3109 = vpack.c.bf16 %v2666, %v2666
        %v3110 = vpack.c.bf16 %v2670, %v2670
        %v3111 = vpack.c.bf16 %v2838, %v2838
        %v3112 = vpack.c.bf16 %v2842, %v2842
        %v3113 = vpack.c.bf16 %v3010, %v3010
        %v3114 = vpack.c.bf16 %v3014, %v3014
        %3115 = vmatprep.subr.bf16.mxu0 0
        %3116 = vmatpush1.bf16.xpose.msra.mxu0 %v3111
        %3117 = vmatprep.subr.bf16.mxu0 0
        %3118 = vmatpush1.bf16.xpose.msra.mxu0 0
        %3119 = vmatprep.subr.bf16.mxu0 0
        %3120 = vmatpush1.bf16.xpose.msra.mxu0 0
        %3121 = vmatprep.subr.bf16.mxu0 0
        %3122 = vmatpush1.bf16.xpose.msra.mxu0 0
        %3123 = vmatprep.subr.bf16.mxu0 0
        %3124 = vmatpush1.bf16.xpose.msra.mxu0 0
        %3125 = vmatprep.subr.bf16.mxu0 0
        %3126 = vmatpush1.bf16.xpose.msra.mxu0 0
        %3127 = vmatprep.subr.bf16.mxu0 0
        %3128 = vmatpush1.bf16.xpose.msra.mxu0 0
        %3129 = vmatprep.subr.bf16.mxu0 0
        %3130 = vmatpush1.bf16.xpose.msra.mxu0 0
        %3131 = vmatprep.subr.bf16.mxu0 0
        %3132 = vmatpush1.bf16.xpose.msra.mxu0 0
        %3133 = vmatprep.subr.bf16.mxu0 0
        %3134 = vmatpush1.bf16.xpose.msra.mxu0 0
        %3135 = vmatprep.subr.bf16.mxu0 0
        %3136 = vmatpush1.bf16.xpose.msra.mxu0 0
        %3137 = vmatprep.subr.bf16.mxu0 0
        %3138 = vmatpush1.bf16.xpose.msra.mxu0 0
        %3139 = vmatprep.subr.bf16.mxu0 0
        %3140 = vmatpush1.bf16.xpose.msra.mxu0 0
        %3141 = vmatprep.subr.bf16.mxu0 0
        %3142 = vmatpush1.bf16.xpose.msra.mxu0 0
        %3143 = vmatprep.subr.bf16.mxu0 0
        %3144 = vmatpush1.bf16.xpose.msra.mxu0 0
        %3145 = vmatprep.subr.bf16.mxu0 0
        %3146 = vmatpush1.bf16.xpose.msra.mxu0 0
        %3147 = vmatprep.mubr.bf16.mxu0 0
        %3148 = vmatmul.mubr.bf16.gmra.mrb[0].mxu0 %v3109
        %v3149 = vpop.f32.mrb[0].mxu0
        %v3150 = vadd.f32 0.0, %v3149
        %v3151 = vpop.f32.mrb[0].mxu0
        %v3152 = vpop.f32.mrb[0].mxu0
        %v3153 = vpop.f32.mrb[0].mxu0
        %3154 = vdwg.mxu0
        %3155 = vmatprep.subr.bf16.mxu0 0
        %3156 = vmatpush1.bf16.xpose.msra.mxu0 %v3112
        %3157 = vmatprep.subr.bf16.mxu0 0
        %3158 = vmatpush1.bf16.xpose.msra.mxu0 0
        %3159 = vmatprep.subr.bf16.mxu0 0
        %3160 = vmatpush1.bf16.xpose.msra.mxu0 0
        %3161 = vmatprep.subr.bf16.mxu0 0
        %3162 = vmatpush1.bf16.xpose.msra.mxu0 0
        %3163 = vmatprep.subr.bf16.mxu0 0
        %3164 = vmatpush1.bf16.xpose.msra.mxu0 0
        %3165 = vmatprep.subr.bf16.mxu0 0
        %3166 = vmatpush1.bf16.xpose.msra.mxu0 0
        %3167 = vmatprep.subr.bf16.mxu0 0
        %3168 = vmatpush1.bf16.xpose.msra.mxu0 0
        %3169 = vmatprep.subr.bf16.mxu0 0
        %3170 = vmatpush1.bf16.xpose.msra.mxu0 0
        %3171 = vmatprep.subr.bf16.mxu0 0
        %3172 = vmatpush1.bf16.xpose.msra.mxu0 0
        %3173 = vmatprep.subr.bf16.mxu0 0
        %3174 = vmatpush1.bf16.xpose.msra.mxu0 0
        %3175 = vmatprep.subr.bf16.mxu0 0
        %3176 = vmatpush1.bf16.xpose.msra.mxu0 0
        %3177 = vmatprep.subr.bf16.mxu0 0
        %3178 = vmatpush1.bf16.xpose.msra.mxu0 0
        %3179 = vmatprep.subr.bf16.mxu0 0
        %3180 = vmatpush1.bf16.xpose.msra.mxu0 0
        %3181 = vmatprep.subr.bf16.mxu0 0
        %3182 = vmatpush1.bf16.xpose.msra.mxu0 0
        %3183 = vmatprep.subr.bf16.mxu0 0
        %3184 = vmatpush1.bf16.xpose.msra.mxu0 0
        %3185 = vmatprep.subr.bf16.mxu0 0
        %3186 = vmatpush1.bf16.xpose.msra.mxu0 0
        %3187 = vmatprep.mubr.bf16.mxu0 0
        %3188 = vmatmul.mubr.bf16.gmra.mrb[0].mxu0 %v3110
        %v3189 = vpop.f32.mrb[0].mxu0
        %v3190 = vadd.f32 0.0, %v3189
        %v3191 = vpop.f32.mrb[0].mxu0
        %v3192 = vpop.f32.mrb[0].mxu0
        %v3193 = vpop.f32.mrb[0].mxu0
        %3194 = vdwg.mxu0
        %v3195 = vmul.f32 %v3150, 0.10206208
        %v3196 = vmul.f32 %v3190, 0.10206208
        %v3197 = vsel %vm3108, 1, 0
        %vm3198 = vcmp.eq.s32.totalorder %v3197, 1
        %v3199 = vsel %vm3198, %v3195, -1e+30
        %v3200 = vsel %vm3198, %v3196, -1e+30
        %vm3201 = vcmask 64512
        %v3202 = vsel %vm3201, %v3199, -inf
        %3203 = vmax.xlane.f32.xlu0 %v3202
        %v3204 = vpop.xlane.xlu0 %3203
        %v3205 = vsel %vm3201, %v3200, -inf
        %3206 = vmax.xlane.f32.xlu0 %v3205
        %v3207 = vpop.xlane.xlu0 %3206
        %v3208 = vsub.f32 %v3199, %v3204
        %v3209 = vsub.f32 %v3200, %v3207
        %v3210 = vmul.f32 %v3208, 1.442695
        %v3211 = vpow.pop %v3210
        %v3212 = vmul.f32 %v3209, 1.442695
        %v3213 = vpow.pop %v3212
        %v3214 = vsel %vm3201, %v3211, 0.0
        %3215 = vadd.xlane.f32.xlu0 %v3214
        %v3216 = vpop.xlane.xlu0 %3215
        %v3217 = vsel %vm3201, %v3213, 0.0
        %3218 = vadd.xlane.f32.xlu0 %v3217
        %v3219 = vpop.xlane.xlu0 %3218
        %v3220 = vrcp.pop %v3216
        %v3221 = vrcp.pop %v3219
        %v3222 = vmul.f32 %v3211, %v3220
        %v3223 = vmul.f32 %v3213, %v3221
        %v3224 = vpack.c.bf16 %v3222, %v3222
        %v3225 = vpack.c.bf16 %v3223, %v3223
        %v3227 = vsel %vm3201, %v3224, 0
        %vm3229 = vcmask 1043456
        %v3231 = vsel %vm3229, %v3113, 0
        %3233 = vmatprep.subr.bf16.mxu0 0
        %3234 = vmatpush1.bf16.msra.mxu0 %v3231
        %3235 = vmatprep.subr.bf16.mxu0 0
        %3236 = vmatpush1.bf16.msra.mxu0 0
        %3237 = vmatprep.subr.bf16.mxu0 0
        %3238 = vmatpush1.bf16.msra.mxu0 0
        %3239 = vmatprep.subr.bf16.mxu0 0
        %3240 = vmatpush1.bf16.msra.mxu0 0
        %3241 = vmatprep.subr.bf16.mxu0 0
        %3242 = vmatpush1.bf16.msra.mxu0 0
        %3243 = vmatprep.subr.bf16.mxu0 0
        %3244 = vmatpush1.bf16.msra.mxu0 0
        %3245 = vmatprep.subr.bf16.mxu0 0
        %3246 = vmatpush1.bf16.msra.mxu0 0
        %3247 = vmatprep.subr.bf16.mxu0 0
        %3248 = vmatpush1.bf16.msra.mxu0 0
        %3249 = vmatprep.subr.bf16.mxu0 0
        %3250 = vmatpush1.bf16.msra.mxu0 0
        %3251 = vmatprep.subr.bf16.mxu0 0
        %3252 = vmatpush1.bf16.msra.mxu0 0
        %3253 = vmatprep.subr.bf16.mxu0 0
        %3254 = vmatpush1.bf16.msra.mxu0 0
        %3255 = vmatprep.subr.bf16.mxu0 0
        %3256 = vmatpush1.bf16.msra.mxu0 0
        %3257 = vmatprep.subr.bf16.mxu0 0
        %3258 = vmatpush1.bf16.msra.mxu0 0
        %3259 = vmatprep.subr.bf16.mxu0 0
        %3260 = vmatpush1.bf16.msra.mxu0 0
        %3261 = vmatprep.subr.bf16.mxu0 0
        %3262 = vmatpush1.bf16.msra.mxu0 0
        %3263 = vmatprep.subr.bf16.mxu0 0
        %3264 = vmatpush1.bf16.msra.mxu0 0
        %3265 = vmatprep.mubr.bf16.mxu0 0
        %3266 = vmatmul.mubr.bf16.gmra.mrb[0].mxu0 %v3227
        %v3267 = vpop.f32.mrb[0].mxu0
        %v3268 = vadd.f32 0.0, %v3267
        %v3269 = vpop.f32.mrb[0].mxu0
        %v3270 = vpop.f32.mrb[0].mxu0
        %v3271 = vpop.f32.mrb[0].mxu0
        %3272 = vdwg.mxu0
        %v3274 = vsel %vm3201, %v3225, 0
        %v3277 = vsel %vm3229, %v3114, 0
        %3279 = vmatprep.subr.bf16.mxu0 0
        %3280 = vmatpush1.bf16.msra.mxu0 %v3277
        %3281 = vmatprep.subr.bf16.mxu0 0
        %3282 = vmatpush1.bf16.msra.mxu0 0
        %3283 = vmatprep.subr.bf16.mxu0 0
        %3284 = vmatpush1.bf16.msra.mxu0 0
        %3285 = vmatprep.subr.bf16.mxu0 0
        %3286 = vmatpush1.bf16.msra.mxu0 0
        %3287 = vmatprep.subr.bf16.mxu0 0
        %3288 = vmatpush1.bf16.msra.mxu0 0
        %3289 = vmatprep.subr.bf16.mxu0 0
        %3290 = vmatpush1.bf16.msra.mxu0 0
        %3291 = vmatprep.subr.bf16.mxu0 0
        %3292 = vmatpush1.bf16.msra.mxu0 0
        %3293 = vmatprep.subr.bf16.mxu0 0
        %3294 = vmatpush1.bf16.msra.mxu0 0
        %3295 = vmatprep.subr.bf16.mxu0 0
        %3296 = vmatpush1.bf16.msra.mxu0 0
        %3297 = vmatprep.subr.bf16.mxu0 0
        %3298 = vmatpush1.bf16.msra.mxu0 0
        %3299 = vmatprep.subr.bf16.mxu0 0
        %3300 = vmatpush1.bf16.msra.mxu0 0
        %3301 = vmatprep.subr.bf16.mxu0 0
        %3302 = vmatpush1.bf16.msra.mxu0 0
        %3303 = vmatprep.subr.bf16.mxu0 0
        %3304 = vmatpush1.bf16.msra.mxu0 0
        %3305 = vmatprep.subr.bf16.mxu0 0
        %3306 = vmatpush1.bf16.msra.mxu0 0
        %3307 = vmatprep.subr.bf16.mxu0 0
        %3308 = vmatpush1.bf16.msra.mxu0 0
        %3309 = vmatprep.subr.bf16.mxu0 0
        %3310 = vmatpush1.bf16.msra.mxu0 0
        %3311 = vmatprep.mubr.bf16.mxu0 0
        %3312 = vmatmul.mubr.bf16.gmra.mrb[0].mxu0 %v3274
        %v3313 = vpop.f32.mrb[0].mxu0
        %v3314 = vadd.f32 0.0, %v3313
        %v3315 = vpop.f32.mrb[0].mxu0
        %v3316 = vpop.f32.mrb[0].mxu0
        %v3317 = vpop.f32.mrb[0].mxu0
        %3318 = vdwg.mxu0
        %v3319 = vpack.c.bf16 %v3314, %v3268
        %v3320 = vld [vmem:[%s665] sm:$0xff]
        %v3321 = vld [vmem:[%s665 + $0x8] sm:$0xf]
        %v3322 = vld [vmem:[%s665 + $0xc] sm:$0xff]
        %v3323 = vld [vmem:[%s665 + $0x14] sm:$0xf]
        %v3324 = vld [vmem:[%s665 + $0x18] sm:$0xff]
        %v3325 = vld [vmem:[%s665 + $0x20] sm:$0xf]
        %v3326 = vld [vmem:[%s665 + $0x24] sm:$0xff]
        %v3327 = vld [vmem:[%s665 + $0x2c] sm:$0xf]
        %v3328 = vld [vmem:[%s665 + $0x30] sm:$0xff]
        %v3329 = vld [vmem:[%s665 + $0x38] sm:$0xf]
        %v3330 = vld [vmem:[%s665 + $0x3c] sm:$0xff]
        %v3331 = vld [vmem:[%s665 + $0x44] sm:$0xf]
        %v3332 = vld [vmem:[%s665 + $0x48] sm:$0xff]
        %v3333 = vld [vmem:[%s665 + $0x50] sm:$0xf]
        %v3334 = vld [vmem:[%s665 + $0x54] sm:$0xff]
        %v3335 = vld [vmem:[%s665 + $0x5c] sm:$0xf]
        %v3336 = vld [vmem:[%s665 + $0x60] sm:$0xff]
        %v3337 = vld [vmem:[%s665 + $0x68] sm:$0xf]
        %v3338 = vld [vmem:[%s665 + $0x6c] sm:$0xff]
        %v3339 = vld [vmem:[%s665 + $0x74] sm:$0xf]
        %v3340 = vld [vmem:[%s665 + $0x78] sm:$0xff]
        %v3341 = vld [vmem:[%s665 + $0x80] sm:$0xf]
        %v3342 = vld [vmem:[%s665 + $0x84] sm:$0xff]
        %v3343 = vld [vmem:[%s665 + $0x8c] sm:$0xf]
        %v3344 = vld [vmem:[%s665 + $0x90] sm:$0xff]
        %v3345 = vld [vmem:[%s665 + $0x98] sm:$0xf]
        %v3346 = vld [vmem:[%s665 + $0x9c] sm:$0xff]
        %v3347 = vld [vmem:[%s665 + $0xa4] sm:$0xf]
        %v3348 = vld [vmem:[%s665 + $0xa8] sm:$0xff]
        %v3349 = vld [vmem:[%s665 + $0xb0] sm:$0xf]
        %v3350 = vld [vmem:[%s665 + $0xb4] sm:$0xff]
        %v3351 = vld [vmem:[%s665 + $0xbc] sm:$0xf]
        %v3352 = vpack.c.bf16 %v2668, %v2668
        %v3353 = vpack.c.bf16 %v2672, %v2672
        %v3354 = vpack.c.bf16 %v2840, %v2840
        %v3355 = vpack.c.bf16 %v2844, %v2844
        %v3356 = vpack.c.bf16 %v3012, %v3012
        %v3357 = vpack.c.bf16 %v3016, %v3016
        %3358 = vmatprep.subr.bf16.mxu0 0
        %3359 = vmatpush1.bf16.xpose.msra.mxu0 %v3354
        %3360 = vmatprep.subr.bf16.mxu0 0
        %3361 = vmatpush1.bf16.xpose.msra.mxu0 0
        %3362 = vmatprep.subr.bf16.mxu0 0
        %3363 = vmatpush1.bf16.xpose.msra.mxu0 0
        %3364 = vmatprep.subr.bf16.mxu0 0
        %3365 = vmatpush1.bf16.xpose.msra.mxu0 0
        %3366 = vmatprep.subr.bf16.mxu0 0
        %3367 = vmatpush1.bf16.xpose.msra.mxu0 0
        %3368 = vmatprep.subr.bf16.mxu0 0
        %3369 = vmatpush1.bf16.xpose.msra.mxu0 0
        %3370 = vmatprep.subr.bf16.mxu0 0
        %3371 = vmatpush1.bf16.xpose.msra.mxu0 0
        %3372 = vmatprep.subr.bf16.mxu0 0
        %3373 = vmatpush1.bf16.xpose.msra.mxu0 0
        %3374 = vmatprep.subr.bf16.mxu0 0
        %3375 = vmatpush1.bf16.xpose.msra.mxu0 0
        %3376 = vmatprep.subr.bf16.mxu0 0
        %3377 = vmatpush1.bf16.xpose.msra.mxu0 0
        %3378 = vmatprep.subr.bf16.mxu0 0
        %3379 = vmatpush1.bf16.xpose.msra.mxu0 0
        %3380 = vmatprep.subr.bf16.mxu0 0
        %3381 = vmatpush1.bf16.xpose.msra.mxu0 0
        %3382 = vmatprep.subr.bf16.mxu0 0
        %3383 = vmatpush1.bf16.xpose.msra.mxu0 0
        %3384 = vmatprep.subr.bf16.mxu0 0
        %3385 = vmatpush1.bf16.xpose.msra.mxu0 0
        %3386 = vmatprep.subr.bf16.mxu0 0
        %3387 = vmatpush1.bf16.xpose.msra.mxu0 0
        %3388 = vmatprep.subr.bf16.mxu0 0
        %3389 = vmatpush1.bf16.xpose.msra.mxu0 0
        %3390 = vmatprep.mubr.bf16.mxu0 0
        %3391 = vmatmul.mubr.bf16.gmra.mrb[0].mxu0 %v3352
        %v3392 = vpop.f32.mrb[0].mxu0
        %v3393 = vadd.f32 0.0, %v3392
        %v3394 = vpop.f32.mrb[0].mxu0
        %v3395 = vpop.f32.mrb[0].mxu0
        %v3396 = vpop.f32.mrb[0].mxu0
        %3397 = vdwg.mxu0
        %3398 = vmatprep.subr.bf16.mxu0 0
        %3399 = vmatpush1.bf16.xpose.msra.mxu0 %v3355
        %3400 = vmatprep.subr.bf16.mxu0 0
        %3401 = vmatpush1.bf16.xpose.msra.mxu0 0
        %3402 = vmatprep.subr.bf16.mxu0 0
        %3403 = vmatpush1.bf16.xpose.msra.mxu0 0
        %3404 = vmatprep.subr.bf16.mxu0 0
        %3405 = vmatpush1.bf16.xpose.msra.mxu0 0
        %3406 = vmatprep.subr.bf16.mxu0 0
        %3407 = vmatpush1.bf16.xpose.msra.mxu0 0
        %3408 = vmatprep.subr.bf16.mxu0 0
        %3409 = vmatpush1.bf16.xpose.msra.mxu0 0
        %3410 = vmatprep.subr.bf16.mxu0 0
        %3411 = vmatpush1.bf16.xpose.msra.mxu0 0
        %3412 = vmatprep.subr.bf16.mxu0 0
        %3413 = vmatpush1.bf16.xpose.msra.mxu0 0
        %3414 = vmatprep.subr.bf16.mxu0 0
        %3415 = vmatpush1.bf16.xpose.msra.mxu0 0
        %3416 = vmatprep.subr.bf16.mxu0 0
        %3417 = vmatpush1.bf16.xpose.msra.mxu0 0
        %3418 = vmatprep.subr.bf16.mxu0 0
        %3419 = vmatpush1.bf16.xpose.msra.mxu0 0
        %3420 = vmatprep.subr.bf16.mxu0 0
        %3421 = vmatpush1.bf16.xpose.msra.mxu0 0
        %3422 = vmatprep.subr.bf16.mxu0 0
        %3423 = vmatpush1.bf16.xpose.msra.mxu0 0
        %3424 = vmatprep.subr.bf16.mxu0 0
        %3425 = vmatpush1.bf16.xpose.msra.mxu0 0
        %3426 = vmatprep.subr.bf16.mxu0 0
        %3427 = vmatpush1.bf16.xpose.msra.mxu0 0
        %3428 = vmatprep.subr.bf16.mxu0 0
        %3429 = vmatpush1.bf16.xpose.msra.mxu0 0
        %3430 = vmatprep.mubr.bf16.mxu0 0
        %3431 = vmatmul.mubr.bf16.gmra.mrb[0].mxu0 %v3353
        %v3432 = vpop.f32.mrb[0].mxu0
        %v3433 = vadd.f32 0.0, %v3432
        %v3434 = vpop.f32.mrb[0].mxu0
        %v3435 = vpop.f32.mrb[0].mxu0
        %v3436 = vpop.f32.mrb[0].mxu0
        %3437 = vdwg.mxu0
        %v3438 = vmul.f32 %v3393, 0.10206208
        %v3439 = vmul.f32 %v3433, 0.10206208
        %v3440 = vsel %vm3198, %v3438, -1e+30
        %v3441 = vsel %vm3198, %v3439, -1e+30
        %v3442 = vsel %vm3201, %v3440, -inf
        %3443 = vmax.xlane.f32.xlu0 %v3442
        %v3444 = vpop.xlane.xlu0 %3443
        %v3445 = vsel %vm3201, %v3441, -inf
        %3446 = vmax.xlane.f32.xlu0 %v3445
        %v3447 = vpop.xlane.xlu0 %3446
        %v3448 = vsub.f32 %v3440, %v3444
        %v3449 = vsub.f32 %v3441, %v3447
        %v3450 = vmul.f32 %v3448, 1.442695
        %v3451 = vpow.pop %v3450
        %v3452 = vmul.f32 %v3449, 1.442695
        %v3453 = vpow.pop %v3452
        %v3454 = vsel %vm3201, %v3451, 0.0
        %3455 = vadd.xlane.f32.xlu0 %v3454
        %v3456 = vpop.xlane.xlu0 %3455
        %v3457 = vsel %vm3201, %v3453, 0.0
        %3458 = vadd.xlane.f32.xlu0 %v3457
        %v3459 = vpop.xlane.xlu0 %3458
        %v3460 = vrcp.pop %v3456
        %v3461 = vrcp.pop %v3459
        %v3462 = vmul.f32 %v3451, %v3460
        %v3463 = vmul.f32 %v3453, %v3461
        %v3464 = vpack.c.bf16 %v3462, %v3462
        %v3465 = vpack.c.bf16 %v3463, %v3463
        %v3467 = vsel %vm3201, %v3464, 0
        %v3470 = vsel %vm3229, %v3356, 0
        %3472 = vmatprep.subr.bf16.mxu0 0
        %3473 = vmatpush1.bf16.msra.mxu0 %v3470
        %3474 = vmatprep.subr.bf16.mxu0 0
        %3475 = vmatpush1.bf16.msra.mxu0 0
        %3476 = vmatprep.subr.bf16.mxu0 0
        %3477 = vmatpush1.bf16.msra.mxu0 0
        %3478 = vmatprep.subr.bf16.mxu0 0
        %3479 = vmatpush1.bf16.msra.mxu0 0
        %3480 = vmatprep.subr.bf16.mxu0 0
        %3481 = vmatpush1.bf16.msra.mxu0 0
        %3482 = vmatprep.subr.bf16.mxu0 0
        %3483 = vmatpush1.bf16.msra.mxu0 0
        %3484 = vmatprep.subr.bf16.mxu0 0
        %3485 = vmatpush1.bf16.msra.mxu0 0
        %3486 = vmatprep.subr.bf16.mxu0 0
        %3487 = vmatpush1.bf16.msra.mxu0 0
        %3488 = vmatprep.subr.bf16.mxu0 0
        %3489 = vmatpush1.bf16.msra.mxu0 0
        %3490 = vmatprep.subr.bf16.mxu0 0
        %3491 = vmatpush1.bf16.msra.mxu0 0
        %3492 = vmatprep.subr.bf16.mxu0 0
        %3493 = vmatpush1.bf16.msra.mxu0 0
        %3494 = vmatprep.subr.bf16.mxu0 0
        %3495 = vmatpush1.bf16.msra.mxu0 0
        %3496 = vmatprep.subr.bf16.mxu0 0
        %3497 = vmatpush1.bf16.msra.mxu0 0
        %3498 = vmatprep.subr.bf16.mxu0 0
        %3499 = vmatpush1.bf16.msra.mxu0 0
        %3500 = vmatprep.subr.bf16.mxu0 0
        %3501 = vmatpush1.bf16.msra.mxu0 0
        %3502 = vmatprep.subr.bf16.mxu0 0
        %3503 = vmatpush1.bf16.msra.mxu0 0
        %3504 = vmatprep.mubr.bf16.mxu0 0
        %3505 = vmatmul.mubr.bf16.gmra.mrb[0].mxu0 %v3467
        %v3506 = vpop.f32.mrb[0].mxu0
        %v3507 = vadd.f32 0.0, %v3506
        %v3508 = vpop.f32.mrb[0].mxu0
        %v3509 = vpop.f32.mrb[0].mxu0
        %v3510 = vpop.f32.mrb[0].mxu0
        %3511 = vdwg.mxu0
        %v3513 = vsel %vm3201, %v3465, 0
        %v3516 = vsel %vm3229, %v3357, 0
        %3518 = vmatprep.subr.bf16.mxu0 0
        %3519 = vmatpush1.bf16.msra.mxu0 %v3516
        %3520 = vmatprep.subr.bf16.mxu0 0
        %3521 = vmatpush1.bf16.msra.mxu0 0
        %3522 = vmatprep.subr.bf16.mxu0 0
        %3523 = vmatpush1.bf16.msra.mxu0 0
        %3524 = vmatprep.subr.bf16.mxu0 0
        %3525 = vmatpush1.bf16.msra.mxu0 0
        %3526 = vmatprep.subr.bf16.mxu0 0
        %3527 = vmatpush1.bf16.msra.mxu0 0
        %3528 = vmatprep.subr.bf16.mxu0 0
        %3529 = vmatpush1.bf16.msra.mxu0 0
        %3530 = vmatprep.subr.bf16.mxu0 0
        %3531 = vmatpush1.bf16.msra.mxu0 0
        %3532 = vmatprep.subr.bf16.mxu0 0
        %3533 = vmatpush1.bf16.msra.mxu0 0
        %3534 = vmatprep.subr.bf16.mxu0 0
        %3535 = vmatpush1.bf16.msra.mxu0 0
        %3536 = vmatprep.subr.bf16.mxu0 0
        %3537 = vmatpush1.bf16.msra.mxu0 0
        %3538 = vmatprep.subr.bf16.mxu0 0
        %3539 = vmatpush1.bf16.msra.mxu0 0
        %3540 = vmatprep.subr.bf16.mxu0 0
        %3541 = vmatpush1.bf16.msra.mxu0 0
        %3542 = vmatprep.subr.bf16.mxu0 0
        %3543 = vmatpush1.bf16.msra.mxu0 0
        %3544 = vmatprep.subr.bf16.mxu0 0
        %3545 = vmatpush1.bf16.msra.mxu0 0
        %3546 = vmatprep.subr.bf16.mxu0 0
        %3547 = vmatpush1.bf16.msra.mxu0 0
        %3548 = vmatprep.subr.bf16.mxu0 0
        %3549 = vmatpush1.bf16.msra.mxu0 0
        %3550 = vmatprep.mubr.bf16.mxu0 0
        %3551 = vmatmul.mubr.bf16.gmra.mrb[0].mxu0 %v3513
        %v3552 = vpop.f32.mrb[0].mxu0
        %v3553 = vadd.f32 0.0, %v3552
        %v3554 = vpop.f32.mrb[0].mxu0
        %v3555 = vpop.f32.mrb[0].mxu0
        %v3556 = vpop.f32.mrb[0].mxu0
        %3557 = vdwg.mxu0
        %v3558 = vpack.c.bf16 %v3553, %v3507
        %v3559 = vld [vmem:[%s665 + $0xc0] sm:$0xff]
        %v3560 = vld [vmem:[%s665 + $0xc8] sm:$0xf]
        %v3561 = vld [vmem:[%s665 + $0xcc] sm:$0xff]
        %v3562 = vld [vmem:[%s665 + $0xd4] sm:$0xf]
        %v3563 = vld [vmem:[%s665 + $0xd8] sm:$0xff]
        %v3564 = vld [vmem:[%s665 + $0xe0] sm:$0xf]
        %v3565 = vld [vmem:[%s665 + $0xe4] sm:$0xff]
        %v3566 = vld [vmem:[%s665 + $0xec] sm:$0xf]
        %v3567 = vld [vmem:[%s665 + $0xf0] sm:$0xff]
        %v3568 = vld [vmem:[%s665 + $0xf8] sm:$0xf]
        %v3569 = vld [vmem:[%s665 + $0xfc] sm:$0xff]
        %v3570 = vld [vmem:[%s665 + $0x104] sm:$0xf]
        %v3571 = vld [vmem:[%s665 + $0x108] sm:$0xff]
        %v3572 = vld [vmem:[%s665 + $0x110] sm:$0xf]
        %v3573 = vld [vmem:[%s665 + $0x114] sm:$0xff]
        %v3574 = vld [vmem:[%s665 + $0x11c] sm:$0xf]
        %v3575 = vld [vmem:[%s665 + $0x120] sm:$0xff]
        %v3576 = vld [vmem:[%s665 + $0x128] sm:$0xf]
        %v3577 = vld [vmem:[%s665 + $0x12c] sm:$0xff]
        %v3578 = vld [vmem:[%s665 + $0x134] sm:$0xf]
        %v3579 = vld [vmem:[%s665 + $0x138] sm:$0xff]
        %v3580 = vld [vmem:[%s665 + $0x140] sm:$0xf]
        %v3581 = vld [vmem:[%s665 + $0x144] sm:$0xff]
        %v3582 = vld [vmem:[%s665 + $0x14c] sm:$0xf]
        %v3583 = vld [vmem:[%s665 + $0x150] sm:$0xff]
        %v3584 = vld [vmem:[%s665 + $0x158] sm:$0xf]
        %v3585 = vld [vmem:[%s665 + $0x15c] sm:$0xff]
        %v3586 = vld [vmem:[%s665 + $0x164] sm:$0xf]
        %v3587 = vld [vmem:[%s665 + $0x168] sm:$0xff]
        %v3588 = vld [vmem:[%s665 + $0x170] sm:$0xf]
        %v3589 = vld [vmem:[%s665 + $0x174] sm:$0xff]
        %v3590 = vld [vmem:[%s665 + $0x17c] sm:$0xf]
        %v3623 = vunpack.c.l.b16 %v3559
        %v3624 = vunpack.c.h.b16 %v3559
        %v3625 = vunpack.c.l.b16 %v3560
        %v3626 = vunpack.c.l.b16 %v3561
        %v3627 = vunpack.c.h.b16 %v3561
        %v3628 = vunpack.c.l.b16 %v3562
        %v3629 = vunpack.c.l.b16 %v3563
        %v3630 = vunpack.c.h.b16 %v3563
        %v3631 = vunpack.c.l.b16 %v3564
        %v3632 = vunpack.c.l.b16 %v3565
        %v3633 = vunpack.c.h.b16 %v3565
        %v3634 = vunpack.c.l.b16 %v3566
        %v3635 = vunpack.c.l.b16 %v3567
        %v3636 = vunpack.c.h.b16 %v3567
        %v3637 = vunpack.c.l.b16 %v3568
        %v3638 = vunpack.c.l.b16 %v3569
        %v3639 = vunpack.c.h.b16 %v3569
        %v3640 = vunpack.c.l.b16 %v3570
        %v3641 = vunpack.c.l.b16 %v3571
        %v3642 = vunpack.c.h.b16 %v3571
        %v3643 = vunpack.c.l.b16 %v3572
        %v3644 = vunpack.c.l.b16 %v3573
        %v3645 = vunpack.c.h.b16 %v3573
        %v3646 = vunpack.c.l.b16 %v3574
        %v3647 = vunpack.c.l.b16 %v3575
        %v3648 = vunpack.c.h.b16 %v3575
        %v3649 = vunpack.c.l.b16 %v3576
        %v3650 = vunpack.c.l.b16 %v3577
        %v3651 = vunpack.c.h.b16 %v3577
        %v3652 = vunpack.c.l.b16 %v3578
        %v3653 = vunpack.c.l.b16 %v3579
        %v3654 = vunpack.c.h.b16 %v3579
        %v3655 = vunpack.c.l.b16 %v3580
        %v3656 = vunpack.c.l.b16 %v3581
        %v3657 = vunpack.c.h.b16 %v3581
        %v3658 = vunpack.c.l.b16 %v3582
        %v3659 = vunpack.c.l.b16 %v3583
        %v3660 = vunpack.c.h.b16 %v3583
        %v3661 = vunpack.c.l.b16 %v3584
        %v3662 = vunpack.c.l.b16 %v3585
        %v3663 = vunpack.c.h.b16 %v3585
        %v3664 = vunpack.c.l.b16 %v3586
        %v3665 = vunpack.c.l.b16 %v3587
        %v3666 = vunpack.c.h.b16 %v3587
        %v3667 = vunpack.c.l.b16 %v3588
        %v3668 = vunpack.c.l.b16 %v3589
        %v3669 = vunpack.c.h.b16 %v3589
        %v3670 = vunpack.c.l.b16 %v3590
        %v3671 = vpack.c.b16 %v3626, %v3623
        %v3672 = vpack.c.b16 %v3627, %v3624
        %v3673 = vpack.c.b16 %v3628, %v3625
        %v3674 = vpack.c.b16 %v3632, %v3629
        %v3675 = vpack.c.b16 %v3633, %v3630
        %v3676 = vpack.c.b16 %v3634, %v3631
        %v3677 = vpack.c.b16 %v3638, %v3635
        %v3678 = vpack.c.b16 %v3639, %v3636
        %v3679 = vpack.c.b16 %v3640, %v3637
        %v3680 = vpack.c.b16 %v3644, %v3641
        %v3681 = vpack.c.b16 %v3645, %v3642
        %v3682 = vpack.c.b16 %v3646, %v3643
        %v3683 = vpack.c.b16 %v3650, %v3647
        %v3684 = vpack.c.b16 %v3651, %v3648
        %v3685 = vpack.c.b16 %v3652, %v3649
        %v3686 = vpack.c.b16 %v3656, %v3653
        %v3687 = vpack.c.b16 %v3657, %v3654
        %v3688 = vpack.c.b16 %v3658, %v3655
        %v3689 = vpack.c.b16 %v3662, %v3659
        %v3690 = vpack.c.b16 %v3663, %v3660
        %v3691 = vpack.c.b16 %v3664, %v3661
        %v3692 = vpack.c.b16 %v3668, %v3665
        %v3693 = vpack.c.b16 %v3669, %v3666
        %v3694 = vpack.c.b16 %v3670, %v3667
        %3719 = vmatprep.subr.bf16.mxu0 %v3672
        %3720 = vmatpush1.bf16.msra.mxu0 %v3671
        %3721 = vmatprep.subr.bf16.mxu0 %v3675
        %3722 = vmatpush1.bf16.msra.mxu0 %v3674
        %3723 = vmatprep.subr.bf16.mxu0 %v3678
        %3724 = vmatpush1.bf16.msra.mxu0 %v3677
        %3725 = vmatprep.subr.bf16.mxu0 %v3681
        %3726 = vmatpush1.bf16.msra.mxu0 %v3680
        %3727 = vmatprep.subr.bf16.mxu0 %v3684
        %3728 = vmatpush1.bf16.msra.mxu0 %v3683
        %3729 = vmatprep.subr.bf16.mxu0 %v3687
        %3730 = vmatpush1.bf16.msra.mxu0 %v3686
        %3731 = vmatprep.subr.bf16.mxu0 %v3690
        %3732 = vmatpush1.bf16.msra.mxu0 %v3689
        %3733 = vmatprep.subr.bf16.mxu0 %v3693
        %3734 = vmatpush1.bf16.msra.mxu0 %v3692
        %3735 = vmatprep.subr.bf16.mxu0 0
        %3736 = vmatpush1.bf16.msra.mxu0 0
        %3737 = vmatprep.subr.bf16.mxu0 0
        %3738 = vmatpush1.bf16.msra.mxu0 0
        %3739 = vmatprep.subr.bf16.mxu0 0
        %3740 = vmatpush1.bf16.msra.mxu0 0
        %3741 = vmatprep.subr.bf16.mxu0 0
        %3742 = vmatpush1.bf16.msra.mxu0 0
        %3743 = vmatprep.subr.bf16.mxu0 0
        %3744 = vmatpush1.bf16.msra.mxu0 0
        %3745 = vmatprep.subr.bf16.mxu0 0
        %3746 = vmatpush1.bf16.msra.mxu0 0
        %3747 = vmatprep.subr.bf16.mxu0 0
        %3748 = vmatpush1.bf16.msra.mxu0 0
        %3749 = vmatprep.subr.bf16.mxu0 0
        %3750 = vmatpush1.bf16.msra.mxu0 0
        %3751 = vmatprep.mubr.bf16.mxu0 0
        %3752 = vmatmul.mubr.bf16.gmra.mrb[0].mxu0 %v3558
        %v3753 = vpop.f32.mrb[0].mxu0
        %v3754 = vadd.f32 0.0, %v3753
        %v3755 = vpop.f32.mrb[0].mxu0
        %v3756 = vadd.f32 0.0, %v3755
        %v3757 = vpop.f32.mrb[0].mxu0
        %v3758 = vadd.f32 0.0, %v3757
        %v3759 = vpop.f32.mrb[0].mxu0
        %v3760 = vadd.f32 0.0, %v3759
        %3761 = vdwg.mxu0
        %3762 = vmatprep.subr.bf16.mxu0 0
        %3763 = vmatpush1.bf16.msra.mxu0 %v3673
        %3764 = vmatprep.subr.bf16.mxu0 0
        %3765 = vmatpush1.bf16.msra.mxu0 %v3676
        %3766 = vmatprep.subr.bf16.mxu0 0
        %3767 = vmatpush1.bf16.msra.mxu0 %v3679
        %3768 = vmatprep.subr.bf16.mxu0 0
        %3769 = vmatpush1.bf16.msra.mxu0 %v3682
        %3770 = vmatprep.subr.bf16.mxu0 0
        %3771 = vmatpush1.bf16.msra.mxu0 %v3685
        %3772 = vmatprep.subr.bf16.mxu0 0
        %3773 = vmatpush1.bf16.msra.mxu0 %v3688
        %3774 = vmatprep.subr.bf16.mxu0 0
        %3775 = vmatpush1.bf16.msra.mxu0 %v3691
        %3776 = vmatprep.subr.bf16.mxu0 0
        %3777 = vmatpush1.bf16.msra.mxu0 %v3694
        %3778 = vmatprep.subr.bf16.mxu0 0
        %3779 = vmatpush1.bf16.msra.mxu0 0
        %3780 = vmatprep.subr.bf16.mxu0 0
        %3781 = vmatpush1.bf16.msra.mxu0 0
        %3782 = vmatprep.subr.bf16.mxu0 0
        %3783 = vmatpush1.bf16.msra.mxu0 0
        %3784 = vmatprep.subr.bf16.mxu0 0
        %3785 = vmatpush1.bf16.msra.mxu0 0
        %3786 = vmatprep.subr.bf16.mxu0 0
        %3787 = vmatpush1.bf16.msra.mxu0 0
        %3788 = vmatprep.subr.bf16.mxu0 0
        %3789 = vmatpush1.bf16.msra.mxu0 0
        %3790 = vmatprep.subr.bf16.mxu0 0
        %3791 = vmatpush1.bf16.msra.mxu0 0
        %3792 = vmatprep.subr.bf16.mxu0 0
        %3793 = vmatpush1.bf16.msra.mxu0 0
        %3794 = vmatprep.mubr.bf16.mxu0 0
        %3795 = vmatmul.mubr.bf16.gmra.mrb[0].mxu0 %v3558
        %v3796 = vpop.f32.mrb[0].mxu0
        %v3797 = vadd.f32 0.0, %v3796
        %v3798 = vpop.f32.mrb[0].mxu0
        %v3799 = vpop.f32.mrb[0].mxu0
        %v3800 = vadd.f32 0.0, %v3799
        %v3801 = vpop.f32.mrb[0].mxu0
        %3802 = vdwg.mxu0
        %v3835 = vunpack.c.l.b16 %v3320
        %v3836 = vunpack.c.h.b16 %v3320
        %v3837 = vunpack.c.l.b16 %v3321
        %v3838 = vunpack.c.l.b16 %v3322
        %v3839 = vunpack.c.h.b16 %v3322
        %v3840 = vunpack.c.l.b16 %v3323
        %v3841 = vunpack.c.l.b16 %v3324
        %v3842 = vunpack.c.h.b16 %v3324
        %v3843 = vunpack.c.l.b16 %v3325
        %v3844 = vunpack.c.l.b16 %v3326
        %v3845 = vunpack.c.h.b16 %v3326
        %v3846 = vunpack.c.l.b16 %v3327
        %v3847 = vunpack.c.l.b16 %v3328
        %v3848 = vunpack.c.h.b16 %v3328
        %v3849 = vunpack.c.l.b16 %v3329
        %v3850 = vunpack.c.l.b16 %v3330
        %v3851 = vunpack.c.h.b16 %v3330
        %v3852 = vunpack.c.l.b16 %v3331
        %v3853 = vunpack.c.l.b16 %v3332
        %v3854 = vunpack.c.h.b16 %v3332
        %v3855 = vunpack.c.l.b16 %v3333
        %v3856 = vunpack.c.l.b16 %v3334
        %v3857 = vunpack.c.h.b16 %v3334
        %v3858 = vunpack.c.l.b16 %v3335
        %v3859 = vunpack.c.l.b16 %v3336
        %v3860 = vunpack.c.h.b16 %v3336
        %v3861 = vunpack.c.l.b16 %v3337
        %v3862 = vunpack.c.l.b16 %v3338
        %v3863 = vunpack.c.h.b16 %v3338
        %v3864 = vunpack.c.l.b16 %v3339
        %v3865 = vunpack.c.l.b16 %v3340
        %v3866 = vunpack.c.h.b16 %v3340
        %v3867 = vunpack.c.l.b16 %v3341
        %v3868 = vunpack.c.l.b16 %v3342
        %v3869 = vunpack.c.h.b16 %v3342
        %v3870 = vunpack.c.l.b16 %v3343
        %v3871 = vunpack.c.l.b16 %v3344
        %v3872 = vunpack.c.h.b16 %v3344
        %v3873 = vunpack.c.l.b16 %v3345
        %v3874 = vunpack.c.l.b16 %v3346
        %v3875 = vunpack.c.h.b16 %v3346
        %v3876 = vunpack.c.l.b16 %v3347
        %v3877 = vunpack.c.l.b16 %v3348
        %v3878 = vunpack.c.h.b16 %v3348
        %v3879 = vunpack.c.l.b16 %v3349
        %v3880 = vunpack.c.l.b16 %v3350
        %v3881 = vunpack.c.h.b16 %v3350
        %v3882 = vunpack.c.l.b16 %v3351
        %v3883 = vpack.c.b16 %v3838, %v3835
        %v3884 = vpack.c.b16 %v3839, %v3836
        %v3885 = vpack.c.b16 %v3840, %v3837
        %v3886 = vpack.c.b16 %v3844, %v3841
        %v3887 = vpack.c.b16 %v3845, %v3842
        %v3888 = vpack.c.b16 %v3846, %v3843
        %v3889 = vpack.c.b16 %v3850, %v3847
        %v3890 = vpack.c.b16 %v3851, %v3848
        %v3891 = vpack.c.b16 %v3852, %v3849
        %v3892 = vpack.c.b16 %v3856, %v3853
        %v3893 = vpack.c.b16 %v3857, %v3854
        %v3894 = vpack.c.b16 %v3858, %v3855
        %v3895 = vpack.c.b16 %v3862, %v3859
        %v3896 = vpack.c.b16 %v3863, %v3860
        %v3897 = vpack.c.b16 %v3864, %v3861
        %v3898 = vpack.c.b16 %v3868, %v3865
        %v3899 = vpack.c.b16 %v3869, %v3866
        %v3900 = vpack.c.b16 %v3870, %v3867
        %v3901 = vpack.c.b16 %v3874, %v3871
        %v3902 = vpack.c.b16 %v3875, %v3872
        %v3903 = vpack.c.b16 %v3876, %v3873
        %v3904 = vpack.c.b16 %v3880, %v3877
        %v3905 = vpack.c.b16 %v3881, %v3878
        %v3906 = vpack.c.b16 %v3882, %v3879
        %3931 = vmatprep.subr.bf16.mxu0 %v3884
        %3932 = vmatpush1.bf16.msra.mxu0 %v3883
        %3933 = vmatprep.subr.bf16.mxu0 %v3887
        %3934 = vmatpush1.bf16.msra.mxu0 %v3886
        %3935 = vmatprep.subr.bf16.mxu0 %v3890
        %3936 = vmatpush1.bf16.msra.mxu0 %v3889
        %3937 = vmatprep.subr.bf16.mxu0 %v3893
        %3938 = vmatpush1.bf16.msra.mxu0 %v3892
        %3939 = vmatprep.subr.bf16.mxu0 %v3896
        %3940 = vmatpush1.bf16.msra.mxu0 %v3895
        %3941 = vmatprep.subr.bf16.mxu0 %v3899
        %3942 = vmatpush1.bf16.msra.mxu0 %v3898
        %3943 = vmatprep.subr.bf16.mxu0 %v3902
        %3944 = vmatpush1.bf16.msra.mxu0 %v3901
        %3945 = vmatprep.subr.bf16.mxu0 %v3905
        %3946 = vmatpush1.bf16.msra.mxu0 %v3904
        %3947 = vmatprep.subr.bf16.mxu0 0
        %3948 = vmatpush1.bf16.msra.mxu0 0
        %3949 = vmatprep.subr.bf16.mxu0 0
        %3950 = vmatpush1.bf16.msra.mxu0 0
        %3951 = vmatprep.subr.bf16.mxu0 0
        %3952 = vmatpush1.bf16.msra.mxu0 0
        %3953 = vmatprep.subr.bf16.mxu0 0
        %3954 = vmatpush1.bf16.msra.mxu0 0
        %3955 = vmatprep.subr.bf16.mxu0 0
        %3956 = vmatpush1.bf16.msra.mxu0 0
        %3957 = vmatprep.subr.bf16.mxu0 0
        %3958 = vmatpush1.bf16.msra.mxu0 0
        %3959 = vmatprep.subr.bf16.mxu0 0
        %3960 = vmatpush1.bf16.msra.mxu0 0
        %3961 = vmatprep.subr.bf16.mxu0 0
        %3962 = vmatpush1.bf16.msra.mxu0 0
        %3963 = vmatprep.mubr.bf16.mxu0 0
        %3964 = vmatmul.mubr.bf16.gmra.mrb[0].mxu0 %v3319
        %v3965 = vpop.f32.mrb[0].mxu0
        %v3966 = vadd.f32 %v3754, %v3965
        %v3967 = vpop.f32.mrb[0].mxu0
        %v3968 = vadd.f32 %v3756, %v3967
        %v3969 = vpop.f32.mrb[0].mxu0
        %v3970 = vadd.f32 %v3758, %v3969
        %v3971 = vpop.f32.mrb[0].mxu0
        %v3972 = vadd.f32 %v3760, %v3971
        %3973 = vdwg.mxu0
        %3974 = vmatprep.subr.bf16.mxu0 0
        %3975 = vmatpush1.bf16.msra.mxu0 %v3885
        %3976 = vmatprep.subr.bf16.mxu0 0
        %3977 = vmatpush1.bf16.msra.mxu0 %v3888
        %3978 = vmatprep.subr.bf16.mxu0 0
        %3979 = vmatpush1.bf16.msra.mxu0 %v3891
        %3980 = vmatprep.subr.bf16.mxu0 0
        %3981 = vmatpush1.bf16.msra.mxu0 %v3894
        %3982 = vmatprep.subr.bf16.mxu0 0
        %3983 = vmatpush1.bf16.msra.mxu0 %v3897
        %3984 = vmatprep.subr.bf16.mxu0 0
        %3985 = vmatpush1.bf16.msra.mxu0 %v3900
        %3986 = vmatprep.subr.bf16.mxu0 0
        %3987 = vmatpush1.bf16.msra.mxu0 %v3903
        %3988 = vmatprep.subr.bf16.mxu0 0
        %3989 = vmatpush1.bf16.msra.mxu0 %v3906
        %3990 = vmatprep.subr.bf16.mxu0 0
        %3991 = vmatpush1.bf16.msra.mxu0 0
        %3992 = vmatprep.subr.bf16.mxu0 0
        %3993 = vmatpush1.bf16.msra.mxu0 0
        %3994 = vmatprep.subr.bf16.mxu0 0
        %3995 = vmatpush1.bf16.msra.mxu0 0
        %3996 = vmatprep.subr.bf16.mxu0 0
        %3997 = vmatpush1.bf16.msra.mxu0 0
        %3998 = vmatprep.subr.bf16.mxu0 0
        %3999 = vmatpush1.bf16.msra.mxu0 0
        %4000 = vmatprep.subr.bf16.mxu0 0
        %4001 = vmatpush1.bf16.msra.mxu0 0
        %4002 = vmatprep.subr.bf16.mxu0 0
        %4003 = vmatpush1.bf16.msra.mxu0 0
        %4004 = vmatprep.subr.bf16.mxu0 0
        %4005 = vmatpush1.bf16.msra.mxu0 0
        %4006 = vmatprep.mubr.bf16.mxu0 0
        %4007 = vmatmul.mubr.bf16.gmra.mrb[0].mxu0 %v3319
        %v4008 = vpop.f32.mrb[0].mxu0
        %v4009 = vadd.f32 %v3797, %v4008
        %v4010 = vpop.f32.mrb[0].mxu0
        %v4011 = vpop.f32.mrb[0].mxu0
        %v4012 = vadd.f32 %v3800, %v4011
        %v4013 = vpop.f32.mrb[0].mxu0
        %4014 = vdwg.mxu0
        %v4015 = vpack.c.bf16 %v2752, %v2752
        %v4016 = vpack.c.bf16 %v2756, %v2756
        %v4017 = vpack.c.bf16 %v2924, %v2924
        %v4018 = vpack.c.bf16 %v2928, %v2928
        %v4019 = vpack.c.bf16 %v3096, %v3096
        %v4020 = vpack.c.bf16 %v3100, %v3100
        %4021 = vmatprep.subr.bf16.mxu0 0
        %4022 = vmatpush1.bf16.xpose.msra.mxu0 %v4017
        %4023 = vmatprep.subr.bf16.mxu0 0
        %4024 = vmatpush1.bf16.xpose.msra.mxu0 0
        %4025 = vmatprep.subr.bf16.mxu0 0
        %4026 = vmatpush1.bf16.xpose.msra.mxu0 0
        %4027 = vmatprep.subr.bf16.mxu0 0
        %4028 = vmatpush1.bf16.xpose.msra.mxu0 0
        %4029 = vmatprep.subr.bf16.mxu0 0
        %4030 = vmatpush1.bf16.xpose.msra.mxu0 0
        %4031 = vmatprep.subr.bf16.mxu0 0
        %4032 = vmatpush1.bf16.xpose.msra.mxu0 0
        %4033 = vmatprep.subr.bf16.mxu0 0
        %4034 = vmatpush1.bf16.xpose.msra.mxu0 0
        %4035 = vmatprep.subr.bf16.mxu0 0
        %4036 = vmatpush1.bf16.xpose.msra.mxu0 0
        %4037 = vmatprep.subr.bf16.mxu0 0
        %4038 = vmatpush1.bf16.xpose.msra.mxu0 0
        %4039 = vmatprep.subr.bf16.mxu0 0
        %4040 = vmatpush1.bf16.xpose.msra.mxu0 0
        %4041 = vmatprep.subr.bf16.mxu0 0
        %4042 = vmatpush1.bf16.xpose.msra.mxu0 0
        %4043 = vmatprep.subr.bf16.mxu0 0
        %4044 = vmatpush1.bf16.xpose.msra.mxu0 0
        %4045 = vmatprep.subr.bf16.mxu0 0
        %4046 = vmatpush1.bf16.xpose.msra.mxu0 0
        %4047 = vmatprep.subr.bf16.mxu0 0
        %4048 = vmatpush1.bf16.xpose.msra.mxu0 0
        %4049 = vmatprep.subr.bf16.mxu0 0
        %4050 = vmatpush1.bf16.xpose.msra.mxu0 0
        %4051 = vmatprep.subr.bf16.mxu0 0
        %4052 = vmatpush1.bf16.xpose.msra.mxu0 0
        %4053 = vmatprep.mubr.bf16.mxu0 0
        %4054 = vmatmul.mubr.bf16.gmra.mrb[0].mxu0 %v4015
        %v4055 = vpop.f32.mrb[0].mxu0
        %v4056 = vadd.f32 0.0, %v4055
        %v4057 = vpop.f32.mrb[0].mxu0
        %v4058 = vpop.f32.mrb[0].mxu0
        %v4059 = vpop.f32.mrb[0].mxu0
        %4060 = vdwg.mxu0
        %4061 = vmatprep.subr.bf16.mxu0 0
        %4062 = vmatpush1.bf16.xpose.msra.mxu0 %v4018
        %4063 = vmatprep.subr.bf16.mxu0 0
        %4064 = vmatpush1.bf16.xpose.msra.mxu0 0
        %4065 = vmatprep.subr.bf16.mxu0 0
        %4066 = vmatpush1.bf16.xpose.msra.mxu0 0
        %4067 = vmatprep.subr.bf16.mxu0 0
        %4068 = vmatpush1.bf16.xpose.msra.mxu0 0
        %4069 = vmatprep.subr.bf16.mxu0 0
        %4070 = vmatpush1.bf16.xpose.msra.mxu0 0
        %4071 = vmatprep.subr.bf16.mxu0 0
        %4072 = vmatpush1.bf16.xpose.msra.mxu0 0
        %4073 = vmatprep.subr.bf16.mxu0 0
        %4074 = vmatpush1.bf16.xpose.msra.mxu0 0
        %4075 = vmatprep.subr.bf16.mxu0 0
        %4076 = vmatpush1.bf16.xpose.msra.mxu0 0
        %4077 = vmatprep.subr.bf16.mxu0 0
        %4078 = vmatpush1.bf16.xpose.msra.mxu0 0
        %4079 = vmatprep.subr.bf16.mxu0 0
        %4080 = vmatpush1.bf16.xpose.msra.mxu0 0
        %4081 = vmatprep.subr.bf16.mxu0 0
        %4082 = vmatpush1.bf16.xpose.msra.mxu0 0
        %4083 = vmatprep.subr.bf16.mxu0 0
        %4084 = vmatpush1.bf16.xpose.msra.mxu0 0
        %4085 = vmatprep.subr.bf16.mxu0 0
        %4086 = vmatpush1.bf16.xpose.msra.mxu0 0
        %4087 = vmatprep.subr.bf16.mxu0 0
        %4088 = vmatpush1.bf16.xpose.msra.mxu0 0
        %4089 = vmatprep.subr.bf16.mxu0 0
        %4090 = vmatpush1.bf16.xpose.msra.mxu0 0
        %4091 = vmatprep.subr.bf16.mxu0 0
        %4092 = vmatpush1.bf16.xpose.msra.mxu0 0
        %4093 = vmatprep.mubr.bf16.mxu0 0
        %4094 = vmatmul.mubr.bf16.gmra.mrb[0].mxu0 %v4016
        %v4095 = vpop.f32.mrb[0].mxu0
        %v4096 = vadd.f32 0.0, %v4095
        %v4097 = vpop.f32.mrb[0].mxu0
        %v4098 = vpop.f32.mrb[0].mxu0
        %v4099 = vpop.f32.mrb[0].mxu0
        %4100 = vdwg.mxu0
        %v4101 = vmul.f32 %v4056, 0.10206208
        %v4102 = vmul.f32 %v4096, 0.10206208
        %v4103 = vsel %vm3198, %v4101, -1e+30
        %v4104 = vsel %vm3198, %v4102, -1e+30
        %v4105 = vsel %vm3201, %v4103, -inf
        %4106 = vmax.xlane.f32.xlu0 %v4105
        %v4107 = vpop.xlane.xlu0 %4106
        %v4108 = vsel %vm3201, %v4104, -inf
        %4109 = vmax.xlane.f32.xlu0 %v4108
        %v4110 = vpop.xlane.xlu0 %4109
        %v4111 = vsub.f32 %v4103, %v4107
        %v4112 = vsub.f32 %v4104, %v4110
        %v4113 = vmul.f32 %v4111, 1.442695
        %v4114 = vpow.pop %v4113
        %v4115 = vmul.f32 %v4112, 1.442695
        %v4116 = vpow.pop %v4115
        %v4117 = vsel %vm3201, %v4114, 0.0
        %4118 = vadd.xlane.f32.xlu0 %v4117
        %v4119 = vpop.xlane.xlu0 %4118
        %v4120 = vsel %vm3201, %v4116, 0.0
        %4121 = vadd.xlane.f32.xlu0 %v4120
        %v4122 = vpop.xlane.xlu0 %4121
        %v4123 = vrcp.pop %v4119
        %v4124 = vrcp.pop %v4122
        %v4125 = vmul.f32 %v4114, %v4123
        %v4126 = vmul.f32 %v4116, %v4124
        %v4127 = vpack.c.bf16 %v4125, %v4125
        %v4128 = vpack.c.bf16 %v4126, %v4126
        %v4130 = vsel %vm3201, %v4127, 0
        %v4133 = vsel %vm3229, %v4019, 0
        %4135 = vmatprep.subr.bf16.mxu0 0
        %4136 = vmatpush1.bf16.msra.mxu0 %v4133
        %4137 = vmatprep.subr.bf16.mxu0 0
        %4138 = vmatpush1.bf16.msra.mxu0 0
        %4139 = vmatprep.subr.bf16.mxu0 0
        %4140 = vmatpush1.bf16.msra.mxu0 0
        %4141 = vmatprep.subr.bf16.mxu0 0
        %4142 = vmatpush1.bf16.msra.mxu0 0
        %4143 = vmatprep.subr.bf16.mxu0 0
        %4144 = vmatpush1.bf16.msra.mxu0 0
        %4145 = vmatprep.subr.bf16.mxu0 0
        %4146 = vmatpush1.bf16.msra.mxu0 0
        %4147 = vmatprep.subr.bf16.mxu0 0
        %4148 = vmatpush1.bf16.msra.mxu0 0
        %4149 = vmatprep.subr.bf16.mxu0 0
        %4150 = vmatpush1.bf16.msra.mxu0 0
        %4151 = vmatprep.subr.bf16.mxu0 0
        %4152 = vmatpush1.bf16.msra.mxu0 0
        %4153 = vmatprep.subr.bf16.mxu0 0
        %4154 = vmatpush1.bf16.msra.mxu0 0
        %4155 = vmatprep.subr.bf16.mxu0 0
        %4156 = vmatpush1.bf16.msra.mxu0 0
        %4157 = vmatprep.subr.bf16.mxu0 0
        %4158 = vmatpush1.bf16.msra.mxu0 0
        %4159 = vmatprep.subr.bf16.mxu0 0
        %4160 = vmatpush1.bf16.msra.mxu0 0
        %4161 = vmatprep.subr.bf16.mxu0 0
        %4162 = vmatpush1.bf16.msra.mxu0 0
        %4163 = vmatprep.subr.bf16.mxu0 0
        %4164 = vmatpush1.bf16.msra.mxu0 0
        %4165 = vmatprep.subr.bf16.mxu0 0
        %4166 = vmatpush1.bf16.msra.mxu0 0
        %4167 = vmatprep.mubr.bf16.mxu0 0
        %4168 = vmatmul.mubr.bf16.gmra.mrb[0].mxu0 %v4130
        %v4169 = vpop.f32.mrb[0].mxu0
        %v4170 = vadd.f32 0.0, %v4169
        %v4171 = vpop.f32.mrb[0].mxu0
        %v4172 = vpop.f32.mrb[0].mxu0
        %v4173 = vpop.f32.mrb[0].mxu0
        %4174 = vdwg.mxu0
        %v4176 = vsel %vm3201, %v4128, 0
        %v4179 = vsel %vm3229, %v4020, 0
        %4181 = vmatprep.subr.bf16.mxu0 0
        %4182 = vmatpush1.bf16.msra.mxu0 %v4179
        %4183 = vmatprep.subr.bf16.mxu0 0
        %4184 = vmatpush1.bf16.msra.mxu0 0
        %4185 = vmatprep.subr.bf16.mxu0 0
        %4186 = vmatpush1.bf16.msra.mxu0 0
        %4187 = vmatprep.subr.bf16.mxu0 0
        %4188 = vmatpush1.bf16.msra.mxu0 0
        %4189 = vmatprep.subr.bf16.mxu0 0
        %4190 = vmatpush1.bf16.msra.mxu0 0
        %4191 = vmatprep.subr.bf16.mxu0 0
        %4192 = vmatpush1.bf16.msra.mxu0 0
        %4193 = vmatprep.subr.bf16.mxu0 0
        %4194 = vmatpush1.bf16.msra.mxu0 0
        %4195 = vmatprep.subr.bf16.mxu0 0
        %4196 = vmatpush1.bf16.msra.mxu0 0
        %4197 = vmatprep.subr.bf16.mxu0 0
        %4198 = vmatpush1.bf16.msra.mxu0 0
        %4199 = vmatprep.subr.bf16.mxu0 0
        %4200 = vmatpush1.bf16.msra.mxu0 0
        %4201 = vmatprep.subr.bf16.mxu0 0
        %4202 = vmatpush1.bf16.msra.mxu0 0
        %4203 = vmatprep.subr.bf16.mxu0 0
        %4204 = vmatpush1.bf16.msra.mxu0 0
        %4205 = vmatprep.subr.bf16.mxu0 0
        %4206 = vmatpush1.bf16.msra.mxu0 0
        %4207 = vmatprep.subr.bf16.mxu0 0
        %4208 = vmatpush1.bf16.msra.mxu0 0
        %4209 = vmatprep.subr.bf16.mxu0 0
        %4210 = vmatpush1.bf16.msra.mxu0 0
        %4211 = vmatprep.subr.bf16.mxu0 0
        %4212 = vmatpush1.bf16.msra.mxu0 0
        %4213 = vmatprep.mubr.bf16.mxu0 0
        %4214 = vmatmul.mubr.bf16.gmra.mrb[0].mxu0 %v4176
        %v4215 = vpop.f32.mrb[0].mxu0
        %v4216 = vadd.f32 0.0, %v4215
        %v4217 = vpop.f32.mrb[0].mxu0
        %v4218 = vpop.f32.mrb[0].mxu0
        %v4219 = vpop.f32.mrb[0].mxu0
        %4220 = vdwg.mxu0
        %v4221 = vpack.c.bf16 %v4216, %v4170
        %v4222 = vld [vmem:[%s665 + $0x180] sm:$0xff]
        %v4223 = vld [vmem:[%s665 + $0x188] sm:$0xf]
        %v4224 = vld [vmem:[%s665 + $0x18c] sm:$0xff]
        %v4225 = vld [vmem:[%s665 + $0x194] sm:$0xf]
        %v4226 = vld [vmem:[%s665 + $0x198] sm:$0xff]
        %v4227 = vld [vmem:[%s665 + $0x1a0] sm:$0xf]
        %v4228 = vld [vmem:[%s665 + $0x1a4] sm:$0xff]
        %v4229 = vld [vmem:[%s665 + $0x1ac] sm:$0xf]
        %v4230 = vld [vmem:[%s665 + $0x1b0] sm:$0xff]
        %v4231 = vld [vmem:[%s665 + $0x1b8] sm:$0xf]
        %v4232 = vld [vmem:[%s665 + $0x1bc] sm:$0xff]
        %v4233 = vld [vmem:[%s665 + $0x1c4] sm:$0xf]
        %v4234 = vld [vmem:[%s665 + $0x1c8] sm:$0xff]
        %v4235 = vld [vmem:[%s665 + $0x1d0] sm:$0xf]
        %v4236 = vld [vmem:[%s665 + $0x1d4] sm:$0xff]
        %v4237 = vld [vmem:[%s665 + $0x1dc] sm:$0xf]
        %v4238 = vld [vmem:[%s665 + $0x1e0] sm:$0xff]
        %v4239 = vld [vmem:[%s665 + $0x1e8] sm:$0xf]
        %v4240 = vld [vmem:[%s665 + $0x1ec] sm:$0xff]
        %v4241 = vld [vmem:[%s665 + $0x1f4] sm:$0xf]
        %v4242 = vld [vmem:[%s665 + $0x1f8] sm:$0xff]
        %v4243 = vld [vmem:[%s665 + $0x200] sm:$0xf]
        %v4244 = vld [vmem:[%s665 + $0x204] sm:$0xff]
        %v4245 = vld [vmem:[%s665 + $0x20c] sm:$0xf]
        %v4246 = vld [vmem:[%s665 + $0x210] sm:$0xff]
        %v4247 = vld [vmem:[%s665 + $0x218] sm:$0xf]
        %v4248 = vld [vmem:[%s665 + $0x21c] sm:$0xff]
        %v4249 = vld [vmem:[%s665 + $0x224] sm:$0xf]
        %v4250 = vld [vmem:[%s665 + $0x228] sm:$0xff]
        %v4251 = vld [vmem:[%s665 + $0x230] sm:$0xf]
        %v4252 = vld [vmem:[%s665 + $0x234] sm:$0xff]
        %v4253 = vld [vmem:[%s665 + $0x23c] sm:$0xf]
        %v4286 = vunpack.c.l.b16 %v4222
        %v4287 = vunpack.c.h.b16 %v4222
        %v4288 = vunpack.c.l.b16 %v4223
        %v4289 = vunpack.c.l.b16 %v4224
        %v4290 = vunpack.c.h.b16 %v4224
        %v4291 = vunpack.c.l.b16 %v4225
        %v4292 = vunpack.c.l.b16 %v4226
        %v4293 = vunpack.c.h.b16 %v4226
        %v4294 = vunpack.c.l.b16 %v4227
        %v4295 = vunpack.c.l.b16 %v4228
        %v4296 = vunpack.c.h.b16 %v4228
        %v4297 = vunpack.c.l.b16 %v4229
        %v4298 = vunpack.c.l.b16 %v4230
        %v4299 = vunpack.c.h.b16 %v4230
        %v4300 = vunpack.c.l.b16 %v4231
        %v4301 = vunpack.c.l.b16 %v4232
        %v4302 = vunpack.c.h.b16 %v4232
        %v4303 = vunpack.c.l.b16 %v4233
        %v4304 = vunpack.c.l.b16 %v4234
        %v4305 = vunpack.c.h.b16 %v4234
        %v4306 = vunpack.c.l.b16 %v4235
        %v4307 = vunpack.c.l.b16 %v4236
        %v4308 = vunpack.c.h.b16 %v4236
        %v4309 = vunpack.c.l.b16 %v4237
        %v4310 = vunpack.c.l.b16 %v4238
        %v4311 = vunpack.c.h.b16 %v4238
        %v4312 = vunpack.c.l.b16 %v4239
        %v4313 = vunpack.c.l.b16 %v4240
        %v4314 = vunpack.c.h.b16 %v4240
        %v4315 = vunpack.c.l.b16 %v4241
        %v4316 = vunpack.c.l.b16 %v4242
        %v4317 = vunpack.c.h.b16 %v4242
        %v4318 = vunpack.c.l.b16 %v4243
        %v4319 = vunpack.c.l.b16 %v4244
        %v4320 = vunpack.c.h.b16 %v4244
        %v4321 = vunpack.c.l.b16 %v4245
        %v4322 = vunpack.c.l.b16 %v4246
        %v4323 = vunpack.c.h.b16 %v4246
        %v4324 = vunpack.c.l.b16 %v4247
        %v4325 = vunpack.c.l.b16 %v4248
        %v4326 = vunpack.c.h.b16 %v4248
        %v4327 = vunpack.c.l.b16 %v4249
        %v4328 = vunpack.c.l.b16 %v4250
        %v4329 = vunpack.c.h.b16 %v4250
        %v4330 = vunpack.c.l.b16 %v4251
        %v4331 = vunpack.c.l.b16 %v4252
        %v4332 = vunpack.c.h.b16 %v4252
        %v4333 = vunpack.c.l.b16 %v4253
        %v4334 = vpack.c.b16 %v4289, %v4286
        %v4335 = vpack.c.b16 %v4290, %v4287
        %v4336 = vpack.c.b16 %v4291, %v4288
        %v4337 = vpack.c.b16 %v4295, %v4292
        %v4338 = vpack.c.b16 %v4296, %v4293
        %v4339 = vpack.c.b16 %v4297, %v4294
        %v4340 = vpack.c.b16 %v4301, %v4298
        %v4341 = vpack.c.b16 %v4302, %v4299
        %v4342 = vpack.c.b16 %v4303, %v4300
        %v4343 = vpack.c.b16 %v4307, %v4304
        %v4344 = vpack.c.b16 %v4308, %v4305
        %v4345 = vpack.c.b16 %v4309, %v4306
        %v4346 = vpack.c.b16 %v4313, %v4310
        %v4347 = vpack.c.b16 %v4314, %v4311
        %v4348 = vpack.c.b16 %v4315, %v4312
        %v4349 = vpack.c.b16 %v4319, %v4316
        %v4350 = vpack.c.b16 %v4320, %v4317
        %v4351 = vpack.c.b16 %v4321, %v4318
        %v4352 = vpack.c.b16 %v4325, %v4322
        %v4353 = vpack.c.b16 %v4326, %v4323
        %v4354 = vpack.c.b16 %v4327, %v4324
        %v4355 = vpack.c.b16 %v4331, %v4328
        %v4356 = vpack.c.b16 %v4332, %v4329
        %v4357 = vpack.c.b16 %v4333, %v4330
        %4382 = vmatprep.subr.bf16.mxu0 %v4335
        %4383 = vmatpush1.bf16.msra.mxu0 %v4334
        %4384 = vmatprep.subr.bf16.mxu0 %v4338
        %4385 = vmatpush1.bf16.msra.mxu0 %v4337
        %4386 = vmatprep.subr.bf16.mxu0 %v4341
        %4387 = vmatpush1.bf16.msra.mxu0 %v4340
        %4388 = vmatprep.subr.bf16.mxu0 %v4344
        %4389 = vmatpush1.bf16.msra.mxu0 %v4343
        %4390 = vmatprep.subr.bf16.mxu0 %v4347
        %4391 = vmatpush1.bf16.msra.mxu0 %v4346
        %4392 = vmatprep.subr.bf16.mxu0 %v4350
        %4393 = vmatpush1.bf16.msra.mxu0 %v4349
        %4394 = vmatprep.subr.bf16.mxu0 %v4353
        %4395 = vmatpush1.bf16.msra.mxu0 %v4352
        %4396 = vmatprep.subr.bf16.mxu0 %v4356
        %4397 = vmatpush1.bf16.msra.mxu0 %v4355
        %4398 = vmatprep.subr.bf16.mxu0 0
        %4399 = vmatpush1.bf16.msra.mxu0 0
        %4400 = vmatprep.subr.bf16.mxu0 0
        %4401 = vmatpush1.bf16.msra.mxu0 0
        %4402 = vmatprep.subr.bf16.mxu0 0
        %4403 = vmatpush1.bf16.msra.mxu0 0
        %4404 = vmatprep.subr.bf16.mxu0 0
        %4405 = vmatpush1.bf16.msra.mxu0 0
        %4406 = vmatprep.subr.bf16.mxu0 0
        %4407 = vmatpush1.bf16.msra.mxu0 0
        %4408 = vmatprep.subr.bf16.mxu0 0
        %4409 = vmatpush1.bf16.msra.mxu0 0
        %4410 = vmatprep.subr.bf16.mxu0 0
        %4411 = vmatpush1.bf16.msra.mxu0 0
        %4412 = vmatprep.subr.bf16.mxu0 0
        %4413 = vmatpush1.bf16.msra.mxu0 0
        %4414 = vmatprep.mubr.bf16.mxu0 0
        %4415 = vmatmul.mubr.bf16.gmra.mrb[0].mxu0 %v4221
        %v4416 = vpop.f32.mrb[0].mxu0
        %v4417 = vadd.f32 0.0, %v4416
        %v4418 = vpop.f32.mrb[0].mxu0
        %v4419 = vadd.f32 0.0, %v4418
        %v4420 = vpop.f32.mrb[0].mxu0
        %v4421 = vadd.f32 0.0, %v4420
        %v4422 = vpop.f32.mrb[0].mxu0
        %v4423 = vadd.f32 0.0, %v4422
        %4424 = vdwg.mxu0
        %4425 = vmatprep.subr.bf16.mxu0 0
        %4426 = vmatpush1.bf16.msra.mxu0 %v4336
        %4427 = vmatprep.subr.bf16.mxu0 0
        %4428 = vmatpush1.bf16.msra.mxu0 %v4339
        %4429 = vmatprep.subr.bf16.mxu0 0
        %4430 = vmatpush1.bf16.msra.mxu0 %v4342
        %4431 = vmatprep.subr.bf16.mxu0 0
        %4432 = vmatpush1.bf16.msra.mxu0 %v4345
        %4433 = vmatprep.subr.bf16.mxu0 0
        %4434 = vmatpush1.bf16.msra.mxu0 %v4348
        %4435 = vmatprep.subr.bf16.mxu0 0
        %4436 = vmatpush1.bf16.msra.mxu0 %v4351
        %4437 = vmatprep.subr.bf16.mxu0 0
        %4438 = vmatpush1.bf16.msra.mxu0 %v4354
        %4439 = vmatprep.subr.bf16.mxu0 0
        %4440 = vmatpush1.bf16.msra.mxu0 %v4357
        %4441 = vmatprep.subr.bf16.mxu0 0
        %4442 = vmatpush1.bf16.msra.mxu0 0
        %4443 = vmatprep.subr.bf16.mxu0 0
        %4444 = vmatpush1.bf16.msra.mxu0 0
        %4445 = vmatprep.subr.bf16.mxu0 0
        %4446 = vmatpush1.bf16.msra.mxu0 0
        %4447 = vmatprep.subr.bf16.mxu0 0
        %4448 = vmatpush1.bf16.msra.mxu0 0
        %4449 = vmatprep.subr.bf16.mxu0 0
        %4450 = vmatpush1.bf16.msra.mxu0 0
        %4451 = vmatprep.subr.bf16.mxu0 0
        %4452 = vmatpush1.bf16.msra.mxu0 0
        %4453 = vmatprep.subr.bf16.mxu0 0
        %4454 = vmatpush1.bf16.msra.mxu0 0
        %4455 = vmatprep.subr.bf16.mxu0 0
        %4456 = vmatpush1.bf16.msra.mxu0 0
        %4457 = vmatprep.mubr.bf16.mxu0 0
        %4458 = vmatmul.mubr.bf16.gmra.mrb[0].mxu0 %v4221
        %v4459 = vpop.f32.mrb[0].mxu0
        %v4460 = vadd.f32 0.0, %v4459
        %v4461 = vpop.f32.mrb[0].mxu0
        %v4462 = vpop.f32.mrb[0].mxu0
        %v4463 = vadd.f32 0.0, %v4462
        %v4464 = vpop.f32.mrb[0].mxu0
        %4465 = vdwg.mxu0
        %v4466 = vadd.f32 %v3966, %v4417
        %v4467 = vadd.f32 %v3968, %v4419
        %v4468 = vadd.f32 %v4009, %v4460
        %v4469 = vadd.f32 %v3970, %v4421
        %v4470 = vadd.f32 %v3972, %v4423
        %v4471 = vadd.f32 %v4012, %v4463
        %v4472 = vpack.c.bf16 %v2754, %v2754
        %v4473 = vpack.c.bf16 %v2758, %v2758
        %v4474 = vpack.c.bf16 %v2926, %v2926
        %v4475 = vpack.c.bf16 %v2930, %v2930
        %v4476 = vpack.c.bf16 %v3098, %v3098
        %v4477 = vpack.c.bf16 %v3102, %v3102
        %4478 = vmatprep.subr.bf16.mxu0 0
        %4479 = vmatpush1.bf16.xpose.msra.mxu0 %v4474
        %4480 = vmatprep.subr.bf16.mxu0 0
        %4481 = vmatpush1.bf16.xpose.msra.mxu0 0
        %4482 = vmatprep.subr.bf16.mxu0 0
        %4483 = vmatpush1.bf16.xpose.msra.mxu0 0
        %4484 = vmatprep.subr.bf16.mxu0 0
        %4485 = vmatpush1.bf16.xpose.msra.mxu0 0
        %4486 = vmatprep.subr.bf16.mxu0 0
        %4487 = vmatpush1.bf16.xpose.msra.mxu0 0
        %4488 = vmatprep.subr.bf16.mxu0 0
        %4489 = vmatpush1.bf16.xpose.msra.mxu0 0
        %4490 = vmatprep.subr.bf16.mxu0 0
        %4491 = vmatpush1.bf16.xpose.msra.mxu0 0
        %4492 = vmatprep.subr.bf16.mxu0 0
        %4493 = vmatpush1.bf16.xpose.msra.mxu0 0
        %4494 = vmatprep.subr.bf16.mxu0 0
        %4495 = vmatpush1.bf16.xpose.msra.mxu0 0
        %4496 = vmatprep.subr.bf16.mxu0 0
        %4497 = vmatpush1.bf16.xpose.msra.mxu0 0
        %4498 = vmatprep.subr.bf16.mxu0 0
        %4499 = vmatpush1.bf16.xpose.msra.mxu0 0
        %4500 = vmatprep.subr.bf16.mxu0 0
        %4501 = vmatpush1.bf16.xpose.msra.mxu0 0
        %4502 = vmatprep.subr.bf16.mxu0 0
        %4503 = vmatpush1.bf16.xpose.msra.mxu0 0
        %4504 = vmatprep.subr.bf16.mxu0 0
        %4505 = vmatpush1.bf16.xpose.msra.mxu0 0
        %4506 = vmatprep.subr.bf16.mxu0 0
        %4507 = vmatpush1.bf16.xpose.msra.mxu0 0
        %4508 = vmatprep.subr.bf16.mxu0 0
        %4509 = vmatpush1.bf16.xpose.msra.mxu0 0
        %4510 = vmatprep.mubr.bf16.mxu0 0
        %4511 = vmatmul.mubr.bf16.gmra.mrb[0].mxu0 %v4472
        %v4512 = vpop.f32.mrb[0].mxu0
        %v4513 = vadd.f32 0.0, %v4512
        %v4514 = vpop.f32.mrb[0].mxu0
        %v4515 = vpop.f32.mrb[0].mxu0
        %v4516 = vpop.f32.mrb[0].mxu0
        %4517 = vdwg.mxu0
        %4518 = vmatprep.subr.bf16.mxu0 0
        %4519 = vmatpush1.bf16.xpose.msra.mxu0 %v4475
        %4520 = vmatprep.subr.bf16.mxu0 0
        %4521 = vmatpush1.bf16.xpose.msra.mxu0 0
        %4522 = vmatprep.subr.bf16.mxu0 0
        %4523 = vmatpush1.bf16.xpose.msra.mxu0 0
        %4524 = vmatprep.subr.bf16.mxu0 0
        %4525 = vmatpush1.bf16.xpose.msra.mxu0 0
        %4526 = vmatprep.subr.bf16.mxu0 0
        %4527 = vmatpush1.bf16.xpose.msra.mxu0 0
        %4528 = vmatprep.subr.bf16.mxu0 0
        %4529 = vmatpush1.bf16.xpose.msra.mxu0 0
        %4530 = vmatprep.subr.bf16.mxu0 0
        %4531 = vmatpush1.bf16.xpose.msra.mxu0 0
        %4532 = vmatprep.subr.bf16.mxu0 0
        %4533 = vmatpush1.bf16.xpose.msra.mxu0 0
        %4534 = vmatprep.subr.bf16.mxu0 0
        %4535 = vmatpush1.bf16.xpose.msra.mxu0 0
        %4536 = vmatprep.subr.bf16.mxu0 0
        %4537 = vmatpush1.bf16.xpose.msra.mxu0 0
        %4538 = vmatprep.subr.bf16.mxu0 0
        %4539 = vmatpush1.bf16.xpose.msra.mxu0 0
        %4540 = vmatprep.subr.bf16.mxu0 0
        %4541 = vmatpush1.bf16.xpose.msra.mxu0 0
        %4542 = vmatprep.subr.bf16.mxu0 0
        %4543 = vmatpush1.bf16.xpose.msra.mxu0 0
        %4544 = vmatprep.subr.bf16.mxu0 0
        %4545 = vmatpush1.bf16.xpose.msra.mxu0 0
        %4546 = vmatprep.subr.bf16.mxu0 0
        %4547 = vmatpush1.bf16.xpose.msra.mxu0 0
        %4548 = vmatprep.subr.bf16.mxu0 0
        %4549 = vmatpush1.bf16.xpose.msra.mxu0 0
        %4550 = vmatprep.mubr.bf16.mxu0 0
        %4551 = vmatmul.mubr.bf16.gmra.mrb[0].mxu0 %v4473
        %v4552 = vpop.f32.mrb[0].mxu0
        %v4553 = vadd.f32 0.0, %v4552
        %v4554 = vpop.f32.mrb[0].mxu0
        %v4555 = vpop.f32.mrb[0].mxu0
        %v4556 = vpop.f32.mrb[0].mxu0
        %4557 = vdwg.mxu0
        %v4558 = vmul.f32 %v4513, 0.10206208
        %v4559 = vmul.f32 %v4553, 0.10206208
        %v4560 = vsel %vm3198, %v4558, -1e+30
        %v4561 = vsel %vm3198, %v4559, -1e+30
        %v4562 = vsel %vm3201, %v4560, -inf
        %4563 = vmax.xlane.f32.xlu0 %v4562
        %v4564 = vpop.xlane.xlu0 %4563
        %v4565 = vsel %vm3201, %v4561, -inf
        %4566 = vmax.xlane.f32.xlu0 %v4565
        %v4567 = vpop.xlane.xlu0 %4566
        %v4568 = vsub.f32 %v4560, %v4564
        %v4569 = vsub.f32 %v4561, %v4567
        %v4570 = vmul.f32 %v4568, 1.442695
        %v4571 = vpow.pop %v4570
        %v4572 = vmul.f32 %v4569, 1.442695
        %v4573 = vpow.pop %v4572
        %v4574 = vsel %vm3201, %v4571, 0.0
        %4575 = vadd.xlane.f32.xlu0 %v4574
        %v4576 = vpop.xlane.xlu0 %4575
        %v4577 = vsel %vm3201, %v4573, 0.0
        %4578 = vadd.xlane.f32.xlu0 %v4577
        %v4579 = vpop.xlane.xlu0 %4578
        %v4580 = vrcp.pop %v4576
        %v4581 = vrcp.pop %v4579
        %v4582 = vmul.f32 %v4571, %v4580
        %v4583 = vmul.f32 %v4573, %v4581
        %v4584 = vpack.c.bf16 %v4582, %v4582
        %v4585 = vpack.c.bf16 %v4583, %v4583
        %v4587 = vsel %vm3201, %v4584, 0
        %v4590 = vsel %vm3229, %v4476, 0
        %4592 = vmatprep.subr.bf16.mxu0 0
        %4593 = vmatpush1.bf16.msra.mxu0 %v4590
        %4594 = vmatprep.subr.bf16.mxu0 0
        %4595 = vmatpush1.bf16.msra.mxu0 0
        %4596 = vmatprep.subr.bf16.mxu0 0
        %4597 = vmatpush1.bf16.msra.mxu0 0
        %4598 = vmatprep.subr.bf16.mxu0 0
        %4599 = vmatpush1.bf16.msra.mxu0 0
        %4600 = vmatprep.subr.bf16.mxu0 0
        %4601 = vmatpush1.bf16.msra.mxu0 0
        %4602 = vmatprep.subr.bf16.mxu0 0
        %4603 = vmatpush1.bf16.msra.mxu0 0
        %4604 = vmatprep.subr.bf16.mxu0 0
        %4605 = vmatpush1.bf16.msra.mxu0 0
        %4606 = vmatprep.subr.bf16.mxu0 0
        %4607 = vmatpush1.bf16.msra.mxu0 0
        %4608 = vmatprep.subr.bf16.mxu0 0
        %4609 = vmatpush1.bf16.msra.mxu0 0
        %4610 = vmatprep.subr.bf16.mxu0 0
        %4611 = vmatpush1.bf16.msra.mxu0 0
        %4612 = vmatprep.subr.bf16.mxu0 0
        %4613 = vmatpush1.bf16.msra.mxu0 0
        %4614 = vmatprep.subr.bf16.mxu0 0
        %4615 = vmatpush1.bf16.msra.mxu0 0
        %4616 = vmatprep.subr.bf16.mxu0 0
        %4617 = vmatpush1.bf16.msra.mxu0 0
        %4618 = vmatprep.subr.bf16.mxu0 0
        %4619 = vmatpush1.bf16.msra.mxu0 0
        %4620 = vmatprep.subr.bf16.mxu0 0
        %4621 = vmatpush1.bf16.msra.mxu0 0
        %4622 = vmatprep.subr.bf16.mxu0 0
        %4623 = vmatpush1.bf16.msra.mxu0 0
        %4624 = vmatprep.mubr.bf16.mxu0 0
        %4625 = vmatmul.mubr.bf16.gmra.mrb[0].mxu0 %v4587
        %v4626 = vpop.f32.mrb[0].mxu0
        %v4627 = vadd.f32 0.0, %v4626
        %v4628 = vpop.f32.mrb[0].mxu0
        %v4629 = vpop.f32.mrb[0].mxu0
        %v4630 = vpop.f32.mrb[0].mxu0
        %4631 = vdwg.mxu0
        %v4633 = vsel %vm3201, %v4585, 0
        %v4636 = vsel %vm3229, %v4477, 0
        %4638 = vmatprep.subr.bf16.mxu0 0
        %4639 = vmatpush1.bf16.msra.mxu0 %v4636
        %4640 = vmatprep.subr.bf16.mxu0 0
        %4641 = vmatpush1.bf16.msra.mxu0 0
        %4642 = vmatprep.subr.bf16.mxu0 0
        %4643 = vmatpush1.bf16.msra.mxu0 0
        %4644 = vmatprep.subr.bf16.mxu0 0
        %4645 = vmatpush1.bf16.msra.mxu0 0
        %4646 = vmatprep.subr.bf16.mxu0 0
        %4647 = vmatpush1.bf16.msra.mxu0 0
        %4648 = vmatprep.subr.bf16.mxu0 0
        %4649 = vmatpush1.bf16.msra.mxu0 0
        %4650 = vmatprep.subr.bf16.mxu0 0
        %4651 = vmatpush1.bf16.msra.mxu0 0
        %4652 = vmatprep.subr.bf16.mxu0 0
        %4653 = vmatpush1.bf16.msra.mxu0 0
        %4654 = vmatprep.subr.bf16.mxu0 0
        %4655 = vmatpush1.bf16.msra.mxu0 0
        %4656 = vmatprep.subr.bf16.mxu0 0
        %4657 = vmatpush1.bf16.msra.mxu0 0
        %4658 = vmatprep.subr.bf16.mxu0 0
        %4659 = vmatpush1.bf16.msra.mxu0 0
        %4660 = vmatprep.subr.bf16.mxu0 0
        %4661 = vmatpush1.bf16.msra.mxu0 0
        %4662 = vmatprep.subr.bf16.mxu0 0
        %4663 = vmatpush1.bf16.msra.mxu0 0
        %4664 = vmatprep.subr.bf16.mxu0 0
        %4665 = vmatpush1.bf16.msra.mxu0 0
        %4666 = vmatprep.subr.bf16.mxu0 0
        %4667 = vmatpush1.bf16.msra.mxu0 0
        %4668 = vmatprep.subr.bf16.mxu0 0
        %4669 = vmatpush1.bf16.msra.mxu0 0
        %4670 = vmatprep.mubr.bf16.mxu0 0
        %4671 = vmatmul.mubr.bf16.gmra.mrb[0].mxu0 %v4633
        %v4672 = vpop.f32.mrb[0].mxu0
        %v4673 = vadd.f32 0.0, %v4672
        %v4674 = vpop.f32.mrb[0].mxu0
        %v4675 = vpop.f32.mrb[0].mxu0
        %v4676 = vpop.f32.mrb[0].mxu0
        %4677 = vdwg.mxu0
        %v4678 = vpack.c.bf16 %v4673, %v4627
        %v4679 = vld [vmem:[%s665 + $0x240] sm:$0xff]
        %v4680 = vld [vmem:[%s665 + $0x248] sm:$0xf]
        %v4681 = vld [vmem:[%s665 + $0x24c] sm:$0xff]
        %v4682 = vld [vmem:[%s665 + $0x254] sm:$0xf]
        %v4683 = vld [vmem:[%s665 + $0x258] sm:$0xff]
        %v4684 = vld [vmem:[%s665 + $0x260] sm:$0xf]
        %v4685 = vld [vmem:[%s665 + $0x264] sm:$0xff]
        %v4686 = vld [vmem:[%s665 + $0x26c] sm:$0xf]
        %v4687 = vld [vmem:[%s665 + $0x270] sm:$0xff]
        %v4688 = vld [vmem:[%s665 + $0x278] sm:$0xf]
        %v4689 = vld [vmem:[%s665 + $0x27c] sm:$0xff]
        %v4690 = vld [vmem:[%s665 + $0x284] sm:$0xf]
        %v4691 = vld [vmem:[%s665 + $0x288] sm:$0xff]
        %v4692 = vld [vmem:[%s665 + $0x290] sm:$0xf]
        %v4693 = vld [vmem:[%s665 + $0x294] sm:$0xff]
        %v4694 = vld [vmem:[%s665 + $0x29c] sm:$0xf]
        %v4695 = vld [vmem:[%s665 + $0x2a0] sm:$0xff]
        %v4696 = vld [vmem:[%s665 + $0x2a8] sm:$0xf]
        %v4697 = vld [vmem:[%s665 + $0x2ac] sm:$0xff]
        %v4698 = vld [vmem:[%s665 + $0x2b4] sm:$0xf]
        %v4699 = vld [vmem:[%s665 + $0x2b8] sm:$0xff]
        %v4700 = vld [vmem:[%s665 + $0x2c0] sm:$0xf]
        %v4701 = vld [vmem:[%s665 + $0x2c4] sm:$0xff]
        %v4702 = vld [vmem:[%s665 + $0x2cc] sm:$0xf]
        %v4703 = vld [vmem:[%s665 + $0x2d0] sm:$0xff]
        %v4704 = vld [vmem:[%s665 + $0x2d8] sm:$0xf]
        %v4705 = vld [vmem:[%s665 + $0x2dc] sm:$0xff]
        %v4706 = vld [vmem:[%s665 + $0x2e4] sm:$0xf]
        %v4707 = vld [vmem:[%s665 + $0x2e8] sm:$0xff]
        %v4708 = vld [vmem:[%s665 + $0x2f0] sm:$0xf]
        %v4709 = vld [vmem:[%s665 + $0x2f4] sm:$0xff]
        %v4710 = vld [vmem:[%s665 + $0x2fc] sm:$0xf]
        %v4743 = vunpack.c.l.b16 %v4679
        %v4744 = vunpack.c.h.b16 %v4679
        %v4745 = vunpack.c.l.b16 %v4680
        %v4746 = vunpack.c.l.b16 %v4681
        %v4747 = vunpack.c.h.b16 %v4681
        %v4748 = vunpack.c.l.b16 %v4682
        %v4749 = vunpack.c.l.b16 %v4683
        %v4750 = vunpack.c.h.b16 %v4683
        %v4751 = vunpack.c.l.b16 %v4684
        %v4752 = vunpack.c.l.b16 %v4685
        %v4753 = vunpack.c.h.b16 %v4685
        %v4754 = vunpack.c.l.b16 %v4686
        %v4755 = vunpack.c.l.b16 %v4687
        %v4756 = vunpack.c.h.b16 %v4687
        %v4757 = vunpack.c.l.b16 %v4688
        %v4758 = vunpack.c.l.b16 %v4689
        %v4759 = vunpack.c.h.b16 %v4689
        %v4760 = vunpack.c.l.b16 %v4690
        %v4761 = vunpack.c.l.b16 %v4691
        %v4762 = vunpack.c.h.b16 %v4691
        %v4763 = vunpack.c.l.b16 %v4692
        %v4764 = vunpack.c.l.b16 %v4693
        %v4765 = vunpack.c.h.b16 %v4693
        %v4766 = vunpack.c.l.b16 %v4694
        %v4767 = vunpack.c.l.b16 %v4695
        %v4768 = vunpack.c.h.b16 %v4695
        %v4769 = vunpack.c.l.b16 %v4696
        %v4770 = vunpack.c.l.b16 %v4697
        %v4771 = vunpack.c.h.b16 %v4697
        %v4772 = vunpack.c.l.b16 %v4698
        %v4773 = vunpack.c.l.b16 %v4699
        %v4774 = vunpack.c.h.b16 %v4699
        %v4775 = vunpack.c.l.b16 %v4700
        %v4776 = vunpack.c.l.b16 %v4701
        %v4777 = vunpack.c.h.b16 %v4701
        %v4778 = vunpack.c.l.b16 %v4702
        %v4779 = vunpack.c.l.b16 %v4703
        %v4780 = vunpack.c.h.b16 %v4703
        %v4781 = vunpack.c.l.b16 %v4704
        %v4782 = vunpack.c.l.b16 %v4705
        %v4783 = vunpack.c.h.b16 %v4705
        %v4784 = vunpack.c.l.b16 %v4706
        %v4785 = vunpack.c.l.b16 %v4707
        %v4786 = vunpack.c.h.b16 %v4707
        %v4787 = vunpack.c.l.b16 %v4708
        %v4788 = vunpack.c.l.b16 %v4709
        %v4789 = vunpack.c.h.b16 %v4709
        %v4790 = vunpack.c.l.b16 %v4710
        %v4791 = vpack.c.b16 %v4746, %v4743
        %v4792 = vpack.c.b16 %v4747, %v4744
        %v4793 = vpack.c.b16 %v4748, %v4745
        %v4794 = vpack.c.b16 %v4752, %v4749
        %v4795 = vpack.c.b16 %v4753, %v4750
        %v4796 = vpack.c.b16 %v4754, %v4751
        %v4797 = vpack.c.b16 %v4758, %v4755
        %v4798 = vpack.c.b16 %v4759, %v4756
        %v4799 = vpack.c.b16 %v4760, %v4757
        %v4800 = vpack.c.b16 %v4764, %v4761
        %v4801 = vpack.c.b16 %v4765, %v4762
        %v4802 = vpack.c.b16 %v4766, %v4763
        %v4803 = vpack.c.b16 %v4770, %v4767
        %v4804 = vpack.c.b16 %v4771, %v4768
        %v4805 = vpack.c.b16 %v4772, %v4769
        %v4806 = vpack.c.b16 %v4776, %v4773
        %v4807 = vpack.c.b16 %v4777, %v4774
        %v4808 = vpack.c.b16 %v4778, %v4775
        %v4809 = vpack.c.b16 %v4782, %v4779
        %v4810 = vpack.c.b16 %v4783, %v4780
        %v4811 = vpack.c.b16 %v4784, %v4781
        %v4812 = vpack.c.b16 %v4788, %v4785
        %v4813 = vpack.c.b16 %v4789, %v4786
        %v4814 = vpack.c.b16 %v4790, %v4787
        %4839 = vmatprep.subr.bf16.mxu0 %v4792
        %4840 = vmatpush1.bf16.msra.mxu0 %v4791
        %4841 = vmatprep.subr.bf16.mxu0 %v4795
        %4842 = vmatpush1.bf16.msra.mxu0 %v4794
        %4843 = vmatprep.subr.bf16.mxu0 %v4798
        %4844 = vmatpush1.bf16.msra.mxu0 %v4797
        %4845 = vmatprep.subr.bf16.mxu0 %v4801
        %4846 = vmatpush1.bf16.msra.mxu0 %v4800
        %4847 = vmatprep.subr.bf16.mxu0 %v4804
        %4848 = vmatpush1.bf16.msra.mxu0 %v4803
        %4849 = vmatprep.subr.bf16.mxu0 %v4807
        %4850 = vmatpush1.bf16.msra.mxu0 %v4806
        %4851 = vmatprep.subr.bf16.mxu0 %v4810
        %4852 = vmatpush1.bf16.msra.mxu0 %v4809
        %4853 = vmatprep.subr.bf16.mxu0 %v4813
        %4854 = vmatpush1.bf16.msra.mxu0 %v4812
        %4855 = vmatprep.subr.bf16.mxu0 0
        %4856 = vmatpush1.bf16.msra.mxu0 0
        %4857 = vmatprep.subr.bf16.mxu0 0
        %4858 = vmatpush1.bf16.msra.mxu0 0
        %4859 = vmatprep.subr.bf16.mxu0 0
        %4860 = vmatpush1.bf16.msra.mxu0 0
        %4861 = vmatprep.subr.bf16.mxu0 0
        %4862 = vmatpush1.bf16.msra.mxu0 0
        %4863 = vmatprep.subr.bf16.mxu0 0
        %4864 = vmatpush1.bf16.msra.mxu0 0
        %4865 = vmatprep.subr.bf16.mxu0 0
        %4866 = vmatpush1.bf16.msra.mxu0 0
        %4867 = vmatprep.subr.bf16.mxu0 0
        %4868 = vmatpush1.bf16.msra.mxu0 0
        %4869 = vmatprep.subr.bf16.mxu0 0
        %4870 = vmatpush1.bf16.msra.mxu0 0
        %4871 = vmatprep.mubr.bf16.mxu0 0
        %4872 = vmatmul.mubr.bf16.gmra.mrb[0].mxu0 %v4678
        %v4873 = vpop.f32.mrb[0].mxu0
        %v4874 = vadd.f32 0.0, %v4873
        %v4875 = vpop.f32.mrb[0].mxu0
        %v4876 = vadd.f32 0.0, %v4875
        %v4877 = vpop.f32.mrb[0].mxu0
        %v4878 = vadd.f32 0.0, %v4877
        %v4879 = vpop.f32.mrb[0].mxu0
        %v4880 = vadd.f32 0.0, %v4879
        %4881 = vdwg.mxu0
        %4882 = vmatprep.subr.bf16.mxu0 0
        %4883 = vmatpush1.bf16.msra.mxu0 %v4793
        %4884 = vmatprep.subr.bf16.mxu0 0
        %4885 = vmatpush1.bf16.msra.mxu0 %v4796
        %4886 = vmatprep.subr.bf16.mxu0 0
        %4887 = vmatpush1.bf16.msra.mxu0 %v4799
        %4888 = vmatprep.subr.bf16.mxu0 0
        %4889 = vmatpush1.bf16.msra.mxu0 %v4802
        %4890 = vmatprep.subr.bf16.mxu0 0
        %4891 = vmatpush1.bf16.msra.mxu0 %v4805
        %4892 = vmatprep.subr.bf16.mxu0 0
        %4893 = vmatpush1.bf16.msra.mxu0 %v4808
        %4894 = vmatprep.subr.bf16.mxu0 0
        %4895 = vmatpush1.bf16.msra.mxu0 %v4811
        %4896 = vmatprep.subr.bf16.mxu0 0
        %4897 = vmatpush1.bf16.msra.mxu0 %v4814
        %4898 = vmatprep.subr.bf16.mxu0 0
        %4899 = vmatpush1.bf16.msra.mxu0 0
        %4900 = vmatprep.subr.bf16.mxu0 0
        %4901 = vmatpush1.bf16.msra.mxu0 0
        %4902 = vmatprep.subr.bf16.mxu0 0
        %4903 = vmatpush1.bf16.msra.mxu0 0
        %4904 = vmatprep.subr.bf16.mxu0 0
        %4905 = vmatpush1.bf16.msra.mxu0 0
        %4906 = vmatprep.subr.bf16.mxu0 0
        %4907 = vmatpush1.bf16.msra.mxu0 0
        %4908 = vmatprep.subr.bf16.mxu0 0
        %4909 = vmatpush1.bf16.msra.mxu0 0
        %4910 = vmatprep.subr.bf16.mxu0 0
        %4911 = vmatpush1.bf16.msra.mxu0 0
        %4912 = vmatprep.subr.bf16.mxu0 0
        %4913 = vmatpush1.bf16.msra.mxu0 0
        %4914 = vmatprep.mubr.bf16.mxu0 0
        %4915 = vmatmul.mubr.bf16.gmra.mrb[0].mxu0 %v4678
        %v4916 = vpop.f32.mrb[0].mxu0
        %v4917 = vadd.f32 0.0, %v4916
        %v4918 = vpop.f32.mrb[0].mxu0
        %v4919 = vpop.f32.mrb[0].mxu0
        %v4920 = vadd.f32 0.0, %v4919
        %v4921 = vpop.f32.mrb[0].mxu0
        %4922 = vdwg.mxu0
        %v4923 = vadd.f32 %v4466, %v4874
        %v4924 = vadd.f32 %v4467, %v4876
        %v4925 = vadd.f32 %v4468, %v4917
        %v4926 = vadd.f32 %v4469, %v4878
        %v4927 = vadd.f32 %v4470, %v4880
        %v4928 = vadd.f32 %v4471, %v4920
        %v4929 = vld [vmem:[%s674] sm:$0x7]
        %v4931 = vlaneseq
        %v4932 = vshrl.u32 %v4931, 7
        %v4933 = vsub.s32 0, %v4932
        %v4934 = vrot.slane %v4929, %v4933
        %v4935 = vlaneseq
        %v4936 = vshrl.u32 %v4935, 7
        %v4937 = vsub.s32 1, %v4936
        %v4938 = vrot.slane %v4929, %v4937
        %v4939 = vlaneseq
        %v4940 = vshrl.u32 %v4939, 7
        %v4941 = vsub.s32 2, %v4940
        %v4942 = vrot.slane %v4929, %v4941
        %v4946 = vadd.f32 %v4923, %v4934
        %v4947 = vadd.f32 %v4924, %v4938
        %v4948 = vadd.f32 %v4925, %v4942
        %v4949 = vadd.f32 %v4926, %v4934
        %v4950 = vadd.f32 %v4927, %v4938
        %v4951 = vadd.f32 %v4928, %v4942
        %v4952 = vadd.f32 %v851, %v4946
        %v4953 = vadd.f32 %v852, %v4947
        %v4954 = vadd.f32 %v853, %v4948
        %v4955 = vadd.f32 %v854, %v4949
        %v4956 = vadd.f32 %v855, %v4950
        %v4957 = vadd.f32 %v856, %v4951
        %v4958 = vld [vmem:[%s719] sm:$0x7]
        %v4959 = vld [vmem:[%s728] sm:$0x7]
        %v4960 = vadd.f32 %v4952, %v4953
        %v4961 = vadd.f32 %v4960, %v4954
        %4962 = vadd.xlane.f32.xlu0 %v4961
        %v4963 = vpop.xlane.xlu0 %4962
        %v4964 = vadd.f32 %v4955, %v4956
        %v4965 = vadd.f32 %v4964, %v4957
        %4966 = vadd.xlane.f32.xlu0 %v4965
        %v4967 = vpop.xlane.xlu0 %4966
        %v4968 = vrcp.pop 384.0
        %v4969 = vmul.f32 %v4963, %v4968
        %v4970 = vmul.f32 %v4967, %v4968
        %v4971 = vsub.f32 %v4952, %v4969
        %v4972 = vsub.f32 %v4953, %v4969
        %v4973 = vsub.f32 %v4954, %v4969
        %v4974 = vsub.f32 %v4955, %v4970
        %v4975 = vsub.f32 %v4956, %v4970
        %v4976 = vsub.f32 %v4957, %v4970
        %v4977 = vmul.f32 %v4971, %v4971
        %v4978 = vmul.f32 %v4972, %v4972
        %v4979 = vmul.f32 %v4973, %v4973
        %v4980 = vmul.f32 %v4974, %v4974
        %v4981 = vmul.f32 %v4975, %v4975
        %v4982 = vmul.f32 %v4976, %v4976
        %v4983 = vadd.f32 %v4977, %v4978
        %v4984 = vadd.f32 %v4983, %v4979
        %4985 = vadd.xlane.f32.xlu0 %v4984
        %v4986 = vpop.xlane.xlu0 %4985
        %v4987 = vadd.f32 %v4980, %v4981
        %v4988 = vadd.f32 %v4987, %v4982
        %4989 = vadd.xlane.f32.xlu0 %v4988
        %v4990 = vpop.xlane.xlu0 %4989
        %v4991 = vmul.f32 %v4986, %v4968
        %v4992 = vmul.f32 %v4990, %v4968
        %v4993 = vadd.f32 %v4991, 1e-05
        %v4994 = vadd.f32 %v4992, 1e-05
        %v4995 = vrsqrt.pop %v4993
        %v4996 = vrsqrt.pop %v4994
        %v4997 = vmul.f32 %v4971, %v4995
        %v4998 = vmul.f32 %v4972, %v4995
        %v4999 = vmul.f32 %v4973, %v4995
        %v5000 = vmul.f32 %v4974, %v4996
        %v5001 = vmul.f32 %v4975, %v4996
        %v5002 = vmul.f32 %v4976, %v4996
        %v5004 = vlaneseq
        %v5005 = vshrl.u32 %v5004, 7
        %v5006 = vsub.s32 0, %v5005
        %v5007 = vrot.slane %v4958, %v5006
        %v5008 = vlaneseq
        %v5009 = vshrl.u32 %v5008, 7
        %v5010 = vsub.s32 1, %v5009
        %v5011 = vrot.slane %v4958, %v5010
        %v5012 = vlaneseq
        %v5013 = vshrl.u32 %v5012, 7
        %v5014 = vsub.s32 2, %v5013
        %v5015 = vrot.slane %v4958, %v5014
        %v5019 = vmul.f32 %v4997, %v5007
        %v5020 = vmul.f32 %v4998, %v5011
        %v5021 = vmul.f32 %v4999, %v5015
        %v5022 = vmul.f32 %v5000, %v5007
        %v5023 = vmul.f32 %v5001, %v5011
        %v5024 = vmul.f32 %v5002, %v5015
        %v5026 = vlaneseq
        %v5027 = vshrl.u32 %v5026, 7
        %v5028 = vsub.s32 0, %v5027
        %v5029 = vrot.slane %v4959, %v5028
        %v5030 = vlaneseq
        %v5031 = vshrl.u32 %v5030, 7
        %v5032 = vsub.s32 1, %v5031
        %v5033 = vrot.slane %v4959, %v5032
        %v5034 = vlaneseq
        %v5035 = vshrl.u32 %v5034, 7
        %v5036 = vsub.s32 2, %v5035
        %v5037 = vrot.slane %v4959, %v5036
        %v5041 = vadd.f32 %v5019, %v5029
        %v5042 = vadd.f32 %v5020, %v5033
        %v5043 = vadd.f32 %v5021, %v5037
        %v5044 = vadd.f32 %v5022, %v5029
        %v5045 = vadd.f32 %v5023, %v5033
        %v5046 = vadd.f32 %v5024, %v5037
        %v5047 = vpack.c.bf16 %v5044, %v5041
        %v5048 = vpack.c.bf16 %v5045, %v5042
        %v5049 = vpack.c.bf16 %v5046, %v5043
        %v5050 = vld [vmem:[%s683] sm:$0xff]
        %v5051 = vld [vmem:[%s683 + $0x8] sm:$0xff]
        %v5052 = vld [vmem:[%s683 + $0x10] sm:$0xff]
        %v5053 = vld [vmem:[%s683 + $0x18] sm:$0xff]
        %v5054 = vld [vmem:[%s683 + $0x20] sm:$0xff]
        %v5055 = vld [vmem:[%s683 + $0x28] sm:$0xff]
        %v5056 = vld [vmem:[%s683 + $0x30] sm:$0xff]
        %v5057 = vld [vmem:[%s683 + $0x38] sm:$0xff]
        %v5058 = vld [vmem:[%s683 + $0x40] sm:$0xff]
        %v5059 = vld [vmem:[%s683 + $0x48] sm:$0xff]
        %v5060 = vld [vmem:[%s683 + $0x50] sm:$0xff]
        %v5061 = vld [vmem:[%s683 + $0x58] sm:$0xff]
        %v5062 = vld [vmem:[%s683 + $0x60] sm:$0xff]
        %v5063 = vld [vmem:[%s683 + $0x68] sm:$0xff]
        %v5064 = vld [vmem:[%s683 + $0x70] sm:$0xff]
        %v5065 = vld [vmem:[%s683 + $0x78] sm:$0xff]
        %v5066 = vld [vmem:[%s683 + $0x80] sm:$0xff]
        %v5067 = vld [vmem:[%s683 + $0x88] sm:$0xff]
        %v5068 = vld [vmem:[%s683 + $0x90] sm:$0xff]
        %v5069 = vld [vmem:[%s683 + $0x98] sm:$0xff]
        %v5070 = vld [vmem:[%s683 + $0xa0] sm:$0xff]
        %v5071 = vld [vmem:[%s683 + $0xa8] sm:$0xff]
        %v5072 = vld [vmem:[%s683 + $0xb0] sm:$0xff]
        %v5073 = vld [vmem:[%s683 + $0xb8] sm:$0xff]
        %v5074 = vld [vmem:[%s683 + $0xc0] sm:$0xff]
        %v5075 = vld [vmem:[%s683 + $0xc8] sm:$0xff]
        %v5076 = vld [vmem:[%s683 + $0xd0] sm:$0xff]
        %v5077 = vld [vmem:[%s683 + $0xd8] sm:$0xff]
        %v5078 = vld [vmem:[%s683 + $0xe0] sm:$0xff]
        %v5079 = vld [vmem:[%s683 + $0xe8] sm:$0xff]
        %v5080 = vld [vmem:[%s683 + $0xf0] sm:$0xff]
        %v5081 = vld [vmem:[%s683 + $0xf8] sm:$0xff]
        %v5082 = vld [vmem:[%s683 + $0x100] sm:$0xff]
        %v5083 = vld [vmem:[%s683 + $0x108] sm:$0xff]
        %v5084 = vld [vmem:[%s683 + $0x110] sm:$0xff]
        %v5085 = vld [vmem:[%s683 + $0x118] sm:$0xff]
        %v5086 = vld [vmem:[%s683 + $0x120] sm:$0xff]
        %v5087 = vld [vmem:[%s683 + $0x128] sm:$0xff]
        %v5088 = vld [vmem:[%s683 + $0x130] sm:$0xff]
        %v5089 = vld [vmem:[%s683 + $0x138] sm:$0xff]
        %v5090 = vld [vmem:[%s683 + $0x140] sm:$0xff]
        %v5091 = vld [vmem:[%s683 + $0x148] sm:$0xff]
        %v5092 = vld [vmem:[%s683 + $0x150] sm:$0xff]
        %v5093 = vld [vmem:[%s683 + $0x158] sm:$0xff]
        %v5094 = vld [vmem:[%s683 + $0x160] sm:$0xff]
        %v5095 = vld [vmem:[%s683 + $0x168] sm:$0xff]
        %v5096 = vld [vmem:[%s683 + $0x170] sm:$0xff]
        %v5097 = vld [vmem:[%s683 + $0x178] sm:$0xff]
        %v5098 = vld [vmem:[%s683 + $0x180] sm:$0xff]
        %v5099 = vld [vmem:[%s683 + $0x188] sm:$0xff]
        %v5100 = vld [vmem:[%s683 + $0x190] sm:$0xff]
        %v5101 = vld [vmem:[%s683 + $0x198] sm:$0xff]
        %v5102 = vld [vmem:[%s683 + $0x1a0] sm:$0xff]
        %v5103 = vld [vmem:[%s683 + $0x1a8] sm:$0xff]
        %v5104 = vld [vmem:[%s683 + $0x1b0] sm:$0xff]
        %v5105 = vld [vmem:[%s683 + $0x1b8] sm:$0xff]
        %v5106 = vld [vmem:[%s683 + $0x1c0] sm:$0xff]
        %v5107 = vld [vmem:[%s683 + $0x1c8] sm:$0xff]
        %v5108 = vld [vmem:[%s683 + $0x1d0] sm:$0xff]
        %v5109 = vld [vmem:[%s683 + $0x1d8] sm:$0xff]
        %v5110 = vld [vmem:[%s683 + $0x1e0] sm:$0xff]
        %v5111 = vld [vmem:[%s683 + $0x1e8] sm:$0xff]
        %v5112 = vld [vmem:[%s683 + $0x1f0] sm:$0xff]
        %v5113 = vld [vmem:[%s683 + $0x1f8] sm:$0xff]
        %v5114 = vld [vmem:[%s683 + $0x200] sm:$0xff]
        %v5115 = vld [vmem:[%s683 + $0x208] sm:$0xff]
        %v5116 = vld [vmem:[%s683 + $0x210] sm:$0xff]
        %v5117 = vld [vmem:[%s683 + $0x218] sm:$0xff]
        %v5118 = vld [vmem:[%s683 + $0x220] sm:$0xff]
        %v5119 = vld [vmem:[%s683 + $0x228] sm:$0xff]
        %v5120 = vld [vmem:[%s683 + $0x230] sm:$0xff]
        %v5121 = vld [vmem:[%s683 + $0x238] sm:$0xff]
        %v5122 = vld [vmem:[%s683 + $0x240] sm:$0xff]
        %v5123 = vld [vmem:[%s683 + $0x248] sm:$0xff]
        %v5124 = vld [vmem:[%s683 + $0x250] sm:$0xff]
        %v5125 = vld [vmem:[%s683 + $0x258] sm:$0xff]
        %v5126 = vld [vmem:[%s683 + $0x260] sm:$0xff]
        %v5127 = vld [vmem:[%s683 + $0x268] sm:$0xff]
        %v5128 = vld [vmem:[%s683 + $0x270] sm:$0xff]
        %v5129 = vld [vmem:[%s683 + $0x278] sm:$0xff]
        %v5130 = vld [vmem:[%s683 + $0x280] sm:$0xff]
        %v5131 = vld [vmem:[%s683 + $0x288] sm:$0xff]
        %v5132 = vld [vmem:[%s683 + $0x290] sm:$0xff]
        %v5133 = vld [vmem:[%s683 + $0x298] sm:$0xff]
        %v5134 = vld [vmem:[%s683 + $0x2a0] sm:$0xff]
        %v5135 = vld [vmem:[%s683 + $0x2a8] sm:$0xff]
        %v5136 = vld [vmem:[%s683 + $0x2b0] sm:$0xff]
        %v5137 = vld [vmem:[%s683 + $0x2b8] sm:$0xff]
        %v5138 = vld [vmem:[%s683 + $0x2c0] sm:$0xff]
        %v5139 = vld [vmem:[%s683 + $0x2c8] sm:$0xff]
        %v5140 = vld [vmem:[%s683 + $0x2d0] sm:$0xff]
        %v5141 = vld [vmem:[%s683 + $0x2d8] sm:$0xff]
        %v5142 = vld [vmem:[%s683 + $0x2e0] sm:$0xff]
        %v5143 = vld [vmem:[%s683 + $0x2e8] sm:$0xff]
        %v5144 = vld [vmem:[%s683 + $0x2f0] sm:$0xff]
        %v5145 = vld [vmem:[%s683 + $0x2f8] sm:$0xff]
        %v5146 = vld [vmem:[%s683 + $0x300] sm:$0xff]
        %v5147 = vld [vmem:[%s683 + $0x308] sm:$0xff]
        %v5148 = vld [vmem:[%s683 + $0x310] sm:$0xff]
        %v5149 = vld [vmem:[%s683 + $0x318] sm:$0xff]
        %v5150 = vld [vmem:[%s683 + $0x320] sm:$0xff]
        %v5151 = vld [vmem:[%s683 + $0x328] sm:$0xff]
        %v5152 = vld [vmem:[%s683 + $0x330] sm:$0xff]
        %v5153 = vld [vmem:[%s683 + $0x338] sm:$0xff]
        %v5154 = vld [vmem:[%s683 + $0x340] sm:$0xff]
        %v5155 = vld [vmem:[%s683 + $0x348] sm:$0xff]
        %v5156 = vld [vmem:[%s683 + $0x350] sm:$0xff]
        %v5157 = vld [vmem:[%s683 + $0x358] sm:$0xff]
        %v5158 = vld [vmem:[%s683 + $0x360] sm:$0xff]
        %v5159 = vld [vmem:[%s683 + $0x368] sm:$0xff]
        %v5160 = vld [vmem:[%s683 + $0x370] sm:$0xff]
        %v5161 = vld [vmem:[%s683 + $0x378] sm:$0xff]
        %v5162 = vld [vmem:[%s683 + $0x380] sm:$0xff]
        %v5163 = vld [vmem:[%s683 + $0x388] sm:$0xff]
        %v5164 = vld [vmem:[%s683 + $0x390] sm:$0xff]
        %v5165 = vld [vmem:[%s683 + $0x398] sm:$0xff]
        %v5166 = vld [vmem:[%s683 + $0x3a0] sm:$0xff]
        %v5167 = vld [vmem:[%s683 + $0x3a8] sm:$0xff]
        %v5168 = vld [vmem:[%s683 + $0x3b0] sm:$0xff]
        %v5169 = vld [vmem:[%s683 + $0x3b8] sm:$0xff]
        %v5170 = vld [vmem:[%s683 + $0x3c0] sm:$0xff]
        %v5171 = vld [vmem:[%s683 + $0x3c8] sm:$0xff]
        %v5172 = vld [vmem:[%s683 + $0x3d0] sm:$0xff]
        %v5173 = vld [vmem:[%s683 + $0x3d8] sm:$0xff]
        %v5174 = vld [vmem:[%s683 + $0x3e0] sm:$0xff]
        %v5175 = vld [vmem:[%s683 + $0x3e8] sm:$0xff]
        %v5176 = vld [vmem:[%s683 + $0x3f0] sm:$0xff]
        %v5177 = vld [vmem:[%s683 + $0x3f8] sm:$0xff]
        %v5178 = vld [vmem:[%s683 + $0x400] sm:$0xff]
        %v5179 = vld [vmem:[%s683 + $0x408] sm:$0xff]
        %v5180 = vld [vmem:[%s683 + $0x410] sm:$0xff]
        %v5181 = vld [vmem:[%s683 + $0x418] sm:$0xff]
        %v5182 = vld [vmem:[%s683 + $0x420] sm:$0xff]
        %v5183 = vld [vmem:[%s683 + $0x428] sm:$0xff]
        %v5184 = vld [vmem:[%s683 + $0x430] sm:$0xff]
        %v5185 = vld [vmem:[%s683 + $0x438] sm:$0xff]
        %v5186 = vld [vmem:[%s683 + $0x440] sm:$0xff]
        %v5187 = vld [vmem:[%s683 + $0x448] sm:$0xff]
        %v5188 = vld [vmem:[%s683 + $0x450] sm:$0xff]
        %v5189 = vld [vmem:[%s683 + $0x458] sm:$0xff]
        %v5190 = vld [vmem:[%s683 + $0x460] sm:$0xff]
        %v5191 = vld [vmem:[%s683 + $0x468] sm:$0xff]
        %v5192 = vld [vmem:[%s683 + $0x470] sm:$0xff]
        %v5193 = vld [vmem:[%s683 + $0x478] sm:$0xff]
        %v5194 = vld [vmem:[%s683 + $0x480] sm:$0xff]
        %v5195 = vld [vmem:[%s683 + $0x488] sm:$0xff]
        %v5196 = vld [vmem:[%s683 + $0x490] sm:$0xff]
        %v5197 = vld [vmem:[%s683 + $0x498] sm:$0xff]
        %v5198 = vld [vmem:[%s683 + $0x4a0] sm:$0xff]
        %v5199 = vld [vmem:[%s683 + $0x4a8] sm:$0xff]
        %v5200 = vld [vmem:[%s683 + $0x4b0] sm:$0xff]
        %v5201 = vld [vmem:[%s683 + $0x4b8] sm:$0xff]
        %v5202 = vld [vmem:[%s683 + $0x4c0] sm:$0xff]
        %v5203 = vld [vmem:[%s683 + $0x4c8] sm:$0xff]
        %v5204 = vld [vmem:[%s683 + $0x4d0] sm:$0xff]
        %v5205 = vld [vmem:[%s683 + $0x4d8] sm:$0xff]
        %v5206 = vld [vmem:[%s683 + $0x4e0] sm:$0xff]
        %v5207 = vld [vmem:[%s683 + $0x4e8] sm:$0xff]
        %v5208 = vld [vmem:[%s683 + $0x4f0] sm:$0xff]
        %v5209 = vld [vmem:[%s683 + $0x4f8] sm:$0xff]
        %v5210 = vld [vmem:[%s683 + $0x500] sm:$0xff]
        %v5211 = vld [vmem:[%s683 + $0x508] sm:$0xff]
        %v5212 = vld [vmem:[%s683 + $0x510] sm:$0xff]
        %v5213 = vld [vmem:[%s683 + $0x518] sm:$0xff]
        %v5214 = vld [vmem:[%s683 + $0x520] sm:$0xff]
        %v5215 = vld [vmem:[%s683 + $0x528] sm:$0xff]
        %v5216 = vld [vmem:[%s683 + $0x530] sm:$0xff]
        %v5217 = vld [vmem:[%s683 + $0x538] sm:$0xff]
        %v5218 = vld [vmem:[%s683 + $0x540] sm:$0xff]
        %v5219 = vld [vmem:[%s683 + $0x548] sm:$0xff]
        %v5220 = vld [vmem:[%s683 + $0x550] sm:$0xff]
        %v5221 = vld [vmem:[%s683 + $0x558] sm:$0xff]
        %v5222 = vld [vmem:[%s683 + $0x560] sm:$0xff]
        %v5223 = vld [vmem:[%s683 + $0x568] sm:$0xff]
        %v5224 = vld [vmem:[%s683 + $0x570] sm:$0xff]
        %v5225 = vld [vmem:[%s683 + $0x578] sm:$0xff]
        %v5226 = vld [vmem:[%s683 + $0x580] sm:$0xff]
        %v5227 = vld [vmem:[%s683 + $0x588] sm:$0xff]
        %v5228 = vld [vmem:[%s683 + $0x590] sm:$0xff]
        %v5229 = vld [vmem:[%s683 + $0x598] sm:$0xff]
        %v5230 = vld [vmem:[%s683 + $0x5a0] sm:$0xff]
        %v5231 = vld [vmem:[%s683 + $0x5a8] sm:$0xff]
        %v5232 = vld [vmem:[%s683 + $0x5b0] sm:$0xff]
        %v5233 = vld [vmem:[%s683 + $0x5b8] sm:$0xff]
        %v5234 = vld [vmem:[%s683 + $0x5c0] sm:$0xff]
        %v5235 = vld [vmem:[%s683 + $0x5c8] sm:$0xff]
        %v5236 = vld [vmem:[%s683 + $0x5d0] sm:$0xff]
        %v5237 = vld [vmem:[%s683 + $0x5d8] sm:$0xff]
        %v5238 = vld [vmem:[%s683 + $0x5e0] sm:$0xff]
        %v5239 = vld [vmem:[%s683 + $0x5e8] sm:$0xff]
        %v5240 = vld [vmem:[%s683 + $0x5f0] sm:$0xff]
        %v5241 = vld [vmem:[%s683 + $0x5f8] sm:$0xff]
        %v5242 = vld [vmem:[%s683 + $0x600] sm:$0xff]
        %v5243 = vld [vmem:[%s683 + $0x608] sm:$0xff]
        %v5244 = vld [vmem:[%s683 + $0x610] sm:$0xff]
        %v5245 = vld [vmem:[%s683 + $0x618] sm:$0xff]
        %v5246 = vld [vmem:[%s683 + $0x620] sm:$0xff]
        %v5247 = vld [vmem:[%s683 + $0x628] sm:$0xff]
        %v5248 = vld [vmem:[%s683 + $0x630] sm:$0xff]
        %v5249 = vld [vmem:[%s683 + $0x638] sm:$0xff]
        %v5250 = vld [vmem:[%s683 + $0x640] sm:$0xff]
        %v5251 = vld [vmem:[%s683 + $0x648] sm:$0xff]
        %v5252 = vld [vmem:[%s683 + $0x650] sm:$0xff]
        %v5253 = vld [vmem:[%s683 + $0x658] sm:$0xff]
        %v5254 = vld [vmem:[%s683 + $0x660] sm:$0xff]
        %v5255 = vld [vmem:[%s683 + $0x668] sm:$0xff]
        %v5256 = vld [vmem:[%s683 + $0x670] sm:$0xff]
        %v5257 = vld [vmem:[%s683 + $0x678] sm:$0xff]
        %v5258 = vld [vmem:[%s683 + $0x680] sm:$0xff]
        %v5259 = vld [vmem:[%s683 + $0x688] sm:$0xff]
        %v5260 = vld [vmem:[%s683 + $0x690] sm:$0xff]
        %v5261 = vld [vmem:[%s683 + $0x698] sm:$0xff]
        %v5262 = vld [vmem:[%s683 + $0x6a0] sm:$0xff]
        %v5263 = vld [vmem:[%s683 + $0x6a8] sm:$0xff]
        %v5264 = vld [vmem:[%s683 + $0x6b0] sm:$0xff]
        %v5265 = vld [vmem:[%s683 + $0x6b8] sm:$0xff]
        %v5266 = vld [vmem:[%s683 + $0x6c0] sm:$0xff]
        %v5267 = vld [vmem:[%s683 + $0x6c8] sm:$0xff]
        %v5268 = vld [vmem:[%s683 + $0x6d0] sm:$0xff]
        %v5269 = vld [vmem:[%s683 + $0x6d8] sm:$0xff]
        %v5270 = vld [vmem:[%s683 + $0x6e0] sm:$0xff]
        %v5271 = vld [vmem:[%s683 + $0x6e8] sm:$0xff]
        %v5272 = vld [vmem:[%s683 + $0x6f0] sm:$0xff]
        %v5273 = vld [vmem:[%s683 + $0x6f8] sm:$0xff]
        %v5274 = vld [vmem:[%s683 + $0x700] sm:$0xff]
        %v5275 = vld [vmem:[%s683 + $0x708] sm:$0xff]
        %v5276 = vld [vmem:[%s683 + $0x710] sm:$0xff]
        %v5277 = vld [vmem:[%s683 + $0x718] sm:$0xff]
        %v5278 = vld [vmem:[%s683 + $0x720] sm:$0xff]
        %v5279 = vld [vmem:[%s683 + $0x728] sm:$0xff]
        %v5280 = vld [vmem:[%s683 + $0x730] sm:$0xff]
        %v5281 = vld [vmem:[%s683 + $0x738] sm:$0xff]
        %v5282 = vld [vmem:[%s683 + $0x740] sm:$0xff]
        %v5283 = vld [vmem:[%s683 + $0x748] sm:$0xff]
        %v5284 = vld [vmem:[%s683 + $0x750] sm:$0xff]
        %v5285 = vld [vmem:[%s683 + $0x758] sm:$0xff]
        %v5286 = vld [vmem:[%s683 + $0x760] sm:$0xff]
        %v5287 = vld [vmem:[%s683 + $0x768] sm:$0xff]
        %v5288 = vld [vmem:[%s683 + $0x770] sm:$0xff]
        %v5289 = vld [vmem:[%s683 + $0x778] sm:$0xff]
        %v5290 = vld [vmem:[%s683 + $0x780] sm:$0xff]
        %v5291 = vld [vmem:[%s683 + $0x788] sm:$0xff]
        %v5292 = vld [vmem:[%s683 + $0x790] sm:$0xff]
        %v5293 = vld [vmem:[%s683 + $0x798] sm:$0xff]
        %v5294 = vld [vmem:[%s683 + $0x7a0] sm:$0xff]
        %v5295 = vld [vmem:[%s683 + $0x7a8] sm:$0xff]
        %v5296 = vld [vmem:[%s683 + $0x7b0] sm:$0xff]
        %v5297 = vld [vmem:[%s683 + $0x7b8] sm:$0xff]
        %v5298 = vld [vmem:[%s683 + $0x7c0] sm:$0xff]
        %v5299 = vld [vmem:[%s683 + $0x7c8] sm:$0xff]
        %v5300 = vld [vmem:[%s683 + $0x7d0] sm:$0xff]
        %v5301 = vld [vmem:[%s683 + $0x7d8] sm:$0xff]
        %v5302 = vld [vmem:[%s683 + $0x7e0] sm:$0xff]
        %v5303 = vld [vmem:[%s683 + $0x7e8] sm:$0xff]
        %v5304 = vld [vmem:[%s683 + $0x7f0] sm:$0xff]
        %v5305 = vld [vmem:[%s683 + $0x7f8] sm:$0xff]
        %v5306 = vld [vmem:[%s683 + $0x800] sm:$0xff]
        %v5307 = vld [vmem:[%s683 + $0x808] sm:$0xff]
        %v5308 = vld [vmem:[%s683 + $0x810] sm:$0xff]
        %v5309 = vld [vmem:[%s683 + $0x818] sm:$0xff]
        %v5310 = vld [vmem:[%s683 + $0x820] sm:$0xff]
        %v5311 = vld [vmem:[%s683 + $0x828] sm:$0xff]
        %v5312 = vld [vmem:[%s683 + $0x830] sm:$0xff]
        %v5313 = vld [vmem:[%s683 + $0x838] sm:$0xff]
        %v5314 = vld [vmem:[%s683 + $0x840] sm:$0xff]
        %v5315 = vld [vmem:[%s683 + $0x848] sm:$0xff]
        %v5316 = vld [vmem:[%s683 + $0x850] sm:$0xff]
        %v5317 = vld [vmem:[%s683 + $0x858] sm:$0xff]
        %v5318 = vld [vmem:[%s683 + $0x860] sm:$0xff]
        %v5319 = vld [vmem:[%s683 + $0x868] sm:$0xff]
        %v5320 = vld [vmem:[%s683 + $0x870] sm:$0xff]
        %v5321 = vld [vmem:[%s683 + $0x878] sm:$0xff]
        %v5322 = vld [vmem:[%s683 + $0x880] sm:$0xff]
        %v5323 = vld [vmem:[%s683 + $0x888] sm:$0xff]
        %v5324 = vld [vmem:[%s683 + $0x890] sm:$0xff]
        %v5325 = vld [vmem:[%s683 + $0x898] sm:$0xff]
        %v5326 = vld [vmem:[%s683 + $0x8a0] sm:$0xff]
        %v5327 = vld [vmem:[%s683 + $0x8a8] sm:$0xff]
        %v5328 = vld [vmem:[%s683 + $0x8b0] sm:$0xff]
        %v5329 = vld [vmem:[%s683 + $0x8b8] sm:$0xff]
        %v5330 = vld [vmem:[%s683 + $0x8c0] sm:$0xff]
        %v5331 = vld [vmem:[%s683 + $0x8c8] sm:$0xff]
        %v5332 = vld [vmem:[%s683 + $0x8d0] sm:$0xff]
        %v5333 = vld [vmem:[%s683 + $0x8d8] sm:$0xff]
        %v5334 = vld [vmem:[%s683 + $0x8e0] sm:$0xff]
        %v5335 = vld [vmem:[%s683 + $0x8e8] sm:$0xff]
        %v5336 = vld [vmem:[%s683 + $0x8f0] sm:$0xff]
        %v5337 = vld [vmem:[%s683 + $0x8f8] sm:$0xff]
        %v5338 = vld [vmem:[%s692] sm:$0xff]
        %v5339 = vld [vmem:[%s692 + $0x8] sm:$0xf]
        %v5342 = vlaneseq
        %v5343 = vshrl.u32 %v5342, 7
        %v5344 = vsub.s32 0, %v5343
        %v5345 = vrot.slane %v5338, %v5344
        %v5346 = vlaneseq
        %v5347 = vshrl.u32 %v5346, 7
        %v5348 = vsub.s32 1, %v5347
        %v5349 = vrot.slane %v5338, %v5348
        %v5350 = vlaneseq
        %v5351 = vshrl.u32 %v5350, 7
        %v5352 = vsub.s32 2, %v5351
        %v5353 = vrot.slane %v5338, %v5352
        %v5354 = vlaneseq
        %v5355 = vshrl.u32 %v5354, 7
        %v5356 = vsub.s32 3, %v5355
        %v5357 = vrot.slane %v5338, %v5356
        %v5358 = vlaneseq
        %v5359 = vshrl.u32 %v5358, 7
        %v5360 = vsub.s32 4, %v5359
        %v5361 = vrot.slane %v5338, %v5360
        %v5362 = vlaneseq
        %v5363 = vshrl.u32 %v5362, 7
        %v5364 = vsub.s32 5, %v5363
        %v5365 = vrot.slane %v5338, %v5364
        %v5366 = vlaneseq
        %v5367 = vshrl.u32 %v5366, 7
        %v5368 = vsub.s32 6, %v5367
        %v5369 = vrot.slane %v5338, %v5368
        %v5370 = vlaneseq
        %v5371 = vshrl.u32 %v5370, 7
        %v5372 = vsub.s32 7, %v5371
        %v5373 = vrot.slane %v5338, %v5372
        %v5374 = vlaneseq
        %v5375 = vshrl.u32 %v5374, 7
        %v5376 = vsub.s32 0, %v5375
        %v5377 = vrot.slane %v5339, %v5376
        %v5378 = vlaneseq
        %v5379 = vshrl.u32 %v5378, 7
        %v5380 = vsub.s32 1, %v5379
        %v5381 = vrot.slane %v5339, %v5380
        %v5382 = vlaneseq
        %v5383 = vshrl.u32 %v5382, 7
        %v5384 = vsub.s32 2, %v5383
        %v5385 = vrot.slane %v5339, %v5384
        %v5386 = vlaneseq
        %v5387 = vshrl.u32 %v5386, 7
        %v5388 = vsub.s32 3, %v5387
        %v5389 = vrot.slane %v5339, %v5388
        %v5690 = vunpack.c.l.b16 %v5050
        %v5691 = vunpack.c.h.b16 %v5050
        %v5692 = vunpack.c.l.b16 %v5051
        %v5693 = vunpack.c.h.b16 %v5051
        %v5694 = vunpack.c.l.b16 %v5052
        %v5695 = vunpack.c.h.b16 %v5052
        %v5696 = vunpack.c.l.b16 %v5053
        %v5697 = vunpack.c.h.b16 %v5053
        %v5698 = vunpack.c.l.b16 %v5054
        %v5699 = vunpack.c.h.b16 %v5054
        %v5700 = vunpack.c.l.b16 %v5055
        %v5701 = vunpack.c.h.b16 %v5055
        %v5702 = vunpack.c.l.b16 %v5056
        %v5703 = vunpack.c.h.b16 %v5056
        %v5704 = vunpack.c.l.b16 %v5057
        %v5705 = vunpack.c.h.b16 %v5057
        %v5706 = vunpack.c.l.b16 %v5058
        %v5707 = vunpack.c.h.b16 %v5058
        %v5708 = vunpack.c.l.b16 %v5059
        %v5709 = vunpack.c.h.b16 %v5059
        %v5710 = vunpack.c.l.b16 %v5060
        %v5711 = vunpack.c.h.b16 %v5060
        %v5712 = vunpack.c.l.b16 %v5061
        %v5713 = vunpack.c.h.b16 %v5061
        %v5714 = vunpack.c.l.b16 %v5062
        %v5715 = vunpack.c.h.b16 %v5062
        %v5716 = vunpack.c.l.b16 %v5063
        %v5717 = vunpack.c.h.b16 %v5063
        %v5718 = vunpack.c.l.b16 %v5064
        %v5719 = vunpack.c.h.b16 %v5064
        %v5720 = vunpack.c.l.b16 %v5065
        %v5721 = vunpack.c.h.b16 %v5065
        %v5722 = vunpack.c.l.b16 %v5066
        %v5723 = vunpack.c.h.b16 %v5066
        %v5724 = vunpack.c.l.b16 %v5067
        %v5725 = vunpack.c.h.b16 %v5067
        %v5726 = vunpack.c.l.b16 %v5068
        %v5727 = vunpack.c.h.b16 %v5068
        %v5728 = vunpack.c.l.b16 %v5069
        %v5729 = vunpack.c.h.b16 %v5069
        %v5730 = vunpack.c.l.b16 %v5070
        %v5731 = vunpack.c.h.b16 %v5070
        %v5732 = vunpack.c.l.b16 %v5071
        %v5733 = vunpack.c.h.b16 %v5071
        %v5734 = vunpack.c.l.b16 %v5072
        %v5735 = vunpack.c.h.b16 %v5072
        %v5736 = vunpack.c.l.b16 %v5073
        %v5737 = vunpack.c.h.b16 %v5073
        %v5738 = vunpack.c.l.b16 %v5074
        %v5739 = vunpack.c.h.b16 %v5074
        %v5740 = vunpack.c.l.b16 %v5075
        %v5741 = vunpack.c.h.b16 %v5075
        %v5742 = vunpack.c.l.b16 %v5076
        %v5743 = vunpack.c.h.b16 %v5076
        %v5744 = vunpack.c.l.b16 %v5077
        %v5745 = vunpack.c.h.b16 %v5077
        %v5746 = vunpack.c.l.b16 %v5078
        %v5747 = vunpack.c.h.b16 %v5078
        %v5748 = vunpack.c.l.b16 %v5079
        %v5749 = vunpack.c.h.b16 %v5079
        %v5750 = vunpack.c.l.b16 %v5080
        %v5751 = vunpack.c.h.b16 %v5080
        %v5752 = vunpack.c.l.b16 %v5081
        %v5753 = vunpack.c.h.b16 %v5081
        %v5754 = vunpack.c.l.b16 %v5082
        %v5755 = vunpack.c.h.b16 %v5082
        %v5756 = vunpack.c.l.b16 %v5083
        %v5757 = vunpack.c.h.b16 %v5083
        %v5758 = vunpack.c.l.b16 %v5084
        %v5759 = vunpack.c.h.b16 %v5084
        %v5760 = vunpack.c.l.b16 %v5085
        %v5761 = vunpack.c.h.b16 %v5085
        %v5762 = vunpack.c.l.b16 %v5086
        %v5763 = vunpack.c.h.b16 %v5086
        %v5764 = vunpack.c.l.b16 %v5087
        %v5765 = vunpack.c.h.b16 %v5087
        %v5766 = vunpack.c.l.b16 %v5088
        %v5767 = vunpack.c.h.b16 %v5088
        %v5768 = vunpack.c.l.b16 %v5089
        %v5769 = vunpack.c.h.b16 %v5089
        %v5770 = vunpack.c.l.b16 %v5090
        %v5771 = vunpack.c.h.b16 %v5090
        %v5772 = vunpack.c.l.b16 %v5091
        %v5773 = vunpack.c.h.b16 %v5091
        %v5774 = vunpack.c.l.b16 %v5092
        %v5775 = vunpack.c.h.b16 %v5092
        %v5776 = vunpack.c.l.b16 %v5093
        %v5777 = vunpack.c.h.b16 %v5093
        %v5778 = vunpack.c.l.b16 %v5094
        %v5779 = vunpack.c.h.b16 %v5094
        %v5780 = vunpack.c.l.b16 %v5095
        %v5781 = vunpack.c.h.b16 %v5095
        %v5782 = vunpack.c.l.b16 %v5096
        %v5783 = vunpack.c.h.b16 %v5096
        %v5784 = vunpack.c.l.b16 %v5097
        %v5785 = vunpack.c.h.b16 %v5097
        %v5786 = vunpack.c.l.b16 %v5098
        %v5787 = vunpack.c.h.b16 %v5098
        %v5788 = vunpack.c.l.b16 %v5099
        %v5789 = vunpack.c.h.b16 %v5099
        %v5790 = vunpack.c.l.b16 %v5100
        %v5791 = vunpack.c.h.b16 %v5100
        %v5792 = vunpack.c.l.b16 %v5101
        %v5793 = vunpack.c.h.b16 %v5101
        %v5794 = vunpack.c.l.b16 %v5102
        %v5795 = vunpack.c.h.b16 %v5102
        %v5796 = vunpack.c.l.b16 %v5103
        %v5797 = vunpack.c.h.b16 %v5103
        %v5798 = vunpack.c.l.b16 %v5104
        %v5799 = vunpack.c.h.b16 %v5104
        %v5800 = vunpack.c.l.b16 %v5105
        %v5801 = vunpack.c.h.b16 %v5105
        %v5802 = vunpack.c.l.b16 %v5106
        %v5803 = vunpack.c.h.b16 %v5106
        %v5804 = vunpack.c.l.b16 %v5107
        %v5805 = vunpack.c.h.b16 %v5107
        %v5806 = vunpack.c.l.b16 %v5108
        %v5807 = vunpack.c.h.b16 %v5108
        %v5808 = vunpack.c.l.b16 %v5109
        %v5809 = vunpack.c.h.b16 %v5109
        %v5810 = vunpack.c.l.b16 %v5110
        %v5811 = vunpack.c.h.b16 %v5110
        %v5812 = vunpack.c.l.b16 %v5111
        %v5813 = vunpack.c.h.b16 %v5111
        %v5814 = vunpack.c.l.b16 %v5112
        %v5815 = vunpack.c.h.b16 %v5112
        %v5816 = vunpack.c.l.b16 %v5113
        %v5817 = vunpack.c.h.b16 %v5113
        %v5818 = vunpack.c.l.b16 %v5114
        %v5819 = vunpack.c.h.b16 %v5114
        %v5820 = vunpack.c.l.b16 %v5115
        %v5821 = vunpack.c.h.b16 %v5115
        %v5822 = vunpack.c.l.b16 %v5116
        %v5823 = vunpack.c.h.b16 %v5116
        %v5824 = vunpack.c.l.b16 %v5117
        %v5825 = vunpack.c.h.b16 %v5117
        %v5826 = vunpack.c.l.b16 %v5118
        %v5827 = vunpack.c.h.b16 %v5118
        %v5828 = vunpack.c.l.b16 %v5119
        %v5829 = vunpack.c.h.b16 %v5119
        %v5830 = vunpack.c.l.b16 %v5120
        %v5831 = vunpack.c.h.b16 %v5120
        %v5832 = vunpack.c.l.b16 %v5121
        %v5833 = vunpack.c.h.b16 %v5121
        %v5834 = vunpack.c.l.b16 %v5122
        %v5835 = vunpack.c.h.b16 %v5122
        %v5836 = vunpack.c.l.b16 %v5123
        %v5837 = vunpack.c.h.b16 %v5123
        %v5838 = vunpack.c.l.b16 %v5124
        %v5839 = vunpack.c.h.b16 %v5124
        %v5840 = vunpack.c.l.b16 %v5125
        %v5841 = vunpack.c.h.b16 %v5125
        %v5842 = vunpack.c.l.b16 %v5126
        %v5843 = vunpack.c.h.b16 %v5126
        %v5844 = vunpack.c.l.b16 %v5127
        %v5845 = vunpack.c.h.b16 %v5127
        %v5846 = vunpack.c.l.b16 %v5128
        %v5847 = vunpack.c.h.b16 %v5128
        %v5848 = vunpack.c.l.b16 %v5129
        %v5849 = vunpack.c.h.b16 %v5129
        %v5850 = vunpack.c.l.b16 %v5130
        %v5851 = vunpack.c.h.b16 %v5130
        %v5852 = vunpack.c.l.b16 %v5131
        %v5853 = vunpack.c.h.b16 %v5131
        %v5854 = vunpack.c.l.b16 %v5132
        %v5855 = vunpack.c.h.b16 %v5132
        %v5856 = vunpack.c.l.b16 %v5133
        %v5857 = vunpack.c.h.b16 %v5133
        %v5858 = vunpack.c.l.b16 %v5134
        %v5859 = vunpack.c.h.b16 %v5134
        %v5860 = vunpack.c.l.b16 %v5135
        %v5861 = vunpack.c.h.b16 %v5135
        %v5862 = vunpack.c.l.b16 %v5136
        %v5863 = vunpack.c.h.b16 %v5136
        %v5864 = vunpack.c.l.b16 %v5137
        %v5865 = vunpack.c.h.b16 %v5137
        %v5866 = vunpack.c.l.b16 %v5138
        %v5867 = vunpack.c.h.b16 %v5138
        %v5868 = vunpack.c.l.b16 %v5139
        %v5869 = vunpack.c.h.b16 %v5139
        %v5870 = vunpack.c.l.b16 %v5140
        %v5871 = vunpack.c.h.b16 %v5140
        %v5872 = vunpack.c.l.b16 %v5141
        %v5873 = vunpack.c.h.b16 %v5141
        %v5874 = vunpack.c.l.b16 %v5142
        %v5875 = vunpack.c.h.b16 %v5142
        %v5876 = vunpack.c.l.b16 %v5143
        %v5877 = vunpack.c.h.b16 %v5143
        %v5878 = vunpack.c.l.b16 %v5144
        %v5879 = vunpack.c.h.b16 %v5144
        %v5880 = vunpack.c.l.b16 %v5145
        %v5881 = vunpack.c.h.b16 %v5145
        %v5882 = vunpack.c.l.b16 %v5146
        %v5883 = vunpack.c.h.b16 %v5146
        %v5884 = vunpack.c.l.b16 %v5147
        %v5885 = vunpack.c.h.b16 %v5147
        %v5886 = vunpack.c.l.b16 %v5148
        %v5887 = vunpack.c.h.b16 %v5148
        %v5888 = vunpack.c.l.b16 %v5149
        %v5889 = vunpack.c.h.b16 %v5149
        %v5890 = vunpack.c.l.b16 %v5150
        %v5891 = vunpack.c.h.b16 %v5150
        %v5892 = vunpack.c.l.b16 %v5151
        %v5893 = vunpack.c.h.b16 %v5151
        %v5894 = vunpack.c.l.b16 %v5152
        %v5895 = vunpack.c.h.b16 %v5152
        %v5896 = vunpack.c.l.b16 %v5153
        %v5897 = vunpack.c.h.b16 %v5153
        %v5898 = vunpack.c.l.b16 %v5154
        %v5899 = vunpack.c.h.b16 %v5154
        %v5900 = vunpack.c.l.b16 %v5155
        %v5901 = vunpack.c.h.b16 %v5155
        %v5902 = vunpack.c.l.b16 %v5156
        %v5903 = vunpack.c.h.b16 %v5156
        %v5904 = vunpack.c.l.b16 %v5157
        %v5905 = vunpack.c.h.b16 %v5157
        %v5906 = vunpack.c.l.b16 %v5158
        %v5907 = vunpack.c.h.b16 %v5158
        %v5908 = vunpack.c.l.b16 %v5159
        %v5909 = vunpack.c.h.b16 %v5159
        %v5910 = vunpack.c.l.b16 %v5160
        %v5911 = vunpack.c.h.b16 %v5160
        %v5912 = vunpack.c.l.b16 %v5161
        %v5913 = vunpack.c.h.b16 %v5161
        %v5914 = vunpack.c.l.b16 %v5162
        %v5915 = vunpack.c.h.b16 %v5162
        %v5916 = vunpack.c.l.b16 %v5163
        %v5917 = vunpack.c.h.b16 %v5163
        %v5918 = vunpack.c.l.b16 %v5164
        %v5919 = vunpack.c.h.b16 %v5164
        %v5920 = vunpack.c.l.b16 %v5165
        %v5921 = vunpack.c.h.b16 %v5165
        %v5922 = vunpack.c.l.b16 %v5166
        %v5923 = vunpack.c.h.b16 %v5166
        %v5924 = vunpack.c.l.b16 %v5167
        %v5925 = vunpack.c.h.b16 %v5167
        %v5926 = vunpack.c.l.b16 %v5168
        %v5927 = vunpack.c.h.b16 %v5168
        %v5928 = vunpack.c.l.b16 %v5169
        %v5929 = vunpack.c.h.b16 %v5169
        %v5930 = vunpack.c.l.b16 %v5170
        %v5931 = vunpack.c.h.b16 %v5170
        %v5932 = vunpack.c.l.b16 %v5171
        %v5933 = vunpack.c.h.b16 %v5171
        %v5934 = vunpack.c.l.b16 %v5172
        %v5935 = vunpack.c.h.b16 %v5172
        %v5936 = vunpack.c.l.b16 %v5173
        %v5937 = vunpack.c.h.b16 %v5173
        %v5938 = vunpack.c.l.b16 %v5174
        %v5939 = vunpack.c.h.b16 %v5174
        %v5940 = vunpack.c.l.b16 %v5175
        %v5941 = vunpack.c.h.b16 %v5175
        %v5942 = vunpack.c.l.b16 %v5176
        %v5943 = vunpack.c.h.b16 %v5176
        %v5944 = vunpack.c.l.b16 %v5177
        %v5945 = vunpack.c.h.b16 %v5177
        %v5946 = vunpack.c.l.b16 %v5178
        %v5947 = vunpack.c.h.b16 %v5178
        %v5948 = vunpack.c.l.b16 %v5179
        %v5949 = vunpack.c.h.b16 %v5179
        %v5950 = vunpack.c.l.b16 %v5180
        %v5951 = vunpack.c.h.b16 %v5180
        %v5952 = vunpack.c.l.b16 %v5181
        %v5953 = vunpack.c.h.b16 %v5181
        %v5954 = vunpack.c.l.b16 %v5182
        %v5955 = vunpack.c.h.b16 %v5182
        %v5956 = vunpack.c.l.b16 %v5183
        %v5957 = vunpack.c.h.b16 %v5183
        %v5958 = vunpack.c.l.b16 %v5184
        %v5959 = vunpack.c.h.b16 %v5184
        %v5960 = vunpack.c.l.b16 %v5185
        %v5961 = vunpack.c.h.b16 %v5185
        %v5962 = vunpack.c.l.b16 %v5186
        %v5963 = vunpack.c.h.b16 %v5186
        %v5964 = vunpack.c.l.b16 %v5187
        %v5965 = vunpack.c.h.b16 %v5187
        %v5966 = vunpack.c.l.b16 %v5188
        %v5967 = vunpack.c.h.b16 %v5188
        %v5968 = vunpack.c.l.b16 %v5189
        %v5969 = vunpack.c.h.b16 %v5189
        %v5970 = vunpack.c.l.b16 %v5190
        %v5971 = vunpack.c.h.b16 %v5190
        %v5972 = vunpack.c.l.b16 %v5191
        %v5973 = vunpack.c.h.b16 %v5191
        %v5974 = vunpack.c.l.b16 %v5192
        %v5975 = vunpack.c.h.b16 %v5192
        %v5976 = vunpack.c.l.b16 %v5193
        %v5977 = vunpack.c.h.b16 %v5193
        %v5978 = vunpack.c.l.b16 %v5194
        %v5979 = vunpack.c.h.b16 %v5194
        %v5980 = vunpack.c.l.b16 %v5195
        %v5981 = vunpack.c.h.b16 %v5195
        %v5982 = vunpack.c.l.b16 %v5196
        %v5983 = vunpack.c.h.b16 %v5196
        %v5984 = vunpack.c.l.b16 %v5197
        %v5985 = vunpack.c.h.b16 %v5197
        %v5986 = vunpack.c.l.b16 %v5198
        %v5987 = vunpack.c.h.b16 %v5198
        %v5988 = vunpack.c.l.b16 %v5199
        %v5989 = vunpack.c.h.b16 %v5199
        %v5990 = vunpack.c.l.b16 %v5200
        %v5991 = vunpack.c.h.b16 %v5200
        %v5992 = vunpack.c.l.b16 %v5201
        %v5993 = vunpack.c.h.b16 %v5201
        %v5994 = vunpack.c.l.b16 %v5202
        %v5995 = vunpack.c.h.b16 %v5202
        %v5996 = vunpack.c.l.b16 %v5203
        %v5997 = vunpack.c.h.b16 %v5203
        %v5998 = vunpack.c.l.b16 %v5204
        %v5999 = vunpack.c.h.b16 %v5204
        %v6000 = vunpack.c.l.b16 %v5205
        %v6001 = vunpack.c.h.b16 %v5205
        %v6002 = vunpack.c.l.b16 %v5206
        %v6003 = vunpack.c.h.b16 %v5206
        %v6004 = vunpack.c.l.b16 %v5207
        %v6005 = vunpack.c.h.b16 %v5207
        %v6006 = vunpack.c.l.b16 %v5208
        %v6007 = vunpack.c.h.b16 %v5208
        %v6008 = vunpack.c.l.b16 %v5209
        %v6009 = vunpack.c.h.b16 %v5209
        %v6010 = vunpack.c.l.b16 %v5210
        %v6011 = vunpack.c.h.b16 %v5210
        %v6012 = vunpack.c.l.b16 %v5211
        %v6013 = vunpack.c.h.b16 %v5211
        %v6014 = vunpack.c.l.b16 %v5212
        %v6015 = vunpack.c.h.b16 %v5212
        %v6016 = vunpack.c.l.b16 %v5213
        %v6017 = vunpack.c.h.b16 %v5213
        %v6018 = vunpack.c.l.b16 %v5214
        %v6019 = vunpack.c.h.b16 %v5214
        %v6020 = vunpack.c.l.b16 %v5215
        %v6021 = vunpack.c.h.b16 %v5215
        %v6022 = vunpack.c.l.b16 %v5216
        %v6023 = vunpack.c.h.b16 %v5216
        %v6024 = vunpack.c.l.b16 %v5217
        %v6025 = vunpack.c.h.b16 %v5217
        %v6026 = vunpack.c.l.b16 %v5218
        %v6027 = vunpack.c.h.b16 %v5218
        %v6028 = vunpack.c.l.b16 %v5219
        %v6029 = vunpack.c.h.b16 %v5219
        %v6030 = vunpack.c.l.b16 %v5220
        %v6031 = vunpack.c.h.b16 %v5220
        %v6032 = vunpack.c.l.b16 %v5221
        %v6033 = vunpack.c.h.b16 %v5221
        %v6034 = vunpack.c.l.b16 %v5222
        %v6035 = vunpack.c.h.b16 %v5222
        %v6036 = vunpack.c.l.b16 %v5223
        %v6037 = vunpack.c.h.b16 %v5223
        %v6038 = vunpack.c.l.b16 %v5224
        %v6039 = vunpack.c.h.b16 %v5224
        %v6040 = vunpack.c.l.b16 %v5225
        %v6041 = vunpack.c.h.b16 %v5225
        %v6042 = vunpack.c.l.b16 %v5226
        %v6043 = vunpack.c.h.b16 %v5226
        %v6044 = vunpack.c.l.b16 %v5227
        %v6045 = vunpack.c.h.b16 %v5227
        %v6046 = vunpack.c.l.b16 %v5228
        %v6047 = vunpack.c.h.b16 %v5228
        %v6048 = vunpack.c.l.b16 %v5229
        %v6049 = vunpack.c.h.b16 %v5229
        %v6050 = vunpack.c.l.b16 %v5230
        %v6051 = vunpack.c.h.b16 %v5230
        %v6052 = vunpack.c.l.b16 %v5231
        %v6053 = vunpack.c.h.b16 %v5231
        %v6054 = vunpack.c.l.b16 %v5232
        %v6055 = vunpack.c.h.b16 %v5232
        %v6056 = vunpack.c.l.b16 %v5233
        %v6057 = vunpack.c.h.b16 %v5233
        %v6058 = vunpack.c.l.b16 %v5234
        %v6059 = vunpack.c.h.b16 %v5234
        %v6060 = vunpack.c.l.b16 %v5235
        %v6061 = vunpack.c.h.b16 %v5235
        %v6062 = vunpack.c.l.b16 %v5236
        %v6063 = vunpack.c.h.b16 %v5236
        %v6064 = vunpack.c.l.b16 %v5237
        %v6065 = vunpack.c.h.b16 %v5237
        %v6066 = vunpack.c.l.b16 %v5238
        %v6067 = vunpack.c.h.b16 %v5238
        %v6068 = vunpack.c.l.b16 %v5239
        %v6069 = vunpack.c.h.b16 %v5239
        %v6070 = vunpack.c.l.b16 %v5240
        %v6071 = vunpack.c.h.b16 %v5240
        %v6072 = vunpack.c.l.b16 %v5241
        %v6073 = vunpack.c.h.b16 %v5241
        %v6074 = vunpack.c.l.b16 %v5242
        %v6075 = vunpack.c.h.b16 %v5242
        %v6076 = vunpack.c.l.b16 %v5243
        %v6077 = vunpack.c.h.b16 %v5243
        %v6078 = vunpack.c.l.b16 %v5244
        %v6079 = vunpack.c.h.b16 %v5244
        %v6080 = vunpack.c.l.b16 %v5245
        %v6081 = vunpack.c.h.b16 %v5245
        %v6082 = vunpack.c.l.b16 %v5246
        %v6083 = vunpack.c.h.b16 %v5246
        %v6084 = vunpack.c.l.b16 %v5247
        %v6085 = vunpack.c.h.b16 %v5247
        %v6086 = vunpack.c.l.b16 %v5248
        %v6087 = vunpack.c.h.b16 %v5248
        %v6088 = vunpack.c.l.b16 %v5249
        %v6089 = vunpack.c.h.b16 %v5249
        %v6090 = vunpack.c.l.b16 %v5250
        %v6091 = vunpack.c.h.b16 %v5250
        %v6092 = vunpack.c.l.b16 %v5251
        %v6093 = vunpack.c.h.b16 %v5251
        %v6094 = vunpack.c.l.b16 %v5252
        %v6095 = vunpack.c.h.b16 %v5252
        %v6096 = vunpack.c.l.b16 %v5253
        %v6097 = vunpack.c.h.b16 %v5253
        %v6098 = vunpack.c.l.b16 %v5254
        %v6099 = vunpack.c.h.b16 %v5254
        %v6100 = vunpack.c.l.b16 %v5255
        %v6101 = vunpack.c.h.b16 %v5255
        %v6102 = vunpack.c.l.b16 %v5256
        %v6103 = vunpack.c.h.b16 %v5256
        %v6104 = vunpack.c.l.b16 %v5257
        %v6105 = vunpack.c.h.b16 %v5257
        %v6106 = vunpack.c.l.b16 %v5258
        %v6107 = vunpack.c.h.b16 %v5258
        %v6108 = vunpack.c.l.b16 %v5259
        %v6109 = vunpack.c.h.b16 %v5259
        %v6110 = vunpack.c.l.b16 %v5260
        %v6111 = vunpack.c.h.b16 %v5260
        %v6112 = vunpack.c.l.b16 %v5261
        %v6113 = vunpack.c.h.b16 %v5261
        %v6114 = vunpack.c.l.b16 %v5262
        %v6115 = vunpack.c.h.b16 %v5262
        %v6116 = vunpack.c.l.b16 %v5263
        %v6117 = vunpack.c.h.b16 %v5263
        %v6118 = vunpack.c.l.b16 %v5264
        %v6119 = vunpack.c.h.b16 %v5264
        %v6120 = vunpack.c.l.b16 %v5265
        %v6121 = vunpack.c.h.b16 %v5265
        %v6122 = vunpack.c.l.b16 %v5266
        %v6123 = vunpack.c.h.b16 %v5266
        %v6124 = vunpack.c.l.b16 %v5267
        %v6125 = vunpack.c.h.b16 %v5267
        %v6126 = vunpack.c.l.b16 %v5268
        %v6127 = vunpack.c.h.b16 %v5268
        %v6128 = vunpack.c.l.b16 %v5269
        %v6129 = vunpack.c.h.b16 %v5269
        %v6130 = vunpack.c.l.b16 %v5270
        %v6131 = vunpack.c.h.b16 %v5270
        %v6132 = vunpack.c.l.b16 %v5271
        %v6133 = vunpack.c.h.b16 %v5271
        %v6134 = vunpack.c.l.b16 %v5272
        %v6135 = vunpack.c.h.b16 %v5272
        %v6136 = vunpack.c.l.b16 %v5273
        %v6137 = vunpack.c.h.b16 %v5273
        %v6138 = vunpack.c.l.b16 %v5274
        %v6139 = vunpack.c.h.b16 %v5274
        %v6140 = vunpack.c.l.b16 %v5275
        %v6141 = vunpack.c.h.b16 %v5275
        %v6142 = vunpack.c.l.b16 %v5276
        %v6143 = vunpack.c.h.b16 %v5276
        %v6144 = vunpack.c.l.b16 %v5277
        %v6145 = vunpack.c.h.b16 %v5277
        %v6146 = vunpack.c.l.b16 %v5278
        %v6147 = vunpack.c.h.b16 %v5278
        %v6148 = vunpack.c.l.b16 %v5279
        %v6149 = vunpack.c.h.b16 %v5279
        %v6150 = vunpack.c.l.b16 %v5280
        %v6151 = vunpack.c.h.b16 %v5280
        %v6152 = vunpack.c.l.b16 %v5281
        %v6153 = vunpack.c.h.b16 %v5281
        %v6154 = vunpack.c.l.b16 %v5282
        %v6155 = vunpack.c.h.b16 %v5282
        %v6156 = vunpack.c.l.b16 %v5283
        %v6157 = vunpack.c.h.b16 %v5283
        %v6158 = vunpack.c.l.b16 %v5284
        %v6159 = vunpack.c.h.b16 %v5284
        %v6160 = vunpack.c.l.b16 %v5285
        %v6161 = vunpack.c.h.b16 %v5285
        %v6162 = vunpack.c.l.b16 %v5286
        %v6163 = vunpack.c.h.b16 %v5286
        %v6164 = vunpack.c.l.b16 %v5287
        %v6165 = vunpack.c.h.b16 %v5287
        %v6166 = vunpack.c.l.b16 %v5288
        %v6167 = vunpack.c.h.b16 %v5288
        %v6168 = vunpack.c.l.b16 %v5289
        %v6169 = vunpack.c.h.b16 %v5289
        %v6170 = vunpack.c.l.b16 %v5290
        %v6171 = vunpack.c.h.b16 %v5290
        %v6172 = vunpack.c.l.b16 %v5291
        %v6173 = vunpack.c.h.b16 %v5291
        %v6174 = vunpack.c.l.b16 %v5292
        %v6175 = vunpack.c.h.b16 %v5292
        %v6176 = vunpack.c.l.b16 %v5293
        %v6177 = vunpack.c.h.b16 %v5293
        %v6178 = vunpack.c.l.b16 %v5294
        %v6179 = vunpack.c.h.b16 %v5294
        %v6180 = vunpack.c.l.b16 %v5295
        %v6181 = vunpack.c.h.b16 %v5295
        %v6182 = vunpack.c.l.b16 %v5296
        %v6183 = vunpack.c.h.b16 %v5296
        %v6184 = vunpack.c.l.b16 %v5297
        %v6185 = vunpack.c.h.b16 %v5297
        %v6186 = vunpack.c.l.b16 %v5298
        %v6187 = vunpack.c.h.b16 %v5298
        %v6188 = vunpack.c.l.b16 %v5299
        %v6189 = vunpack.c.h.b16 %v5299
        %v6190 = vunpack.c.l.b16 %v5300
        %v6191 = vunpack.c.h.b16 %v5300
        %v6192 = vunpack.c.l.b16 %v5301
        %v6193 = vunpack.c.h.b16 %v5301
        %v6194 = vunpack.c.l.b16 %v5302
        %v6195 = vunpack.c.h.b16 %v5302
        %v6196 = vunpack.c.l.b16 %v5303
        %v6197 = vunpack.c.h.b16 %v5303
        %v6198 = vunpack.c.l.b16 %v5304
        %v6199 = vunpack.c.h.b16 %v5304
        %v6200 = vunpack.c.l.b16 %v5305
        %v6201 = vunpack.c.h.b16 %v5305
        %v6202 = vunpack.c.l.b16 %v5306
        %v6203 = vunpack.c.h.b16 %v5306
        %v6204 = vunpack.c.l.b16 %v5307
        %v6205 = vunpack.c.h.b16 %v5307
        %v6206 = vunpack.c.l.b16 %v5308
        %v6207 = vunpack.c.h.b16 %v5308
        %v6208 = vunpack.c.l.b16 %v5309
        %v6209 = vunpack.c.h.b16 %v5309
        %v6210 = vunpack.c.l.b16 %v5310
        %v6211 = vunpack.c.h.b16 %v5310
        %v6212 = vunpack.c.l.b16 %v5311
        %v6213 = vunpack.c.h.b16 %v5311
        %v6214 = vunpack.c.l.b16 %v5312
        %v6215 = vunpack.c.h.b16 %v5312
        %v6216 = vunpack.c.l.b16 %v5313
        %v6217 = vunpack.c.h.b16 %v5313
        %v6218 = vunpack.c.l.b16 %v5314
        %v6219 = vunpack.c.h.b16 %v5314
        %v6220 = vunpack.c.l.b16 %v5315
        %v6221 = vunpack.c.h.b16 %v5315
        %v6222 = vunpack.c.l.b16 %v5316
        %v6223 = vunpack.c.h.b16 %v5316
        %v6224 = vunpack.c.l.b16 %v5317
        %v6225 = vunpack.c.h.b16 %v5317
        %v6226 = vunpack.c.l.b16 %v5318
        %v6227 = vunpack.c.h.b16 %v5318
        %v6228 = vunpack.c.l.b16 %v5319
        %v6229 = vunpack.c.h.b16 %v5319
        %v6230 = vunpack.c.l.b16 %v5320
        %v6231 = vunpack.c.h.b16 %v5320
        %v6232 = vunpack.c.l.b16 %v5321
        %v6233 = vunpack.c.h.b16 %v5321
        %v6234 = vunpack.c.l.b16 %v5322
        %v6235 = vunpack.c.h.b16 %v5322
        %v6236 = vunpack.c.l.b16 %v5323
        %v6237 = vunpack.c.h.b16 %v5323
        %v6238 = vunpack.c.l.b16 %v5324
        %v6239 = vunpack.c.h.b16 %v5324
        %v6240 = vunpack.c.l.b16 %v5325
        %v6241 = vunpack.c.h.b16 %v5325
        %v6242 = vunpack.c.l.b16 %v5326
        %v6243 = vunpack.c.h.b16 %v5326
        %v6244 = vunpack.c.l.b16 %v5327
        %v6245 = vunpack.c.h.b16 %v5327
        %v6246 = vunpack.c.l.b16 %v5328
        %v6247 = vunpack.c.h.b16 %v5328
        %v6248 = vunpack.c.l.b16 %v5329
        %v6249 = vunpack.c.h.b16 %v5329
        %v6250 = vunpack.c.l.b16 %v5330
        %v6251 = vunpack.c.h.b16 %v5330
        %v6252 = vunpack.c.l.b16 %v5331
        %v6253 = vunpack.c.h.b16 %v5331
        %v6254 = vunpack.c.l.b16 %v5332
        %v6255 = vunpack.c.h.b16 %v5332
        %v6256 = vunpack.c.l.b16 %v5333
        %v6257 = vunpack.c.h.b16 %v5333
        %v6258 = vunpack.c.l.b16 %v5334
        %v6259 = vunpack.c.h.b16 %v5334
        %v6260 = vunpack.c.l.b16 %v5335
        %v6261 = vunpack.c.h.b16 %v5335
        %v6262 = vunpack.c.l.b16 %v5336
        %v6263 = vunpack.c.h.b16 %v5336
        %v6264 = vunpack.c.l.b16 %v5337
        %v6265 = vunpack.c.h.b16 %v5337
        %v6266 = vpack.c.b16 %v5702, %v5690
        %v6267 = vpack.c.b16 %v5703, %v5691
        %v6268 = vpack.c.b16 %v5704, %v5692
        %v6269 = vpack.c.b16 %v5705, %v5693
        %v6270 = vpack.c.b16 %v5706, %v5694
        %v6271 = vpack.c.b16 %v5707, %v5695
        %v6272 = vpack.c.b16 %v5708, %v5696
        %v6273 = vpack.c.b16 %v5709, %v5697
        %v6274 = vpack.c.b16 %v5710, %v5698
        %v6275 = vpack.c.b16 %v5711, %v5699
        %v6276 = vpack.c.b16 %v5712, %v5700
        %v6277 = vpack.c.b16 %v5713, %v5701
        %v6278 = vpack.c.b16 %v5726, %v5714
        %v6279 = vpack.c.b16 %v5727, %v5715
        %v6280 = vpack.c.b16 %v5728, %v5716
        %v6281 = vpack.c.b16 %v5729, %v5717
        %v6282 = vpack.c.b16 %v5730, %v5718
        %v6283 = vpack.c.b16 %v5731, %v5719
        %v6284 = vpack.c.b16 %v5732, %v5720
        %v6285 = vpack.c.b16 %v5733, %v5721
        %v6286 = vpack.c.b16 %v5734, %v5722
        %v6287 = vpack.c.b16 %v5735, %v5723
        %v6288 = vpack.c.b16 %v5736, %v5724
        %v6289 = vpack.c.b16 %v5737, %v5725
        %v6290 = vpack.c.b16 %v5750, %v5738
        %v6291 = vpack.c.b16 %v5751, %v5739
        %v6292 = vpack.c.b16 %v5752, %v5740
        %v6293 = vpack.c.b16 %v5753, %v5741
        %v6294 = vpack.c.b16 %v5754, %v5742
        %v6295 = vpack.c.b16 %v5755, %v5743
        %v6296 = vpack.c.b16 %v5756, %v5744
        %v6297 = vpack.c.b16 %v5757, %v5745
        %v6298 = vpack.c.b16 %v5758, %v5746
        %v6299 = vpack.c.b16 %v5759, %v5747
        %v6300 = vpack.c.b16 %v5760, %v5748
        %v6301 = vpack.c.b16 %v5761, %v5749
        %v6302 = vpack.c.b16 %v5774, %v5762
        %v6303 = vpack.c.b16 %v5775, %v5763
        %v6304 = vpack.c.b16 %v5776, %v5764
        %v6305 = vpack.c.b16 %v5777, %v5765
        %v6306 = vpack.c.b16 %v5778, %v5766
        %v6307 = vpack.c.b16 %v5779, %v5767
        %v6308 = vpack.c.b16 %v5780, %v5768
        %v6309 = vpack.c.b16 %v5781, %v5769
        %v6310 = vpack.c.b16 %v5782, %v5770
        %v6311 = vpack.c.b16 %v5783, %v5771
        %v6312 = vpack.c.b16 %v5784, %v5772
        %v6313 = vpack.c.b16 %v5785, %v5773
        %v6314 = vpack.c.b16 %v5798, %v5786
        %v6315 = vpack.c.b16 %v5799, %v5787
        %v6316 = vpack.c.b16 %v5800, %v5788
        %v6317 = vpack.c.b16 %v5801, %v5789
        %v6318 = vpack.c.b16 %v5802, %v5790
        %v6319 = vpack.c.b16 %v5803, %v5791
        %v6320 = vpack.c.b16 %v5804, %v5792
        %v6321 = vpack.c.b16 %v5805, %v5793
        %v6322 = vpack.c.b16 %v5806, %v5794
        %v6323 = vpack.c.b16 %v5807, %v5795
        %v6324 = vpack.c.b16 %v5808, %v5796
        %v6325 = vpack.c.b16 %v5809, %v5797
        %v6326 = vpack.c.b16 %v5822, %v5810
        %v6327 = vpack.c.b16 %v5823, %v5811
        %v6328 = vpack.c.b16 %v5824, %v5812
        %v6329 = vpack.c.b16 %v5825, %v5813
        %v6330 = vpack.c.b16 %v5826, %v5814
        %v6331 = vpack.c.b16 %v5827, %v5815
        %v6332 = vpack.c.b16 %v5828, %v5816
        %v6333 = vpack.c.b16 %v5829, %v5817
        %v6334 = vpack.c.b16 %v5830, %v5818
        %v6335 = vpack.c.b16 %v5831, %v5819
        %v6336 = vpack.c.b16 %v5832, %v5820
        %v6337 = vpack.c.b16 %v5833, %v5821
        %v6338 = vpack.c.b16 %v5846, %v5834
        %v6339 = vpack.c.b16 %v5847, %v5835
        %v6340 = vpack.c.b16 %v5848, %v5836
        %v6341 = vpack.c.b16 %v5849, %v5837
        %v6342 = vpack.c.b16 %v5850, %v5838
        %v6343 = vpack.c.b16 %v5851, %v5839
        %v6344 = vpack.c.b16 %v5852, %v5840
        %v6345 = vpack.c.b16 %v5853, %v5841
        %v6346 = vpack.c.b16 %v5854, %v5842
        %v6347 = vpack.c.b16 %v5855, %v5843
        %v6348 = vpack.c.b16 %v5856, %v5844
        %v6349 = vpack.c.b16 %v5857, %v5845
        %v6350 = vpack.c.b16 %v5870, %v5858
        %v6351 = vpack.c.b16 %v5871, %v5859
        %v6352 = vpack.c.b16 %v5872, %v5860
        %v6353 = vpack.c.b16 %v5873, %v5861
        %v6354 = vpack.c.b16 %v5874, %v5862
        %v6355 = vpack.c.b16 %v5875, %v5863
        %v6356 = vpack.c.b16 %v5876, %v5864
        %v6357 = vpack.c.b16 %v5877, %v5865
        %v6358 = vpack.c.b16 %v5878, %v5866
        %v6359 = vpack.c.b16 %v5879, %v5867
        %v6360 = vpack.c.b16 %v5880, %v5868
        %v6361 = vpack.c.b16 %v5881, %v5869
        %v6362 = vpack.c.b16 %v5894, %v5882
        %v6363 = vpack.c.b16 %v5895, %v5883
        %v6364 = vpack.c.b16 %v5896, %v5884
        %v6365 = vpack.c.b16 %v5897, %v5885
        %v6366 = vpack.c.b16 %v5898, %v5886
        %v6367 = vpack.c.b16 %v5899, %v5887
        %v6368 = vpack.c.b16 %v5900, %v5888
        %v6369 = vpack.c.b16 %v5901, %v5889
        %v6370 = vpack.c.b16 %v5902, %v5890
        %v6371 = vpack.c.b16 %v5903, %v5891
        %v6372 = vpack.c.b16 %v5904, %v5892
        %v6373 = vpack.c.b16 %v5905, %v5893
        %v6374 = vpack.c.b16 %v5918, %v5906
        %v6375 = vpack.c.b16 %v5919, %v5907
        %v6376 = vpack.c.b16 %v5920, %v5908
        %v6377 = vpack.c.b16 %v5921, %v5909
        %v6378 = vpack.c.b16 %v5922, %v5910
        %v6379 = vpack.c.b16 %v5923, %v5911
        %v6380 = vpack.c.b16 %v5924, %v5912
        %v6381 = vpack.c.b16 %v5925, %v5913
        %v6382 = vpack.c.b16 %v5926, %v5914
        %v6383 = vpack.c.b16 %v5927, %v5915
        %v6384 = vpack.c.b16 %v5928, %v5916
        %v6385 = vpack.c.b16 %v5929, %v5917
        %v6386 = vpack.c.b16 %v5942, %v5930
        %v6387 = vpack.c.b16 %v5943, %v5931
        %v6388 = vpack.c.b16 %v5944, %v5932
        %v6389 = vpack.c.b16 %v5945, %v5933
        %v6390 = vpack.c.b16 %v5946, %v5934
        %v6391 = vpack.c.b16 %v5947, %v5935
        %v6392 = vpack.c.b16 %v5948, %v5936
        %v6393 = vpack.c.b16 %v5949, %v5937
        %v6394 = vpack.c.b16 %v5950, %v5938
        %v6395 = vpack.c.b16 %v5951, %v5939
        %v6396 = vpack.c.b16 %v5952, %v5940
        %v6397 = vpack.c.b16 %v5953, %v5941
        %v6398 = vpack.c.b16 %v5966, %v5954
        %v6399 = vpack.c.b16 %v5967, %v5955
        %v6400 = vpack.c.b16 %v5968, %v5956
        %v6401 = vpack.c.b16 %v5969, %v5957
        %v6402 = vpack.c.b16 %v5970, %v5958
        %v6403 = vpack.c.b16 %v5971, %v5959
        %v6404 = vpack.c.b16 %v5972, %v5960
        %v6405 = vpack.c.b16 %v5973, %v5961
        %v6406 = vpack.c.b16 %v5974, %v5962
        %v6407 = vpack.c.b16 %v5975, %v5963
        %v6408 = vpack.c.b16 %v5976, %v5964
        %v6409 = vpack.c.b16 %v5977, %v5965
        %v6410 = vpack.c.b16 %v5990, %v5978
        %v6411 = vpack.c.b16 %v5991, %v5979
        %v6412 = vpack.c.b16 %v5992, %v5980
        %v6413 = vpack.c.b16 %v5993, %v5981
        %v6414 = vpack.c.b16 %v5994, %v5982
        %v6415 = vpack.c.b16 %v5995, %v5983
        %v6416 = vpack.c.b16 %v5996, %v5984
        %v6417 = vpack.c.b16 %v5997, %v5985
        %v6418 = vpack.c.b16 %v5998, %v5986
        %v6419 = vpack.c.b16 %v5999, %v5987
        %v6420 = vpack.c.b16 %v6000, %v5988
        %v6421 = vpack.c.b16 %v6001, %v5989
        %v6422 = vpack.c.b16 %v6014, %v6002
        %v6423 = vpack.c.b16 %v6015, %v6003
        %v6424 = vpack.c.b16 %v6016, %v6004
        %v6425 = vpack.c.b16 %v6017, %v6005
        %v6426 = vpack.c.b16 %v6018, %v6006
        %v6427 = vpack.c.b16 %v6019, %v6007
        %v6428 = vpack.c.b16 %v6020, %v6008
        %v6429 = vpack.c.b16 %v6021, %v6009
        %v6430 = vpack.c.b16 %v6022, %v6010
        %v6431 = vpack.c.b16 %v6023, %v6011
        %v6432 = vpack.c.b16 %v6024, %v6012
        %v6433 = vpack.c.b16 %v6025, %v6013
        %v6434 = vpack.c.b16 %v6038, %v6026
        %v6435 = vpack.c.b16 %v6039, %v6027
        %v6436 = vpack.c.b16 %v6040, %v6028
        %v6437 = vpack.c.b16 %v6041, %v6029
        %v6438 = vpack.c.b16 %v6042, %v6030
        %v6439 = vpack.c.b16 %v6043, %v6031
        %v6440 = vpack.c.b16 %v6044, %v6032
        %v6441 = vpack.c.b16 %v6045, %v6033
        %v6442 = vpack.c.b16 %v6046, %v6034
        %v6443 = vpack.c.b16 %v6047, %v6035
        %v6444 = vpack.c.b16 %v6048, %v6036
        %v6445 = vpack.c.b16 %v6049, %v6037
        %v6446 = vpack.c.b16 %v6062, %v6050
        %v6447 = vpack.c.b16 %v6063, %v6051
        %v6448 = vpack.c.b16 %v6064, %v6052
        %v6449 = vpack.c.b16 %v6065, %v6053
        %v6450 = vpack.c.b16 %v6066, %v6054
        %v6451 = vpack.c.b16 %v6067, %v6055
        %v6452 = vpack.c.b16 %v6068, %v6056
        %v6453 = vpack.c.b16 %v6069, %v6057
        %v6454 = vpack.c.b16 %v6070, %v6058
        %v6455 = vpack.c.b16 %v6071, %v6059
        %v6456 = vpack.c.b16 %v6072, %v6060
        %v6457 = vpack.c.b16 %v6073, %v6061
        %v6458 = vpack.c.b16 %v6086, %v6074
        %v6459 = vpack.c.b16 %v6087, %v6075
        %v6460 = vpack.c.b16 %v6088, %v6076
        %v6461 = vpack.c.b16 %v6089, %v6077
        %v6462 = vpack.c.b16 %v6090, %v6078
        %v6463 = vpack.c.b16 %v6091, %v6079
        %v6464 = vpack.c.b16 %v6092, %v6080
        %v6465 = vpack.c.b16 %v6093, %v6081
        %v6466 = vpack.c.b16 %v6094, %v6082
        %v6467 = vpack.c.b16 %v6095, %v6083
        %v6468 = vpack.c.b16 %v6096, %v6084
        %v6469 = vpack.c.b16 %v6097, %v6085
        %v6470 = vpack.c.b16 %v6110, %v6098
        %v6471 = vpack.c.b16 %v6111, %v6099
        %v6472 = vpack.c.b16 %v6112, %v6100
        %v6473 = vpack.c.b16 %v6113, %v6101
        %v6474 = vpack.c.b16 %v6114, %v6102
        %v6475 = vpack.c.b16 %v6115, %v6103
        %v6476 = vpack.c.b16 %v6116, %v6104
        %v6477 = vpack.c.b16 %v6117, %v6105
        %v6478 = vpack.c.b16 %v6118, %v6106
        %v6479 = vpack.c.b16 %v6119, %v6107
        %v6480 = vpack.c.b16 %v6120, %v6108
        %v6481 = vpack.c.b16 %v6121, %v6109
        %v6482 = vpack.c.b16 %v6134, %v6122
        %v6483 = vpack.c.b16 %v6135, %v6123
        %v6484 = vpack.c.b16 %v6136, %v6124
        %v6485 = vpack.c.b16 %v6137, %v6125
        %v6486 = vpack.c.b16 %v6138, %v6126
        %v6487 = vpack.c.b16 %v6139, %v6127
        %v6488 = vpack.c.b16 %v6140, %v6128
        %v6489 = vpack.c.b16 %v6141, %v6129
        %v6490 = vpack.c.b16 %v6142, %v6130
        %v6491 = vpack.c.b16 %v6143, %v6131
        %v6492 = vpack.c.b16 %v6144, %v6132
        %v6493 = vpack.c.b16 %v6145, %v6133
        %v6494 = vpack.c.b16 %v6158, %v6146
        %v6495 = vpack.c.b16 %v6159, %v6147
        %v6496 = vpack.c.b16 %v6160, %v6148
        %v6497 = vpack.c.b16 %v6161, %v6149
        %v6498 = vpack.c.b16 %v6162, %v6150
        %v6499 = vpack.c.b16 %v6163, %v6151
        %v6500 = vpack.c.b16 %v6164, %v6152
        %v6501 = vpack.c.b16 %v6165, %v6153
        %v6502 = vpack.c.b16 %v6166, %v6154
        %v6503 = vpack.c.b16 %v6167, %v6155
        %v6504 = vpack.c.b16 %v6168, %v6156
        %v6505 = vpack.c.b16 %v6169, %v6157
        %v6506 = vpack.c.b16 %v6182, %v6170
        %v6507 = vpack.c.b16 %v6183, %v6171
        %v6508 = vpack.c.b16 %v6184, %v6172
        %v6509 = vpack.c.b16 %v6185, %v6173
        %v6510 = vpack.c.b16 %v6186, %v6174
        %v6511 = vpack.c.b16 %v6187, %v6175
        %v6512 = vpack.c.b16 %v6188, %v6176
        %v6513 = vpack.c.b16 %v6189, %v6177
        %v6514 = vpack.c.b16 %v6190, %v6178
        %v6515 = vpack.c.b16 %v6191, %v6179
        %v6516 = vpack.c.b16 %v6192, %v6180
        %v6517 = vpack.c.b16 %v6193, %v6181
        %v6518 = vpack.c.b16 %v6206, %v6194
        %v6519 = vpack.c.b16 %v6207, %v6195
        %v6520 = vpack.c.b16 %v6208, %v6196
        %v6521 = vpack.c.b16 %v6209, %v6197
        %v6522 = vpack.c.b16 %v6210, %v6198
        %v6523 = vpack.c.b16 %v6211, %v6199
        %v6524 = vpack.c.b16 %v6212, %v6200
        %v6525 = vpack.c.b16 %v6213, %v6201
        %v6526 = vpack.c.b16 %v6214, %v6202
        %v6527 = vpack.c.b16 %v6215, %v6203
        %v6528 = vpack.c.b16 %v6216, %v6204
        %v6529 = vpack.c.b16 %v6217, %v6205
        %v6530 = vpack.c.b16 %v6230, %v6218
        %v6531 = vpack.c.b16 %v6231, %v6219
        %v6532 = vpack.c.b16 %v6232, %v6220
        %v6533 = vpack.c.b16 %v6233, %v6221
        %v6534 = vpack.c.b16 %v6234, %v6222
        %v6535 = vpack.c.b16 %v6235, %v6223
        %v6536 = vpack.c.b16 %v6236, %v6224
        %v6537 = vpack.c.b16 %v6237, %v6225
        %v6538 = vpack.c.b16 %v6238, %v6226
        %v6539 = vpack.c.b16 %v6239, %v6227
        %v6540 = vpack.c.b16 %v6240, %v6228
        %v6541 = vpack.c.b16 %v6241, %v6229
        %v6542 = vpack.c.b16 %v6254, %v6242
        %v6543 = vpack.c.b16 %v6255, %v6243
        %v6544 = vpack.c.b16 %v6256, %v6244
        %v6545 = vpack.c.b16 %v6257, %v6245
        %v6546 = vpack.c.b16 %v6258, %v6246
        %v6547 = vpack.c.b16 %v6259, %v6247
        %v6548 = vpack.c.b16 %v6260, %v6248
        %v6549 = vpack.c.b16 %v6261, %v6249
        %v6550 = vpack.c.b16 %v6262, %v6250
        %v6551 = vpack.c.b16 %v6263, %v6251
        %v6552 = vpack.c.b16 %v6264, %v6252
        %v6553 = vpack.c.b16 %v6265, %v6253
        %6842 = vmatprep.subr.bf16.mxu0 %v6267
        %6843 = vmatpush1.bf16.msra.mxu0 %v6266
        %6844 = vmatprep.subr.bf16.mxu0 %v6279
        %6845 = vmatpush1.bf16.msra.mxu0 %v6278
        %6846 = vmatprep.subr.bf16.mxu0 %v6291
        %6847 = vmatpush1.bf16.msra.mxu0 %v6290
        %6848 = vmatprep.subr.bf16.mxu0 %v6303
        %6849 = vmatpush1.bf16.msra.mxu0 %v6302
        %6850 = vmatprep.subr.bf16.mxu0 %v6315
        %6851 = vmatpush1.bf16.msra.mxu0 %v6314
        %6852 = vmatprep.subr.bf16.mxu0 %v6327
        %6853 = vmatpush1.bf16.msra.mxu0 %v6326
        %6854 = vmatprep.subr.bf16.mxu0 %v6339
        %6855 = vmatpush1.bf16.msra.mxu0 %v6338
        %6856 = vmatprep.subr.bf16.mxu0 %v6351
        %6857 = vmatpush1.bf16.msra.mxu0 %v6350
        %6858 = vmatprep.subr.bf16.mxu0 %v6363
        %6859 = vmatpush1.bf16.msra.mxu0 %v6362
        %6860 = vmatprep.subr.bf16.mxu0 %v6375
        %6861 = vmatpush1.bf16.msra.mxu0 %v6374
        %6862 = vmatprep.subr.bf16.mxu0 %v6387
        %6863 = vmatpush1.bf16.msra.mxu0 %v6386
        %6864 = vmatprep.subr.bf16.mxu0 %v6399
        %6865 = vmatpush1.bf16.msra.mxu0 %v6398
        %6866 = vmatprep.subr.bf16.mxu0 %v6411
        %6867 = vmatpush1.bf16.msra.mxu0 %v6410
        %6868 = vmatprep.subr.bf16.mxu0 %v6423
        %6869 = vmatpush1.bf16.msra.mxu0 %v6422
        %6870 = vmatprep.subr.bf16.mxu0 %v6435
        %6871 = vmatpush1.bf16.msra.mxu0 %v6434
        %6872 = vmatprep.subr.bf16.mxu0 %v6447
        %6873 = vmatpush1.bf16.msra.mxu0 %v6446
        %6874 = vmatprep.mubr.bf16.mxu0 %v5048
        %6875 = vmatmul.mubr.bf16.gmra.mrb[0].mxu0 %v5047
        %v6876 = vpop.f32.mrb[0].mxu0
        %v6877 = vadd.f32 %v5345, %v6876
        %v6878 = vpop.f32.mrb[0].mxu0
        %v6879 = vadd.f32 %v5349, %v6878
        %v6880 = vpop.f32.mrb[0].mxu0
        %v6881 = vadd.f32 %v5345, %v6880
        %v6882 = vpop.f32.mrb[0].mxu0
        %v6883 = vadd.f32 %v5349, %v6882
        %6884 = vdwg.mxu0
        %6885 = vmatprep.subr.bf16.mxu0 %v6459
        %6886 = vmatpush1.bf16.msra.mxu0 %v6458
        %6887 = vmatprep.subr.bf16.mxu0 %v6471
        %6888 = vmatpush1.bf16.msra.mxu0 %v6470
        %6889 = vmatprep.subr.bf16.mxu0 %v6483
        %6890 = vmatpush1.bf16.msra.mxu0 %v6482
        %6891 = vmatprep.subr.bf16.mxu0 %v6495
        %6892 = vmatpush1.bf16.msra.mxu0 %v6494
        %6893 = vmatprep.subr.bf16.mxu0 %v6507
        %6894 = vmatpush1.bf16.msra.mxu0 %v6506
        %6895 = vmatprep.subr.bf16.mxu0 %v6519
        %6896 = vmatpush1.bf16.msra.mxu0 %v6518
        %6897 = vmatprep.subr.bf16.mxu0 %v6531
        %6898 = vmatpush1.bf16.msra.mxu0 %v6530
        %6899 = vmatprep.subr.bf16.mxu0 %v6543
        %6900 = vmatpush1.bf16.msra.mxu0 %v6542
        %6901 = vmatprep.subr.bf16.mxu0 0
        %6902 = vmatpush1.bf16.msra.mxu0 0
        %6903 = vmatprep.subr.bf16.mxu0 0
        %6904 = vmatpush1.bf16.msra.mxu0 0
        %6905 = vmatprep.subr.bf16.mxu0 0
        %6906 = vmatpush1.bf16.msra.mxu0 0
        %6907 = vmatprep.subr.bf16.mxu0 0
        %6908 = vmatpush1.bf16.msra.mxu0 0
        %6909 = vmatprep.subr.bf16.mxu0 0
        %6910 = vmatpush1.bf16.msra.mxu0 0
        %6911 = vmatprep.subr.bf16.mxu0 0
        %6912 = vmatpush1.bf16.msra.mxu0 0
        %6913 = vmatprep.subr.bf16.mxu0 0
        %6914 = vmatpush1.bf16.msra.mxu0 0
        %6915 = vmatprep.subr.bf16.mxu0 0
        %6916 = vmatpush1.bf16.msra.mxu0 0
        %6917 = vmatprep.mubr.bf16.mxu0 0
        %6918 = vmatmul.mubr.bf16.gmra.mrb[0].mxu0 %v5049
        %v6919 = vpop.f32.mrb[0].mxu0
        %v6920 = vadd.f32 %v6877, %v6919
        %v6921 = vpop.f32.mrb[0].mxu0
        %v6922 = vadd.f32 %v6879, %v6921
        %v6923 = vpop.f32.mrb[0].mxu0
        %v6924 = vadd.f32 %v6881, %v6923
        %v6925 = vpop.f32.mrb[0].mxu0
        %v6926 = vadd.f32 %v6883, %v6925
        %6927 = vdwg.mxu0
        %6928 = vmatprep.subr.bf16.mxu0 %v6269
        %6929 = vmatpush1.bf16.msra.mxu0 %v6268
        %6930 = vmatprep.subr.bf16.mxu0 %v6281
        %6931 = vmatpush1.bf16.msra.mxu0 %v6280
        %6932 = vmatprep.subr.bf16.mxu0 %v6293
        %6933 = vmatpush1.bf16.msra.mxu0 %v6292
        %6934 = vmatprep.subr.bf16.mxu0 %v6305
        %6935 = vmatpush1.bf16.msra.mxu0 %v6304
        %6936 = vmatprep.subr.bf16.mxu0 %v6317
        %6937 = vmatpush1.bf16.msra.mxu0 %v6316
        %6938 = vmatprep.subr.bf16.mxu0 %v6329
        %6939 = vmatpush1.bf16.msra.mxu0 %v6328
        %6940 = vmatprep.subr.bf16.mxu0 %v6341
        %6941 = vmatpush1.bf16.msra.mxu0 %v6340
        %6942 = vmatprep.subr.bf16.mxu0 %v6353
        %6943 = vmatpush1.bf16.msra.mxu0 %v6352
        %6944 = vmatprep.subr.bf16.mxu0 %v6365
        %6945 = vmatpush1.bf16.msra.mxu0 %v6364
        %6946 = vmatprep.subr.bf16.mxu0 %v6377
        %6947 = vmatpush1.bf16.msra.mxu0 %v6376
        %6948 = vmatprep.subr.bf16.mxu0 %v6389
        %6949 = vmatpush1.bf16.msra.mxu0 %v6388
        %6950 = vmatprep.subr.bf16.mxu0 %v6401
        %6951 = vmatpush1.bf16.msra.mxu0 %v6400
        %6952 = vmatprep.subr.bf16.mxu0 %v6413
        %6953 = vmatpush1.bf16.msra.mxu0 %v6412
        %6954 = vmatprep.subr.bf16.mxu0 %v6425
        %6955 = vmatpush1.bf16.msra.mxu0 %v6424
        %6956 = vmatprep.subr.bf16.mxu0 %v6437
        %6957 = vmatpush1.bf16.msra.mxu0 %v6436
        %6958 = vmatprep.subr.bf16.mxu0 %v6449
        %6959 = vmatpush1.bf16.msra.mxu0 %v6448
        %6960 = vmatprep.mubr.bf16.mxu0 %v5048
        %6961 = vmatmul.mubr.bf16.gmra.mrb[0].mxu0 %v5047
        %v6962 = vpop.f32.mrb[0].mxu0
        %v6963 = vadd.f32 %v5353, %v6962
        %v6964 = vpop.f32.mrb[0].mxu0
        %v6965 = vadd.f32 %v5357, %v6964
        %v6966 = vpop.f32.mrb[0].mxu0
        %v6967 = vadd.f32 %v5353, %v6966
        %v6968 = vpop.f32.mrb[0].mxu0
        %v6969 = vadd.f32 %v5357, %v6968
        %6970 = vdwg.mxu0
        %6971 = vmatprep.subr.bf16.mxu0 %v6461
        %6972 = vmatpush1.bf16.msra.mxu0 %v6460
        %6973 = vmatprep.subr.bf16.mxu0 %v6473
        %6974 = vmatpush1.bf16.msra.mxu0 %v6472
        %6975 = vmatprep.subr.bf16.mxu0 %v6485
        %6976 = vmatpush1.bf16.msra.mxu0 %v6484
        %6977 = vmatprep.subr.bf16.mxu0 %v6497
        %6978 = vmatpush1.bf16.msra.mxu0 %v6496
        %6979 = vmatprep.subr.bf16.mxu0 %v6509
        %6980 = vmatpush1.bf16.msra.mxu0 %v6508
        %6981 = vmatprep.subr.bf16.mxu0 %v6521
        %6982 = vmatpush1.bf16.msra.mxu0 %v6520
        %6983 = vmatprep.subr.bf16.mxu0 %v6533
        %6984 = vmatpush1.bf16.msra.mxu0 %v6532
        %6985 = vmatprep.subr.bf16.mxu0 %v6545
        %6986 = vmatpush1.bf16.msra.mxu0 %v6544
        %6987 = vmatprep.subr.bf16.mxu0 0
        %6988 = vmatpush1.bf16.msra.mxu0 0
        %6989 = vmatprep.subr.bf16.mxu0 0
        %6990 = vmatpush1.bf16.msra.mxu0 0
        %6991 = vmatprep.subr.bf16.mxu0 0
        %6992 = vmatpush1.bf16.msra.mxu0 0
        %6993 = vmatprep.subr.bf16.mxu0 0
        %6994 = vmatpush1.bf16.msra.mxu0 0
        %6995 = vmatprep.subr.bf16.mxu0 0
        %6996 = vmatpush1.bf16.msra.mxu0 0
        %6997 = vmatprep.subr.bf16.mxu0 0
        %6998 = vmatpush1.bf16.msra.mxu0 0
        %6999 = vmatprep.subr.bf16.mxu0 0
        %7000 = vmatpush1.bf16.msra.mxu0 0
        %7001 = vmatprep.subr.bf16.mxu0 0
        %7002 = vmatpush1.bf16.msra.mxu0 0
        %7003 = vmatprep.mubr.bf16.mxu0 0
        %7004 = vmatmul.mubr.bf16.gmra.mrb[0].mxu0 %v5049
        %v7005 = vpop.f32.mrb[0].mxu0
        %v7006 = vadd.f32 %v6963, %v7005
        %v7007 = vpop.f32.mrb[0].mxu0
        %v7008 = vadd.f32 %v6965, %v7007
        %v7009 = vpop.f32.mrb[0].mxu0
        %v7010 = vadd.f32 %v6967, %v7009
        %v7011 = vpop.f32.mrb[0].mxu0
        %v7012 = vadd.f32 %v6969, %v7011
        %7013 = vdwg.mxu0
        %7014 = vmatprep.subr.bf16.mxu0 %v6271
        %7015 = vmatpush1.bf16.msra.mxu0 %v6270
        %7016 = vmatprep.subr.bf16.mxu0 %v6283
        %7017 = vmatpush1.bf16.msra.mxu0 %v6282
        %7018 = vmatprep.subr.bf16.mxu0 %v6295
        %7019 = vmatpush1.bf16.msra.mxu0 %v6294
        %7020 = vmatprep.subr.bf16.mxu0 %v6307
        %7021 = vmatpush1.bf16.msra.mxu0 %v6306
        %7022 = vmatprep.subr.bf16.mxu0 %v6319
        %7023 = vmatpush1.bf16.msra.mxu0 %v6318
        %7024 = vmatprep.subr.bf16.mxu0 %v6331
        %7025 = vmatpush1.bf16.msra.mxu0 %v6330
        %7026 = vmatprep.subr.bf16.mxu0 %v6343
        %7027 = vmatpush1.bf16.msra.mxu0 %v6342
        %7028 = vmatprep.subr.bf16.mxu0 %v6355
        %7029 = vmatpush1.bf16.msra.mxu0 %v6354
        %7030 = vmatprep.subr.bf16.mxu0 %v6367
        %7031 = vmatpush1.bf16.msra.mxu0 %v6366
        %7032 = vmatprep.subr.bf16.mxu0 %v6379
        %7033 = vmatpush1.bf16.msra.mxu0 %v6378
        %7034 = vmatprep.subr.bf16.mxu0 %v6391
        %7035 = vmatpush1.bf16.msra.mxu0 %v6390
        %7036 = vmatprep.subr.bf16.mxu0 %v6403
        %7037 = vmatpush1.bf16.msra.mxu0 %v6402
        %7038 = vmatprep.subr.bf16.mxu0 %v6415
        %7039 = vmatpush1.bf16.msra.mxu0 %v6414
        %7040 = vmatprep.subr.bf16.mxu0 %v6427
        %7041 = vmatpush1.bf16.msra.mxu0 %v6426
        %7042 = vmatprep.subr.bf16.mxu0 %v6439
        %7043 = vmatpush1.bf16.msra.mxu0 %v6438
        %7044 = vmatprep.subr.bf16.mxu0 %v6451
        %7045 = vmatpush1.bf16.msra.mxu0 %v6450
        %7046 = vmatprep.mubr.bf16.mxu0 %v5048
        %7047 = vmatmul.mubr.bf16.gmra.mrb[0].mxu0 %v5047
        %v7048 = vpop.f32.mrb[0].mxu0
        %v7049 = vadd.f32 %v5361, %v7048
        %v7050 = vpop.f32.mrb[0].mxu0
        %v7051 = vadd.f32 %v5365, %v7050
        %v7052 = vpop.f32.mrb[0].mxu0
        %v7053 = vadd.f32 %v5361, %v7052
        %v7054 = vpop.f32.mrb[0].mxu0
        %v7055 = vadd.f32 %v5365, %v7054
        %7056 = vdwg.mxu0
        %7057 = vmatprep.subr.bf16.mxu0 %v6463
        %7058 = vmatpush1.bf16.msra.mxu0 %v6462
        %7059 = vmatprep.subr.bf16.mxu0 %v6475
        %7060 = vmatpush1.bf16.msra.mxu0 %v6474
        %7061 = vmatprep.subr.bf16.mxu0 %v6487
        %7062 = vmatpush1.bf16.msra.mxu0 %v6486
        %7063 = vmatprep.subr.bf16.mxu0 %v6499
        %7064 = vmatpush1.bf16.msra.mxu0 %v6498
        %7065 = vmatprep.subr.bf16.mxu0 %v6511
        %7066 = vmatpush1.bf16.msra.mxu0 %v6510
        %7067 = vmatprep.subr.bf16.mxu0 %v6523
        %7068 = vmatpush1.bf16.msra.mxu0 %v6522
        %7069 = vmatprep.subr.bf16.mxu0 %v6535
        %7070 = vmatpush1.bf16.msra.mxu0 %v6534
        %7071 = vmatprep.subr.bf16.mxu0 %v6547
        %7072 = vmatpush1.bf16.msra.mxu0 %v6546
        %7073 = vmatprep.subr.bf16.mxu0 0
        %7074 = vmatpush1.bf16.msra.mxu0 0
        %7075 = vmatprep.subr.bf16.mxu0 0
        %7076 = vmatpush1.bf16.msra.mxu0 0
        %7077 = vmatprep.subr.bf16.mxu0 0
        %7078 = vmatpush1.bf16.msra.mxu0 0
        %7079 = vmatprep.subr.bf16.mxu0 0
        %7080 = vmatpush1.bf16.msra.mxu0 0
        %7081 = vmatprep.subr.bf16.mxu0 0
        %7082 = vmatpush1.bf16.msra.mxu0 0
        %7083 = vmatprep.subr.bf16.mxu0 0
        %7084 = vmatpush1.bf16.msra.mxu0 0
        %7085 = vmatprep.subr.bf16.mxu0 0
        %7086 = vmatpush1.bf16.msra.mxu0 0
        %7087 = vmatprep.subr.bf16.mxu0 0
        %7088 = vmatpush1.bf16.msra.mxu0 0
        %7089 = vmatprep.mubr.bf16.mxu0 0
        %7090 = vmatmul.mubr.bf16.gmra.mrb[0].mxu0 %v5049
        %v7091 = vpop.f32.mrb[0].mxu0
        %v7092 = vadd.f32 %v7049, %v7091
        %v7093 = vpop.f32.mrb[0].mxu0
        %v7094 = vadd.f32 %v7051, %v7093
        %v7095 = vpop.f32.mrb[0].mxu0
        %v7096 = vadd.f32 %v7053, %v7095
        %v7097 = vpop.f32.mrb[0].mxu0
        %v7098 = vadd.f32 %v7055, %v7097
        %7099 = vdwg.mxu0
        %7100 = vmatprep.subr.bf16.mxu0 %v6273
        %7101 = vmatpush1.bf16.msra.mxu0 %v6272
        %7102 = vmatprep.subr.bf16.mxu0 %v6285
        %7103 = vmatpush1.bf16.msra.mxu0 %v6284
        %7104 = vmatprep.subr.bf16.mxu0 %v6297
        %7105 = vmatpush1.bf16.msra.mxu0 %v6296
        %7106 = vmatprep.subr.bf16.mxu0 %v6309
        %7107 = vmatpush1.bf16.msra.mxu0 %v6308
        %7108 = vmatprep.subr.bf16.mxu0 %v6321
        %7109 = vmatpush1.bf16.msra.mxu0 %v6320
        %7110 = vmatprep.subr.bf16.mxu0 %v6333
        %7111 = vmatpush1.bf16.msra.mxu0 %v6332
        %7112 = vmatprep.subr.bf16.mxu0 %v6345
        %7113 = vmatpush1.bf16.msra.mxu0 %v6344
        %7114 = vmatprep.subr.bf16.mxu0 %v6357
        %7115 = vmatpush1.bf16.msra.mxu0 %v6356
        %7116 = vmatprep.subr.bf16.mxu0 %v6369
        %7117 = vmatpush1.bf16.msra.mxu0 %v6368
        %7118 = vmatprep.subr.bf16.mxu0 %v6381
        %7119 = vmatpush1.bf16.msra.mxu0 %v6380
        %7120 = vmatprep.subr.bf16.mxu0 %v6393
        %7121 = vmatpush1.bf16.msra.mxu0 %v6392
        %7122 = vmatprep.subr.bf16.mxu0 %v6405
        %7123 = vmatpush1.bf16.msra.mxu0 %v6404
        %7124 = vmatprep.subr.bf16.mxu0 %v6417
        %7125 = vmatpush1.bf16.msra.mxu0 %v6416
        %7126 = vmatprep.subr.bf16.mxu0 %v6429
        %7127 = vmatpush1.bf16.msra.mxu0 %v6428
        %7128 = vmatprep.subr.bf16.mxu0 %v6441
        %7129 = vmatpush1.bf16.msra.mxu0 %v6440
        %7130 = vmatprep.subr.bf16.mxu0 %v6453
        %7131 = vmatpush1.bf16.msra.mxu0 %v6452
        %7132 = vmatprep.mubr.bf16.mxu0 %v5048
        %7133 = vmatmul.mubr.bf16.gmra.mrb[0].mxu0 %v5047
        %v7134 = vpop.f32.mrb[0].mxu0
        %v7135 = vadd.f32 %v5369, %v7134
        %v7136 = vpop.f32.mrb[0].mxu0
        %v7137 = vadd.f32 %v5373, %v7136
        %v7138 = vpop.f32.mrb[0].mxu0
        %v7139 = vadd.f32 %v5369, %v7138
        %v7140 = vpop.f32.mrb[0].mxu0
        %v7141 = vadd.f32 %v5373, %v7140
        %7142 = vdwg.mxu0
        %7143 = vmatprep.subr.bf16.mxu0 %v6465
        %7144 = vmatpush1.bf16.msra.mxu0 %v6464
        %7145 = vmatprep.subr.bf16.mxu0 %v6477
        %7146 = vmatpush1.bf16.msra.mxu0 %v6476
        %7147 = vmatprep.subr.bf16.mxu0 %v6489
        %7148 = vmatpush1.bf16.msra.mxu0 %v6488
        %7149 = vmatprep.subr.bf16.mxu0 %v6501
        %7150 = vmatpush1.bf16.msra.mxu0 %v6500
        %7151 = vmatprep.subr.bf16.mxu0 %v6513
        %7152 = vmatpush1.bf16.msra.mxu0 %v6512
        %7153 = vmatprep.subr.bf16.mxu0 %v6525
        %7154 = vmatpush1.bf16.msra.mxu0 %v6524
        %7155 = vmatprep.subr.bf16.mxu0 %v6537
        %7156 = vmatpush1.bf16.msra.mxu0 %v6536
        %7157 = vmatprep.subr.bf16.mxu0 %v6549
        %7158 = vmatpush1.bf16.msra.mxu0 %v6548
        %7159 = vmatprep.subr.bf16.mxu0 0
        %7160 = vmatpush1.bf16.msra.mxu0 0
        %7161 = vmatprep.subr.bf16.mxu0 0
        %7162 = vmatpush1.bf16.msra.mxu0 0
        %7163 = vmatprep.subr.bf16.mxu0 0
        %7164 = vmatpush1.bf16.msra.mxu0 0
        %7165 = vmatprep.subr.bf16.mxu0 0
        %7166 = vmatpush1.bf16.msra.mxu0 0
        %7167 = vmatprep.subr.bf16.mxu0 0
        %7168 = vmatpush1.bf16.msra.mxu0 0
        %7169 = vmatprep.subr.bf16.mxu0 0
        %7170 = vmatpush1.bf16.msra.mxu0 0
        %7171 = vmatprep.subr.bf16.mxu0 0
        %7172 = vmatpush1.bf16.msra.mxu0 0
        %7173 = vmatprep.subr.bf16.mxu0 0
        %7174 = vmatpush1.bf16.msra.mxu0 0
        %7175 = vmatprep.mubr.bf16.mxu0 0
        %7176 = vmatmul.mubr.bf16.gmra.mrb[0].mxu0 %v5049
        %v7177 = vpop.f32.mrb[0].mxu0
        %v7178 = vadd.f32 %v7135, %v7177
        %v7179 = vpop.f32.mrb[0].mxu0
        %v7180 = vadd.f32 %v7137, %v7179
        %v7181 = vpop.f32.mrb[0].mxu0
        %v7182 = vadd.f32 %v7139, %v7181
        %v7183 = vpop.f32.mrb[0].mxu0
        %v7184 = vadd.f32 %v7141, %v7183
        %7185 = vdwg.mxu0
        %7186 = vmatprep.subr.bf16.mxu0 %v6275
        %7187 = vmatpush1.bf16.msra.mxu0 %v6274
        %7188 = vmatprep.subr.bf16.mxu0 %v6287
        %7189 = vmatpush1.bf16.msra.mxu0 %v6286
        %7190 = vmatprep.subr.bf16.mxu0 %v6299
        %7191 = vmatpush1.bf16.msra.mxu0 %v6298
        %7192 = vmatprep.subr.bf16.mxu0 %v6311
        %7193 = vmatpush1.bf16.msra.mxu0 %v6310
        %7194 = vmatprep.subr.bf16.mxu0 %v6323
        %7195 = vmatpush1.bf16.msra.mxu0 %v6322
        %7196 = vmatprep.subr.bf16.mxu0 %v6335
        %7197 = vmatpush1.bf16.msra.mxu0 %v6334
        %7198 = vmatprep.subr.bf16.mxu0 %v6347
        %7199 = vmatpush1.bf16.msra.mxu0 %v6346
        %7200 = vmatprep.subr.bf16.mxu0 %v6359
        %7201 = vmatpush1.bf16.msra.mxu0 %v6358
        %7202 = vmatprep.subr.bf16.mxu0 %v6371
        %7203 = vmatpush1.bf16.msra.mxu0 %v6370
        %7204 = vmatprep.subr.bf16.mxu0 %v6383
        %7205 = vmatpush1.bf16.msra.mxu0 %v6382
        %7206 = vmatprep.subr.bf16.mxu0 %v6395
        %7207 = vmatpush1.bf16.msra.mxu0 %v6394
        %7208 = vmatprep.subr.bf16.mxu0 %v6407
        %7209 = vmatpush1.bf16.msra.mxu0 %v6406
        %7210 = vmatprep.subr.bf16.mxu0 %v6419
        %7211 = vmatpush1.bf16.msra.mxu0 %v6418
        %7212 = vmatprep.subr.bf16.mxu0 %v6431
        %7213 = vmatpush1.bf16.msra.mxu0 %v6430
        %7214 = vmatprep.subr.bf16.mxu0 %v6443
        %7215 = vmatpush1.bf16.msra.mxu0 %v6442
        %7216 = vmatprep.subr.bf16.mxu0 %v6455
        %7217 = vmatpush1.bf16.msra.mxu0 %v6454
        %7218 = vmatprep.mubr.bf16.mxu0 %v5048
        %7219 = vmatmul.mubr.bf16.gmra.mrb[0].mxu0 %v5047
        %v7220 = vpop.f32.mrb[0].mxu0
        %v7221 = vadd.f32 %v5377, %v7220
        %v7222 = vpop.f32.mrb[0].mxu0
        %v7223 = vadd.f32 %v5381, %v7222
        %v7224 = vpop.f32.mrb[0].mxu0
        %v7225 = vadd.f32 %v5377, %v7224
        %v7226 = vpop.f32.mrb[0].mxu0
        %v7227 = vadd.f32 %v5381, %v7226
        %7228 = vdwg.mxu0
        %7229 = vmatprep.subr.bf16.mxu0 %v6467
        %7230 = vmatpush1.bf16.msra.mxu0 %v6466
        %7231 = vmatprep.subr.bf16.mxu0 %v6479
        %7232 = vmatpush1.bf16.msra.mxu0 %v6478
        %7233 = vmatprep.subr.bf16.mxu0 %v6491
        %7234 = vmatpush1.bf16.msra.mxu0 %v6490
        %7235 = vmatprep.subr.bf16.mxu0 %v6503
        %7236 = vmatpush1.bf16.msra.mxu0 %v6502
        %7237 = vmatprep.subr.bf16.mxu0 %v6515
        %7238 = vmatpush1.bf16.msra.mxu0 %v6514
        %7239 = vmatprep.subr.bf16.mxu0 %v6527
        %7240 = vmatpush1.bf16.msra.mxu0 %v6526
        %7241 = vmatprep.subr.bf16.mxu0 %v6539
        %7242 = vmatpush1.bf16.msra.mxu0 %v6538
        %7243 = vmatprep.subr.bf16.mxu0 %v6551
        %7244 = vmatpush1.bf16.msra.mxu0 %v6550
        %7245 = vmatprep.subr.bf16.mxu0 0
        %7246 = vmatpush1.bf16.msra.mxu0 0
        %7247 = vmatprep.subr.bf16.mxu0 0
        %7248 = vmatpush1.bf16.msra.mxu0 0
        %7249 = vmatprep.subr.bf16.mxu0 0
        %7250 = vmatpush1.bf16.msra.mxu0 0
        %7251 = vmatprep.subr.bf16.mxu0 0
        %7252 = vmatpush1.bf16.msra.mxu0 0
        %7253 = vmatprep.subr.bf16.mxu0 0
        %7254 = vmatpush1.bf16.msra.mxu0 0
        %7255 = vmatprep.subr.bf16.mxu0 0
        %7256 = vmatpush1.bf16.msra.mxu0 0
        %7257 = vmatprep.subr.bf16.mxu0 0
        %7258 = vmatpush1.bf16.msra.mxu0 0
        %7259 = vmatprep.subr.bf16.mxu0 0
        %7260 = vmatpush1.bf16.msra.mxu0 0
        %7261 = vmatprep.mubr.bf16.mxu0 0
        %7262 = vmatmul.mubr.bf16.gmra.mrb[0].mxu0 %v5049
        %v7263 = vpop.f32.mrb[0].mxu0
        %v7264 = vadd.f32 %v7221, %v7263
        %v7265 = vpop.f32.mrb[0].mxu0
        %v7266 = vadd.f32 %v7223, %v7265
        %v7267 = vpop.f32.mrb[0].mxu0
        %v7268 = vadd.f32 %v7225, %v7267
        %v7269 = vpop.f32.mrb[0].mxu0
        %v7270 = vadd.f32 %v7227, %v7269
        %7271 = vdwg.mxu0
        %7272 = vmatprep.subr.bf16.mxu0 %v6277
        %7273 = vmatpush1.bf16.msra.mxu0 %v6276
        %7274 = vmatprep.subr.bf16.mxu0 %v6289
        %7275 = vmatpush1.bf16.msra.mxu0 %v6288
        %7276 = vmatprep.subr.bf16.mxu0 %v6301
        %7277 = vmatpush1.bf16.msra.mxu0 %v6300
        %7278 = vmatprep.subr.bf16.mxu0 %v6313
        %7279 = vmatpush1.bf16.msra.mxu0 %v6312
        %7280 = vmatprep.subr.bf16.mxu0 %v6325
        %7281 = vmatpush1.bf16.msra.mxu0 %v6324
        %7282 = vmatprep.subr.bf16.mxu0 %v6337
        %7283 = vmatpush1.bf16.msra.mxu0 %v6336
        %7284 = vmatprep.subr.bf16.mxu0 %v6349
        %7285 = vmatpush1.bf16.msra.mxu0 %v6348
        %7286 = vmatprep.subr.bf16.mxu0 %v6361
        %7287 = vmatpush1.bf16.msra.mxu0 %v6360
        %7288 = vmatprep.subr.bf16.mxu0 %v6373
        %7289 = vmatpush1.bf16.msra.mxu0 %v6372
        %7290 = vmatprep.subr.bf16.mxu0 %v6385
        %7291 = vmatpush1.bf16.msra.mxu0 %v6384
        %7292 = vmatprep.subr.bf16.mxu0 %v6397
        %7293 = vmatpush1.bf16.msra.mxu0 %v6396
        %7294 = vmatprep.subr.bf16.mxu0 %v6409
        %7295 = vmatpush1.bf16.msra.mxu0 %v6408
        %7296 = vmatprep.subr.bf16.mxu0 %v6421
        %7297 = vmatpush1.bf16.msra.mxu0 %v6420
        %7298 = vmatprep.subr.bf16.mxu0 %v6433
        %7299 = vmatpush1.bf16.msra.mxu0 %v6432
        %7300 = vmatprep.subr.bf16.mxu0 %v6445
        %7301 = vmatpush1.bf16.msra.mxu0 %v6444
        %7302 = vmatprep.subr.bf16.mxu0 %v6457
        %7303 = vmatpush1.bf16.msra.mxu0 %v6456
        %7304 = vmatprep.mubr.bf16.mxu0 %v5048
        %7305 = vmatmul.mubr.bf16.gmra.mrb[0].mxu0 %v5047
        %v7306 = vpop.f32.mrb[0].mxu0
        %v7307 = vadd.f32 %v5385, %v7306
        %v7308 = vpop.f32.mrb[0].mxu0
        %v7309 = vadd.f32 %v5389, %v7308
        %v7310 = vpop.f32.mrb[0].mxu0
        %v7311 = vadd.f32 %v5385, %v7310
        %v7312 = vpop.f32.mrb[0].mxu0
        %v7313 = vadd.f32 %v5389, %v7312
        %7314 = vdwg.mxu0
        %7315 = vmatprep.subr.bf16.mxu0 %v6469
        %7316 = vmatpush1.bf16.msra.mxu0 %v6468
        %7317 = vmatprep.subr.bf16.mxu0 %v6481
        %7318 = vmatpush1.bf16.msra.mxu0 %v6480
        %7319 = vmatprep.subr.bf16.mxu0 %v6493
        %7320 = vmatpush1.bf16.msra.mxu0 %v6492
        %7321 = vmatprep.subr.bf16.mxu0 %v6505
        %7322 = vmatpush1.bf16.msra.mxu0 %v6504
        %7323 = vmatprep.subr.bf16.mxu0 %v6517
        %7324 = vmatpush1.bf16.msra.mxu0 %v6516
        %7325 = vmatprep.subr.bf16.mxu0 %v6529
        %7326 = vmatpush1.bf16.msra.mxu0 %v6528
        %7327 = vmatprep.subr.bf16.mxu0 %v6541
        %7328 = vmatpush1.bf16.msra.mxu0 %v6540
        %7329 = vmatprep.subr.bf16.mxu0 %v6553
        %7330 = vmatpush1.bf16.msra.mxu0 %v6552
        %7331 = vmatprep.subr.bf16.mxu0 0
        %7332 = vmatpush1.bf16.msra.mxu0 0
        %7333 = vmatprep.subr.bf16.mxu0 0
        %7334 = vmatpush1.bf16.msra.mxu0 0
        %7335 = vmatprep.subr.bf16.mxu0 0
        %7336 = vmatpush1.bf16.msra.mxu0 0
        %7337 = vmatprep.subr.bf16.mxu0 0
        %7338 = vmatpush1.bf16.msra.mxu0 0
        %7339 = vmatprep.subr.bf16.mxu0 0
        %7340 = vmatpush1.bf16.msra.mxu0 0
        %7341 = vmatprep.subr.bf16.mxu0 0
        %7342 = vmatpush1.bf16.msra.mxu0 0
        %7343 = vmatprep.subr.bf16.mxu0 0
        %7344 = vmatpush1.bf16.msra.mxu0 0
        %7345 = vmatprep.subr.bf16.mxu0 0
        %7346 = vmatpush1.bf16.msra.mxu0 0
        %7347 = vmatprep.mubr.bf16.mxu0 0
        %7348 = vmatmul.mubr.bf16.gmra.mrb[0].mxu0 %v5049
        %v7349 = vpop.f32.mrb[0].mxu0
        %v7350 = vadd.f32 %v7307, %v7349
        %v7351 = vpop.f32.mrb[0].mxu0
        %v7352 = vadd.f32 %v7309, %v7351
        %v7353 = vpop.f32.mrb[0].mxu0
        %v7354 = vadd.f32 %v7311, %v7353
        %v7355 = vpop.f32.mrb[0].mxu0
        %v7356 = vadd.f32 %v7313, %v7355
        %7357 = vdwg.mxu0
        %v7358 = vmax.f32 %v6920, 0.0
        %v7359 = vmax.f32 %v6922, 0.0
        %v7360 = vmax.f32 %v7006, 0.0
        %v7361 = vmax.f32 %v7008, 0.0
        %v7362 = vmax.f32 %v7092, 0.0
        %v7363 = vmax.f32 %v7094, 0.0
        %v7364 = vmax.f32 %v7178, 0.0
        %v7365 = vmax.f32 %v7180, 0.0
        %v7366 = vmax.f32 %v7264, 0.0
        %v7367 = vmax.f32 %v7266, 0.0
        %v7368 = vmax.f32 %v7350, 0.0
        %v7369 = vmax.f32 %v7352, 0.0
        %v7370 = vmax.f32 %v6924, 0.0
        %v7371 = vmax.f32 %v6926, 0.0
        %v7372 = vmax.f32 %v7010, 0.0
        %v7373 = vmax.f32 %v7012, 0.0
        %v7374 = vmax.f32 %v7096, 0.0
        %v7375 = vmax.f32 %v7098, 0.0
        %v7376 = vmax.f32 %v7182, 0.0
        %v7377 = vmax.f32 %v7184, 0.0
        %v7378 = vmax.f32 %v7268, 0.0
        %v7379 = vmax.f32 %v7270, 0.0
        %v7380 = vmax.f32 %v7354, 0.0
        %v7381 = vmax.f32 %v7356, 0.0
        %v7382 = vpack.c.bf16 %v7370, %v7358
        %v7383 = vpack.c.bf16 %v7371, %v7359
        %v7384 = vpack.c.bf16 %v7372, %v7360
        %v7385 = vpack.c.bf16 %v7373, %v7361
        %v7386 = vpack.c.bf16 %v7374, %v7362
        %v7387 = vpack.c.bf16 %v7375, %v7363
        %v7388 = vpack.c.bf16 %v7376, %v7364
        %v7389 = vpack.c.bf16 %v7377, %v7365
        %v7390 = vpack.c.bf16 %v7378, %v7366
        %v7391 = vpack.c.bf16 %v7379, %v7367
        %v7392 = vpack.c.bf16 %v7380, %v7368
        %v7393 = vpack.c.bf16 %v7381, %v7369
        %v7394 = vld [vmem:[%s701] sm:$0xff]
        %v7395 = vld [vmem:[%s701 + $0x8] sm:$0xf]
        %v7396 = vld [vmem:[%s701 + $0xc] sm:$0xff]
        %v7397 = vld [vmem:[%s701 + $0x14] sm:$0xf]
        %v7398 = vld [vmem:[%s701 + $0x18] sm:$0xff]
        %v7399 = vld [vmem:[%s701 + $0x20] sm:$0xf]
        %v7400 = vld [vmem:[%s701 + $0x24] sm:$0xff]
        %v7401 = vld [vmem:[%s701 + $0x2c] sm:$0xf]
        %v7402 = vld [vmem:[%s701 + $0x30] sm:$0xff]
        %v7403 = vld [vmem:[%s701 + $0x38] sm:$0xf]
        %v7404 = vld [vmem:[%s701 + $0x3c] sm:$0xff]
        %v7405 = vld [vmem:[%s701 + $0x44] sm:$0xf]
        %v7406 = vld [vmem:[%s701 + $0x48] sm:$0xff]
        %v7407 = vld [vmem:[%s701 + $0x50] sm:$0xf]
        %v7408 = vld [vmem:[%s701 + $0x54] sm:$0xff]
        %v7409 = vld [vmem:[%s701 + $0x5c] sm:$0xf]
        %v7410 = vld [vmem:[%s701 + $0x60] sm:$0xff]
        %v7411 = vld [vmem:[%s701 + $0x68] sm:$0xf]
        %v7412 = vld [vmem:[%s701 + $0x6c] sm:$0xff]
        %v7413 = vld [vmem:[%s701 + $0x74] sm:$0xf]
        %v7414 = vld [vmem:[%s701 + $0x78] sm:$0xff]
        %v7415 = vld [vmem:[%s701 + $0x80] sm:$0xf]
        %v7416 = vld [vmem:[%s701 + $0x84] sm:$0xff]
        %v7417 = vld [vmem:[%s701 + $0x8c] sm:$0xf]
        %v7418 = vld [vmem:[%s701 + $0x90] sm:$0xff]
        %v7419 = vld [vmem:[%s701 + $0x98] sm:$0xf]
        %v7420 = vld [vmem:[%s701 + $0x9c] sm:$0xff]
        %v7421 = vld [vmem:[%s701 + $0xa4] sm:$0xf]
        %v7422 = vld [vmem:[%s701 + $0xa8] sm:$0xff]
        %v7423 = vld [vmem:[%s701 + $0xb0] sm:$0xf]
        %v7424 = vld [vmem:[%s701 + $0xb4] sm:$0xff]
        %v7425 = vld [vmem:[%s701 + $0xbc] sm:$0xf]
        %v7426 = vld [vmem:[%s701 + $0xc0] sm:$0xff]
        %v7427 = vld [vmem:[%s701 + $0xc8] sm:$0xf]
        %v7428 = vld [vmem:[%s701 + $0xcc] sm:$0xff]
        %v7429 = vld [vmem:[%s701 + $0xd4] sm:$0xf]
        %v7430 = vld [vmem:[%s701 + $0xd8] sm:$0xff]
        %v7431 = vld [vmem:[%s701 + $0xe0] sm:$0xf]
        %v7432 = vld [vmem:[%s701 + $0xe4] sm:$0xff]
        %v7433 = vld [vmem:[%s701 + $0xec] sm:$0xf]
        %v7434 = vld [vmem:[%s701 + $0xf0] sm:$0xff]
        %v7435 = vld [vmem:[%s701 + $0xf8] sm:$0xf]
        %v7436 = vld [vmem:[%s701 + $0xfc] sm:$0xff]
        %v7437 = vld [vmem:[%s701 + $0x104] sm:$0xf]
        %v7438 = vld [vmem:[%s701 + $0x108] sm:$0xff]
        %v7439 = vld [vmem:[%s701 + $0x110] sm:$0xf]
        %v7440 = vld [vmem:[%s701 + $0x114] sm:$0xff]
        %v7441 = vld [vmem:[%s701 + $0x11c] sm:$0xf]
        %v7442 = vld [vmem:[%s701 + $0x120] sm:$0xff]
        %v7443 = vld [vmem:[%s701 + $0x128] sm:$0xf]
        %v7444 = vld [vmem:[%s701 + $0x12c] sm:$0xff]
        %v7445 = vld [vmem:[%s701 + $0x134] sm:$0xf]
        %v7446 = vld [vmem:[%s701 + $0x138] sm:$0xff]
        %v7447 = vld [vmem:[%s701 + $0x140] sm:$0xf]
        %v7448 = vld [vmem:[%s701 + $0x144] sm:$0xff]
        %v7449 = vld [vmem:[%s701 + $0x14c] sm:$0xf]
        %v7450 = vld [vmem:[%s701 + $0x150] sm:$0xff]
        %v7451 = vld [vmem:[%s701 + $0x158] sm:$0xf]
        %v7452 = vld [vmem:[%s701 + $0x15c] sm:$0xff]
        %v7453 = vld [vmem:[%s701 + $0x164] sm:$0xf]
        %v7454 = vld [vmem:[%s701 + $0x168] sm:$0xff]
        %v7455 = vld [vmem:[%s701 + $0x170] sm:$0xf]
        %v7456 = vld [vmem:[%s701 + $0x174] sm:$0xff]
        %v7457 = vld [vmem:[%s701 + $0x17c] sm:$0xf]
        %v7458 = vld [vmem:[%s701 + $0x180] sm:$0xff]
        %v7459 = vld [vmem:[%s701 + $0x188] sm:$0xf]
        %v7460 = vld [vmem:[%s701 + $0x18c] sm:$0xff]
        %v7461 = vld [vmem:[%s701 + $0x194] sm:$0xf]
        %v7462 = vld [vmem:[%s701 + $0x198] sm:$0xff]
        %v7463 = vld [vmem:[%s701 + $0x1a0] sm:$0xf]
        %v7464 = vld [vmem:[%s701 + $0x1a4] sm:$0xff]
        %v7465 = vld [vmem:[%s701 + $0x1ac] sm:$0xf]
        %v7466 = vld [vmem:[%s701 + $0x1b0] sm:$0xff]
        %v7467 = vld [vmem:[%s701 + $0x1b8] sm:$0xf]
        %v7468 = vld [vmem:[%s701 + $0x1bc] sm:$0xff]
        %v7469 = vld [vmem:[%s701 + $0x1c4] sm:$0xf]
        %v7470 = vld [vmem:[%s701 + $0x1c8] sm:$0xff]
        %v7471 = vld [vmem:[%s701 + $0x1d0] sm:$0xf]
        %v7472 = vld [vmem:[%s701 + $0x1d4] sm:$0xff]
        %v7473 = vld [vmem:[%s701 + $0x1dc] sm:$0xf]
        %v7474 = vld [vmem:[%s701 + $0x1e0] sm:$0xff]
        %v7475 = vld [vmem:[%s701 + $0x1e8] sm:$0xf]
        %v7476 = vld [vmem:[%s701 + $0x1ec] sm:$0xff]
        %v7477 = vld [vmem:[%s701 + $0x1f4] sm:$0xf]
        %v7478 = vld [vmem:[%s701 + $0x1f8] sm:$0xff]
        %v7479 = vld [vmem:[%s701 + $0x200] sm:$0xf]
        %v7480 = vld [vmem:[%s701 + $0x204] sm:$0xff]
        %v7481 = vld [vmem:[%s701 + $0x20c] sm:$0xf]
        %v7482 = vld [vmem:[%s701 + $0x210] sm:$0xff]
        %v7483 = vld [vmem:[%s701 + $0x218] sm:$0xf]
        %v7484 = vld [vmem:[%s701 + $0x21c] sm:$0xff]
        %v7485 = vld [vmem:[%s701 + $0x224] sm:$0xf]
        %v7486 = vld [vmem:[%s701 + $0x228] sm:$0xff]
        %v7487 = vld [vmem:[%s701 + $0x230] sm:$0xf]
        %v7488 = vld [vmem:[%s701 + $0x234] sm:$0xff]
        %v7489 = vld [vmem:[%s701 + $0x23c] sm:$0xf]
        %v7490 = vld [vmem:[%s701 + $0x240] sm:$0xff]
        %v7491 = vld [vmem:[%s701 + $0x248] sm:$0xf]
        %v7492 = vld [vmem:[%s701 + $0x24c] sm:$0xff]
        %v7493 = vld [vmem:[%s701 + $0x254] sm:$0xf]
        %v7494 = vld [vmem:[%s701 + $0x258] sm:$0xff]
        %v7495 = vld [vmem:[%s701 + $0x260] sm:$0xf]
        %v7496 = vld [vmem:[%s701 + $0x264] sm:$0xff]
        %v7497 = vld [vmem:[%s701 + $0x26c] sm:$0xf]
        %v7498 = vld [vmem:[%s701 + $0x270] sm:$0xff]
        %v7499 = vld [vmem:[%s701 + $0x278] sm:$0xf]
        %v7500 = vld [vmem:[%s701 + $0x27c] sm:$0xff]
        %v7501 = vld [vmem:[%s701 + $0x284] sm:$0xf]
        %v7502 = vld [vmem:[%s701 + $0x288] sm:$0xff]
        %v7503 = vld [vmem:[%s701 + $0x290] sm:$0xf]
        %v7504 = vld [vmem:[%s701 + $0x294] sm:$0xff]
        %v7505 = vld [vmem:[%s701 + $0x29c] sm:$0xf]
        %v7506 = vld [vmem:[%s701 + $0x2a0] sm:$0xff]
        %v7507 = vld [vmem:[%s701 + $0x2a8] sm:$0xf]
        %v7508 = vld [vmem:[%s701 + $0x2ac] sm:$0xff]
        %v7509 = vld [vmem:[%s701 + $0x2b4] sm:$0xf]
        %v7510 = vld [vmem:[%s701 + $0x2b8] sm:$0xff]
        %v7511 = vld [vmem:[%s701 + $0x2c0] sm:$0xf]
        %v7512 = vld [vmem:[%s701 + $0x2c4] sm:$0xff]
        %v7513 = vld [vmem:[%s701 + $0x2cc] sm:$0xf]
        %v7514 = vld [vmem:[%s701 + $0x2d0] sm:$0xff]
        %v7515 = vld [vmem:[%s701 + $0x2d8] sm:$0xf]
        %v7516 = vld [vmem:[%s701 + $0x2dc] sm:$0xff]
        %v7517 = vld [vmem:[%s701 + $0x2e4] sm:$0xf]
        %v7518 = vld [vmem:[%s701 + $0x2e8] sm:$0xff]
        %v7519 = vld [vmem:[%s701 + $0x2f0] sm:$0xf]
        %v7520 = vld [vmem:[%s701 + $0x2f4] sm:$0xff]
        %v7521 = vld [vmem:[%s701 + $0x2fc] sm:$0xf]
        %v7522 = vld [vmem:[%s701 + $0x300] sm:$0xff]
        %v7523 = vld [vmem:[%s701 + $0x308] sm:$0xf]
        %v7524 = vld [vmem:[%s701 + $0x30c] sm:$0xff]
        %v7525 = vld [vmem:[%s701 + $0x314] sm:$0xf]
        %v7526 = vld [vmem:[%s701 + $0x318] sm:$0xff]
        %v7527 = vld [vmem:[%s701 + $0x320] sm:$0xf]
        %v7528 = vld [vmem:[%s701 + $0x324] sm:$0xff]
        %v7529 = vld [vmem:[%s701 + $0x32c] sm:$0xf]
        %v7530 = vld [vmem:[%s701 + $0x330] sm:$0xff]
        %v7531 = vld [vmem:[%s701 + $0x338] sm:$0xf]
        %v7532 = vld [vmem:[%s701 + $0x33c] sm:$0xff]
        %v7533 = vld [vmem:[%s701 + $0x344] sm:$0xf]
        %v7534 = vld [vmem:[%s701 + $0x348] sm:$0xff]
        %v7535 = vld [vmem:[%s701 + $0x350] sm:$0xf]
        %v7536 = vld [vmem:[%s701 + $0x354] sm:$0xff]
        %v7537 = vld [vmem:[%s701 + $0x35c] sm:$0xf]
        %v7538 = vld [vmem:[%s701 + $0x360] sm:$0xff]
        %v7539 = vld [vmem:[%s701 + $0x368] sm:$0xf]
        %v7540 = vld [vmem:[%s701 + $0x36c] sm:$0xff]
        %v7541 = vld [vmem:[%s701 + $0x374] sm:$0xf]
        %v7542 = vld [vmem:[%s701 + $0x378] sm:$0xff]
        %v7543 = vld [vmem:[%s701 + $0x380] sm:$0xf]
        %v7544 = vld [vmem:[%s701 + $0x384] sm:$0xff]
        %v7545 = vld [vmem:[%s701 + $0x38c] sm:$0xf]
        %v7546 = vld [vmem:[%s701 + $0x390] sm:$0xff]
        %v7547 = vld [vmem:[%s701 + $0x398] sm:$0xf]
        %v7548 = vld [vmem:[%s701 + $0x39c] sm:$0xff]
        %v7549 = vld [vmem:[%s701 + $0x3a4] sm:$0xf]
        %v7550 = vld [vmem:[%s701 + $0x3a8] sm:$0xff]
        %v7551 = vld [vmem:[%s701 + $0x3b0] sm:$0xf]
        %v7552 = vld [vmem:[%s701 + $0x3b4] sm:$0xff]
        %v7553 = vld [vmem:[%s701 + $0x3bc] sm:$0xf]
        %v7554 = vld [vmem:[%s701 + $0x3c0] sm:$0xff]
        %v7555 = vld [vmem:[%s701 + $0x3c8] sm:$0xf]
        %v7556 = vld [vmem:[%s701 + $0x3cc] sm:$0xff]
        %v7557 = vld [vmem:[%s701 + $0x3d4] sm:$0xf]
        %v7558 = vld [vmem:[%s701 + $0x3d8] sm:$0xff]
        %v7559 = vld [vmem:[%s701 + $0x3e0] sm:$0xf]
        %v7560 = vld [vmem:[%s701 + $0x3e4] sm:$0xff]
        %v7561 = vld [vmem:[%s701 + $0x3ec] sm:$0xf]
        %v7562 = vld [vmem:[%s701 + $0x3f0] sm:$0xff]
        %v7563 = vld [vmem:[%s701 + $0x3f8] sm:$0xf]
        %v7564 = vld [vmem:[%s701 + $0x3fc] sm:$0xff]
        %v7565 = vld [vmem:[%s701 + $0x404] sm:$0xf]
        %v7566 = vld [vmem:[%s701 + $0x408] sm:$0xff]
        %v7567 = vld [vmem:[%s701 + $0x410] sm:$0xf]
        %v7568 = vld [vmem:[%s701 + $0x414] sm:$0xff]
        %v7569 = vld [vmem:[%s701 + $0x41c] sm:$0xf]
        %v7570 = vld [vmem:[%s701 + $0x420] sm:$0xff]
        %v7571 = vld [vmem:[%s701 + $0x428] sm:$0xf]
        %v7572 = vld [vmem:[%s701 + $0x42c] sm:$0xff]
        %v7573 = vld [vmem:[%s701 + $0x434] sm:$0xf]
        %v7574 = vld [vmem:[%s701 + $0x438] sm:$0xff]
        %v7575 = vld [vmem:[%s701 + $0x440] sm:$0xf]
        %v7576 = vld [vmem:[%s701 + $0x444] sm:$0xff]
        %v7577 = vld [vmem:[%s701 + $0x44c] sm:$0xf]
        %v7578 = vld [vmem:[%s701 + $0x450] sm:$0xff]
        %v7579 = vld [vmem:[%s701 + $0x458] sm:$0xf]
        %v7580 = vld [vmem:[%s701 + $0x45c] sm:$0xff]
        %v7581 = vld [vmem:[%s701 + $0x464] sm:$0xf]
        %v7582 = vld [vmem:[%s701 + $0x468] sm:$0xff]
        %v7583 = vld [vmem:[%s701 + $0x470] sm:$0xf]
        %v7584 = vld [vmem:[%s701 + $0x474] sm:$0xff]
        %v7585 = vld [vmem:[%s701 + $0x47c] sm:$0xf]
        %v7586 = vld [vmem:[%s701 + $0x480] sm:$0xff]
        %v7587 = vld [vmem:[%s701 + $0x488] sm:$0xf]
        %v7588 = vld [vmem:[%s701 + $0x48c] sm:$0xff]
        %v7589 = vld [vmem:[%s701 + $0x494] sm:$0xf]
        %v7590 = vld [vmem:[%s701 + $0x498] sm:$0xff]
        %v7591 = vld [vmem:[%s701 + $0x4a0] sm:$0xf]
        %v7592 = vld [vmem:[%s701 + $0x4a4] sm:$0xff]
        %v7593 = vld [vmem:[%s701 + $0x4ac] sm:$0xf]
        %v7594 = vld [vmem:[%s701 + $0x4b0] sm:$0xff]
        %v7595 = vld [vmem:[%s701 + $0x4b8] sm:$0xf]
        %v7596 = vld [vmem:[%s701 + $0x4bc] sm:$0xff]
        %v7597 = vld [vmem:[%s701 + $0x4c4] sm:$0xf]
        %v7598 = vld [vmem:[%s701 + $0x4c8] sm:$0xff]
        %v7599 = vld [vmem:[%s701 + $0x4d0] sm:$0xf]
        %v7600 = vld [vmem:[%s701 + $0x4d4] sm:$0xff]
        %v7601 = vld [vmem:[%s701 + $0x4dc] sm:$0xf]
        %v7602 = vld [vmem:[%s701 + $0x4e0] sm:$0xff]
        %v7603 = vld [vmem:[%s701 + $0x4e8] sm:$0xf]
        %v7604 = vld [vmem:[%s701 + $0x4ec] sm:$0xff]
        %v7605 = vld [vmem:[%s701 + $0x4f4] sm:$0xf]
        %v7606 = vld [vmem:[%s701 + $0x4f8] sm:$0xff]
        %v7607 = vld [vmem:[%s701 + $0x500] sm:$0xf]
        %v7608 = vld [vmem:[%s701 + $0x504] sm:$0xff]
        %v7609 = vld [vmem:[%s701 + $0x50c] sm:$0xf]
        %v7610 = vld [vmem:[%s701 + $0x510] sm:$0xff]
        %v7611 = vld [vmem:[%s701 + $0x518] sm:$0xf]
        %v7612 = vld [vmem:[%s701 + $0x51c] sm:$0xff]
        %v7613 = vld [vmem:[%s701 + $0x524] sm:$0xf]
        %v7614 = vld [vmem:[%s701 + $0x528] sm:$0xff]
        %v7615 = vld [vmem:[%s701 + $0x530] sm:$0xf]
        %v7616 = vld [vmem:[%s701 + $0x534] sm:$0xff]
        %v7617 = vld [vmem:[%s701 + $0x53c] sm:$0xf]
        %v7618 = vld [vmem:[%s701 + $0x540] sm:$0xff]
        %v7619 = vld [vmem:[%s701 + $0x548] sm:$0xf]
        %v7620 = vld [vmem:[%s701 + $0x54c] sm:$0xff]
        %v7621 = vld [vmem:[%s701 + $0x554] sm:$0xf]
        %v7622 = vld [vmem:[%s701 + $0x558] sm:$0xff]
        %v7623 = vld [vmem:[%s701 + $0x560] sm:$0xf]
        %v7624 = vld [vmem:[%s701 + $0x564] sm:$0xff]
        %v7625 = vld [vmem:[%s701 + $0x56c] sm:$0xf]
        %v7626 = vld [vmem:[%s701 + $0x570] sm:$0xff]
        %v7627 = vld [vmem:[%s701 + $0x578] sm:$0xf]
        %v7628 = vld [vmem:[%s701 + $0x57c] sm:$0xff]
        %v7629 = vld [vmem:[%s701 + $0x584] sm:$0xf]
        %v7630 = vld [vmem:[%s701 + $0x588] sm:$0xff]
        %v7631 = vld [vmem:[%s701 + $0x590] sm:$0xf]
        %v7632 = vld [vmem:[%s701 + $0x594] sm:$0xff]
        %v7633 = vld [vmem:[%s701 + $0x59c] sm:$0xf]
        %v7634 = vld [vmem:[%s701 + $0x5a0] sm:$0xff]
        %v7635 = vld [vmem:[%s701 + $0x5a8] sm:$0xf]
        %v7636 = vld [vmem:[%s701 + $0x5ac] sm:$0xff]
        %v7637 = vld [vmem:[%s701 + $0x5b4] sm:$0xf]
        %v7638 = vld [vmem:[%s701 + $0x5b8] sm:$0xff]
        %v7639 = vld [vmem:[%s701 + $0x5c0] sm:$0xf]
        %v7640 = vld [vmem:[%s701 + $0x5c4] sm:$0xff]
        %v7641 = vld [vmem:[%s701 + $0x5cc] sm:$0xf]
        %v7642 = vld [vmem:[%s701 + $0x5d0] sm:$0xff]
        %v7643 = vld [vmem:[%s701 + $0x5d8] sm:$0xf]
        %v7644 = vld [vmem:[%s701 + $0x5dc] sm:$0xff]
        %v7645 = vld [vmem:[%s701 + $0x5e4] sm:$0xf]
        %v7646 = vld [vmem:[%s701 + $0x5e8] sm:$0xff]
        %v7647 = vld [vmem:[%s701 + $0x5f0] sm:$0xf]
        %v7648 = vld [vmem:[%s701 + $0x5f4] sm:$0xff]
        %v7649 = vld [vmem:[%s701 + $0x5fc] sm:$0xf]
        %v7650 = vld [vmem:[%s701 + $0x600] sm:$0xff]
        %v7651 = vld [vmem:[%s701 + $0x608] sm:$0xf]
        %v7652 = vld [vmem:[%s701 + $0x60c] sm:$0xff]
        %v7653 = vld [vmem:[%s701 + $0x614] sm:$0xf]
        %v7654 = vld [vmem:[%s701 + $0x618] sm:$0xff]
        %v7655 = vld [vmem:[%s701 + $0x620] sm:$0xf]
        %v7656 = vld [vmem:[%s701 + $0x624] sm:$0xff]
        %v7657 = vld [vmem:[%s701 + $0x62c] sm:$0xf]
        %v7658 = vld [vmem:[%s701 + $0x630] sm:$0xff]
        %v7659 = vld [vmem:[%s701 + $0x638] sm:$0xf]
        %v7660 = vld [vmem:[%s701 + $0x63c] sm:$0xff]
        %v7661 = vld [vmem:[%s701 + $0x644] sm:$0xf]
        %v7662 = vld [vmem:[%s701 + $0x648] sm:$0xff]
        %v7663 = vld [vmem:[%s701 + $0x650] sm:$0xf]
        %v7664 = vld [vmem:[%s701 + $0x654] sm:$0xff]
        %v7665 = vld [vmem:[%s701 + $0x65c] sm:$0xf]
        %v7666 = vld [vmem:[%s701 + $0x660] sm:$0xff]
        %v7667 = vld [vmem:[%s701 + $0x668] sm:$0xf]
        %v7668 = vld [vmem:[%s701 + $0x66c] sm:$0xff]
        %v7669 = vld [vmem:[%s701 + $0x674] sm:$0xf]
        %v7670 = vld [vmem:[%s701 + $0x678] sm:$0xff]
        %v7671 = vld [vmem:[%s701 + $0x680] sm:$0xf]
        %v7672 = vld [vmem:[%s701 + $0x684] sm:$0xff]
        %v7673 = vld [vmem:[%s701 + $0x68c] sm:$0xf]
        %v7674 = vld [vmem:[%s701 + $0x690] sm:$0xff]
        %v7675 = vld [vmem:[%s701 + $0x698] sm:$0xf]
        %v7676 = vld [vmem:[%s701 + $0x69c] sm:$0xff]
        %v7677 = vld [vmem:[%s701 + $0x6a4] sm:$0xf]
        %v7678 = vld [vmem:[%s701 + $0x6a8] sm:$0xff]
        %v7679 = vld [vmem:[%s701 + $0x6b0] sm:$0xf]
        %v7680 = vld [vmem:[%s701 + $0x6b4] sm:$0xff]
        %v7681 = vld [vmem:[%s701 + $0x6bc] sm:$0xf]
        %v7682 = vld [vmem:[%s701 + $0x6c0] sm:$0xff]
        %v7683 = vld [vmem:[%s701 + $0x6c8] sm:$0xf]
        %v7684 = vld [vmem:[%s701 + $0x6cc] sm:$0xff]
        %v7685 = vld [vmem:[%s701 + $0x6d4] sm:$0xf]
        %v7686 = vld [vmem:[%s701 + $0x6d8] sm:$0xff]
        %v7687 = vld [vmem:[%s701 + $0x6e0] sm:$0xf]
        %v7688 = vld [vmem:[%s701 + $0x6e4] sm:$0xff]
        %v7689 = vld [vmem:[%s701 + $0x6ec] sm:$0xf]
        %v7690 = vld [vmem:[%s701 + $0x6f0] sm:$0xff]
        %v7691 = vld [vmem:[%s701 + $0x6f8] sm:$0xf]
        %v7692 = vld [vmem:[%s701 + $0x6fc] sm:$0xff]
        %v7693 = vld [vmem:[%s701 + $0x704] sm:$0xf]
        %v7694 = vld [vmem:[%s701 + $0x708] sm:$0xff]
        %v7695 = vld [vmem:[%s701 + $0x710] sm:$0xf]
        %v7696 = vld [vmem:[%s701 + $0x714] sm:$0xff]
        %v7697 = vld [vmem:[%s701 + $0x71c] sm:$0xf]
        %v7698 = vld [vmem:[%s701 + $0x720] sm:$0xff]
        %v7699 = vld [vmem:[%s701 + $0x728] sm:$0xf]
        %v7700 = vld [vmem:[%s701 + $0x72c] sm:$0xff]
        %v7701 = vld [vmem:[%s701 + $0x734] sm:$0xf]
        %v7702 = vld [vmem:[%s701 + $0x738] sm:$0xff]
        %v7703 = vld [vmem:[%s701 + $0x740] sm:$0xf]
        %v7704 = vld [vmem:[%s701 + $0x744] sm:$0xff]
        %v7705 = vld [vmem:[%s701 + $0x74c] sm:$0xf]
        %v7706 = vld [vmem:[%s701 + $0x750] sm:$0xff]
        %v7707 = vld [vmem:[%s701 + $0x758] sm:$0xf]
        %v7708 = vld [vmem:[%s701 + $0x75c] sm:$0xff]
        %v7709 = vld [vmem:[%s701 + $0x764] sm:$0xf]
        %v7710 = vld [vmem:[%s701 + $0x768] sm:$0xff]
        %v7711 = vld [vmem:[%s701 + $0x770] sm:$0xf]
        %v7712 = vld [vmem:[%s701 + $0x774] sm:$0xff]
        %v7713 = vld [vmem:[%s701 + $0x77c] sm:$0xf]
        %v7714 = vld [vmem:[%s701 + $0x780] sm:$0xff]
        %v7715 = vld [vmem:[%s701 + $0x788] sm:$0xf]
        %v7716 = vld [vmem:[%s701 + $0x78c] sm:$0xff]
        %v7717 = vld [vmem:[%s701 + $0x794] sm:$0xf]
        %v7718 = vld [vmem:[%s701 + $0x798] sm:$0xff]
        %v7719 = vld [vmem:[%s701 + $0x7a0] sm:$0xf]
        %v7720 = vld [vmem:[%s701 + $0x7a4] sm:$0xff]
        %v7721 = vld [vmem:[%s701 + $0x7ac] sm:$0xf]
        %v7722 = vld [vmem:[%s701 + $0x7b0] sm:$0xff]
        %v7723 = vld [vmem:[%s701 + $0x7b8] sm:$0xf]
        %v7724 = vld [vmem:[%s701 + $0x7bc] sm:$0xff]
        %v7725 = vld [vmem:[%s701 + $0x7c4] sm:$0xf]
        %v7726 = vld [vmem:[%s701 + $0x7c8] sm:$0xff]
        %v7727 = vld [vmem:[%s701 + $0x7d0] sm:$0xf]
        %v7728 = vld [vmem:[%s701 + $0x7d4] sm:$0xff]
        %v7729 = vld [vmem:[%s701 + $0x7dc] sm:$0xf]
        %v7730 = vld [vmem:[%s701 + $0x7e0] sm:$0xff]
        %v7731 = vld [vmem:[%s701 + $0x7e8] sm:$0xf]
        %v7732 = vld [vmem:[%s701 + $0x7ec] sm:$0xff]
        %v7733 = vld [vmem:[%s701 + $0x7f4] sm:$0xf]
        %v7734 = vld [vmem:[%s701 + $0x7f8] sm:$0xff]
        %v7735 = vld [vmem:[%s701 + $0x800] sm:$0xf]
        %v7736 = vld [vmem:[%s701 + $0x804] sm:$0xff]
        %v7737 = vld [vmem:[%s701 + $0x80c] sm:$0xf]
        %v7738 = vld [vmem:[%s701 + $0x810] sm:$0xff]
        %v7739 = vld [vmem:[%s701 + $0x818] sm:$0xf]
        %v7740 = vld [vmem:[%s701 + $0x81c] sm:$0xff]
        %v7741 = vld [vmem:[%s701 + $0x824] sm:$0xf]
        %v7742 = vld [vmem:[%s701 + $0x828] sm:$0xff]
        %v7743 = vld [vmem:[%s701 + $0x830] sm:$0xf]
        %v7744 = vld [vmem:[%s701 + $0x834] sm:$0xff]
        %v7745 = vld [vmem:[%s701 + $0x83c] sm:$0xf]
        %v7746 = vld [vmem:[%s701 + $0x840] sm:$0xff]
        %v7747 = vld [vmem:[%s701 + $0x848] sm:$0xf]
        %v7748 = vld [vmem:[%s701 + $0x84c] sm:$0xff]
        %v7749 = vld [vmem:[%s701 + $0x854] sm:$0xf]
        %v7750 = vld [vmem:[%s701 + $0x858] sm:$0xff]
        %v7751 = vld [vmem:[%s701 + $0x860] sm:$0xf]
        %v7752 = vld [vmem:[%s701 + $0x864] sm:$0xff]
        %v7753 = vld [vmem:[%s701 + $0x86c] sm:$0xf]
        %v7754 = vld [vmem:[%s701 + $0x870] sm:$0xff]
        %v7755 = vld [vmem:[%s701 + $0x878] sm:$0xf]
        %v7756 = vld [vmem:[%s701 + $0x87c] sm:$0xff]
        %v7757 = vld [vmem:[%s701 + $0x884] sm:$0xf]
        %v7758 = vld [vmem:[%s701 + $0x888] sm:$0xff]
        %v7759 = vld [vmem:[%s701 + $0x890] sm:$0xf]
        %v7760 = vld [vmem:[%s701 + $0x894] sm:$0xff]
        %v7761 = vld [vmem:[%s701 + $0x89c] sm:$0xf]
        %v7762 = vld [vmem:[%s701 + $0x8a0] sm:$0xff]
        %v7763 = vld [vmem:[%s701 + $0x8a8] sm:$0xf]
        %v7764 = vld [vmem:[%s701 + $0x8ac] sm:$0xff]
        %v7765 = vld [vmem:[%s701 + $0x8b4] sm:$0xf]
        %v7766 = vld [vmem:[%s701 + $0x8b8] sm:$0xff]
        %v7767 = vld [vmem:[%s701 + $0x8c0] sm:$0xf]
        %v7768 = vld [vmem:[%s701 + $0x8c4] sm:$0xff]
        %v7769 = vld [vmem:[%s701 + $0x8cc] sm:$0xf]
        %v7770 = vld [vmem:[%s701 + $0x8d0] sm:$0xff]
        %v7771 = vld [vmem:[%s701 + $0x8d8] sm:$0xf]
        %v7772 = vld [vmem:[%s701 + $0x8dc] sm:$0xff]
        %v7773 = vld [vmem:[%s701 + $0x8e4] sm:$0xf]
        %v7774 = vld [vmem:[%s701 + $0x8e8] sm:$0xff]
        %v7775 = vld [vmem:[%s701 + $0x8f0] sm:$0xf]
        %v7776 = vld [vmem:[%s701 + $0x8f4] sm:$0xff]
        %v7777 = vld [vmem:[%s701 + $0x8fc] sm:$0xf]
        %v7778 = vld [vmem:[%s710] sm:$0x7]
        %v7780 = vlaneseq
        %v7781 = vshrl.u32 %v7780, 7
        %v7782 = vsub.s32 0, %v7781
        %v7783 = vrot.slane %v7778, %v7782
        %v7784 = vlaneseq
        %v7785 = vshrl.u32 %v7784, 7
        %v7786 = vsub.s32 1, %v7785
        %v7787 = vrot.slane %v7778, %v7786
        %v7788 = vlaneseq
        %v7789 = vshrl.u32 %v7788, 7
        %v7790 = vsub.s32 2, %v7789
        %v7791 = vrot.slane %v7778, %v7790
        %v8179 = vunpack.c.l.b16 %v7394
        %v8180 = vunpack.c.h.b16 %v7394
        %v8181 = vunpack.c.l.b16 %v7395
        %v8182 = vunpack.c.l.b16 %v7396
        %v8183 = vunpack.c.h.b16 %v7396
        %v8184 = vunpack.c.l.b16 %v7397
        %v8185 = vunpack.c.l.b16 %v7398
        %v8186 = vunpack.c.h.b16 %v7398
        %v8187 = vunpack.c.l.b16 %v7399
        %v8188 = vunpack.c.l.b16 %v7400
        %v8189 = vunpack.c.h.b16 %v7400
        %v8190 = vunpack.c.l.b16 %v7401
        %v8191 = vunpack.c.l.b16 %v7402
        %v8192 = vunpack.c.h.b16 %v7402
        %v8193 = vunpack.c.l.b16 %v7403
        %v8194 = vunpack.c.l.b16 %v7404
        %v8195 = vunpack.c.h.b16 %v7404
        %v8196 = vunpack.c.l.b16 %v7405
        %v8197 = vunpack.c.l.b16 %v7406
        %v8198 = vunpack.c.h.b16 %v7406
        %v8199 = vunpack.c.l.b16 %v7407
        %v8200 = vunpack.c.l.b16 %v7408
        %v8201 = vunpack.c.h.b16 %v7408
        %v8202 = vunpack.c.l.b16 %v7409
        %v8203 = vunpack.c.l.b16 %v7410
        %v8204 = vunpack.c.h.b16 %v7410
        %v8205 = vunpack.c.l.b16 %v7411
        %v8206 = vunpack.c.l.b16 %v7412
        %v8207 = vunpack.c.h.b16 %v7412
        %v8208 = vunpack.c.l.b16 %v7413
        %v8209 = vunpack.c.l.b16 %v7414
        %v8210 = vunpack.c.h.b16 %v7414
        %v8211 = vunpack.c.l.b16 %v7415
        %v8212 = vunpack.c.l.b16 %v7416
        %v8213 = vunpack.c.h.b16 %v7416
        %v8214 = vunpack.c.l.b16 %v7417
        %v8215 = vunpack.c.l.b16 %v7418
        %v8216 = vunpack.c.h.b16 %v7418
        %v8217 = vunpack.c.l.b16 %v7419
        %v8218 = vunpack.c.l.b16 %v7420
        %v8219 = vunpack.c.h.b16 %v7420
        %v8220 = vunpack.c.l.b16 %v7421
        %v8221 = vunpack.c.l.b16 %v7422
        %v8222 = vunpack.c.h.b16 %v7422
        %v8223 = vunpack.c.l.b16 %v7423
        %v8224 = vunpack.c.l.b16 %v7424
        %v8225 = vunpack.c.h.b16 %v7424
        %v8226 = vunpack.c.l.b16 %v7425
        %v8227 = vunpack.c.l.b16 %v7426
        %v8228 = vunpack.c.h.b16 %v7426
        %v8229 = vunpack.c.l.b16 %v7427
        %v8230 = vunpack.c.l.b16 %v7428
        %v8231 = vunpack.c.h.b16 %v7428
        %v8232 = vunpack.c.l.b16 %v7429
        %v8233 = vunpack.c.l.b16 %v7430
        %v8234 = vunpack.c.h.b16 %v7430
        %v8235 = vunpack.c.l.b16 %v7431
        %v8236 = vunpack.c.l.b16 %v7432
        %v8237 = vunpack.c.h.b16 %v7432
        %v8238 = vunpack.c.l.b16 %v7433
        %v8239 = vunpack.c.l.b16 %v7434
        %v8240 = vunpack.c.h.b16 %v7434
        %v8241 = vunpack.c.l.b16 %v7435
        %v8242 = vunpack.c.l.b16 %v7436
        %v8243 = vunpack.c.h.b16 %v7436
        %v8244 = vunpack.c.l.b16 %v7437
        %v8245 = vunpack.c.l.b16 %v7438
        %v8246 = vunpack.c.h.b16 %v7438
        %v8247 = vunpack.c.l.b16 %v7439
        %v8248 = vunpack.c.l.b16 %v7440
        %v8249 = vunpack.c.h.b16 %v7440
        %v8250 = vunpack.c.l.b16 %v7441
        %v8251 = vunpack.c.l.b16 %v7442
        %v8252 = vunpack.c.h.b16 %v7442
        %v8253 = vunpack.c.l.b16 %v7443
        %v8254 = vunpack.c.l.b16 %v7444
        %v8255 = vunpack.c.h.b16 %v7444
        %v8256 = vunpack.c.l.b16 %v7445
        %v8257 = vunpack.c.l.b16 %v7446
        %v8258 = vunpack.c.h.b16 %v7446
        %v8259 = vunpack.c.l.b16 %v7447
        %v8260 = vunpack.c.l.b16 %v7448
        %v8261 = vunpack.c.h.b16 %v7448
        %v8262 = vunpack.c.l.b16 %v7449
        %v8263 = vunpack.c.l.b16 %v7450
        %v8264 = vunpack.c.h.b16 %v7450
        %v8265 = vunpack.c.l.b16 %v7451
        %v8266 = vunpack.c.l.b16 %v7452
        %v8267 = vunpack.c.h.b16 %v7452
        %v8268 = vunpack.c.l.b16 %v7453
        %v8269 = vunpack.c.l.b16 %v7454
        %v8270 = vunpack.c.h.b16 %v7454
        %v8271 = vunpack.c.l.b16 %v7455
        %v8272 = vunpack.c.l.b16 %v7456
        %v8273 = vunpack.c.h.b16 %v7456
        %v8274 = vunpack.c.l.b16 %v7457
        %v8275 = vunpack.c.l.b16 %v7458
        %v8276 = vunpack.c.h.b16 %v7458
        %v8277 = vunpack.c.l.b16 %v7459
        %v8278 = vunpack.c.l.b16 %v7460
        %v8279 = vunpack.c.h.b16 %v7460
        %v8280 = vunpack.c.l.b16 %v7461
        %v8281 = vunpack.c.l.b16 %v7462
        %v8282 = vunpack.c.h.b16 %v7462
        %v8283 = vunpack.c.l.b16 %v7463
        %v8284 = vunpack.c.l.b16 %v7464
        %v8285 = vunpack.c.h.b16 %v7464
        %v8286 = vunpack.c.l.b16 %v7465
        %v8287 = vunpack.c.l.b16 %v7466
        %v8288 = vunpack.c.h.b16 %v7466
        %v8289 = vunpack.c.l.b16 %v7467
        %v8290 = vunpack.c.l.b16 %v7468
        %v8291 = vunpack.c.h.b16 %v7468
        %v8292 = vunpack.c.l.b16 %v7469
        %v8293 = vunpack.c.l.b16 %v7470
        %v8294 = vunpack.c.h.b16 %v7470
        %v8295 = vunpack.c.l.b16 %v7471
        %v8296 = vunpack.c.l.b16 %v7472
        %v8297 = vunpack.c.h.b16 %v7472
        %v8298 = vunpack.c.l.b16 %v7473
        %v8299 = vunpack.c.l.b16 %v7474
        %v8300 = vunpack.c.h.b16 %v7474
        %v8301 = vunpack.c.l.b16 %v7475
        %v8302 = vunpack.c.l.b16 %v7476
        %v8303 = vunpack.c.h.b16 %v7476
        %v8304 = vunpack.c.l.b16 %v7477
        %v8305 = vunpack.c.l.b16 %v7478
        %v8306 = vunpack.c.h.b16 %v7478
        %v8307 = vunpack.c.l.b16 %v7479
        %v8308 = vunpack.c.l.b16 %v7480
        %v8309 = vunpack.c.h.b16 %v7480
        %v8310 = vunpack.c.l.b16 %v7481
        %v8311 = vunpack.c.l.b16 %v7482
        %v8312 = vunpack.c.h.b16 %v7482
        %v8313 = vunpack.c.l.b16 %v7483
        %v8314 = vunpack.c.l.b16 %v7484
        %v8315 = vunpack.c.h.b16 %v7484
        %v8316 = vunpack.c.l.b16 %v7485
        %v8317 = vunpack.c.l.b16 %v7486
        %v8318 = vunpack.c.h.b16 %v7486
        %v8319 = vunpack.c.l.b16 %v7487
        %v8320 = vunpack.c.l.b16 %v7488
        %v8321 = vunpack.c.h.b16 %v7488
        %v8322 = vunpack.c.l.b16 %v7489
        %v8323 = vunpack.c.l.b16 %v7490
        %v8324 = vunpack.c.h.b16 %v7490
        %v8325 = vunpack.c.l.b16 %v7491
        %v8326 = vunpack.c.l.b16 %v7492
        %v8327 = vunpack.c.h.b16 %v7492
        %v8328 = vunpack.c.l.b16 %v7493
        %v8329 = vunpack.c.l.b16 %v7494
        %v8330 = vunpack.c.h.b16 %v7494
        %v8331 = vunpack.c.l.b16 %v7495
        %v8332 = vunpack.c.l.b16 %v7496
        %v8333 = vunpack.c.h.b16 %v7496
        %v8334 = vunpack.c.l.b16 %v7497
        %v8335 = vunpack.c.l.b16 %v7498
        %v8336 = vunpack.c.h.b16 %v7498
        %v8337 = vunpack.c.l.b16 %v7499
        %v8338 = vunpack.c.l.b16 %v7500
        %v8339 = vunpack.c.h.b16 %v7500
        %v8340 = vunpack.c.l.b16 %v7501
        %v8341 = vunpack.c.l.b16 %v7502
        %v8342 = vunpack.c.h.b16 %v7502
        %v8343 = vunpack.c.l.b16 %v7503
        %v8344 = vunpack.c.l.b16 %v7504
        %v8345 = vunpack.c.h.b16 %v7504
        %v8346 = vunpack.c.l.b16 %v7505
        %v8347 = vunpack.c.l.b16 %v7506
        %v8348 = vunpack.c.h.b16 %v7506
        %v8349 = vunpack.c.l.b16 %v7507
        %v8350 = vunpack.c.l.b16 %v7508
        %v8351 = vunpack.c.h.b16 %v7508
        %v8352 = vunpack.c.l.b16 %v7509
        %v8353 = vunpack.c.l.b16 %v7510
        %v8354 = vunpack.c.h.b16 %v7510
        %v8355 = vunpack.c.l.b16 %v7511
        %v8356 = vunpack.c.l.b16 %v7512
        %v8357 = vunpack.c.h.b16 %v7512
        %v8358 = vunpack.c.l.b16 %v7513
        %v8359 = vunpack.c.l.b16 %v7514
        %v8360 = vunpack.c.h.b16 %v7514
        %v8361 = vunpack.c.l.b16 %v7515
        %v8362 = vunpack.c.l.b16 %v7516
        %v8363 = vunpack.c.h.b16 %v7516
        %v8364 = vunpack.c.l.b16 %v7517
        %v8365 = vunpack.c.l.b16 %v7518
        %v8366 = vunpack.c.h.b16 %v7518
        %v8367 = vunpack.c.l.b16 %v7519
        %v8368 = vunpack.c.l.b16 %v7520
        %v8369 = vunpack.c.h.b16 %v7520
        %v8370 = vunpack.c.l.b16 %v7521
        %v8371 = vunpack.c.l.b16 %v7522
        %v8372 = vunpack.c.h.b16 %v7522
        %v8373 = vunpack.c.l.b16 %v7523
        %v8374 = vunpack.c.l.b16 %v7524
        %v8375 = vunpack.c.h.b16 %v7524
        %v8376 = vunpack.c.l.b16 %v7525
        %v8377 = vunpack.c.l.b16 %v7526
        %v8378 = vunpack.c.h.b16 %v7526
        %v8379 = vunpack.c.l.b16 %v7527
        %v8380 = vunpack.c.l.b16 %v7528
        %v8381 = vunpack.c.h.b16 %v7528
        %v8382 = vunpack.c.l.b16 %v7529
        %v8383 = vunpack.c.l.b16 %v7530
        %v8384 = vunpack.c.h.b16 %v7530
        %v8385 = vunpack.c.l.b16 %v7531
        %v8386 = vunpack.c.l.b16 %v7532
        %v8387 = vunpack.c.h.b16 %v7532
        %v8388 = vunpack.c.l.b16 %v7533
        %v8389 = vunpack.c.l.b16 %v7534
        %v8390 = vunpack.c.h.b16 %v7534
        %v8391 = vunpack.c.l.b16 %v7535
        %v8392 = vunpack.c.l.b16 %v7536
        %v8393 = vunpack.c.h.b16 %v7536
        %v8394 = vunpack.c.l.b16 %v7537
        %v8395 = vunpack.c.l.b16 %v7538
        %v8396 = vunpack.c.h.b16 %v7538
        %v8397 = vunpack.c.l.b16 %v7539
        %v8398 = vunpack.c.l.b16 %v7540
        %v8399 = vunpack.c.h.b16 %v7540
        %v8400 = vunpack.c.l.b16 %v7541
        %v8401 = vunpack.c.l.b16 %v7542
        %v8402 = vunpack.c.h.b16 %v7542
        %v8403 = vunpack.c.l.b16 %v7543
        %v8404 = vunpack.c.l.b16 %v7544
        %v8405 = vunpack.c.h.b16 %v7544
        %v8406 = vunpack.c.l.b16 %v7545
        %v8407 = vunpack.c.l.b16 %v7546
        %v8408 = vunpack.c.h.b16 %v7546
        %v8409 = vunpack.c.l.b16 %v7547
        %v8410 = vunpack.c.l.b16 %v7548
        %v8411 = vunpack.c.h.b16 %v7548
        %v8412 = vunpack.c.l.b16 %v7549
        %v8413 = vunpack.c.l.b16 %v7550
        %v8414 = vunpack.c.h.b16 %v7550
        %v8415 = vunpack.c.l.b16 %v7551
        %v8416 = vunpack.c.l.b16 %v7552
        %v8417 = vunpack.c.h.b16 %v7552
        %v8418 = vunpack.c.l.b16 %v7553
        %v8419 = vunpack.c.l.b16 %v7554
        %v8420 = vunpack.c.h.b16 %v7554
        %v8421 = vunpack.c.l.b16 %v7555
        %v8422 = vunpack.c.l.b16 %v7556
        %v8423 = vunpack.c.h.b16 %v7556
        %v8424 = vunpack.c.l.b16 %v7557
        %v8425 = vunpack.c.l.b16 %v7558
        %v8426 = vunpack.c.h.b16 %v7558
        %v8427 = vunpack.c.l.b16 %v7559
        %v8428 = vunpack.c.l.b16 %v7560
        %v8429 = vunpack.c.h.b16 %v7560
        %v8430 = vunpack.c.l.b16 %v7561
        %v8431 = vunpack.c.l.b16 %v7562
        %v8432 = vunpack.c.h.b16 %v7562
        %v8433 = vunpack.c.l.b16 %v7563
        %v8434 = vunpack.c.l.b16 %v7564
        %v8435 = vunpack.c.h.b16 %v7564
        %v8436 = vunpack.c.l.b16 %v7565
        %v8437 = vunpack.c.l.b16 %v7566
        %v8438 = vunpack.c.h.b16 %v7566
        %v8439 = vunpack.c.l.b16 %v7567
        %v8440 = vunpack.c.l.b16 %v7568
        %v8441 = vunpack.c.h.b16 %v7568
        %v8442 = vunpack.c.l.b16 %v7569
        %v8443 = vunpack.c.l.b16 %v7570
        %v8444 = vunpack.c.h.b16 %v7570
        %v8445 = vunpack.c.l.b16 %v7571
        %v8446 = vunpack.c.l.b16 %v7572
        %v8447 = vunpack.c.h.b16 %v7572
        %v8448 = vunpack.c.l.b16 %v7573
        %v8449 = vunpack.c.l.b16 %v7574
        %v8450 = vunpack.c.h.b16 %v7574
        %v8451 = vunpack.c.l.b16 %v7575
        %v8452 = vunpack.c.l.b16 %v7576
        %v8453 = vunpack.c.h.b16 %v7576
        %v8454 = vunpack.c.l.b16 %v7577
        %v8455 = vunpack.c.l.b16 %v7578
        %v8456 = vunpack.c.h.b16 %v7578
        %v8457 = vunpack.c.l.b16 %v7579
        %v8458 = vunpack.c.l.b16 %v7580
        %v8459 = vunpack.c.h.b16 %v7580
        %v8460 = vunpack.c.l.b16 %v7581
        %v8461 = vunpack.c.l.b16 %v7582
        %v8462 = vunpack.c.h.b16 %v7582
        %v8463 = vunpack.c.l.b16 %v7583
        %v8464 = vunpack.c.l.b16 %v7584
        %v8465 = vunpack.c.h.b16 %v7584
        %v8466 = vunpack.c.l.b16 %v7585
        %v8467 = vunpack.c.l.b16 %v7586
        %v8468 = vunpack.c.h.b16 %v7586
        %v8469 = vunpack.c.l.b16 %v7587
        %v8470 = vunpack.c.l.b16 %v7588
        %v8471 = vunpack.c.h.b16 %v7588
        %v8472 = vunpack.c.l.b16 %v7589
        %v8473 = vunpack.c.l.b16 %v7590
        %v8474 = vunpack.c.h.b16 %v7590
        %v8475 = vunpack.c.l.b16 %v7591
        %v8476 = vunpack.c.l.b16 %v7592
        %v8477 = vunpack.c.h.b16 %v7592
        %v8478 = vunpack.c.l.b16 %v7593
        %v8479 = vunpack.c.l.b16 %v7594
        %v8480 = vunpack.c.h.b16 %v7594
        %v8481 = vunpack.c.l.b16 %v7595
        %v8482 = vunpack.c.l.b16 %v7596
        %v8483 = vunpack.c.h.b16 %v7596
        %v8484 = vunpack.c.l.b16 %v7597
        %v8485 = vunpack.c.l.b16 %v7598
        %v8486 = vunpack.c.h.b16 %v7598
        %v8487 = vunpack.c.l.b16 %v7599
        %v8488 = vunpack.c.l.b16 %v7600
        %v8489 = vunpack.c.h.b16 %v7600
        %v8490 = vunpack.c.l.b16 %v7601
        %v8491 = vunpack.c.l.b16 %v7602
        %v8492 = vunpack.c.h.b16 %v7602
        %v8493 = vunpack.c.l.b16 %v7603
        %v8494 = vunpack.c.l.b16 %v7604
        %v8495 = vunpack.c.h.b16 %v7604
        %v8496 = vunpack.c.l.b16 %v7605
        %v8497 = vunpack.c.l.b16 %v7606
        %v8498 = vunpack.c.h.b16 %v7606
        %v8499 = vunpack.c.l.b16 %v7607
        %v8500 = vunpack.c.l.b16 %v7608
        %v8501 = vunpack.c.h.b16 %v7608
        %v8502 = vunpack.c.l.b16 %v7609
        %v8503 = vunpack.c.l.b16 %v7610
        %v8504 = vunpack.c.h.b16 %v7610
        %v8505 = vunpack.c.l.b16 %v7611
        %v8506 = vunpack.c.l.b16 %v7612
        %v8507 = vunpack.c.h.b16 %v7612
        %v8508 = vunpack.c.l.b16 %v7613
        %v8509 = vunpack.c.l.b16 %v7614
        %v8510 = vunpack.c.h.b16 %v7614
        %v8511 = vunpack.c.l.b16 %v7615
        %v8512 = vunpack.c.l.b16 %v7616
        %v8513 = vunpack.c.h.b16 %v7616
        %v8514 = vunpack.c.l.b16 %v7617
        %v8515 = vunpack.c.l.b16 %v7618
        %v8516 = vunpack.c.h.b16 %v7618
        %v8517 = vunpack.c.l.b16 %v7619
        %v8518 = vunpack.c.l.b16 %v7620
        %v8519 = vunpack.c.h.b16 %v7620
        %v8520 = vunpack.c.l.b16 %v7621
        %v8521 = vunpack.c.l.b16 %v7622
        %v8522 = vunpack.c.h.b16 %v7622
        %v8523 = vunpack.c.l.b16 %v7623
        %v8524 = vunpack.c.l.b16 %v7624
        %v8525 = vunpack.c.h.b16 %v7624
        %v8526 = vunpack.c.l.b16 %v7625
        %v8527 = vunpack.c.l.b16 %v7626
        %v8528 = vunpack.c.h.b16 %v7626
        %v8529 = vunpack.c.l.b16 %v7627
        %v8530 = vunpack.c.l.b16 %v7628
        %v8531 = vunpack.c.h.b16 %v7628
        %v8532 = vunpack.c.l.b16 %v7629
        %v8533 = vunpack.c.l.b16 %v7630
        %v8534 = vunpack.c.h.b16 %v7630
        %v8535 = vunpack.c.l.b16 %v7631
        %v8536 = vunpack.c.l.b16 %v7632
        %v8537 = vunpack.c.h.b16 %v7632
        %v8538 = vunpack.c.l.b16 %v7633
        %v8539 = vunpack.c.l.b16 %v7634
        %v8540 = vunpack.c.h.b16 %v7634
        %v8541 = vunpack.c.l.b16 %v7635
        %v8542 = vunpack.c.l.b16 %v7636
        %v8543 = vunpack.c.h.b16 %v7636
        %v8544 = vunpack.c.l.b16 %v7637
        %v8545 = vunpack.c.l.b16 %v7638
        %v8546 = vunpack.c.h.b16 %v7638
        %v8547 = vunpack.c.l.b16 %v7639
        %v8548 = vunpack.c.l.b16 %v7640
        %v8549 = vunpack.c.h.b16 %v7640
        %v8550 = vunpack.c.l.b16 %v7641
        %v8551 = vunpack.c.l.b16 %v7642
        %v8552 = vunpack.c.h.b16 %v7642
        %v8553 = vunpack.c.l.b16 %v7643
        %v8554 = vunpack.c.l.b16 %v7644
        %v8555 = vunpack.c.h.b16 %v7644
        %v8556 = vunpack.c.l.b16 %v7645
        %v8557 = vunpack.c.l.b16 %v7646
        %v8558 = vunpack.c.h.b16 %v7646
        %v8559 = vunpack.c.l.b16 %v7647
        %v8560 = vunpack.c.l.b16 %v7648
        %v8561 = vunpack.c.h.b16 %v7648
        %v8562 = vunpack.c.l.b16 %v7649
        %v8563 = vunpack.c.l.b16 %v7650
        %v8564 = vunpack.c.h.b16 %v7650
        %v8565 = vunpack.c.l.b16 %v7651
        %v8566 = vunpack.c.l.b16 %v7652
        %v8567 = vunpack.c.h.b16 %v7652
        %v8568 = vunpack.c.l.b16 %v7653
        %v8569 = vunpack.c.l.b16 %v7654
        %v8570 = vunpack.c.h.b16 %v7654
        %v8571 = vunpack.c.l.b16 %v7655
        %v8572 = vunpack.c.l.b16 %v7656
        %v8573 = vunpack.c.h.b16 %v7656
        %v8574 = vunpack.c.l.b16 %v7657
        %v8575 = vunpack.c.l.b16 %v7658
        %v8576 = vunpack.c.h.b16 %v7658
        %v8577 = vunpack.c.l.b16 %v7659
        %v8578 = vunpack.c.l.b16 %v7660
        %v8579 = vunpack.c.h.b16 %v7660
        %v8580 = vunpack.c.l.b16 %v7661
        %v8581 = vunpack.c.l.b16 %v7662
        %v8582 = vunpack.c.h.b16 %v7662
        %v8583 = vunpack.c.l.b16 %v7663
        %v8584 = vunpack.c.l.b16 %v7664
        %v8585 = vunpack.c.h.b16 %v7664
        %v8586 = vunpack.c.l.b16 %v7665
        %v8587 = vunpack.c.l.b16 %v7666
        %v8588 = vunpack.c.h.b16 %v7666
        %v8589 = vunpack.c.l.b16 %v7667
        %v8590 = vunpack.c.l.b16 %v7668
        %v8591 = vunpack.c.h.b16 %v7668
        %v8592 = vunpack.c.l.b16 %v7669
        %v8593 = vunpack.c.l.b16 %v7670
        %v8594 = vunpack.c.h.b16 %v7670
        %v8595 = vunpack.c.l.b16 %v7671
        %v8596 = vunpack.c.l.b16 %v7672
        %v8597 = vunpack.c.h.b16 %v7672
        %v8598 = vunpack.c.l.b16 %v7673
        %v8599 = vunpack.c.l.b16 %v7674
        %v8600 = vunpack.c.h.b16 %v7674
        %v8601 = vunpack.c.l.b16 %v7675
        %v8602 = vunpack.c.l.b16 %v7676
        %v8603 = vunpack.c.h.b16 %v7676
        %v8604 = vunpack.c.l.b16 %v7677
        %v8605 = vunpack.c.l.b16 %v7678
        %v8606 = vunpack.c.h.b16 %v7678
        %v8607 = vunpack.c.l.b16 %v7679
        %v8608 = vunpack.c.l.b16 %v7680
        %v8609 = vunpack.c.h.b16 %v7680
        %v8610 = vunpack.c.l.b16 %v7681
        %v8611 = vunpack.c.l.b16 %v7682
        %v8612 = vunpack.c.h.b16 %v7682
        %v8613 = vunpack.c.l.b16 %v7683
        %v8614 = vunpack.c.l.b16 %v7684
        %v8615 = vunpack.c.h.b16 %v7684
        %v8616 = vunpack.c.l.b16 %v7685
        %v8617 = vunpack.c.l.b16 %v7686
        %v8618 = vunpack.c.h.b16 %v7686
        %v8619 = vunpack.c.l.b16 %v7687
        %v8620 = vunpack.c.l.b16 %v7688
        %v8621 = vunpack.c.h.b16 %v7688
        %v8622 = vunpack.c.l.b16 %v7689
        %v8623 = vunpack.c.l.b16 %v7690
        %v8624 = vunpack.c.h.b16 %v7690
        %v8625 = vunpack.c.l.b16 %v7691
        %v8626 = vunpack.c.l.b16 %v7692
        %v8627 = vunpack.c.h.b16 %v7692
        %v8628 = vunpack.c.l.b16 %v7693
        %v8629 = vunpack.c.l.b16 %v7694
        %v8630 = vunpack.c.h.b16 %v7694
        %v8631 = vunpack.c.l.b16 %v7695
        %v8632 = vunpack.c.l.b16 %v7696
        %v8633 = vunpack.c.h.b16 %v7696
        %v8634 = vunpack.c.l.b16 %v7697
        %v8635 = vunpack.c.l.b16 %v7698
        %v8636 = vunpack.c.h.b16 %v7698
        %v8637 = vunpack.c.l.b16 %v7699
        %v8638 = vunpack.c.l.b16 %v7700
        %v8639 = vunpack.c.h.b16 %v7700
        %v8640 = vunpack.c.l.b16 %v7701
        %v8641 = vunpack.c.l.b16 %v7702
        %v8642 = vunpack.c.h.b16 %v7702
        %v8643 = vunpack.c.l.b16 %v7703
        %v8644 = vunpack.c.l.b16 %v7704
        %v8645 = vunpack.c.h.b16 %v7704
        %v8646 = vunpack.c.l.b16 %v7705
        %v8647 = vunpack.c.l.b16 %v7706
        %v8648 = vunpack.c.h.b16 %v7706
        %v8649 = vunpack.c.l.b16 %v7707
        %v8650 = vunpack.c.l.b16 %v7708
        %v8651 = vunpack.c.h.b16 %v7708
        %v8652 = vunpack.c.l.b16 %v7709
        %v8653 = vunpack.c.l.b16 %v7710
        %v8654 = vunpack.c.h.b16 %v7710
        %v8655 = vunpack.c.l.b16 %v7711
        %v8656 = vunpack.c.l.b16 %v7712
        %v8657 = vunpack.c.h.b16 %v7712
        %v8658 = vunpack.c.l.b16 %v7713
        %v8659 = vunpack.c.l.b16 %v7714
        %v8660 = vunpack.c.h.b16 %v7714
        %v8661 = vunpack.c.l.b16 %v7715
        %v8662 = vunpack.c.l.b16 %v7716
        %v8663 = vunpack.c.h.b16 %v7716
        %v8664 = vunpack.c.l.b16 %v7717
        %v8665 = vunpack.c.l.b16 %v7718
        %v8666 = vunpack.c.h.b16 %v7718
        %v8667 = vunpack.c.l.b16 %v7719
        %v8668 = vunpack.c.l.b16 %v7720
        %v8669 = vunpack.c.h.b16 %v7720
        %v8670 = vunpack.c.l.b16 %v7721
        %v8671 = vunpack.c.l.b16 %v7722
        %v8672 = vunpack.c.h.b16 %v7722
        %v8673 = vunpack.c.l.b16 %v7723
        %v8674 = vunpack.c.l.b16 %v7724
        %v8675 = vunpack.c.h.b16 %v7724
        %v8676 = vunpack.c.l.b16 %v7725
        %v8677 = vunpack.c.l.b16 %v7726
        %v8678 = vunpack.c.h.b16 %v7726
        %v8679 = vunpack.c.l.b16 %v7727
        %v8680 = vunpack.c.l.b16 %v7728
        %v8681 = vunpack.c.h.b16 %v7728
        %v8682 = vunpack.c.l.b16 %v7729
        %v8683 = vunpack.c.l.b16 %v7730
        %v8684 = vunpack.c.h.b16 %v7730
        %v8685 = vunpack.c.l.b16 %v7731
        %v8686 = vunpack.c.l.b16 %v7732
        %v8687 = vunpack.c.h.b16 %v7732
        %v8688 = vunpack.c.l.b16 %v7733
        %v8689 = vunpack.c.l.b16 %v7734
        %v8690 = vunpack.c.h.b16 %v7734
        %v8691 = vunpack.c.l.b16 %v7735
        %v8692 = vunpack.c.l.b16 %v7736
        %v8693 = vunpack.c.h.b16 %v7736
        %v8694 = vunpack.c.l.b16 %v7737
        %v8695 = vunpack.c.l.b16 %v7738
        %v8696 = vunpack.c.h.b16 %v7738
        %v8697 = vunpack.c.l.b16 %v7739
        %v8698 = vunpack.c.l.b16 %v7740
        %v8699 = vunpack.c.h.b16 %v7740
        %v8700 = vunpack.c.l.b16 %v7741
        %v8701 = vunpack.c.l.b16 %v7742
        %v8702 = vunpack.c.h.b16 %v7742
        %v8703 = vunpack.c.l.b16 %v7743
        %v8704 = vunpack.c.l.b16 %v7744
        %v8705 = vunpack.c.h.b16 %v7744
        %v8706 = vunpack.c.l.b16 %v7745
        %v8707 = vunpack.c.l.b16 %v7746
        %v8708 = vunpack.c.h.b16 %v7746
        %v8709 = vunpack.c.l.b16 %v7747
        %v8710 = vunpack.c.l.b16 %v7748
        %v8711 = vunpack.c.h.b16 %v7748
        %v8712 = vunpack.c.l.b16 %v7749
        %v8713 = vunpack.c.l.b16 %v7750
        %v8714 = vunpack.c.h.b16 %v7750
        %v8715 = vunpack.c.l.b16 %v7751
        %v8716 = vunpack.c.l.b16 %v7752
        %v8717 = vunpack.c.h.b16 %v7752
        %v8718 = vunpack.c.l.b16 %v7753
        %v8719 = vunpack.c.l.b16 %v7754
        %v8720 = vunpack.c.h.b16 %v7754
        %v8721 = vunpack.c.l.b16 %v7755
        %v8722 = vunpack.c.l.b16 %v7756
        %v8723 = vunpack.c.h.b16 %v7756
        %v8724 = vunpack.c.l.b16 %v7757
        %v8725 = vunpack.c.l.b16 %v7758
        %v8726 = vunpack.c.h.b16 %v7758
        %v8727 = vunpack.c.l.b16 %v7759
        %v8728 = vunpack.c.l.b16 %v7760
        %v8729 = vunpack.c.h.b16 %v7760
        %v8730 = vunpack.c.l.b16 %v7761
        %v8731 = vunpack.c.l.b16 %v7762
        %v8732 = vunpack.c.h.b16 %v7762
        %v8733 = vunpack.c.l.b16 %v7763
        %v8734 = vunpack.c.l.b16 %v7764
        %v8735 = vunpack.c.h.b16 %v7764
        %v8736 = vunpack.c.l.b16 %v7765
        %v8737 = vunpack.c.l.b16 %v7766
        %v8738 = vunpack.c.h.b16 %v7766
        %v8739 = vunpack.c.l.b16 %v7767
        %v8740 = vunpack.c.l.b16 %v7768
        %v8741 = vunpack.c.h.b16 %v7768
        %v8742 = vunpack.c.l.b16 %v7769
        %v8743 = vunpack.c.l.b16 %v7770
        %v8744 = vunpack.c.h.b16 %v7770
        %v8745 = vunpack.c.l.b16 %v7771
        %v8746 = vunpack.c.l.b16 %v7772
        %v8747 = vunpack.c.h.b16 %v7772
        %v8748 = vunpack.c.l.b16 %v7773
        %v8749 = vunpack.c.l.b16 %v7774
        %v8750 = vunpack.c.h.b16 %v7774
        %v8751 = vunpack.c.l.b16 %v7775
        %v8752 = vunpack.c.l.b16 %v7776
        %v8753 = vunpack.c.h.b16 %v7776
        %v8754 = vunpack.c.l.b16 %v7777
        %v8755 = vpack.c.b16 %v8182, %v8179
        %v8756 = vpack.c.b16 %v8183, %v8180
        %v8757 = vpack.c.b16 %v8184, %v8181
        %v8758 = vpack.c.b16 %v8188, %v8185
        %v8759 = vpack.c.b16 %v8189, %v8186
        %v8760 = vpack.c.b16 %v8190, %v8187
        %v8761 = vpack.c.b16 %v8194, %v8191
        %v8762 = vpack.c.b16 %v8195, %v8192
        %v8763 = vpack.c.b16 %v8196, %v8193
        %v8764 = vpack.c.b16 %v8200, %v8197
        %v8765 = vpack.c.b16 %v8201, %v8198
        %v8766 = vpack.c.b16 %v8202, %v8199
        %v8767 = vpack.c.b16 %v8206, %v8203
        %v8768 = vpack.c.b16 %v8207, %v8204
        %v8769 = vpack.c.b16 %v8208, %v8205
        %v8770 = vpack.c.b16 %v8212, %v8209
        %v8771 = vpack.c.b16 %v8213, %v8210
        %v8772 = vpack.c.b16 %v8214, %v8211
        %v8773 = vpack.c.b16 %v8218, %v8215
        %v8774 = vpack.c.b16 %v8219, %v8216
        %v8775 = vpack.c.b16 %v8220, %v8217
        %v8776 = vpack.c.b16 %v8224, %v8221
        %v8777 = vpack.c.b16 %v8225, %v8222
        %v8778 = vpack.c.b16 %v8226, %v8223
        %v8779 = vpack.c.b16 %v8230, %v8227
        %v8780 = vpack.c.b16 %v8231, %v8228
        %v8781 = vpack.c.b16 %v8232, %v8229
        %v8782 = vpack.c.b16 %v8236, %v8233
        %v8783 = vpack.c.b16 %v8237, %v8234
        %v8784 = vpack.c.b16 %v8238, %v8235
        %v8785 = vpack.c.b16 %v8242, %v8239
        %v8786 = vpack.c.b16 %v8243, %v8240
        %v8787 = vpack.c.b16 %v8244, %v8241
        %v8788 = vpack.c.b16 %v8248, %v8245
        %v8789 = vpack.c.b16 %v8249, %v8246
        %v8790 = vpack.c.b16 %v8250, %v8247
        %v8791 = vpack.c.b16 %v8254, %v8251
        %v8792 = vpack.c.b16 %v8255, %v8252
        %v8793 = vpack.c.b16 %v8256, %v8253
        %v8794 = vpack.c.b16 %v8260, %v8257
        %v8795 = vpack.c.b16 %v8261, %v8258
        %v8796 = vpack.c.b16 %v8262, %v8259
        %v8797 = vpack.c.b16 %v8266, %v8263
        %v8798 = vpack.c.b16 %v8267, %v8264
        %v8799 = vpack.c.b16 %v8268, %v8265
        %v8800 = vpack.c.b16 %v8272, %v8269
        %v8801 = vpack.c.b16 %v8273, %v8270
        %v8802 = vpack.c.b16 %v8274, %v8271
        %v8803 = vpack.c.b16 %v8278, %v8275
        %v8804 = vpack.c.b16 %v8279, %v8276
        %v8805 = vpack.c.b16 %v8280, %v8277
        %v8806 = vpack.c.b16 %v8284, %v8281
        %v8807 = vpack.c.b16 %v8285, %v8282
        %v8808 = vpack.c.b16 %v8286, %v8283
        %v8809 = vpack.c.b16 %v8290, %v8287
        %v8810 = vpack.c.b16 %v8291, %v8288
        %v8811 = vpack.c.b16 %v8292, %v8289
        %v8812 = vpack.c.b16 %v8296, %v8293
        %v8813 = vpack.c.b16 %v8297, %v8294
        %v8814 = vpack.c.b16 %v8298, %v8295
        %v8815 = vpack.c.b16 %v8302, %v8299
        %v8816 = vpack.c.b16 %v8303, %v8300
        %v8817 = vpack.c.b16 %v8304, %v8301
        %v8818 = vpack.c.b16 %v8308, %v8305
        %v8819 = vpack.c.b16 %v8309, %v8306
        %v8820 = vpack.c.b16 %v8310, %v8307
        %v8821 = vpack.c.b16 %v8314, %v8311
        %v8822 = vpack.c.b16 %v8315, %v8312
        %v8823 = vpack.c.b16 %v8316, %v8313
        %v8824 = vpack.c.b16 %v8320, %v8317
        %v8825 = vpack.c.b16 %v8321, %v8318
        %v8826 = vpack.c.b16 %v8322, %v8319
        %v8827 = vpack.c.b16 %v8326, %v8323
        %v8828 = vpack.c.b16 %v8327, %v8324
        %v8829 = vpack.c.b16 %v8328, %v8325
        %v8830 = vpack.c.b16 %v8332, %v8329
        %v8831 = vpack.c.b16 %v8333, %v8330
        %v8832 = vpack.c.b16 %v8334, %v8331
        %v8833 = vpack.c.b16 %v8338, %v8335
        %v8834 = vpack.c.b16 %v8339, %v8336
        %v8835 = vpack.c.b16 %v8340, %v8337
        %v8836 = vpack.c.b16 %v8344, %v8341
        %v8837 = vpack.c.b16 %v8345, %v8342
        %v8838 = vpack.c.b16 %v8346, %v8343
        %v8839 = vpack.c.b16 %v8350, %v8347
        %v8840 = vpack.c.b16 %v8351, %v8348
        %v8841 = vpack.c.b16 %v8352, %v8349
        %v8842 = vpack.c.b16 %v8356, %v8353
        %v8843 = vpack.c.b16 %v8357, %v8354
        %v8844 = vpack.c.b16 %v8358, %v8355
        %v8845 = vpack.c.b16 %v8362, %v8359
        %v8846 = vpack.c.b16 %v8363, %v8360
        %v8847 = vpack.c.b16 %v8364, %v8361
        %v8848 = vpack.c.b16 %v8368, %v8365
        %v8849 = vpack.c.b16 %v8369, %v8366
        %v8850 = vpack.c.b16 %v8370, %v8367
        %v8851 = vpack.c.b16 %v8374, %v8371
        %v8852 = vpack.c.b16 %v8375, %v8372
        %v8853 = vpack.c.b16 %v8376, %v8373
        %v8854 = vpack.c.b16 %v8380, %v8377
        %v8855 = vpack.c.b16 %v8381, %v8378
        %v8856 = vpack.c.b16 %v8382, %v8379
        %v8857 = vpack.c.b16 %v8386, %v8383
        %v8858 = vpack.c.b16 %v8387, %v8384
        %v8859 = vpack.c.b16 %v8388, %v8385
        %v8860 = vpack.c.b16 %v8392, %v8389
        %v8861 = vpack.c.b16 %v8393, %v8390
        %v8862 = vpack.c.b16 %v8394, %v8391
        %v8863 = vpack.c.b16 %v8398, %v8395
        %v8864 = vpack.c.b16 %v8399, %v8396
        %v8865 = vpack.c.b16 %v8400, %v8397
        %v8866 = vpack.c.b16 %v8404, %v8401
        %v8867 = vpack.c.b16 %v8405, %v8402
        %v8868 = vpack.c.b16 %v8406, %v8403
        %v8869 = vpack.c.b16 %v8410, %v8407
        %v8870 = vpack.c.b16 %v8411, %v8408
        %v8871 = vpack.c.b16 %v8412, %v8409
        %v8872 = vpack.c.b16 %v8416, %v8413
        %v8873 = vpack.c.b16 %v8417, %v8414
        %v8874 = vpack.c.b16 %v8418, %v8415
        %v8875 = vpack.c.b16 %v8422, %v8419
        %v8876 = vpack.c.b16 %v8423, %v8420
        %v8877 = vpack.c.b16 %v8424, %v8421
        %v8878 = vpack.c.b16 %v8428, %v8425
        %v8879 = vpack.c.b16 %v8429, %v8426
        %v8880 = vpack.c.b16 %v8430, %v8427
        %v8881 = vpack.c.b16 %v8434, %v8431
        %v8882 = vpack.c.b16 %v8435, %v8432
        %v8883 = vpack.c.b16 %v8436, %v8433
        %v8884 = vpack.c.b16 %v8440, %v8437
        %v8885 = vpack.c.b16 %v8441, %v8438
        %v8886 = vpack.c.b16 %v8442, %v8439
        %v8887 = vpack.c.b16 %v8446, %v8443
        %v8888 = vpack.c.b16 %v8447, %v8444
        %v8889 = vpack.c.b16 %v8448, %v8445
        %v8890 = vpack.c.b16 %v8452, %v8449
        %v8891 = vpack.c.b16 %v8453, %v8450
        %v8892 = vpack.c.b16 %v8454, %v8451
        %v8893 = vpack.c.b16 %v8458, %v8455
        %v8894 = vpack.c.b16 %v8459, %v8456
        %v8895 = vpack.c.b16 %v8460, %v8457
        %v8896 = vpack.c.b16 %v8464, %v8461
        %v8897 = vpack.c.b16 %v8465, %v8462
        %v8898 = vpack.c.b16 %v8466, %v8463
        %v8899 = vpack.c.b16 %v8470, %v8467
        %v8900 = vpack.c.b16 %v8471, %v8468
        %v8901 = vpack.c.b16 %v8472, %v8469
        %v8902 = vpack.c.b16 %v8476, %v8473
        %v8903 = vpack.c.b16 %v8477, %v8474
        %v8904 = vpack.c.b16 %v8478, %v8475
        %v8905 = vpack.c.b16 %v8482, %v8479
        %v8906 = vpack.c.b16 %v8483, %v8480
        %v8907 = vpack.c.b16 %v8484, %v8481
        %v8908 = vpack.c.b16 %v8488, %v8485
        %v8909 = vpack.c.b16 %v8489, %v8486
        %v8910 = vpack.c.b16 %v8490, %v8487
        %v8911 = vpack.c.b16 %v8494, %v8491
        %v8912 = vpack.c.b16 %v8495, %v8492
        %v8913 = vpack.c.b16 %v8496, %v8493
        %v8914 = vpack.c.b16 %v8500, %v8497
        %v8915 = vpack.c.b16 %v8501, %v8498
        %v8916 = vpack.c.b16 %v8502, %v8499
        %v8917 = vpack.c.b16 %v8506, %v8503
        %v8918 = vpack.c.b16 %v8507, %v8504
        %v8919 = vpack.c.b16 %v8508, %v8505
        %v8920 = vpack.c.b16 %v8512, %v8509
        %v8921 = vpack.c.b16 %v8513, %v8510
        %v8922 = vpack.c.b16 %v8514, %v8511
        %v8923 = vpack.c.b16 %v8518, %v8515
        %v8924 = vpack.c.b16 %v8519, %v8516
        %v8925 = vpack.c.b16 %v8520, %v8517
        %v8926 = vpack.c.b16 %v8524, %v8521
        %v8927 = vpack.c.b16 %v8525, %v8522
        %v8928 = vpack.c.b16 %v8526, %v8523
        %v8929 = vpack.c.b16 %v8530, %v8527
        %v8930 = vpack.c.b16 %v8531, %v8528
        %v8931 = vpack.c.b16 %v8532, %v8529
        %v8932 = vpack.c.b16 %v8536, %v8533
        %v8933 = vpack.c.b16 %v8537, %v8534
        %v8934 = vpack.c.b16 %v8538, %v8535
        %v8935 = vpack.c.b16 %v8542, %v8539
        %v8936 = vpack.c.b16 %v8543, %v8540
        %v8937 = vpack.c.b16 %v8544, %v8541
        %v8938 = vpack.c.b16 %v8548, %v8545
        %v8939 = vpack.c.b16 %v8549, %v8546
        %v8940 = vpack.c.b16 %v8550, %v8547
        %v8941 = vpack.c.b16 %v8554, %v8551
        %v8942 = vpack.c.b16 %v8555, %v8552
        %v8943 = vpack.c.b16 %v8556, %v8553
        %v8944 = vpack.c.b16 %v8560, %v8557
        %v8945 = vpack.c.b16 %v8561, %v8558
        %v8946 = vpack.c.b16 %v8562, %v8559
        %v8947 = vpack.c.b16 %v8566, %v8563
        %v8948 = vpack.c.b16 %v8567, %v8564
        %v8949 = vpack.c.b16 %v8568, %v8565
        %v8950 = vpack.c.b16 %v8572, %v8569
        %v8951 = vpack.c.b16 %v8573, %v8570
        %v8952 = vpack.c.b16 %v8574, %v8571
        %v8953 = vpack.c.b16 %v8578, %v8575
        %v8954 = vpack.c.b16 %v8579, %v8576
        %v8955 = vpack.c.b16 %v8580, %v8577
        %v8956 = vpack.c.b16 %v8584, %v8581
        %v8957 = vpack.c.b16 %v8585, %v8582
        %v8958 = vpack.c.b16 %v8586, %v8583
        %v8959 = vpack.c.b16 %v8590, %v8587
        %v8960 = vpack.c.b16 %v8591, %v8588
        %v8961 = vpack.c.b16 %v8592, %v8589
        %v8962 = vpack.c.b16 %v8596, %v8593
        %v8963 = vpack.c.b16 %v8597, %v8594
        %v8964 = vpack.c.b16 %v8598, %v8595
        %v8965 = vpack.c.b16 %v8602, %v8599
        %v8966 = vpack.c.b16 %v8603, %v8600
        %v8967 = vpack.c.b16 %v8604, %v8601
        %v8968 = vpack.c.b16 %v8608, %v8605
        %v8969 = vpack.c.b16 %v8609, %v8606
        %v8970 = vpack.c.b16 %v8610, %v8607
        %v8971 = vpack.c.b16 %v8614, %v8611
        %v8972 = vpack.c.b16 %v8615, %v8612
        %v8973 = vpack.c.b16 %v8616, %v8613
        %v8974 = vpack.c.b16 %v8620, %v8617
        %v8975 = vpack.c.b16 %v8621, %v8618
        %v8976 = vpack.c.b16 %v8622, %v8619
        %v8977 = vpack.c.b16 %v8626, %v8623
        %v8978 = vpack.c.b16 %v8627, %v8624
        %v8979 = vpack.c.b16 %v8628, %v8625
        %v8980 = vpack.c.b16 %v8632, %v8629
        %v8981 = vpack.c.b16 %v8633, %v8630
        %v8982 = vpack.c.b16 %v8634, %v8631
        %v8983 = vpack.c.b16 %v8638, %v8635
        %v8984 = vpack.c.b16 %v8639, %v8636
        %v8985 = vpack.c.b16 %v8640, %v8637
        %v8986 = vpack.c.b16 %v8644, %v8641
        %v8987 = vpack.c.b16 %v8645, %v8642
        %v8988 = vpack.c.b16 %v8646, %v8643
        %v8989 = vpack.c.b16 %v8650, %v8647
        %v8990 = vpack.c.b16 %v8651, %v8648
        %v8991 = vpack.c.b16 %v8652, %v8649
        %v8992 = vpack.c.b16 %v8656, %v8653
        %v8993 = vpack.c.b16 %v8657, %v8654
        %v8994 = vpack.c.b16 %v8658, %v8655
        %v8995 = vpack.c.b16 %v8662, %v8659
        %v8996 = vpack.c.b16 %v8663, %v8660
        %v8997 = vpack.c.b16 %v8664, %v8661
        %v8998 = vpack.c.b16 %v8668, %v8665
        %v8999 = vpack.c.b16 %v8669, %v8666
        %v9000 = vpack.c.b16 %v8670, %v8667
        %v9001 = vpack.c.b16 %v8674, %v8671
        %v9002 = vpack.c.b16 %v8675, %v8672
        %v9003 = vpack.c.b16 %v8676, %v8673
        %v9004 = vpack.c.b16 %v8680, %v8677
        %v9005 = vpack.c.b16 %v8681, %v8678
        %v9006 = vpack.c.b16 %v8682, %v8679
        %v9007 = vpack.c.b16 %v8686, %v8683
        %v9008 = vpack.c.b16 %v8687, %v8684
        %v9009 = vpack.c.b16 %v8688, %v8685
        %v9010 = vpack.c.b16 %v8692, %v8689
        %v9011 = vpack.c.b16 %v8693, %v8690
        %v9012 = vpack.c.b16 %v8694, %v8691
        %v9013 = vpack.c.b16 %v8698, %v8695
        %v9014 = vpack.c.b16 %v8699, %v8696
        %v9015 = vpack.c.b16 %v8700, %v8697
        %v9016 = vpack.c.b16 %v8704, %v8701
        %v9017 = vpack.c.b16 %v8705, %v8702
        %v9018 = vpack.c.b16 %v8706, %v8703
        %v9019 = vpack.c.b16 %v8710, %v8707
        %v9020 = vpack.c.b16 %v8711, %v8708
        %v9021 = vpack.c.b16 %v8712, %v8709
        %v9022 = vpack.c.b16 %v8716, %v8713
        %v9023 = vpack.c.b16 %v8717, %v8714
        %v9024 = vpack.c.b16 %v8718, %v8715
        %v9025 = vpack.c.b16 %v8722, %v8719
        %v9026 = vpack.c.b16 %v8723, %v8720
        %v9027 = vpack.c.b16 %v8724, %v8721
        %v9028 = vpack.c.b16 %v8728, %v8725
        %v9029 = vpack.c.b16 %v8729, %v8726
        %v9030 = vpack.c.b16 %v8730, %v8727
        %v9031 = vpack.c.b16 %v8734, %v8731
        %v9032 = vpack.c.b16 %v8735, %v8732
        %v9033 = vpack.c.b16 %v8736, %v8733
        %v9034 = vpack.c.b16 %v8740, %v8737
        %v9035 = vpack.c.b16 %v8741, %v8738
        %v9036 = vpack.c.b16 %v8742, %v8739
        %v9037 = vpack.c.b16 %v8746, %v8743
        %v9038 = vpack.c.b16 %v8747, %v8744
        %v9039 = vpack.c.b16 %v8748, %v8745
        %v9040 = vpack.c.b16 %v8752, %v8749
        %v9041 = vpack.c.b16 %v8753, %v8750
        %v9042 = vpack.c.b16 %v8754, %v8751
        %9331 = vmatprep.subr.bf16.mxu0 %v8756
        %9332 = vmatpush1.bf16.msra.mxu0 %v8755
        %9333 = vmatprep.subr.bf16.mxu0 %v8759
        %9334 = vmatpush1.bf16.msra.mxu0 %v8758
        %9335 = vmatprep.subr.bf16.mxu0 %v8762
        %9336 = vmatpush1.bf16.msra.mxu0 %v8761
        %9337 = vmatprep.subr.bf16.mxu0 %v8765
        %9338 = vmatpush1.bf16.msra.mxu0 %v8764
        %9339 = vmatprep.subr.bf16.mxu0 %v8768
        %9340 = vmatpush1.bf16.msra.mxu0 %v8767
        %9341 = vmatprep.subr.bf16.mxu0 %v8771
        %9342 = vmatpush1.bf16.msra.mxu0 %v8770
        %9343 = vmatprep.subr.bf16.mxu0 %v8774
        %9344 = vmatpush1.bf16.msra.mxu0 %v8773
        %9345 = vmatprep.subr.bf16.mxu0 %v8777
        %9346 = vmatpush1.bf16.msra.mxu0 %v8776
        %9347 = vmatprep.subr.bf16.mxu0 %v8780
        %9348 = vmatpush1.bf16.msra.mxu0 %v8779
        %9349 = vmatprep.subr.bf16.mxu0 %v8783
        %9350 = vmatpush1.bf16.msra.mxu0 %v8782
        %9351 = vmatprep.subr.bf16.mxu0 %v8786
        %9352 = vmatpush1.bf16.msra.mxu0 %v8785
        %9353 = vmatprep.subr.bf16.mxu0 %v8789
        %9354 = vmatpush1.bf16.msra.mxu0 %v8788
        %9355 = vmatprep.subr.bf16.mxu0 %v8792
        %9356 = vmatpush1.bf16.msra.mxu0 %v8791
        %9357 = vmatprep.subr.bf16.mxu0 %v8795
        %9358 = vmatpush1.bf16.msra.mxu0 %v8794
        %9359 = vmatprep.subr.bf16.mxu0 %v8798
        %9360 = vmatpush1.bf16.msra.mxu0 %v8797
        %9361 = vmatprep.subr.bf16.mxu0 %v8801
        %9362 = vmatpush1.bf16.msra.mxu0 %v8800
        %9363 = vmatprep.mubr.bf16.mxu0 %v7383
        %9364 = vmatmul.mubr.bf16.gmra.mrb[0].mxu0 %v7382
        %v9365 = vpop.f32.mrb[0].mxu0
        %v9366 = vadd.f32 %v7783, %v9365
        %v9367 = vpop.f32.mrb[0].mxu0
        %v9368 = vadd.f32 %v7787, %v9367
        %v9369 = vpop.f32.mrb[0].mxu0
        %v9370 = vadd.f32 %v7783, %v9369
        %v9371 = vpop.f32.mrb[0].mxu0
        %v9372 = vadd.f32 %v7787, %v9371
        %9373 = vdwg.mxu0
        %9374 = vmatprep.subr.bf16.mxu0 %v8804
        %9375 = vmatpush1.bf16.msra.mxu0 %v8803
        %9376 = vmatprep.subr.bf16.mxu0 %v8807
        %9377 = vmatpush1.bf16.msra.mxu0 %v8806
        %9378 = vmatprep.subr.bf16.mxu0 %v8810
        %9379 = vmatpush1.bf16.msra.mxu0 %v8809
        %9380 = vmatprep.subr.bf16.mxu0 %v8813
        %9381 = vmatpush1.bf16.msra.mxu0 %v8812
        %9382 = vmatprep.subr.bf16.mxu0 %v8816
        %9383 = vmatpush1.bf16.msra.mxu0 %v8815
        %9384 = vmatprep.subr.bf16.mxu0 %v8819
        %9385 = vmatpush1.bf16.msra.mxu0 %v8818
        %9386 = vmatprep.subr.bf16.mxu0 %v8822
        %9387 = vmatpush1.bf16.msra.mxu0 %v8821
        %9388 = vmatprep.subr.bf16.mxu0 %v8825
        %9389 = vmatpush1.bf16.msra.mxu0 %v8824
        %9390 = vmatprep.subr.bf16.mxu0 %v8828
        %9391 = vmatpush1.bf16.msra.mxu0 %v8827
        %9392 = vmatprep.subr.bf16.mxu0 %v8831
        %9393 = vmatpush1.bf16.msra.mxu0 %v8830
        %9394 = vmatprep.subr.bf16.mxu0 %v8834
        %9395 = vmatpush1.bf16.msra.mxu0 %v8833
        %9396 = vmatprep.subr.bf16.mxu0 %v8837
        %9397 = vmatpush1.bf16.msra.mxu0 %v8836
        %9398 = vmatprep.subr.bf16.mxu0 %v8840
        %9399 = vmatpush1.bf16.msra.mxu0 %v8839
        %9400 = vmatprep.subr.bf16.mxu0 %v8843
        %9401 = vmatpush1.bf16.msra.mxu0 %v8842
        %9402 = vmatprep.subr.bf16.mxu0 %v8846
        %9403 = vmatpush1.bf16.msra.mxu0 %v8845
        %9404 = vmatprep.subr.bf16.mxu0 %v8849
        %9405 = vmatpush1.bf16.msra.mxu0 %v8848
        %9406 = vmatprep.mubr.bf16.mxu0 %v7385
        %9407 = vmatmul.mubr.bf16.gmra.mrb[0].mxu0 %v7384
        %v9408 = vpop.f32.mrb[0].mxu0
        %v9409 = vadd.f32 %v9366, %v9408
        %v9410 = vpop.f32.mrb[0].mxu0
        %v9411 = vadd.f32 %v9368, %v9410
        %v9412 = vpop.f32.mrb[0].mxu0
        %v9413 = vadd.f32 %v9370, %v9412
        %v9414 = vpop.f32.mrb[0].mxu0
        %v9415 = vadd.f32 %v9372, %v9414
        %9416 = vdwg.mxu0
        %9417 = vmatprep.subr.bf16.mxu0 %v8852
        %9418 = vmatpush1.bf16.msra.mxu0 %v8851
        %9419 = vmatprep.subr.bf16.mxu0 %v8855
        %9420 = vmatpush1.bf16.msra.mxu0 %v8854
        %9421 = vmatprep.subr.bf16.mxu0 %v8858
        %9422 = vmatpush1.bf16.msra.mxu0 %v8857
        %9423 = vmatprep.subr.bf16.mxu0 %v8861
        %9424 = vmatpush1.bf16.msra.mxu0 %v8860
        %9425 = vmatprep.subr.bf16.mxu0 %v8864
        %9426 = vmatpush1.bf16.msra.mxu0 %v8863
        %9427 = vmatprep.subr.bf16.mxu0 %v8867
        %9428 = vmatpush1.bf16.msra.mxu0 %v8866
        %9429 = vmatprep.subr.bf16.mxu0 %v8870
        %9430 = vmatpush1.bf16.msra.mxu0 %v8869
        %9431 = vmatprep.subr.bf16.mxu0 %v8873
        %9432 = vmatpush1.bf16.msra.mxu0 %v8872
        %9433 = vmatprep.subr.bf16.mxu0 %v8876
        %9434 = vmatpush1.bf16.msra.mxu0 %v8875
        %9435 = vmatprep.subr.bf16.mxu0 %v8879
        %9436 = vmatpush1.bf16.msra.mxu0 %v8878
        %9437 = vmatprep.subr.bf16.mxu0 %v8882
        %9438 = vmatpush1.bf16.msra.mxu0 %v8881
        %9439 = vmatprep.subr.bf16.mxu0 %v8885
        %9440 = vmatpush1.bf16.msra.mxu0 %v8884
        %9441 = vmatprep.subr.bf16.mxu0 %v8888
        %9442 = vmatpush1.bf16.msra.mxu0 %v8887
        %9443 = vmatprep.subr.bf16.mxu0 %v8891
        %9444 = vmatpush1.bf16.msra.mxu0 %v8890
        %9445 = vmatprep.subr.bf16.mxu0 %v8894
        %9446 = vmatpush1.bf16.msra.mxu0 %v8893
        %9447 = vmatprep.subr.bf16.mxu0 %v8897
        %9448 = vmatpush1.bf16.msra.mxu0 %v8896
        %9449 = vmatprep.mubr.bf16.mxu0 %v7387
        %9450 = vmatmul.mubr.bf16.gmra.mrb[0].mxu0 %v7386
        %v9451 = vpop.f32.mrb[0].mxu0
        %v9452 = vadd.f32 %v9409, %v9451
        %v9453 = vpop.f32.mrb[0].mxu0
        %v9454 = vadd.f32 %v9411, %v9453
        %v9455 = vpop.f32.mrb[0].mxu0
        %v9456 = vadd.f32 %v9413, %v9455
        %v9457 = vpop.f32.mrb[0].mxu0
        %v9458 = vadd.f32 %v9415, %v9457
        %9459 = vdwg.mxu0
        %9460 = vmatprep.subr.bf16.mxu0 %v8900
        %9461 = vmatpush1.bf16.msra.mxu0 %v8899
        %9462 = vmatprep.subr.bf16.mxu0 %v8903
        %9463 = vmatpush1.bf16.msra.mxu0 %v8902
        %9464 = vmatprep.subr.bf16.mxu0 %v8906
        %9465 = vmatpush1.bf16.msra.mxu0 %v8905
        %9466 = vmatprep.subr.bf16.mxu0 %v8909
        %9467 = vmatpush1.bf16.msra.mxu0 %v8908
        %9468 = vmatprep.subr.bf16.mxu0 %v8912
        %9469 = vmatpush1.bf16.msra.mxu0 %v8911
        %9470 = vmatprep.subr.bf16.mxu0 %v8915
        %9471 = vmatpush1.bf16.msra.mxu0 %v8914
        %9472 = vmatprep.subr.bf16.mxu0 %v8918
        %9473 = vmatpush1.bf16.msra.mxu0 %v8917
        %9474 = vmatprep.subr.bf16.mxu0 %v8921
        %9475 = vmatpush1.bf16.msra.mxu0 %v8920
        %9476 = vmatprep.subr.bf16.mxu0 %v8924
        %9477 = vmatpush1.bf16.msra.mxu0 %v8923
        %9478 = vmatprep.subr.bf16.mxu0 %v8927
        %9479 = vmatpush1.bf16.msra.mxu0 %v8926
        %9480 = vmatprep.subr.bf16.mxu0 %v8930
        %9481 = vmatpush1.bf16.msra.mxu0 %v8929
        %9482 = vmatprep.subr.bf16.mxu0 %v8933
        %9483 = vmatpush1.bf16.msra.mxu0 %v8932
        %9484 = vmatprep.subr.bf16.mxu0 %v8936
        %9485 = vmatpush1.bf16.msra.mxu0 %v8935
        %9486 = vmatprep.subr.bf16.mxu0 %v8939
        %9487 = vmatpush1.bf16.msra.mxu0 %v8938
        %9488 = vmatprep.subr.bf16.mxu0 %v8942
        %9489 = vmatpush1.bf16.msra.mxu0 %v8941
        %9490 = vmatprep.subr.bf16.mxu0 %v8945
        %9491 = vmatpush1.bf16.msra.mxu0 %v8944
        %9492 = vmatprep.mubr.bf16.mxu0 %v7389
        %9493 = vmatmul.mubr.bf16.gmra.mrb[0].mxu0 %v7388
        %v9494 = vpop.f32.mrb[0].mxu0
        %v9495 = vadd.f32 %v9452, %v9494
        %v9496 = vpop.f32.mrb[0].mxu0
        %v9497 = vadd.f32 %v9454, %v9496
        %v9498 = vpop.f32.mrb[0].mxu0
        %v9499 = vadd.f32 %v9456, %v9498
        %v9500 = vpop.f32.mrb[0].mxu0
        %v9501 = vadd.f32 %v9458, %v9500
        %9502 = vdwg.mxu0
        %9503 = vmatprep.subr.bf16.mxu0 %v8948
        %9504 = vmatpush1.bf16.msra.mxu0 %v8947
        %9505 = vmatprep.subr.bf16.mxu0 %v8951
        %9506 = vmatpush1.bf16.msra.mxu0 %v8950
        %9507 = vmatprep.subr.bf16.mxu0 %v8954
        %9508 = vmatpush1.bf16.msra.mxu0 %v8953
        %9509 = vmatprep.subr.bf16.mxu0 %v8957
        %9510 = vmatpush1.bf16.msra.mxu0 %v8956
        %9511 = vmatprep.subr.bf16.mxu0 %v8960
        %9512 = vmatpush1.bf16.msra.mxu0 %v8959
        %9513 = vmatprep.subr.bf16.mxu0 %v8963
        %9514 = vmatpush1.bf16.msra.mxu0 %v8962
        %9515 = vmatprep.subr.bf16.mxu0 %v8966
        %9516 = vmatpush1.bf16.msra.mxu0 %v8965
        %9517 = vmatprep.subr.bf16.mxu0 %v8969
        %9518 = vmatpush1.bf16.msra.mxu0 %v8968
        %9519 = vmatprep.subr.bf16.mxu0 %v8972
        %9520 = vmatpush1.bf16.msra.mxu0 %v8971
        %9521 = vmatprep.subr.bf16.mxu0 %v8975
        %9522 = vmatpush1.bf16.msra.mxu0 %v8974
        %9523 = vmatprep.subr.bf16.mxu0 %v8978
        %9524 = vmatpush1.bf16.msra.mxu0 %v8977
        %9525 = vmatprep.subr.bf16.mxu0 %v8981
        %9526 = vmatpush1.bf16.msra.mxu0 %v8980
        %9527 = vmatprep.subr.bf16.mxu0 %v8984
        %9528 = vmatpush1.bf16.msra.mxu0 %v8983
        %9529 = vmatprep.subr.bf16.mxu0 %v8987
        %9530 = vmatpush1.bf16.msra.mxu0 %v8986
        %9531 = vmatprep.subr.bf16.mxu0 %v8990
        %9532 = vmatpush1.bf16.msra.mxu0 %v8989
        %9533 = vmatprep.subr.bf16.mxu0 %v8993
        %9534 = vmatpush1.bf16.msra.mxu0 %v8992
        %9535 = vmatprep.mubr.bf16.mxu0 %v7391
        %9536 = vmatmul.mubr.bf16.gmra.mrb[0].mxu0 %v7390
        %v9537 = vpop.f32.mrb[0].mxu0
        %v9538 = vadd.f32 %v9495, %v9537
        %v9539 = vpop.f32.mrb[0].mxu0
        %v9540 = vadd.f32 %v9497, %v9539
        %v9541 = vpop.f32.mrb[0].mxu0
        %v9542 = vadd.f32 %v9499, %v9541
        %v9543 = vpop.f32.mrb[0].mxu0
        %v9544 = vadd.f32 %v9501, %v9543
        %9545 = vdwg.mxu0
        %9546 = vmatprep.subr.bf16.mxu0 %v8996
        %9547 = vmatpush1.bf16.msra.mxu0 %v8995
        %9548 = vmatprep.subr.bf16.mxu0 %v8999
        %9549 = vmatpush1.bf16.msra.mxu0 %v8998
        %9550 = vmatprep.subr.bf16.mxu0 %v9002
        %9551 = vmatpush1.bf16.msra.mxu0 %v9001
        %9552 = vmatprep.subr.bf16.mxu0 %v9005
        %9553 = vmatpush1.bf16.msra.mxu0 %v9004
        %9554 = vmatprep.subr.bf16.mxu0 %v9008
        %9555 = vmatpush1.bf16.msra.mxu0 %v9007
        %9556 = vmatprep.subr.bf16.mxu0 %v9011
        %9557 = vmatpush1.bf16.msra.mxu0 %v9010
        %9558 = vmatprep.subr.bf16.mxu0 %v9014
        %9559 = vmatpush1.bf16.msra.mxu0 %v9013
        %9560 = vmatprep.subr.bf16.mxu0 %v9017
        %9561 = vmatpush1.bf16.msra.mxu0 %v9016
        %9562 = vmatprep.subr.bf16.mxu0 %v9020
        %9563 = vmatpush1.bf16.msra.mxu0 %v9019
        %9564 = vmatprep.subr.bf16.mxu0 %v9023
        %9565 = vmatpush1.bf16.msra.mxu0 %v9022
        %9566 = vmatprep.subr.bf16.mxu0 %v9026
        %9567 = vmatpush1.bf16.msra.mxu0 %v9025
        %9568 = vmatprep.subr.bf16.mxu0 %v9029
        %9569 = vmatpush1.bf16.msra.mxu0 %v9028
        %9570 = vmatprep.subr.bf16.mxu0 %v9032
        %9571 = vmatpush1.bf16.msra.mxu0 %v9031
        %9572 = vmatprep.subr.bf16.mxu0 %v9035
        %9573 = vmatpush1.bf16.msra.mxu0 %v9034
        %9574 = vmatprep.subr.bf16.mxu0 %v9038
        %9575 = vmatpush1.bf16.msra.mxu0 %v9037
        %9576 = vmatprep.subr.bf16.mxu0 %v9041
        %9577 = vmatpush1.bf16.msra.mxu0 %v9040
        %9578 = vmatprep.mubr.bf16.mxu0 %v7393
        %9579 = vmatmul.mubr.bf16.gmra.mrb[0].mxu0 %v7392
        %v9580 = vpop.f32.mrb[0].mxu0
        %v9581 = vadd.f32 %v9538, %v9580
        %v9582 = vpop.f32.mrb[0].mxu0
        %v9583 = vadd.f32 %v9540, %v9582
        %v9584 = vpop.f32.mrb[0].mxu0
        %v9585 = vadd.f32 %v9542, %v9584
        %v9586 = vpop.f32.mrb[0].mxu0
        %v9587 = vadd.f32 %v9544, %v9586
        %9588 = vdwg.mxu0
        %9589 = vmatprep.subr.bf16.mxu0 0
        %9590 = vmatpush1.bf16.msra.mxu0 %v8757
        %9591 = vmatprep.subr.bf16.mxu0 0
        %9592 = vmatpush1.bf16.msra.mxu0 %v8760
        %9593 = vmatprep.subr.bf16.mxu0 0
        %9594 = vmatpush1.bf16.msra.mxu0 %v8763
        %9595 = vmatprep.subr.bf16.mxu0 0
        %9596 = vmatpush1.bf16.msra.mxu0 %v8766
        %9597 = vmatprep.subr.bf16.mxu0 0
        %9598 = vmatpush1.bf16.msra.mxu0 %v8769
        %9599 = vmatprep.subr.bf16.mxu0 0
        %9600 = vmatpush1.bf16.msra.mxu0 %v8772
        %9601 = vmatprep.subr.bf16.mxu0 0
        %9602 = vmatpush1.bf16.msra.mxu0 %v8775
        %9603 = vmatprep.subr.bf16.mxu0 0
        %9604 = vmatpush1.bf16.msra.mxu0 %v8778
        %9605 = vmatprep.subr.bf16.mxu0 0
        %9606 = vmatpush1.bf16.msra.mxu0 %v8781
        %9607 = vmatprep.subr.bf16.mxu0 0
        %9608 = vmatpush1.bf16.msra.mxu0 %v8784
        %9609 = vmatprep.subr.bf16.mxu0 0
        %9610 = vmatpush1.bf16.msra.mxu0 %v8787
        %9611 = vmatprep.subr.bf16.mxu0 0
        %9612 = vmatpush1.bf16.msra.mxu0 %v8790
        %9613 = vmatprep.subr.bf16.mxu0 0
        %9614 = vmatpush1.bf16.msra.mxu0 %v8793
        %9615 = vmatprep.subr.bf16.mxu0 0
        %9616 = vmatpush1.bf16.msra.mxu0 %v8796
        %9617 = vmatprep.subr.bf16.mxu0 0
        %9618 = vmatpush1.bf16.msra.mxu0 %v8799
        %9619 = vmatprep.subr.bf16.mxu0 0
        %9620 = vmatpush1.bf16.msra.mxu0 %v8802
        %9621 = vmatprep.mubr.bf16.mxu0 %v7383
        %9622 = vmatmul.mubr.bf16.gmra.mrb[0].mxu0 %v7382
        %v9623 = vpop.f32.mrb[0].mxu0
        %v9624 = vadd.f32 %v7791, %v9623
        %v9625 = vpop.f32.mrb[0].mxu0
        %v9626 = vpop.f32.mrb[0].mxu0
        %v9627 = vadd.f32 %v7791, %v9626
        %v9628 = vpop.f32.mrb[0].mxu0
        %9629 = vdwg.mxu0
        %9630 = vmatprep.subr.bf16.mxu0 0
        %9631 = vmatpush1.bf16.msra.mxu0 %v8805
        %9632 = vmatprep.subr.bf16.mxu0 0
        %9633 = vmatpush1.bf16.msra.mxu0 %v8808
        %9634 = vmatprep.subr.bf16.mxu0 0
        %9635 = vmatpush1.bf16.msra.mxu0 %v8811
        %9636 = vmatprep.subr.bf16.mxu0 0
        %9637 = vmatpush1.bf16.msra.mxu0 %v8814
        %9638 = vmatprep.subr.bf16.mxu0 0
        %9639 = vmatpush1.bf16.msra.mxu0 %v8817
        %9640 = vmatprep.subr.bf16.mxu0 0
        %9641 = vmatpush1.bf16.msra.mxu0 %v8820
        %9642 = vmatprep.subr.bf16.mxu0 0
        %9643 = vmatpush1.bf16.msra.mxu0 %v8823
        %9644 = vmatprep.subr.bf16.mxu0 0
        %9645 = vmatpush1.bf16.msra.mxu0 %v8826
        %9646 = vmatprep.subr.bf16.mxu0 0
        %9647 = vmatpush1.bf16.msra.mxu0 %v8829
        %9648 = vmatprep.subr.bf16.mxu0 0
        %9649 = vmatpush1.bf16.msra.mxu0 %v8832
        %9650 = vmatprep.subr.bf16.mxu0 0
        %9651 = vmatpush1.bf16.msra.mxu0 %v8835
        %9652 = vmatprep.subr.bf16.mxu0 0
        %9653 = vmatpush1.bf16.msra.mxu0 %v8838
        %9654 = vmatprep.subr.bf16.mxu0 0
        %9655 = vmatpush1.bf16.msra.mxu0 %v8841
        %9656 = vmatprep.subr.bf16.mxu0 0
        %9657 = vmatpush1.bf16.msra.mxu0 %v8844
        %9658 = vmatprep.subr.bf16.mxu0 0
        %9659 = vmatpush1.bf16.msra.mxu0 %v8847
        %9660 = vmatprep.subr.bf16.mxu0 0
        %9661 = vmatpush1.bf16.msra.mxu0 %v8850
        %9662 = vmatprep.mubr.bf16.mxu0 %v7385
        %9663 = vmatmul.mubr.bf16.gmra.mrb[0].mxu0 %v7384
        %v9664 = vpop.f32.mrb[0].mxu0
        %v9665 = vadd.f32 %v9624, %v9664
        %v9666 = vpop.f32.mrb[0].mxu0
        %v9667 = vpop.f32.mrb[0].mxu0
        %v9668 = vadd.f32 %v9627, %v9667
        %v9669 = vpop.f32.mrb[0].mxu0
        %9670 = vdwg.mxu0
        %9671 = vmatprep.subr.bf16.mxu0 0
        %9672 = vmatpush1.bf16.msra.mxu0 %v8853
        %9673 = vmatprep.subr.bf16.mxu0 0
        %9674 = vmatpush1.bf16.msra.mxu0 %v8856
        %9675 = vmatprep.subr.bf16.mxu0 0
        %9676 = vmatpush1.bf16.msra.mxu0 %v8859
        %9677 = vmatprep.subr.bf16.mxu0 0
        %9678 = vmatpush1.bf16.msra.mxu0 %v8862
        %9679 = vmatprep.subr.bf16.mxu0 0
        %9680 = vmatpush1.bf16.msra.mxu0 %v8865
        %9681 = vmatprep.subr.bf16.mxu0 0
        %9682 = vmatpush1.bf16.msra.mxu0 %v8868
        %9683 = vmatprep.subr.bf16.mxu0 0
        %9684 = vmatpush1.bf16.msra.mxu0 %v8871
        %9685 = vmatprep.subr.bf16.mxu0 0
        %9686 = vmatpush1.bf16.msra.mxu0 %v8874
        %9687 = vmatprep.subr.bf16.mxu0 0
        %9688 = vmatpush1.bf16.msra.mxu0 %v8877
        %9689 = vmatprep.subr.bf16.mxu0 0
        %9690 = vmatpush1.bf16.msra.mxu0 %v8880
        %9691 = vmatprep.subr.bf16.mxu0 0
        %9692 = vmatpush1.bf16.msra.mxu0 %v8883
        %9693 = vmatprep.subr.bf16.mxu0 0
        %9694 = vmatpush1.bf16.msra.mxu0 %v8886
        %9695 = vmatprep.subr.bf16.mxu0 0
        %9696 = vmatpush1.bf16.msra.mxu0 %v8889
        %9697 = vmatprep.subr.bf16.mxu0 0
        %9698 = vmatpush1.bf16.msra.mxu0 %v8892
        %9699 = vmatprep.subr.bf16.mxu0 0
        %9700 = vmatpush1.bf16.msra.mxu0 %v8895
        %9701 = vmatprep.subr.bf16.mxu0 0
        %9702 = vmatpush1.bf16.msra.mxu0 %v8898
        %9703 = vmatprep.mubr.bf16.mxu0 %v7387
        %9704 = vmatmul.mubr.bf16.gmra.mrb[0].mxu0 %v7386
        %v9705 = vpop.f32.mrb[0].mxu0
        %v9706 = vadd.f32 %v9665, %v9705
        %v9707 = vpop.f32.mrb[0].mxu0
        %v9708 = vpop.f32.mrb[0].mxu0
        %v9709 = vadd.f32 %v9668, %v9708
        %v9710 = vpop.f32.mrb[0].mxu0
        %9711 = vdwg.mxu0
        %9712 = vmatprep.subr.bf16.mxu0 0
        %9713 = vmatpush1.bf16.msra.mxu0 %v8901
        %9714 = vmatprep.subr.bf16.mxu0 0
        %9715 = vmatpush1.bf16.msra.mxu0 %v8904
        %9716 = vmatprep.subr.bf16.mxu0 0
        %9717 = vmatpush1.bf16.msra.mxu0 %v8907
        %9718 = vmatprep.subr.bf16.mxu0 0
        %9719 = vmatpush1.bf16.msra.mxu0 %v8910
        %9720 = vmatprep.subr.bf16.mxu0 0
        %9721 = vmatpush1.bf16.msra.mxu0 %v8913
        %9722 = vmatprep.subr.bf16.mxu0 0
        %9723 = vmatpush1.bf16.msra.mxu0 %v8916
        %9724 = vmatprep.subr.bf16.mxu0 0
        %9725 = vmatpush1.bf16.msra.mxu0 %v8919
        %9726 = vmatprep.subr.bf16.mxu0 0
        %9727 = vmatpush1.bf16.msra.mxu0 %v8922
        %9728 = vmatprep.subr.bf16.mxu0 0
        %9729 = vmatpush1.bf16.msra.mxu0 %v8925
        %9730 = vmatprep.subr.bf16.mxu0 0
        %9731 = vmatpush1.bf16.msra.mxu0 %v8928
        %9732 = vmatprep.subr.bf16.mxu0 0
        %9733 = vmatpush1.bf16.msra.mxu0 %v8931
        %9734 = vmatprep.subr.bf16.mxu0 0
        %9735 = vmatpush1.bf16.msra.mxu0 %v8934
        %9736 = vmatprep.subr.bf16.mxu0 0
        %9737 = vmatpush1.bf16.msra.mxu0 %v8937
        %9738 = vmatprep.subr.bf16.mxu0 0
        %9739 = vmatpush1.bf16.msra.mxu0 %v8940
        %9740 = vmatprep.subr.bf16.mxu0 0
        %9741 = vmatpush1.bf16.msra.mxu0 %v8943
        %9742 = vmatprep.subr.bf16.mxu0 0
        %9743 = vmatpush1.bf16.msra.mxu0 %v8946
        %9744 = vmatprep.mubr.bf16.mxu0 %v7389
        %9745 = vmatmul.mubr.bf16.gmra.mrb[0].mxu0 %v7388
        %v9746 = vpop.f32.mrb[0].mxu0
        %v9747 = vadd.f32 %v9706, %v9746
        %v9748 = vpop.f32.mrb[0].mxu0
        %v9749 = vpop.f32.mrb[0].mxu0
        %v9750 = vadd.f32 %v9709, %v9749
        %v9751 = vpop.f32.mrb[0].mxu0
        %9752 = vdwg.mxu0
        %9753 = vmatprep.subr.bf16.mxu0 0
        %9754 = vmatpush1.bf16.msra.mxu0 %v8949
        %9755 = vmatprep.subr.bf16.mxu0 0
        %9756 = vmatpush1.bf16.msra.mxu0 %v8952
        %9757 = vmatprep.subr.bf16.mxu0 0
        %9758 = vmatpush1.bf16.msra.mxu0 %v8955
        %9759 = vmatprep.subr.bf16.mxu0 0
        %9760 = vmatpush1.bf16.msra.mxu0 %v8958
        %9761 = vmatprep.subr.bf16.mxu0 0
        %9762 = vmatpush1.bf16.msra.mxu0 %v8961
        %9763 = vmatprep.subr.bf16.mxu0 0
        %9764 = vmatpush1.bf16.msra.mxu0 %v8964
        %9765 = vmatprep.subr.bf16.mxu0 0
        %9766 = vmatpush1.bf16.msra.mxu0 %v8967
        %9767 = vmatprep.subr.bf16.mxu0 0
        %9768 = vmatpush1.bf16.msra.mxu0 %v8970
        %9769 = vmatprep.subr.bf16.mxu0 0
        %9770 = vmatpush1.bf16.msra.mxu0 %v8973
        %9771 = vmatprep.subr.bf16.mxu0 0
        %9772 = vmatpush1.bf16.msra.mxu0 %v8976
        %9773 = vmatprep.subr.bf16.mxu0 0
        %9774 = vmatpush1.bf16.msra.mxu0 %v8979
        %9775 = vmatprep.subr.bf16.mxu0 0
        %9776 = vmatpush1.bf16.msra.mxu0 %v8982
        %9777 = vmatprep.subr.bf16.mxu0 0
        %9778 = vmatpush1.bf16.msra.mxu0 %v8985
        %9779 = vmatprep.subr.bf16.mxu0 0
        %9780 = vmatpush1.bf16.msra.mxu0 %v8988
        %9781 = vmatprep.subr.bf16.mxu0 0
        %9782 = vmatpush1.bf16.msra.mxu0 %v8991
        %9783 = vmatprep.subr.bf16.mxu0 0
        %9784 = vmatpush1.bf16.msra.mxu0 %v8994
        %9785 = vmatprep.mubr.bf16.mxu0 %v7391
        %9786 = vmatmul.mubr.bf16.gmra.mrb[0].mxu0 %v7390
        %v9787 = vpop.f32.mrb[0].mxu0
        %v9788 = vadd.f32 %v9747, %v9787
        %v9789 = vpop.f32.mrb[0].mxu0
        %v9790 = vpop.f32.mrb[0].mxu0
        %v9791 = vadd.f32 %v9750, %v9790
        %v9792 = vpop.f32.mrb[0].mxu0
        %9793 = vdwg.mxu0
        %9794 = vmatprep.subr.bf16.mxu0 0
        %9795 = vmatpush1.bf16.msra.mxu0 %v8997
        %9796 = vmatprep.subr.bf16.mxu0 0
        %9797 = vmatpush1.bf16.msra.mxu0 %v9000
        %9798 = vmatprep.subr.bf16.mxu0 0
        %9799 = vmatpush1.bf16.msra.mxu0 %v9003
        %9800 = vmatprep.subr.bf16.mxu0 0
        %9801 = vmatpush1.bf16.msra.mxu0 %v9006
        %9802 = vmatprep.subr.bf16.mxu0 0
        %9803 = vmatpush1.bf16.msra.mxu0 %v9009
        %9804 = vmatprep.subr.bf16.mxu0 0
        %9805 = vmatpush1.bf16.msra.mxu0 %v9012
        %9806 = vmatprep.subr.bf16.mxu0 0
        %9807 = vmatpush1.bf16.msra.mxu0 %v9015
        %9808 = vmatprep.subr.bf16.mxu0 0
        %9809 = vmatpush1.bf16.msra.mxu0 %v9018
        %9810 = vmatprep.subr.bf16.mxu0 0
        %9811 = vmatpush1.bf16.msra.mxu0 %v9021
        %9812 = vmatprep.subr.bf16.mxu0 0
        %9813 = vmatpush1.bf16.msra.mxu0 %v9024
        %9814 = vmatprep.subr.bf16.mxu0 0
        %9815 = vmatpush1.bf16.msra.mxu0 %v9027
        %9816 = vmatprep.subr.bf16.mxu0 0
        %9817 = vmatpush1.bf16.msra.mxu0 %v9030
        %9818 = vmatprep.subr.bf16.mxu0 0
        %9819 = vmatpush1.bf16.msra.mxu0 %v9033
        %9820 = vmatprep.subr.bf16.mxu0 0
        %9821 = vmatpush1.bf16.msra.mxu0 %v9036
        %9822 = vmatprep.subr.bf16.mxu0 0
        %9823 = vmatpush1.bf16.msra.mxu0 %v9039
        %9824 = vmatprep.subr.bf16.mxu0 0
        %9825 = vmatpush1.bf16.msra.mxu0 %v9042
        %9826 = vmatprep.mubr.bf16.mxu0 %v7393
        %9827 = vmatmul.mubr.bf16.gmra.mrb[0].mxu0 %v7392
        %v9828 = vpop.f32.mrb[0].mxu0
        %v9829 = vadd.f32 %v9788, %v9828
        %v9830 = vpop.f32.mrb[0].mxu0
        %v9831 = vpop.f32.mrb[0].mxu0
        %v9832 = vadd.f32 %v9791, %v9831
        %v9833 = vpop.f32.mrb[0].mxu0
        %9834 = vdwg.mxu0
        %v9835 = vadd.f32 %v5041, %v9581
        %v9836 = vadd.f32 %v5042, %v9583
        %v9837 = vadd.f32 %v5043, %v9829
        %v9838 = vadd.f32 %v5044, %v9585
        %v9839 = vadd.f32 %v5045, %v9587
        %v9840 = vadd.f32 %v5046, %v9832
        %v9841 = vld [vmem:[%s737] sm:$0x7]
        %v9842 = vld [vmem:[%s746] sm:$0x7]
        %v9843 = vadd.f32 %v9835, %v9836
        %v9844 = vadd.f32 %v9843, %v9837
        %9845 = vadd.xlane.f32.xlu0 %v9844
        %v9846 = vpop.xlane.xlu0 %9845
        %v9847 = vadd.f32 %v9838, %v9839
        %v9848 = vadd.f32 %v9847, %v9840
        %9849 = vadd.xlane.f32.xlu0 %v9848
        %v9850 = vpop.xlane.xlu0 %9849
        %v9851 = vmul.f32 %v9846, %v4968
        %v9852 = vmul.f32 %v9850, %v4968
        %v9853 = vsub.f32 %v9835, %v9851
        %v9854 = vsub.f32 %v9836, %v9851
        %v9855 = vsub.f32 %v9837, %v9851
        %v9856 = vsub.f32 %v9838, %v9852
        %v9857 = vsub.f32 %v9839, %v9852
        %v9858 = vsub.f32 %v9840, %v9852
        %v9859 = vmul.f32 %v9853, %v9853
        %v9860 = vmul.f32 %v9854, %v9854
        %v9861 = vmul.f32 %v9855, %v9855
        %v9862 = vmul.f32 %v9856, %v9856
        %v9863 = vmul.f32 %v9857, %v9857
        %v9864 = vmul.f32 %v9858, %v9858
        %v9865 = vadd.f32 %v9859, %v9860
        %v9866 = vadd.f32 %v9865, %v9861
        %9867 = vadd.xlane.f32.xlu0 %v9866
        %v9868 = vpop.xlane.xlu0 %9867
        %v9869 = vadd.f32 %v9862, %v9863
        %v9870 = vadd.f32 %v9869, %v9864
        %9871 = vadd.xlane.f32.xlu0 %v9870
        %v9872 = vpop.xlane.xlu0 %9871
        %v9873 = vmul.f32 %v9868, %v4968
        %v9874 = vmul.f32 %v9872, %v4968
        %v9875 = vadd.f32 %v9873, 1e-05
        %v9876 = vadd.f32 %v9874, 1e-05
        %v9877 = vrsqrt.pop %v9875
        %v9878 = vrsqrt.pop %v9876
        %v9879 = vmul.f32 %v9853, %v9877
        %v9880 = vmul.f32 %v9854, %v9877
        %v9881 = vmul.f32 %v9855, %v9877
        %v9882 = vmul.f32 %v9856, %v9878
        %v9883 = vmul.f32 %v9857, %v9878
        %v9884 = vmul.f32 %v9858, %v9878
        %v9886 = vlaneseq
        %v9887 = vshrl.u32 %v9886, 7
        %v9888 = vsub.s32 0, %v9887
        %v9889 = vrot.slane %v9841, %v9888
        %v9890 = vlaneseq
        %v9891 = vshrl.u32 %v9890, 7
        %v9892 = vsub.s32 1, %v9891
        %v9893 = vrot.slane %v9841, %v9892
        %v9894 = vlaneseq
        %v9895 = vshrl.u32 %v9894, 7
        %v9896 = vsub.s32 2, %v9895
        %v9897 = vrot.slane %v9841, %v9896
        %v9901 = vmul.f32 %v9879, %v9889
        %v9902 = vmul.f32 %v9880, %v9893
        %v9903 = vmul.f32 %v9881, %v9897
        %v9904 = vmul.f32 %v9882, %v9889
        %v9905 = vmul.f32 %v9883, %v9893
        %v9906 = vmul.f32 %v9884, %v9897
        %v9908 = vlaneseq
        %v9909 = vshrl.u32 %v9908, 7
        %v9910 = vsub.s32 0, %v9909
        %v9911 = vrot.slane %v9842, %v9910
        %v9912 = vlaneseq
        %v9913 = vshrl.u32 %v9912, 7
        %v9914 = vsub.s32 1, %v9913
        %v9915 = vrot.slane %v9842, %v9914
        %v9916 = vlaneseq
        %v9917 = vshrl.u32 %v9916, 7
        %v9918 = vsub.s32 2, %v9917
        %v9919 = vrot.slane %v9842, %v9918
        %v9923 = vadd.f32 %v9901, %v9911
        %v9924 = vadd.f32 %v9902, %v9915
        %v9925 = vadd.f32 %v9903, %v9919
        %v9926 = vadd.f32 %v9904, %v9911
        %v9927 = vadd.f32 %v9905, %v9915
        %v9928 = vadd.f32 %v9906, %v9919
        %9929 = vst [vmem:[#allocation2] sm:$0xff] %v9923
        %9930 = vst [vmem:[#allocation2 + $0x8] sm:$0xff] %v9924
        %9931 = vst [vmem:[#allocation2 + $0x10] sm:$0xff] %v9925
        %9932 = vst [vmem:[#allocation2 + $0x18] sm:$0xff] %v9926
        %9933 = vst [vmem:[#allocation2 + $0x20] sm:$0xff] %v9927
        %9934 = vst [vmem:[#allocation2 + $0x28] sm:$0xff] %v9928
        %p9935 = scmp.eq.s32.totalorder %s48, 3
        // Predicated region
        $region121: #{tpu_custom_call.1} parent=67 // pred_check
          %p9936 = pneg %p9935
        $region122: #{tpu_custom_call.1} parent=67 // pred_check_branch
          %9938 = sbr.rel (%p9936) target = $region124
        $region123: #{tpu_custom_call.1} parent=67 // pred_region
          %v9939 = vld [vmem:[#allocation2] sm:$0xff]
          %v9940 = vld [vmem:[#allocation2 + $0x8] sm:$0xff]
          %v9941 = vld [vmem:[#allocation2 + $0x10] sm:$0xff]
          %v9942 = vld [vmem:[#allocation2 + $0x18] sm:$0xff]
          %v9943 = vld [vmem:[#allocation2 + $0x20] sm:$0xff]
          %v9944 = vld [vmem:[#allocation2 + $0x28] sm:$0xff]
          %9945 = vst [vmem:[#allocation23] sm:$0xff] %v9939
          %9946 = vst [vmem:[#allocation23 + $0x8] sm:$0xff] %v9940
          %9947 = vst [vmem:[#allocation23 + $0x10] sm:$0xff] %v9941
          %9948 = vst [vmem:[#allocation23 + $0x18] sm:$0xff] %v9942
          %9949 = vst [vmem:[#allocation23 + $0x20] sm:$0xff] %v9943
          %9950 = vst [vmem:[#allocation23 + $0x28] sm:$0xff] %v9944
        $region124: #{tpu_custom_call.1} parent=67 // pred_fallthru
          _
        // Predicated region
        $region125: #{tpu_custom_call.1} parent=67 // pred_check
          %p9951 = pneg %p385
        $region126: #{tpu_custom_call.1} parent=67 // pred_check_branch
          %9953 = sbr.rel (%p9951) target = $region128
        $region127: #{tpu_custom_call.1} parent=67 // pred_region
          %s9954 = smul.u32 2, %s47
          %s9956 = ssub.s32 768, 768
          %9957 = vsyncadd [#allocation5], %s9956
          %s9958 = smul.addr %s9954, 3
          %s9959 = smul.addr %s9958, 128
          %s9960 = scalar_lea.hbm %s12, %s9959
          %s9961 = sshll.u32 [#allocation23], 4
          %s9962 = int_to_ptr.vmem [resolvable:$true] %s9961
          %9967 = dma.vmem_to_hbm [thread:$0]  %s9962, 768, %s9960, [#allocation5], 384, 384, 24
        $region128: #{tpu_custom_call.1} parent=67 // pred_fallthru
          _
        // Predicated region
        $region129: #{tpu_custom_call.1} parent=67 // pred_check
          %p9968 = pneg %p385
        $region130: #{tpu_custom_call.1} parent=67 // pred_check_branch
          %9970 = sbr.rel (%p9968) target = $region132
        $region131: #{tpu_custom_call.1} parent=67 // pred_region
          %9971 = dma.done [#allocation5], 768
        $region132: #{tpu_custom_call.1} parent=67 // pred_fallthru
          _
      $region68: #{tpu_custom_call.1} parent=5 // pred_fallthru
        _
      %p9972 = scmp.le.s32.totalorder 2, %s38
      // Predicated region
      $region133: #{tpu_custom_call.1} parent=5 // pred_check
        %p9973 = pneg %p9972
      $region134: #{tpu_custom_call.1} parent=5 // pred_check_branch
        %9975 = sbr.rel (%p9973) target = $region136
      $region135: #{tpu_custom_call.1} parent=5 // pred_region
        %s9976 = ssub.s32 %s38, 2
      $region136: #{tpu_custom_call.1} parent=5 // pred_fallthru
        _
    $region6: #{tpu_custom_call.1} parent=1 // loop_footer
      %s42 = sadd.s32 1, %s38
    $region7: #{tpu_custom_call.1} parent=1 // loop_footer_branch
      %37 = sbr.rel target = $region3
    $region8: #{tpu_custom_call.1} parent=1 // loop_exit
      _
    %9977 = vsyncpa [#allocation4], 1
    %s9978 = scalar_lea.sflag [#allocation4], 1
    %9979 = vsyncpa %s9978, 1
    %9980 = vsyncpa [#allocation7], 1
    %s9981 = scalar_lea.sflag [#allocation7], 1
    %9982 = vsyncpa %s9981, 1
    %9983 = vsyncpa [#allocation10], 1
    %s9984 = scalar_lea.sflag [#allocation10], 1
    %9985 = vsyncpa %s9984, 1
    %9986 = vsyncpa [#allocation13], 1
    %s9987 = scalar_lea.sflag [#allocation13], 1
    %9988 = vsyncpa %s9987, 1
    %9989 = vsyncpa [#allocation16], 1
    %s9990 = scalar_lea.sflag [#allocation16], 1
    %9991 = vsyncpa %s9990, 1
    %9992 = vsyncpa [#allocation19], 1
    %s9993 = scalar_lea.sflag [#allocation19], 1
    %9994 = vsyncpa %s9993, 1
    %9995 = vsyncpa [#allocation22], 1
    %s9996 = scalar_lea.sflag [#allocation22], 1
    %9997 = vsyncpa %s9996, 1
    %9998 = vsyncpa [#allocation5], 1
    %s9999 = scalar_lea.sflag [#allocation5], 1
    %10000 = vsyncpa %s9999, 1

</llo_original>
